<compile_context>
chip_gen: v6e
topology: v6e:2x2x1
jax: 0.10.0
libtpu: 0.0.40
codegen_flags: <defaults>
</compile_context>

<pallas_src>
import math
from functools import partial

import jax
import jax.numpy as jnp
from jax import lax
from jax.experimental import pallas as pl
from jax.experimental.pallas import tpu as pltpu  # noqa: F401  (TPU backend; kept for completeness)

F32 = jnp.float32


# ----------------------------------------------------------------------------
# One-time parameter preparation (outside the kernel):
#   - transpose every Linear weight to (in_features, out_features)
#   - reshape biases / LN params to (1, N) rows
#   - fold eval-mode BatchNorm1d (running stats) into the preceding Linear
#   - split attention in_proj / out_proj into per-head weight slabs
#   - reshape fc1 weight into per-token (E, width) slabs (flatten fold)
# ----------------------------------------------------------------------------
def prepare_params(params, num_heads, eps=1e-5):
    H = num_heads
    E = params["emb_w"].shape[0]
    Dh = E // H
    S = params["fc1_w"].shape[1] // E          # seq_len implied by fc1 in_features

    def t(w):
        return jnp.asarray(w, F32).T

    def row(b):
        return jnp.asarray(b, F32).reshape(1, -1)

    def fold_bn(w, b, bn):
        gamma, beta, mean, var = (jnp.asarray(a, F32) for a in bn)
        scale = gamma * lax.rsqrt(var + eps)           # (N,)
        shift = beta - mean * scale
        return t(w) * scale[None, :], row(jnp.asarray(b, F32) * scale + shift)

    def split_heads_in(w_block, b_block):
        # torch layout: q = x @ w_block.T + b_block, w_block (E_out, E_in)
        w = jnp.asarray(w_block, F32).reshape(H, Dh, E).transpose(0, 2, 1)   # (H, E, Dh)
        b = jnp.asarray(b_block, F32).reshape(H, 1, Dh)                      # (H, 1, Dh)
        return w, b

    p = {"emb_w": t(params["emb_w"]), "emb_b": row(params["emb_b"]), "layers": []}
    for lyr in params["layers"]:
        ipw = jnp.asarray(lyr["in_proj_w"], F32)
        ipb = jnp.asarray(lyr["in_proj_b"], F32)
        q_w, q_b = split_heads_in(ipw[0:E], ipb[0:E])
        k_w, k_b = split_heads_in(ipw[E:2 * E], ipb[E:2 * E])
        v_w, v_b = split_heads_in(ipw[2 * E:3 * E], ipb[2 * E:3 * E])
        out_w = t(lyr["out_w"]).reshape(H, Dh, E)        # per-head rows of W_out^T
        p["layers"].append({
            "ln1_g": row(lyr["ln1_g"]), "ln1_b": row(lyr["ln1_b"]),
            "q_w": q_w, "q_b": q_b, "k_w": k_w, "k_b": k_b, "v_w": v_w, "v_b": v_b,
            "out_w": out_w, "out_b": row(lyr["out_b"]),
            "ln2_g": row(lyr["ln2_g"]), "ln2_b": row(lyr["ln2_b"]),
            "ff1_w": t(lyr["ff1_w"]), "ff1_b": row(lyr["ff1_b"]),
            "ff2_w": t(lyr["ff2_w"]), "ff2_b": row(lyr["ff2_b"]),
        })
    fc1_w, fc1_b = fold_bn(params["fc1_w"], params["fc1_b"], params["bn1"])
    width = fc1_w.shape[1]
    p["fc1_w"] = fc1_w.reshape(S, E, width)              # per-token weight slabs
    p["fc1_b"] = fc1_b
    p["fc2_w"], p["fc2_b"] = fold_bn(params["fc2_w"], params["fc2_b"], params["bn2"])
    p["fc3_w"], p["fc3_b"] = fold_bn(params["fc3_w"], params["fc3_b"], params["bn3"])
    p["fc4_w"], p["fc4_b"] = fold_bn(params["fc4_w"], params["fc4_b"], params["bn4"])
    p["fc5_w"], p["fc5_b"] = t(params["fc5_w"]), row(params["fc5_b"])
    return p


# ------------------------------ in-kernel helpers -----------------------------
def _layernorm(x, g, b, eps=1e-5):
    mu = jnp.mean(x, axis=-1, keepdims=True)
    var = jnp.mean(jnp.square(x - mu), axis=-1, keepdims=True)
    return (x - mu) * lax.rsqrt(var + eps) * g + b


def _tree_sum(parts):
    """Sum a list of same-shaped arrays with a balanced tree (short dep chain)."""
    parts = list(parts)
    while len(parts) > 1:
        nxt = [parts[i] + parts[i + 1] for i in range(0, len(parts) - 1, 2)]
        if len(parts) % 2:
            nxt.append(parts[-1])
        parts = nxt
    return parts[0]


# Exact-erf GELU via Abramowitz & Stegun 7.1.26 (max abs err 1.5e-7).
# Uses only exp / div / mul / where — all guaranteed Mosaic lowerings.
_A1, _A2, _A3, _A4, _A5 = 0.254829592, -0.284496736, 1.421413741, -1.453152027, 1.061405429
_P_ERF = 0.3275911
_INV_SQRT2 = 0.7071067811865476


def _gelu_erf(x):
    z = x * _INV_SQRT2
    az = jnp.abs(z)
    t = 1.0 / (1.0 + _P_ERF * az)
    poly = ((((_A5 * t + _A4) * t + _A3) * t + _A2) * t + _A1) * t
    erf_abs = 1.0 - poly * jnp.exp(-az * az)
    erf = jnp.where(z >= 0.0, erf_abs, -erf_abs)
    return 0.5 * x * (1.0 + erf)


# ----------------------------------------------------------------------------
# Fully fused forward: ONE grid-less pallas_call for the whole batch.
# ----------------------------------------------------------------------------
def dqn_forward(prepped, state, num_heads):
    if state.ndim == 2:                 # (S, F) -> add batch dim (unsqueeze)
        state = state[None]
    state = state.astype(F32)
    B, S, F_IN = state.shape
    E = prepped["emb_w"].shape[1]
    H = num_heads
    Dh = E // H
    A = prepped["fc5_w"].shape[1]
    scale = 1.0 / math.sqrt(Dh)

    flat_params, treedef = jax.tree_util.tree_flatten(prepped)
    x2d = state.reshape(B * S, F_IN)    # merge batch & seq outside the kernel

    def kernel(x_ref, *refs):
        o_ref = refs[-1]                                # (B, A)
        p = jax.tree_util.tree_unflatten(treedef, list(refs[:-1]))

        # ---- embedding: Linear(F_IN -> E), all B*S tokens at once -----------
        x = jnp.dot(x_ref[...], p["emb_w"][...],
                    preferred_element_type=F32) + p["emb_b"][...]      # (B*S, E)

        # ---- TransformerEncoder (norm_first, gelu, eval: dropout off) -------
        for lyr in p["layers"]:
            h = _layernorm(x, lyr["ln1_g"][...], lyr["ln1_b"][...])

            # per-head q/k/v from pre-split weight slabs (M = B*S matmuls);
            # no lane-slicing of activations anywhere.
            q_heads, k_heads, v_heads, ow_heads = [], [], [], []
            for hd in range(H):
                q_heads.append(jnp.dot(h, lyr["q_w"][hd],
                                       preferred_element_type=F32) + lyr["q_b"][hd])
                k_heads.append(jnp.dot(h, lyr["k_w"][hd],
                                       preferred_element_type=F32) + lyr["k_b"][hd])
                v_heads.append(jnp.dot(h, lyr["v_w"][hd],
                                       preferred_element_type=F32) + lyr["v_b"][hd])
                ow_heads.append(lyr["out_w"][hd])                       # (Dh, E)

            sample_blocks = []
            for b in range(B):
                r0 = b * S                                # tile-aligned row slice
                head_parts = []
                for hd in range(H):
                    qh = q_heads[hd][r0:r0 + S, :]
                    kh = k_heads[hd][r0:r0 + S, :]
                    vh = v_heads[hd][r0:r0 + S, :]
                    sc = lax.dot_general(qh, kh, (((1,), (1,)), ((), ())),
                                         preferred_element_type=F32) * scale   # (S, S)
                    sc = sc - jnp.max(sc, axis=-1, keepdims=True)
                    es = jnp.exp(sc)
                    pr = es * pl.reciprocal(jnp.sum(es, axis=-1, keepdims=True),
                                            approx=True)
                    ah = jnp.dot(pr, vh, preferred_element_type=F32)            # (S, Dh)
                    # concat-over-heads folded into per-head output projections:
                    head_parts.append(jnp.dot(ah, ow_heads[hd],
                                              preferred_element_type=F32))      # (S, E)
                sample_blocks.append(_tree_sum(head_parts))
            attn = sample_blocks[0] if B == 1 else jnp.concatenate(sample_blocks, axis=0)
            x = x + attn + lyr["out_b"][...]

            # feed-forward block: x = x + W2(gelu(W1(LN2(x))))
            h = _layernorm(x, lyr["ln2_g"][...], lyr["ln2_b"][...])
            h = _gelu_erf(jnp.dot(h, lyr["ff1_w"][...],
                                  preferred_element_type=F32) + lyr["ff1_b"][...])
            x = x + jnp.dot(h, lyr["ff2_w"][...],
                            preferred_element_type=F32) + lyr["ff2_b"][...]

        # ---- flatten(start_dim=1) + fc1 (BN folded) -------------------------
        # per-(sample, token) partial matmuls, tree-summed (no in-kernel reshape,
        # no serial accumulation chain).
        y_rows = []
        for b in range(B):
            parts = [jnp.dot(x[b * S + si:b * S + si + 1, :], p["fc1_w"][si],
                             preferred_element_type=F32) for si in range(S)]
            y_rows.append(_tree_sum(parts))                       # (1, width)
        y = y_rows[0] if B == 1 else jnp.concatenate(y_rows, axis=0)   # (B, width)
        y = jnp.maximum(y + p["fc1_b"][...], 0.0)

        # ---- MLP head (BN folded, ReLU fused), M = B matmuls ----------------
        y = jnp.maximum(jnp.dot(y, p["fc2_w"][...],
                                preferred_element_type=F32) + p["fc2_b"][...], 0.0)
        y = jnp.maximum(jnp.dot(y, p["fc3_w"][...],
                                preferred_element_type=F32) + p["fc3_b"][...], 0.0)
        y = jnp.maximum(jnp.dot(y, p["fc4_w"][...],
                                preferred_element_type=F32) + p["fc4_b"][...], 0.0)
        o_ref[...] = jnp.dot(y, p["fc5_w"][...],
                             preferred_element_type=F32) + p["fc5_b"][...]

    # Grid-less call: every input (state slab + ~300 KB of weights) lives
    # whole-array in VMEM, single invocation, single (B, A) output store.
    out = pl.pallas_call(
        kernel,
        out_shape=jax.ShapeDtypeStruct((B, A), F32),
    )(x2d, *flat_params)
    return out


# ----------------------------------------------------------------------------
# Pure-JAX reference (mirrors the PyTorch eval-mode forward, un-prepped params)
# ----------------------------------------------------------------------------
def dqn_reference(params, state, num_heads):
    if state.ndim == 2:
        state = state[None]
    B, S, F_IN = state.shape
    E = params["emb_w"].shape[0]
    H, Dh = num_heads, E // num_heads

    def ln(v, g, b):
        mu = v.mean(-1, keepdims=True)
        var = ((v - mu) ** 2).mean(-1, keepdims=True)
        return (v - mu) / jnp.sqrt(var + 1e-5) * g + b

    x = state.reshape(B * S, F_IN) @ params["emb_w"].T + params["emb_b"]
    for lyr in params["layers"]:
        h = ln(x, lyr["ln1_g"], lyr["ln1_b"])
        qkv = h @ lyr["in_proj_w"].T + lyr["in_proj_b"]
        q, k, v = jnp.split(qkv, 3, axis=-1)
        hd = lambda t: t.reshape(B, S, H, Dh).transpose(0, 2, 1, 3)
        q, k, v = hd(q), hd(k), hd(v)
        s = jnp.einsum("bhqd,bhkd->bhqk", q, k) / math.sqrt(Dh)
        a = jnp.einsum("bhqk,bhkd->bhqd", jax.nn.softmax(s, axis=-1), v)
        a = a.transpose(0, 2, 1, 3).reshape(B * S, E)
        x = x + a @ lyr["out_w"].T + lyr["out_b"]
        h = ln(x, lyr["ln2_g"], lyr["ln2_b"])
        h = jax.nn.gelu(h @ lyr["ff1_w"].T + lyr["ff1_b"], approximate=False)
        x = x + h @ lyr["ff2_w"].T + lyr["ff2_b"]
    x = x.reshape(B, S * E)

    def bn_relu(v, bn):
        g, b, m, var = bn
        return jnp.maximum((v - m) / jnp.sqrt(var + 1e-5) * g + b, 0.0)

    x = bn_relu(x @ params["fc1_w"].T + params["fc1_b"], params["bn1"])
    x = bn_relu(x @ params["fc2_w"].T + params["fc2_b"], params["bn2"])
    x = bn_relu(x @ params["fc3_w"].T + params["fc3_b"], params["bn3"])
    x = bn_relu(x @ params["fc4_w"].T + params["fc4_b"], params["bn4"])
    return x @ params["fc5_w"].T + params["fc5_b"]


# ----------------------------------------------------------------------------
# Deterministic parameter initialization (synthetic; shapes from __init__)
# ----------------------------------------------------------------------------
def init_params(key, seq_len, num_actions, embedding_dim, num_heads,
                num_enc_layers, width):
    F_IN = 80                   # module hard-codes self.num_states = 80
    E = embedding_dim
    keys = iter(jax.random.split(key, 512))

    def w(shape, scale=0.05):
        return (scale * jax.random.normal(next(keys), shape)).astype(jnp.float32)

    def bn(n):
        return (1.0 + w((n,)), w((n,)), w((n,)),
                1.0 + 0.5 * jax.random.uniform(next(keys), (n,), dtype=jnp.float32))

    params = {"emb_w": w((E, F_IN)), "emb_b": w((E,)), "layers": []}
    for _ in range(num_enc_layers):
        params["layers"].append({
            "ln1_g": 1.0 + w((E,)), "ln1_b": w((E,)),
            "in_proj_w": w((3 * E, E)), "in_proj_b": w((3 * E,)),
            "out_w": w((E, E)), "out_b": w((E,)),
            "ln2_g": 1.0 + w((E,)), "ln2_b": w((E,)),
            "ff1_w": w((width, E)), "ff1_b": w((width,)),
            "ff2_w": w((E, width)), "ff2_b": w((E,)),
        })
    params["fc1_w"] = w((width, seq_len * E)); params["fc1_b"] = w((width,))
    params["bn1"] = bn(width)
    params["fc2_w"] = w((width, width)); params["fc2_b"] = w((width,))
    params["bn2"] = bn(width)
    params["fc3_w"] = w((width // 2, width)); params["fc3_b"] = w((width // 2,))
    params["bn3"] = bn(width // 2)
    params["fc4_w"] = w((width // 4, width // 2)); params["fc4_b"] = w((width // 4,))
    params["bn4"] = bn(width // 4)
    params["fc5_w"] = w((num_actions, width // 4)); params["fc5_b"] = w((num_actions,))
    return params


# ----------------------------------------------------------------------------
if __name__ == "__main__":
    # batch=2, seq (= num_states ctor arg) = 8, per-token features = 80,
    # embedding_dim=32, num_heads=4, num_enc_layers=2, width=64, num_actions=4
    B, S, F_IN = 2, 8, 80
    E, H, L, WIDTH, NUM_ACTIONS = 32, 4, 2, 64, 4

    key = jax.random.PRNGKey(0)
    pkey, xkey = jax.random.split(key)
    params = init_params(pkey, S, NUM_ACTIONS, E, H, L, WIDTH)
    state = jax.random.normal(xkey, (B, S, F_IN), dtype=jnp.float32)

    prepped = prepare_params(params, H)   # one-time: transpose, fold BN, split heads

    fwd = jax.jit(partial(dqn_forward, num_heads=H))
    q_values = fwd(prepped, state)
    jax.block_until_ready(q_values)

    q_ref = dqn_reference(params, state, H)
    assert q_values.shape == (B, NUM_ACTIONS)
    assert bool(jnp.all(jnp.isfinite(q_values)))
    assert bool(jnp.allclose(q_values, q_ref, atol=2e-3, rtol=2e-3))
    print("KERNEL_OK")
</pallas_src>

<mosaic_0001>
module attributes {stable_mosaic.version = 11 : i64} {
  func.func @kernel(%arg0: memref<16x80xf32, #tpu.memory_space<vmem>>, %arg1: memref<1x32xf32, #tpu.memory_space<vmem>>, %arg2: memref<80x32xf32, #tpu.memory_space<vmem>>, %arg3: memref<1x64xf32, #tpu.memory_space<vmem>>, %arg4: memref<8x32x64xf32, #tpu.memory_space<vmem>>, %arg5: memref<1x64xf32, #tpu.memory_space<vmem>>, %arg6: memref<64x64xf32, #tpu.memory_space<vmem>>, %arg7: memref<1x32xf32, #tpu.memory_space<vmem>>, %arg8: memref<64x32xf32, #tpu.memory_space<vmem>>, %arg9: memref<1x16xf32, #tpu.memory_space<vmem>>, %arg10: memref<32x16xf32, #tpu.memory_space<vmem>>, %arg11: memref<1x4xf32, #tpu.memory_space<vmem>>, %arg12: memref<16x4xf32, #tpu.memory_space<vmem>>, %arg13: memref<1x64xf32, #tpu.memory_space<vmem>>, %arg14: memref<32x64xf32, #tpu.memory_space<vmem>>, %arg15: memref<1x32xf32, #tpu.memory_space<vmem>>, %arg16: memref<64x32xf32, #tpu.memory_space<vmem>>, %arg17: memref<4x1x8xf32, #tpu.memory_space<vmem>>, %arg18: memref<4x32x8xf32, #tpu.memory_space<vmem>>, %arg19: memref<1x32xf32, #tpu.memory_space<vmem>>, %arg20: memref<1x32xf32, #tpu.memory_space<vmem>>, %arg21: memref<1x32xf32, #tpu.memory_space<vmem>>, %arg22: memref<1x32xf32, #tpu.memory_space<vmem>>, %arg23: memref<1x32xf32, #tpu.memory_space<vmem>>, %arg24: memref<4x8x32xf32, #tpu.memory_space<vmem>>, %arg25: memref<4x1x8xf32, #tpu.memory_space<vmem>>, %arg26: memref<4x32x8xf32, #tpu.memory_space<vmem>>, %arg27: memref<4x1x8xf32, #tpu.memory_space<vmem>>, %arg28: memref<4x32x8xf32, #tpu.memory_space<vmem>>, %arg29: memref<1x64xf32, #tpu.memory_space<vmem>>, %arg30: memref<32x64xf32, #tpu.memory_space<vmem>>, %arg31: memref<1x32xf32, #tpu.memory_space<vmem>>, %arg32: memref<64x32xf32, #tpu.memory_space<vmem>>, %arg33: memref<4x1x8xf32, #tpu.memory_space<vmem>>, %arg34: memref<4x32x8xf32, #tpu.memory_space<vmem>>, %arg35: memref<1x32xf32, #tpu.memory_space<vmem>>, %arg36: memref<1x32xf32, #tpu.memory_space<vmem>>, %arg37: memref<1x32xf32, #tpu.memory_space<vmem>>, %arg38: memref<1x32xf32, #tpu.memory_space<vmem>>, %arg39: memref<1x32xf32, #tpu.memory_space<vmem>>, %arg40: memref<4x8x32xf32, #tpu.memory_space<vmem>>, %arg41: memref<4x1x8xf32, #tpu.memory_space<vmem>>, %arg42: memref<4x32x8xf32, #tpu.memory_space<vmem>>, %arg43: memref<4x1x8xf32, #tpu.memory_space<vmem>>, %arg44: memref<4x32x8xf32, #tpu.memory_space<vmem>>, %arg45: memref<2x4xf32, #tpu.memory_space<vmem>>) attributes {dimension_semantics = [], scalar_prefetch = 0 : i64, scratch_operands = 0 : i64, tpu.core_type = #tpu.core_type<tc>} {
    %c0 = arith.constant 0 : index
    %c0_0 = arith.constant 0 : index
    %0 = vector.load %arg0[%c0, %c0_0] : memref<16x80xf32, #tpu.memory_space<vmem>>, vector<16x80xf32>
    %c0_1 = arith.constant 0 : index
    %c0_2 = arith.constant 0 : index
    %1 = vector.load %arg2[%c0_1, %c0_2] : memref<80x32xf32, #tpu.memory_space<vmem>>, vector<80x32xf32>
    %cst = arith.constant dense<0.000000e+00> : vector<16x32xf32>
    %2 = tpu.matmul %0, %1, %cst {dimension_numbers = #tpu.dot_dimension_numbers<[1], [0], [0], [1], [0, 0, 1, 1], [], []>} : vector<16x80xf32>, vector<80x32xf32>, vector<16x32xf32> -> vector<16x32xf32>
    %c0_3 = arith.constant 0 : index
    %c0_4 = arith.constant 0 : index
    %3 = vector.load %arg1[%c0_3, %c0_4] : memref<1x32xf32, #tpu.memory_space<vmem>>, vector<1x32xf32>
    %4 = vector.broadcast %3 : vector<1x32xf32> to vector<16x32xf32>
    %5 = arith.addf %2, %4 : vector<16x32xf32>
    %c0_5 = arith.constant 0 : index
    %c0_6 = arith.constant 0 : index
    %6 = vector.load %arg20[%c0_5, %c0_6] : memref<1x32xf32, #tpu.memory_space<vmem>>, vector<1x32xf32>
    %c0_7 = arith.constant 0 : index
    %c0_8 = arith.constant 0 : index
    %7 = vector.load %arg19[%c0_7, %c0_8] : memref<1x32xf32, #tpu.memory_space<vmem>>, vector<1x32xf32>
    %cst_9 = arith.constant dense<0.000000e+00> : vector<16xf32>
    %8 = vector.multi_reduction <add>, %5, %cst_9 [1] : vector<16x32xf32> to vector<16xf32>
    %9 = vector.shape_cast %8 : vector<16xf32> to vector<16x1xf32>
    %cst_10 = arith.constant 3.200000e+01 : f32
    %10 = vector.broadcast %cst_10 : f32 to vector<16x1xf32>
    %11 = arith.divf %9, %10 : vector<16x1xf32>
    %12 = vector.broadcast %11 : vector<16x1xf32> to vector<16x32xf32>
    %13 = arith.subf %5, %12 : vector<16x32xf32>
    %14 = arith.mulf %13, %13 : vector<16x32xf32>
    %cst_11 = arith.constant dense<0.000000e+00> : vector<16xf32>
    %15 = vector.multi_reduction <add>, %14, %cst_11 [1] : vector<16x32xf32> to vector<16xf32>
    %16 = vector.shape_cast %15 : vector<16xf32> to vector<16x1xf32>
    %cst_12 = arith.constant 3.200000e+01 : f32
    %17 = vector.broadcast %cst_12 : f32 to vector<16x1xf32>
    %18 = arith.divf %16, %17 : vector<16x1xf32>
    %19 = vector.broadcast %11 : vector<16x1xf32> to vector<16x32xf32>
    %20 = arith.subf %5, %19 : vector<16x32xf32>
    %cst_13 = arith.constant 9.99999974E-6 : f32
    %21 = vector.broadcast %cst_13 : f32 to vector<16x1xf32>
    %22 = arith.addf %18, %21 : vector<16x1xf32>
    %23 = math.rsqrt %22 : vector<16x1xf32>
    %24 = vector.broadcast %23 : vector<16x1xf32> to vector<16x32xf32>
    %25 = arith.mulf %20, %24 : vector<16x32xf32>
    %26 = vector.broadcast %6 : vector<1x32xf32> to vector<16x32xf32>
    %27 = arith.mulf %25, %26 : vector<16x32xf32>
    %28 = vector.broadcast %7 : vector<1x32xf32> to vector<16x32xf32>
    %29 = arith.addf %27, %28 : vector<16x32xf32>
    %c0_14 = arith.constant 0 : index
    %c0_15 = arith.constant 0 : index
    %c0_16 = arith.constant 0 : index
    %30 = vector.load %arg26[%c0_14, %c0_15, %c0_16] : memref<4x32x8xf32, #tpu.memory_space<vmem>>, vector<1x32x8xf32>
    %31 = vector.shape_cast %30 : vector<1x32x8xf32> to vector<32x8xf32>
    %cst_17 = arith.constant dense<0.000000e+00> : vector<16x8xf32>
    %32 = tpu.matmul %29, %31, %cst_17 {dimension_numbers = #tpu.dot_dimension_numbers<[1], [0], [0], [1], [0, 0, 1, 1], [], []>} : vector<16x32xf32>, vector<32x8xf32>, vector<16x8xf32> -> vector<16x8xf32>
    %c0_18 = arith.constant 0 : index
    %c0_19 = arith.constant 0 : index
    %c0_20 = arith.constant 0 : index
    %33 = vector.load %arg25[%c0_18, %c0_19, %c0_20] : memref<4x1x8xf32, #tpu.memory_space<vmem>>, vector<1x1x8xf32>
    %34 = vector.shape_cast %33 : vector<1x1x8xf32> to vector<1x8xf32>
    %35 = vector.broadcast %34 : vector<1x8xf32> to vector<16x8xf32>
    %36 = arith.addf %32, %35 : vector<16x8xf32>
    %c0_21 = arith.constant 0 : index
    %c0_22 = arith.constant 0 : index
    %c0_23 = arith.constant 0 : index
    %37 = vector.load %arg18[%c0_21, %c0_22, %c0_23] : memref<4x32x8xf32, #tpu.memory_space<vmem>>, vector<1x32x8xf32>
    %38 = vector.shape_cast %37 : vector<1x32x8xf32> to vector<32x8xf32>
    %cst_24 = arith.constant dense<0.000000e+00> : vector<16x8xf32>
    %39 = tpu.matmul %29, %38, %cst_24 {dimension_numbers = #tpu.dot_dimension_numbers<[1], [0], [0], [1], [0, 0, 1, 1], [], []>} : vector<16x32xf32>, vector<32x8xf32>, vector<16x8xf32> -> vector<16x8xf32>
    %c0_25 = arith.constant 0 : index
    %c0_26 = arith.constant 0 : index
    %c0_27 = arith.constant 0 : index
    %40 = vector.load %arg17[%c0_25, %c0_26, %c0_27] : memref<4x1x8xf32, #tpu.memory_space<vmem>>, vector<1x1x8xf32>
    %41 = vector.shape_cast %40 : vector<1x1x8xf32> to vector<1x8xf32>
    %42 = vector.broadcast %41 : vector<1x8xf32> to vector<16x8xf32>
    %43 = arith.addf %39, %42 : vector<16x8xf32>
    %c0_28 = arith.constant 0 : index
    %c0_29 = arith.constant 0 : index
    %c0_30 = arith.constant 0 : index
    %44 = vector.load %arg28[%c0_28, %c0_29, %c0_30] : memref<4x32x8xf32, #tpu.memory_space<vmem>>, vector<1x32x8xf32>
    %45 = vector.shape_cast %44 : vector<1x32x8xf32> to vector<32x8xf32>
    %cst_31 = arith.constant dense<0.000000e+00> : vector<16x8xf32>
    %46 = tpu.matmul %29, %45, %cst_31 {dimension_numbers = #tpu.dot_dimension_numbers<[1], [0], [0], [1], [0, 0, 1, 1], [], []>} : vector<16x32xf32>, vector<32x8xf32>, vector<16x8xf32> -> vector<16x8xf32>
    %c0_32 = arith.constant 0 : index
    %c0_33 = arith.constant 0 : index
    %c0_34 = arith.constant 0 : index
    %47 = vector.load %arg27[%c0_32, %c0_33, %c0_34] : memref<4x1x8xf32, #tpu.memory_space<vmem>>, vector<1x1x8xf32>
    %48 = vector.shape_cast %47 : vector<1x1x8xf32> to vector<1x8xf32>
    %49 = vector.broadcast %48 : vector<1x8xf32> to vector<16x8xf32>
    %50 = arith.addf %46, %49 : vector<16x8xf32>
    %c0_35 = arith.constant 0 : index
    %c0_36 = arith.constant 0 : index
    %c0_37 = arith.constant 0 : index
    %51 = vector.load %arg24[%c0_35, %c0_36, %c0_37] : memref<4x8x32xf32, #tpu.memory_space<vmem>>, vector<1x8x32xf32>
    %52 = vector.shape_cast %51 : vector<1x8x32xf32> to vector<8x32xf32>
    %c1 = arith.constant 1 : index
    %c0_38 = arith.constant 0 : index
    %c0_39 = arith.constant 0 : index
    %53 = vector.load %arg26[%c1, %c0_38, %c0_39] : memref<4x32x8xf32, #tpu.memory_space<vmem>>, vector<1x32x8xf32>
    %54 = vector.shape_cast %53 : vector<1x32x8xf32> to vector<32x8xf32>
    %cst_40 = arith.constant dense<0.000000e+00> : vector<16x8xf32>
    %55 = tpu.matmul %29, %54, %cst_40 {dimension_numbers = #tpu.dot_dimension_numbers<[1], [0], [0], [1], [0, 0, 1, 1], [], []>} : vector<16x32xf32>, vector<32x8xf32>, vector<16x8xf32> -> vector<16x8xf32>
    %c1_41 = arith.constant 1 : index
    %c0_42 = arith.constant 0 : index
    %c0_43 = arith.constant 0 : index
    %56 = vector.load %arg25[%c1_41, %c0_42, %c0_43] : memref<4x1x8xf32, #tpu.memory_space<vmem>>, vector<1x1x8xf32>
    %57 = vector.shape_cast %56 : vector<1x1x8xf32> to vector<1x8xf32>
    %58 = vector.broadcast %57 : vector<1x8xf32> to vector<16x8xf32>
    %59 = arith.addf %55, %58 : vector<16x8xf32>
    %c1_44 = arith.constant 1 : index
    %c0_45 = arith.constant 0 : index
    %c0_46 = arith.constant 0 : index
    %60 = vector.load %arg18[%c1_44, %c0_45, %c0_46] : memref<4x32x8xf32, #tpu.memory_space<vmem>>, vector<1x32x8xf32>
    %61 = vector.shape_cast %60 : vector<1x32x8xf32> to vector<32x8xf32>
    %cst_47 = arith.constant dense<0.000000e+00> : vector<16x8xf32>
    %62 = tpu.matmul %29, %61, %cst_47 {dimension_numbers = #tpu.dot_dimension_numbers<[1], [0], [0], [1], [0, 0, 1, 1], [], []>} : vector<16x32xf32>, vector<32x8xf32>, vector<16x8xf32> -> vector<16x8xf32>
    %c1_48 = arith.constant 1 : index
    %c0_49 = arith.constant 0 : index
    %c0_50 = arith.constant 0 : index
    %63 = vector.load %arg17[%c1_48, %c0_49, %c0_50] : memref<4x1x8xf32, #tpu.memory_space<vmem>>, vector<1x1x8xf32>
    %64 = vector.shape_cast %63 : vector<1x1x8xf32> to vector<1x8xf32>
    %65 = vector.broadcast %64 : vector<1x8xf32> to vector<16x8xf32>
    %66 = arith.addf %62, %65 : vector<16x8xf32>
    %c1_51 = arith.constant 1 : index
    %c0_52 = arith.constant 0 : index
    %c0_53 = arith.constant 0 : index
    %67 = vector.load %arg28[%c1_51, %c0_52, %c0_53] : memref<4x32x8xf32, #tpu.memory_space<vmem>>, vector<1x32x8xf32>
    %68 = vector.shape_cast %67 : vector<1x32x8xf32> to vector<32x8xf32>
    %cst_54 = arith.constant dense<0.000000e+00> : vector<16x8xf32>
    %69 = tpu.matmul %29, %68, %cst_54 {dimension_numbers = #tpu.dot_dimension_numbers<[1], [0], [0], [1], [0, 0, 1, 1], [], []>} : vector<16x32xf32>, vector<32x8xf32>, vector<16x8xf32> -> vector<16x8xf32>
    %c1_55 = arith.constant 1 : index
    %c0_56 = arith.constant 0 : index
    %c0_57 = arith.constant 0 : index
    %70 = vector.load %arg27[%c1_55, %c0_56, %c0_57] : memref<4x1x8xf32, #tpu.memory_space<vmem>>, vector<1x1x8xf32>
    %71 = vector.shape_cast %70 : vector<1x1x8xf32> to vector<1x8xf32>
    %72 = vector.broadcast %71 : vector<1x8xf32> to vector<16x8xf32>
    %73 = arith.addf %69, %72 : vector<16x8xf32>
    %c1_58 = arith.constant 1 : index
    %c0_59 = arith.constant 0 : index
    %c0_60 = arith.constant 0 : index
    %74 = vector.load %arg24[%c1_58, %c0_59, %c0_60] : memref<4x8x32xf32, #tpu.memory_space<vmem>>, vector<1x8x32xf32>
    %75 = vector.shape_cast %74 : vector<1x8x32xf32> to vector<8x32xf32>
    %c2 = arith.constant 2 : index
    %c0_61 = arith.constant 0 : index
    %c0_62 = arith.constant 0 : index
    %76 = vector.load %arg26[%c2, %c0_61, %c0_62] : memref<4x32x8xf32, #tpu.memory_space<vmem>>, vector<1x32x8xf32>
    %77 = vector.shape_cast %76 : vector<1x32x8xf32> to vector<32x8xf32>
    %cst_63 = arith.constant dense<0.000000e+00> : vector<16x8xf32>
    %78 = tpu.matmul %29, %77, %cst_63 {dimension_numbers = #tpu.dot_dimension_numbers<[1], [0], [0], [1], [0, 0, 1, 1], [], []>} : vector<16x32xf32>, vector<32x8xf32>, vector<16x8xf32> -> vector<16x8xf32>
    %c2_64 = arith.constant 2 : index
    %c0_65 = arith.constant 0 : index
    %c0_66 = arith.constant 0 : index
    %79 = vector.load %arg25[%c2_64, %c0_65, %c0_66] : memref<4x1x8xf32, #tpu.memory_space<vmem>>, vector<1x1x8xf32>
    %80 = vector.shape_cast %79 : vector<1x1x8xf32> to vector<1x8xf32>
    %81 = vector.broadcast %80 : vector<1x8xf32> to vector<16x8xf32>
    %82 = arith.addf %78, %81 : vector<16x8xf32>
    %c2_67 = arith.constant 2 : index
    %c0_68 = arith.constant 0 : index
    %c0_69 = arith.constant 0 : index
    %83 = vector.load %arg18[%c2_67, %c0_68, %c0_69] : memref<4x32x8xf32, #tpu.memory_space<vmem>>, vector<1x32x8xf32>
    %84 = vector.shape_cast %83 : vector<1x32x8xf32> to vector<32x8xf32>
    %cst_70 = arith.constant dense<0.000000e+00> : vector<16x8xf32>
    %85 = tpu.matmul %29, %84, %cst_70 {dimension_numbers = #tpu.dot_dimension_numbers<[1], [0], [0], [1], [0, 0, 1, 1], [], []>} : vector<16x32xf32>, vector<32x8xf32>, vector<16x8xf32> -> vector<16x8xf32>
    %c2_71 = arith.constant 2 : index
    %c0_72 = arith.constant 0 : index
    %c0_73 = arith.constant 0 : index
    %86 = vector.load %arg17[%c2_71, %c0_72, %c0_73] : memref<4x1x8xf32, #tpu.memory_space<vmem>>, vector<1x1x8xf32>
    %87 = vector.shape_cast %86 : vector<1x1x8xf32> to vector<1x8xf32>
    %88 = vector.broadcast %87 : vector<1x8xf32> to vector<16x8xf32>
    %89 = arith.addf %85, %88 : vector<16x8xf32>
    %c2_74 = arith.constant 2 : index
    %c0_75 = arith.constant 0 : index
    %c0_76 = arith.constant 0 : index
    %90 = vector.load %arg28[%c2_74, %c0_75, %c0_76] : memref<4x32x8xf32, #tpu.memory_space<vmem>>, vector<1x32x8xf32>
    %91 = vector.shape_cast %90 : vector<1x32x8xf32> to vector<32x8xf32>
    %cst_77 = arith.constant dense<0.000000e+00> : vector<16x8xf32>
    %92 = tpu.matmul %29, %91, %cst_77 {dimension_numbers = #tpu.dot_dimension_numbers<[1], [0], [0], [1], [0, 0, 1, 1], [], []>} : vector<16x32xf32>, vector<32x8xf32>, vector<16x8xf32> -> vector<16x8xf32>
    %c2_78 = arith.constant 2 : index
    %c0_79 = arith.constant 0 : index
    %c0_80 = arith.constant 0 : index
    %93 = vector.load %arg27[%c2_78, %c0_79, %c0_80] : memref<4x1x8xf32, #tpu.memory_space<vmem>>, vector<1x1x8xf32>
    %94 = vector.shape_cast %93 : vector<1x1x8xf32> to vector<1x8xf32>
    %95 = vector.broadcast %94 : vector<1x8xf32> to vector<16x8xf32>
    %96 = arith.addf %92, %95 : vector<16x8xf32>
    %c2_81 = arith.constant 2 : index
    %c0_82 = arith.constant 0 : index
    %c0_83 = arith.constant 0 : index
    %97 = vector.load %arg24[%c2_81, %c0_82, %c0_83] : memref<4x8x32xf32, #tpu.memory_space<vmem>>, vector<1x8x32xf32>
    %98 = vector.shape_cast %97 : vector<1x8x32xf32> to vector<8x32xf32>
    %c3 = arith.constant 3 : index
    %c0_84 = arith.constant 0 : index
    %c0_85 = arith.constant 0 : index
    %99 = vector.load %arg26[%c3, %c0_84, %c0_85] : memref<4x32x8xf32, #tpu.memory_space<vmem>>, vector<1x32x8xf32>
    %100 = vector.shape_cast %99 : vector<1x32x8xf32> to vector<32x8xf32>
    %cst_86 = arith.constant dense<0.000000e+00> : vector<16x8xf32>
    %101 = tpu.matmul %29, %100, %cst_86 {dimension_numbers = #tpu.dot_dimension_numbers<[1], [0], [0], [1], [0, 0, 1, 1], [], []>} : vector<16x32xf32>, vector<32x8xf32>, vector<16x8xf32> -> vector<16x8xf32>
    %c3_87 = arith.constant 3 : index
    %c0_88 = arith.constant 0 : index
    %c0_89 = arith.constant 0 : index
    %102 = vector.load %arg25[%c3_87, %c0_88, %c0_89] : memref<4x1x8xf32, #tpu.memory_space<vmem>>, vector<1x1x8xf32>
    %103 = vector.shape_cast %102 : vector<1x1x8xf32> to vector<1x8xf32>
    %104 = vector.broadcast %103 : vector<1x8xf32> to vector<16x8xf32>
    %105 = arith.addf %101, %104 : vector<16x8xf32>
    %c3_90 = arith.constant 3 : index
    %c0_91 = arith.constant 0 : index
    %c0_92 = arith.constant 0 : index
    %106 = vector.load %arg18[%c3_90, %c0_91, %c0_92] : memref<4x32x8xf32, #tpu.memory_space<vmem>>, vector<1x32x8xf32>
    %107 = vector.shape_cast %106 : vector<1x32x8xf32> to vector<32x8xf32>
    %cst_93 = arith.constant dense<0.000000e+00> : vector<16x8xf32>
    %108 = tpu.matmul %29, %107, %cst_93 {dimension_numbers = #tpu.dot_dimension_numbers<[1], [0], [0], [1], [0, 0, 1, 1], [], []>} : vector<16x32xf32>, vector<32x8xf32>, vector<16x8xf32> -> vector<16x8xf32>
    %c3_94 = arith.constant 3 : index
    %c0_95 = arith.constant 0 : index
    %c0_96 = arith.constant 0 : index
    %109 = vector.load %arg17[%c3_94, %c0_95, %c0_96] : memref<4x1x8xf32, #tpu.memory_space<vmem>>, vector<1x1x8xf32>
    %110 = vector.shape_cast %109 : vector<1x1x8xf32> to vector<1x8xf32>
    %111 = vector.broadcast %110 : vector<1x8xf32> to vector<16x8xf32>
    %112 = arith.addf %108, %111 : vector<16x8xf32>
    %c3_97 = arith.constant 3 : index
    %c0_98 = arith.constant 0 : index
    %c0_99 = arith.constant 0 : index
    %113 = vector.load %arg28[%c3_97, %c0_98, %c0_99] : memref<4x32x8xf32, #tpu.memory_space<vmem>>, vector<1x32x8xf32>
    %114 = vector.shape_cast %113 : vector<1x32x8xf32> to vector<32x8xf32>
    %cst_100 = arith.constant dense<0.000000e+00> : vector<16x8xf32>
    %115 = tpu.matmul %29, %114, %cst_100 {dimension_numbers = #tpu.dot_dimension_numbers<[1], [0], [0], [1], [0, 0, 1, 1], [], []>} : vector<16x32xf32>, vector<32x8xf32>, vector<16x8xf32> -> vector<16x8xf32>
    %c3_101 = arith.constant 3 : index
    %c0_102 = arith.constant 0 : index
    %c0_103 = arith.constant 0 : index
    %116 = vector.load %arg27[%c3_101, %c0_102, %c0_103] : memref<4x1x8xf32, #tpu.memory_space<vmem>>, vector<1x1x8xf32>
    %117 = vector.shape_cast %116 : vector<1x1x8xf32> to vector<1x8xf32>
    %118 = vector.broadcast %117 : vector<1x8xf32> to vector<16x8xf32>
    %119 = arith.addf %115, %118 : vector<16x8xf32>
    %c3_104 = arith.constant 3 : index
    %c0_105 = arith.constant 0 : index
    %c0_106 = arith.constant 0 : index
    %120 = vector.load %arg24[%c3_104, %c0_105, %c0_106] : memref<4x8x32xf32, #tpu.memory_space<vmem>>, vector<1x8x32xf32>
    %121 = vector.shape_cast %120 : vector<1x8x32xf32> to vector<8x32xf32>
    %122 = vector.extract_strided_slice %36 {offsets = [0, 0], sizes = [8, 8], strides = [1, 1]} : vector<16x8xf32> to vector<8x8xf32>
    %123 = vector.extract_strided_slice %43 {offsets = [0, 0], sizes = [8, 8], strides = [1, 1]} : vector<16x8xf32> to vector<8x8xf32>
    %124 = vector.extract_strided_slice %50 {offsets = [0, 0], sizes = [8, 8], strides = [1, 1]} : vector<16x8xf32> to vector<8x8xf32>
    %cst_107 = arith.constant dense<0.000000e+00> : vector<8x8xf32>
    %125 = tpu.matmul %122, %123, %cst_107 {dimension_numbers = #tpu.dot_dimension_numbers<[1], [1], [0], [0], [0, 0, 1, 0], [], []>} : vector<8x8xf32>, vector<8x8xf32>, vector<8x8xf32> -> vector<8x8xf32>
    %cst_108 = arith.constant 0.353553385 : f32
    %126 = vector.broadcast %cst_108 : f32 to vector<8x8xf32>
    %127 = arith.mulf %125, %126 : vector<8x8xf32>
    %cst_109 = arith.constant dense<0xFF800000> : vector<8xf32>
    %128 = vector.multi_reduction <maximumf>, %127, %cst_109 [1] : vector<8x8xf32> to vector<8xf32>
    %129 = vector.shape_cast %128 : vector<8xf32> to vector<8x1xf32>
    %130 = vector.broadcast %129 : vector<8x1xf32> to vector<8x8xf32>
    %131 = arith.subf %127, %130 : vector<8x8xf32>
    %132 = math.exp %131 : vector<8x8xf32>
    %cst_110 = arith.constant dense<0.000000e+00> : vector<8xf32>
    %133 = vector.multi_reduction <add>, %132, %cst_110 [1] : vector<8x8xf32> to vector<8xf32>
    %134 = vector.shape_cast %133 : vector<8xf32> to vector<8x1xf32>
    %135 = tpu.reciprocal %134 {approx = true} : vector<8x1xf32> -> vector<8x1xf32>
    %136 = vector.broadcast %135 : vector<8x1xf32> to vector<8x8xf32>
    %137 = arith.mulf %132, %136 : vector<8x8xf32>
    %cst_111 = arith.constant dense<0.000000e+00> : vector<8x8xf32>
    %138 = tpu.matmul %137, %124, %cst_111 {dimension_numbers = #tpu.dot_dimension_numbers<[1], [0], [0], [1], [0, 0, 1, 1], [], []>} : vector<8x8xf32>, vector<8x8xf32>, vector<8x8xf32> -> vector<8x8xf32>
    %cst_112 = arith.constant dense<0.000000e+00> : vector<8x32xf32>
    %139 = tpu.matmul %138, %52, %cst_112 {dimension_numbers = #tpu.dot_dimension_numbers<[1], [0], [0], [1], [0, 0, 1, 1], [], []>} : vector<8x8xf32>, vector<8x32xf32>, vector<8x32xf32> -> vector<8x32xf32>
    %140 = vector.extract_strided_slice %59 {offsets = [0, 0], sizes = [8, 8], strides = [1, 1]} : vector<16x8xf32> to vector<8x8xf32>
    %141 = vector.extract_strided_slice %66 {offsets = [0, 0], sizes = [8, 8], strides = [1, 1]} : vector<16x8xf32> to vector<8x8xf32>
    %142 = vector.extract_strided_slice %73 {offsets = [0, 0], sizes = [8, 8], strides = [1, 1]} : vector<16x8xf32> to vector<8x8xf32>
    %cst_113 = arith.constant dense<0.000000e+00> : vector<8x8xf32>
    %143 = tpu.matmul %140, %141, %cst_113 {dimension_numbers = #tpu.dot_dimension_numbers<[1], [1], [0], [0], [0, 0, 1, 0], [], []>} : vector<8x8xf32>, vector<8x8xf32>, vector<8x8xf32> -> vector<8x8xf32>
    %cst_114 = arith.constant 0.353553385 : f32
    %144 = vector.broadcast %cst_114 : f32 to vector<8x8xf32>
    %145 = arith.mulf %143, %144 : vector<8x8xf32>
    %cst_115 = arith.constant dense<0xFF800000> : vector<8xf32>
    %146 = vector.multi_reduction <maximumf>, %145, %cst_115 [1] : vector<8x8xf32> to vector<8xf32>
    %147 = vector.shape_cast %146 : vector<8xf32> to vector<8x1xf32>
    %148 = vector.broadcast %147 : vector<8x1xf32> to vector<8x8xf32>
    %149 = arith.subf %145, %148 : vector<8x8xf32>
    %150 = math.exp %149 : vector<8x8xf32>
    %cst_116 = arith.constant dense<0.000000e+00> : vector<8xf32>
    %151 = vector.multi_reduction <add>, %150, %cst_116 [1] : vector<8x8xf32> to vector<8xf32>
    %152 = vector.shape_cast %151 : vector<8xf32> to vector<8x1xf32>
    %153 = tpu.reciprocal %152 {approx = true} : vector<8x1xf32> -> vector<8x1xf32>
    %154 = vector.broadcast %153 : vector<8x1xf32> to vector<8x8xf32>
    %155 = arith.mulf %150, %154 : vector<8x8xf32>
    %cst_117 = arith.constant dense<0.000000e+00> : vector<8x8xf32>
    %156 = tpu.matmul %155, %142, %cst_117 {dimension_numbers = #tpu.dot_dimension_numbers<[1], [0], [0], [1], [0, 0, 1, 1], [], []>} : vector<8x8xf32>, vector<8x8xf32>, vector<8x8xf32> -> vector<8x8xf32>
    %cst_118 = arith.constant dense<0.000000e+00> : vector<8x32xf32>
    %157 = tpu.matmul %156, %75, %cst_118 {dimension_numbers = #tpu.dot_dimension_numbers<[1], [0], [0], [1], [0, 0, 1, 1], [], []>} : vector<8x8xf32>, vector<8x32xf32>, vector<8x32xf32> -> vector<8x32xf32>
    %158 = vector.extract_strided_slice %82 {offsets = [0, 0], sizes = [8, 8], strides = [1, 1]} : vector<16x8xf32> to vector<8x8xf32>
    %159 = vector.extract_strided_slice %89 {offsets = [0, 0], sizes = [8, 8], strides = [1, 1]} : vector<16x8xf32> to vector<8x8xf32>
    %160 = vector.extract_strided_slice %96 {offsets = [0, 0], sizes = [8, 8], strides = [1, 1]} : vector<16x8xf32> to vector<8x8xf32>
    %cst_119 = arith.constant dense<0.000000e+00> : vector<8x8xf32>
    %161 = tpu.matmul %158, %159, %cst_119 {dimension_numbers = #tpu.dot_dimension_numbers<[1], [1], [0], [0], [0, 0, 1, 0], [], []>} : vector<8x8xf32>, vector<8x8xf32>, vector<8x8xf32> -> vector<8x8xf32>
    %cst_120 = arith.constant 0.353553385 : f32
    %162 = vector.broadcast %cst_120 : f32 to vector<8x8xf32>
    %163 = arith.mulf %161, %162 : vector<8x8xf32>
    %cst_121 = arith.constant dense<0xFF800000> : vector<8xf32>
    %164 = vector.multi_reduction <maximumf>, %163, %cst_121 [1] : vector<8x8xf32> to vector<8xf32>
    %165 = vector.shape_cast %164 : vector<8xf32> to vector<8x1xf32>
    %166 = vector.broadcast %165 : vector<8x1xf32> to vector<8x8xf32>
    %167 = arith.subf %163, %166 : vector<8x8xf32>
    %168 = math.exp %167 : vector<8x8xf32>
    %cst_122 = arith.constant dense<0.000000e+00> : vector<8xf32>
    %169 = vector.multi_reduction <add>, %168, %cst_122 [1] : vector<8x8xf32> to vector<8xf32>
    %170 = vector.shape_cast %169 : vector<8xf32> to vector<8x1xf32>
    %171 = tpu.reciprocal %170 {approx = true} : vector<8x1xf32> -> vector<8x1xf32>
    %172 = vector.broadcast %171 : vector<8x1xf32> to vector<8x8xf32>
    %173 = arith.mulf %168, %172 : vector<8x8xf32>
    %cst_123 = arith.constant dense<0.000000e+00> : vector<8x8xf32>
    %174 = tpu.matmul %173, %160, %cst_123 {dimension_numbers = #tpu.dot_dimension_numbers<[1], [0], [0], [1], [0, 0, 1, 1], [], []>} : vector<8x8xf32>, vector<8x8xf32>, vector<8x8xf32> -> vector<8x8xf32>
    %cst_124 = arith.constant dense<0.000000e+00> : vector<8x32xf32>
    %175 = tpu.matmul %174, %98, %cst_124 {dimension_numbers = #tpu.dot_dimension_numbers<[1], [0], [0], [1], [0, 0, 1, 1], [], []>} : vector<8x8xf32>, vector<8x32xf32>, vector<8x32xf32> -> vector<8x32xf32>
    %176 = vector.extract_strided_slice %105 {offsets = [0, 0], sizes = [8, 8], strides = [1, 1]} : vector<16x8xf32> to vector<8x8xf32>
    %177 = vector.extract_strided_slice %112 {offsets = [0, 0], sizes = [8, 8], strides = [1, 1]} : vector<16x8xf32> to vector<8x8xf32>
    %178 = vector.extract_strided_slice %119 {offsets = [0, 0], sizes = [8, 8], strides = [1, 1]} : vector<16x8xf32> to vector<8x8xf32>
    %cst_125 = arith.constant dense<0.000000e+00> : vector<8x8xf32>
    %179 = tpu.matmul %176, %177, %cst_125 {dimension_numbers = #tpu.dot_dimension_numbers<[1], [1], [0], [0], [0, 0, 1, 0], [], []>} : vector<8x8xf32>, vector<8x8xf32>, vector<8x8xf32> -> vector<8x8xf32>
    %cst_126 = arith.constant 0.353553385 : f32
    %180 = vector.broadcast %cst_126 : f32 to vector<8x8xf32>
    %181 = arith.mulf %179, %180 : vector<8x8xf32>
    %cst_127 = arith.constant dense<0xFF800000> : vector<8xf32>
    %182 = vector.multi_reduction <maximumf>, %181, %cst_127 [1] : vector<8x8xf32> to vector<8xf32>
    %183 = vector.shape_cast %182 : vector<8xf32> to vector<8x1xf32>
    %184 = vector.broadcast %183 : vector<8x1xf32> to vector<8x8xf32>
    %185 = arith.subf %181, %184 : vector<8x8xf32>
    %186 = math.exp %185 : vector<8x8xf32>
    %cst_128 = arith.constant dense<0.000000e+00> : vector<8xf32>
    %187 = vector.multi_reduction <add>, %186, %cst_128 [1] : vector<8x8xf32> to vector<8xf32>
    %188 = vector.shape_cast %187 : vector<8xf32> to vector<8x1xf32>
    %189 = tpu.reciprocal %188 {approx = true} : vector<8x1xf32> -> vector<8x1xf32>
    %190 = vector.broadcast %189 : vector<8x1xf32> to vector<8x8xf32>
    %191 = arith.mulf %186, %190 : vector<8x8xf32>
    %cst_129 = arith.constant dense<0.000000e+00> : vector<8x8xf32>
    %192 = tpu.matmul %191, %178, %cst_129 {dimension_numbers = #tpu.dot_dimension_numbers<[1], [0], [0], [1], [0, 0, 1, 1], [], []>} : vector<8x8xf32>, vector<8x8xf32>, vector<8x8xf32> -> vector<8x8xf32>
    %cst_130 = arith.constant dense<0.000000e+00> : vector<8x32xf32>
    %193 = tpu.matmul %192, %121, %cst_130 {dimension_numbers = #tpu.dot_dimension_numbers<[1], [0], [0], [1], [0, 0, 1, 1], [], []>} : vector<8x8xf32>, vector<8x32xf32>, vector<8x32xf32> -> vector<8x32xf32>
    %194 = arith.addf %139, %157 : vector<8x32xf32>
    %195 = arith.addf %175, %193 : vector<8x32xf32>
    %196 = arith.addf %194, %195 : vector<8x32xf32>
    %197 = vector.extract_strided_slice %36 {offsets = [8, 0], sizes = [8, 8], strides = [1, 1]} : vector<16x8xf32> to vector<8x8xf32>
    %198 = vector.extract_strided_slice %43 {offsets = [8, 0], sizes = [8, 8], strides = [1, 1]} : vector<16x8xf32> to vector<8x8xf32>
    %199 = vector.extract_strided_slice %50 {offsets = [8, 0], sizes = [8, 8], strides = [1, 1]} : vector<16x8xf32> to vector<8x8xf32>
    %cst_131 = arith.constant dense<0.000000e+00> : vector<8x8xf32>
    %200 = tpu.matmul %197, %198, %cst_131 {dimension_numbers = #tpu.dot_dimension_numbers<[1], [1], [0], [0], [0, 0, 1, 0], [], []>} : vector<8x8xf32>, vector<8x8xf32>, vector<8x8xf32> -> vector<8x8xf32>
    %cst_132 = arith.constant 0.353553385 : f32
    %201 = vector.broadcast %cst_132 : f32 to vector<8x8xf32>
    %202 = arith.mulf %200, %201 : vector<8x8xf32>
    %cst_133 = arith.constant dense<0xFF800000> : vector<8xf32>
    %203 = vector.multi_reduction <maximumf>, %202, %cst_133 [1] : vector<8x8xf32> to vector<8xf32>
    %204 = vector.shape_cast %203 : vector<8xf32> to vector<8x1xf32>
    %205 = vector.broadcast %204 : vector<8x1xf32> to vector<8x8xf32>
    %206 = arith.subf %202, %205 : vector<8x8xf32>
    %207 = math.exp %206 : vector<8x8xf32>
    %cst_134 = arith.constant dense<0.000000e+00> : vector<8xf32>
    %208 = vector.multi_reduction <add>, %207, %cst_134 [1] : vector<8x8xf32> to vector<8xf32>
    %209 = vector.shape_cast %208 : vector<8xf32> to vector<8x1xf32>
    %210 = tpu.reciprocal %209 {approx = true} : vector<8x1xf32> -> vector<8x1xf32>
    %211 = vector.broadcast %210 : vector<8x1xf32> to vector<8x8xf32>
    %212 = arith.mulf %207, %211 : vector<8x8xf32>
    %cst_135 = arith.constant dense<0.000000e+00> : vector<8x8xf32>
    %213 = tpu.matmul %212, %199, %cst_135 {dimension_numbers = #tpu.dot_dimension_numbers<[1], [0], [0], [1], [0, 0, 1, 1], [], []>} : vector<8x8xf32>, vector<8x8xf32>, vector<8x8xf32> -> vector<8x8xf32>
    %cst_136 = arith.constant dense<0.000000e+00> : vector<8x32xf32>
    %214 = tpu.matmul %213, %52, %cst_136 {dimension_numbers = #tpu.dot_dimension_numbers<[1], [0], [0], [1], [0, 0, 1, 1], [], []>} : vector<8x8xf32>, vector<8x32xf32>, vector<8x32xf32> -> vector<8x32xf32>
    %215 = vector.extract_strided_slice %59 {offsets = [8, 0], sizes = [8, 8], strides = [1, 1]} : vector<16x8xf32> to vector<8x8xf32>
    %216 = vector.extract_strided_slice %66 {offsets = [8, 0], sizes = [8, 8], strides = [1, 1]} : vector<16x8xf32> to vector<8x8xf32>
    %217 = vector.extract_strided_slice %73 {offsets = [8, 0], sizes = [8, 8], strides = [1, 1]} : vector<16x8xf32> to vector<8x8xf32>
    %cst_137 = arith.constant dense<0.000000e+00> : vector<8x8xf32>
    %218 = tpu.matmul %215, %216, %cst_137 {dimension_numbers = #tpu.dot_dimension_numbers<[1], [1], [0], [0], [0, 0, 1, 0], [], []>} : vector<8x8xf32>, vector<8x8xf32>, vector<8x8xf32> -> vector<8x8xf32>
    %cst_138 = arith.constant 0.353553385 : f32
    %219 = vector.broadcast %cst_138 : f32 to vector<8x8xf32>
    %220 = arith.mulf %218, %219 : vector<8x8xf32>
    %cst_139 = arith.constant dense<0xFF800000> : vector<8xf32>
    %221 = vector.multi_reduction <maximumf>, %220, %cst_139 [1] : vector<8x8xf32> to vector<8xf32>
    %222 = vector.shape_cast %221 : vector<8xf32> to vector<8x1xf32>
    %223 = vector.broadcast %222 : vector<8x1xf32> to vector<8x8xf32>
    %224 = arith.subf %220, %223 : vector<8x8xf32>
    %225 = math.exp %224 : vector<8x8xf32>
    %cst_140 = arith.constant dense<0.000000e+00> : vector<8xf32>
    %226 = vector.multi_reduction <add>, %225, %cst_140 [1] : vector<8x8xf32> to vector<8xf32>
    %227 = vector.shape_cast %226 : vector<8xf32> to vector<8x1xf32>
    %228 = tpu.reciprocal %227 {approx = true} : vector<8x1xf32> -> vector<8x1xf32>
    %229 = vector.broadcast %228 : vector<8x1xf32> to vector<8x8xf32>
    %230 = arith.mulf %225, %229 : vector<8x8xf32>
    %cst_141 = arith.constant dense<0.000000e+00> : vector<8x8xf32>
    %231 = tpu.matmul %230, %217, %cst_141 {dimension_numbers = #tpu.dot_dimension_numbers<[1], [0], [0], [1], [0, 0, 1, 1], [], []>} : vector<8x8xf32>, vector<8x8xf32>, vector<8x8xf32> -> vector<8x8xf32>
    %cst_142 = arith.constant dense<0.000000e+00> : vector<8x32xf32>
    %232 = tpu.matmul %231, %75, %cst_142 {dimension_numbers = #tpu.dot_dimension_numbers<[1], [0], [0], [1], [0, 0, 1, 1], [], []>} : vector<8x8xf32>, vector<8x32xf32>, vector<8x32xf32> -> vector<8x32xf32>
    %233 = vector.extract_strided_slice %82 {offsets = [8, 0], sizes = [8, 8], strides = [1, 1]} : vector<16x8xf32> to vector<8x8xf32>
    %234 = vector.extract_strided_slice %89 {offsets = [8, 0], sizes = [8, 8], strides = [1, 1]} : vector<16x8xf32> to vector<8x8xf32>
    %235 = vector.extract_strided_slice %96 {offsets = [8, 0], sizes = [8, 8], strides = [1, 1]} : vector<16x8xf32> to vector<8x8xf32>
    %cst_143 = arith.constant dense<0.000000e+00> : vector<8x8xf32>
    %236 = tpu.matmul %233, %234, %cst_143 {dimension_numbers = #tpu.dot_dimension_numbers<[1], [1], [0], [0], [0, 0, 1, 0], [], []>} : vector<8x8xf32>, vector<8x8xf32>, vector<8x8xf32> -> vector<8x8xf32>
    %cst_144 = arith.constant 0.353553385 : f32
    %237 = vector.broadcast %cst_144 : f32 to vector<8x8xf32>
    %238 = arith.mulf %236, %237 : vector<8x8xf32>
    %cst_145 = arith.constant dense<0xFF800000> : vector<8xf32>
    %239 = vector.multi_reduction <maximumf>, %238, %cst_145 [1] : vector<8x8xf32> to vector<8xf32>
    %240 = vector.shape_cast %239 : vector<8xf32> to vector<8x1xf32>
    %241 = vector.broadcast %240 : vector<8x1xf32> to vector<8x8xf32>
    %242 = arith.subf %238, %241 : vector<8x8xf32>
    %243 = math.exp %242 : vector<8x8xf32>
    %cst_146 = arith.constant dense<0.000000e+00> : vector<8xf32>
    %244 = vector.multi_reduction <add>, %243, %cst_146 [1] : vector<8x8xf32> to vector<8xf32>
    %245 = vector.shape_cast %244 : vector<8xf32> to vector<8x1xf32>
    %246 = tpu.reciprocal %245 {approx = true} : vector<8x1xf32> -> vector<8x1xf32>
    %247 = vector.broadcast %246 : vector<8x1xf32> to vector<8x8xf32>
    %248 = arith.mulf %243, %247 : vector<8x8xf32>
    %cst_147 = arith.constant dense<0.000000e+00> : vector<8x8xf32>
    %249 = tpu.matmul %248, %235, %cst_147 {dimension_numbers = #tpu.dot_dimension_numbers<[1], [0], [0], [1], [0, 0, 1, 1], [], []>} : vector<8x8xf32>, vector<8x8xf32>, vector<8x8xf32> -> vector<8x8xf32>
    %cst_148 = arith.constant dense<0.000000e+00> : vector<8x32xf32>
    %250 = tpu.matmul %249, %98, %cst_148 {dimension_numbers = #tpu.dot_dimension_numbers<[1], [0], [0], [1], [0, 0, 1, 1], [], []>} : vector<8x8xf32>, vector<8x32xf32>, vector<8x32xf32> -> vector<8x32xf32>
    %251 = vector.extract_strided_slice %105 {offsets = [8, 0], sizes = [8, 8], strides = [1, 1]} : vector<16x8xf32> to vector<8x8xf32>
    %252 = vector.extract_strided_slice %112 {offsets = [8, 0], sizes = [8, 8], strides = [1, 1]} : vector<16x8xf32> to vector<8x8xf32>
    %253 = vector.extract_strided_slice %119 {offsets = [8, 0], sizes = [8, 8], strides = [1, 1]} : vector<16x8xf32> to vector<8x8xf32>
    %cst_149 = arith.constant dense<0.000000e+00> : vector<8x8xf32>
    %254 = tpu.matmul %251, %252, %cst_149 {dimension_numbers = #tpu.dot_dimension_numbers<[1], [1], [0], [0], [0, 0, 1, 0], [], []>} : vector<8x8xf32>, vector<8x8xf32>, vector<8x8xf32> -> vector<8x8xf32>
    %cst_150 = arith.constant 0.353553385 : f32
    %255 = vector.broadcast %cst_150 : f32 to vector<8x8xf32>
    %256 = arith.mulf %254, %255 : vector<8x8xf32>
    %cst_151 = arith.constant dense<0xFF800000> : vector<8xf32>
    %257 = vector.multi_reduction <maximumf>, %256, %cst_151 [1] : vector<8x8xf32> to vector<8xf32>
    %258 = vector.shape_cast %257 : vector<8xf32> to vector<8x1xf32>
    %259 = vector.broadcast %258 : vector<8x1xf32> to vector<8x8xf32>
    %260 = arith.subf %256, %259 : vector<8x8xf32>
    %261 = math.exp %260 : vector<8x8xf32>
    %cst_152 = arith.constant dense<0.000000e+00> : vector<8xf32>
    %262 = vector.multi_reduction <add>, %261, %cst_152 [1] : vector<8x8xf32> to vector<8xf32>
    %263 = vector.shape_cast %262 : vector<8xf32> to vector<8x1xf32>
    %264 = tpu.reciprocal %263 {approx = true} : vector<8x1xf32> -> vector<8x1xf32>
    %265 = vector.broadcast %264 : vector<8x1xf32> to vector<8x8xf32>
    %266 = arith.mulf %261, %265 : vector<8x8xf32>
    %cst_153 = arith.constant dense<0.000000e+00> : vector<8x8xf32>
    %267 = tpu.matmul %266, %253, %cst_153 {dimension_numbers = #tpu.dot_dimension_numbers<[1], [0], [0], [1], [0, 0, 1, 1], [], []>} : vector<8x8xf32>, vector<8x8xf32>, vector<8x8xf32> -> vector<8x8xf32>
    %cst_154 = arith.constant dense<0.000000e+00> : vector<8x32xf32>
    %268 = tpu.matmul %267, %121, %cst_154 {dimension_numbers = #tpu.dot_dimension_numbers<[1], [0], [0], [1], [0, 0, 1, 1], [], []>} : vector<8x8xf32>, vector<8x32xf32>, vector<8x32xf32> -> vector<8x32xf32>
    %269 = arith.addf %214, %232 : vector<8x32xf32>
    %270 = arith.addf %250, %268 : vector<8x32xf32>
    %271 = arith.addf %269, %270 : vector<8x32xf32>
    %272 = tpu.concatenate %196, %271 in 0 : vector<8x32xf32>, vector<8x32xf32> -> vector<16x32xf32>
    %273 = arith.addf %5, %272 : vector<16x32xf32>
    %c0_155 = arith.constant 0 : index
    %c0_156 = arith.constant 0 : index
    %274 = vector.load %arg23[%c0_155, %c0_156] : memref<1x32xf32, #tpu.memory_space<vmem>>, vector<1x32xf32>
    %275 = vector.broadcast %274 : vector<1x32xf32> to vector<16x32xf32>
    %276 = arith.addf %273, %275 : vector<16x32xf32>
    %c0_157 = arith.constant 0 : index
    %c0_158 = arith.constant 0 : index
    %277 = vector.load %arg22[%c0_157, %c0_158] : memref<1x32xf32, #tpu.memory_space<vmem>>, vector<1x32xf32>
    %c0_159 = arith.constant 0 : index
    %c0_160 = arith.constant 0 : index
    %278 = vector.load %arg21[%c0_159, %c0_160] : memref<1x32xf32, #tpu.memory_space<vmem>>, vector<1x32xf32>
    %cst_161 = arith.constant dense<0.000000e+00> : vector<16xf32>
    %279 = vector.multi_reduction <add>, %276, %cst_161 [1] : vector<16x32xf32> to vector<16xf32>
    %280 = vector.shape_cast %279 : vector<16xf32> to vector<16x1xf32>
    %cst_162 = arith.constant 3.200000e+01 : f32
    %281 = vector.broadcast %cst_162 : f32 to vector<16x1xf32>
    %282 = arith.divf %280, %281 : vector<16x1xf32>
    %283 = vector.broadcast %282 : vector<16x1xf32> to vector<16x32xf32>
    %284 = arith.subf %276, %283 : vector<16x32xf32>
    %285 = arith.mulf %284, %284 : vector<16x32xf32>
    %cst_163 = arith.constant dense<0.000000e+00> : vector<16xf32>
    %286 = vector.multi_reduction <add>, %285, %cst_163 [1] : vector<16x32xf32> to vector<16xf32>
    %287 = vector.shape_cast %286 : vector<16xf32> to vector<16x1xf32>
    %cst_164 = arith.constant 3.200000e+01 : f32
    %288 = vector.broadcast %cst_164 : f32 to vector<16x1xf32>
    %289 = arith.divf %287, %288 : vector<16x1xf32>
    %290 = vector.broadcast %282 : vector<16x1xf32> to vector<16x32xf32>
    %291 = arith.subf %276, %290 : vector<16x32xf32>
    %cst_165 = arith.constant 9.99999974E-6 : f32
    %292 = vector.broadcast %cst_165 : f32 to vector<16x1xf32>
    %293 = arith.addf %289, %292 : vector<16x1xf32>
    %294 = math.rsqrt %293 : vector<16x1xf32>
    %295 = vector.broadcast %294 : vector<16x1xf32> to vector<16x32xf32>
    %296 = arith.mulf %291, %295 : vector<16x32xf32>
    %297 = vector.broadcast %277 : vector<1x32xf32> to vector<16x32xf32>
    %298 = arith.mulf %296, %297 : vector<16x32xf32>
    %299 = vector.broadcast %278 : vector<1x32xf32> to vector<16x32xf32>
    %300 = arith.addf %298, %299 : vector<16x32xf32>
    %c0_166 = arith.constant 0 : index
    %c0_167 = arith.constant 0 : index
    %301 = vector.load %arg14[%c0_166, %c0_167] : memref<32x64xf32, #tpu.memory_space<vmem>>, vector<32x64xf32>
    %cst_168 = arith.constant dense<0.000000e+00> : vector<16x64xf32>
    %302 = tpu.matmul %300, %301, %cst_168 {dimension_numbers = #tpu.dot_dimension_numbers<[1], [0], [0], [1], [0, 0, 1, 1], [], []>} : vector<16x32xf32>, vector<32x64xf32>, vector<16x64xf32> -> vector<16x64xf32>
    %c0_169 = arith.constant 0 : index
    %c0_170 = arith.constant 0 : index
    %303 = vector.load %arg13[%c0_169, %c0_170] : memref<1x64xf32, #tpu.memory_space<vmem>>, vector<1x64xf32>
    %304 = vector.broadcast %303 : vector<1x64xf32> to vector<16x64xf32>
    %305 = arith.addf %302, %304 : vector<16x64xf32>
    %cst_171 = arith.constant 0.707106769 : f32
    %306 = vector.broadcast %cst_171 : f32 to vector<16x64xf32>
    %307 = arith.mulf %305, %306 : vector<16x64xf32>
    %308 = math.absf %307 : vector<16x64xf32>
    %cst_172 = arith.constant 0.327591091 : f32
    %309 = vector.broadcast %cst_172 : f32 to vector<16x64xf32>
    %310 = arith.mulf %309, %308 : vector<16x64xf32>
    %cst_173 = arith.constant 1.000000e+00 : f32
    %311 = vector.broadcast %cst_173 : f32 to vector<16x64xf32>
    %312 = arith.addf %311, %310 : vector<16x64xf32>
    %cst_174 = arith.constant 1.000000e+00 : f32
    %313 = vector.broadcast %cst_174 : f32 to vector<16x64xf32>
    %314 = arith.divf %313, %312 : vector<16x64xf32>
    %cst_175 = arith.constant 1.06140542 : f32
    %315 = vector.broadcast %cst_175 : f32 to vector<16x64xf32>
    %316 = arith.mulf %315, %314 : vector<16x64xf32>
    %cst_176 = arith.constant -1.45315206 : f32
    %317 = vector.broadcast %cst_176 : f32 to vector<16x64xf32>
    %318 = arith.addf %316, %317 : vector<16x64xf32>
    %319 = arith.mulf %318, %314 : vector<16x64xf32>
    %cst_177 = arith.constant 1.42141378 : f32
    %320 = vector.broadcast %cst_177 : f32 to vector<16x64xf32>
    %321 = arith.addf %319, %320 : vector<16x64xf32>
    %322 = arith.mulf %321, %314 : vector<16x64xf32>
    %cst_178 = arith.constant -0.284496725 : f32
    %323 = vector.broadcast %cst_178 : f32 to vector<16x64xf32>
    %324 = arith.addf %322, %323 : vector<16x64xf32>
    %325 = arith.mulf %324, %314 : vector<16x64xf32>
    %cst_179 = arith.constant 0.254829586 : f32
    %326 = vector.broadcast %cst_179 : f32 to vector<16x64xf32>
    %327 = arith.addf %325, %326 : vector<16x64xf32>
    %328 = arith.mulf %327, %314 : vector<16x64xf32>
    %cst_180 = arith.constant 0.000000e+00 : f32
    %329 = vector.broadcast %cst_180 : f32 to vector<16x64xf32>
    %330 = arith.subf %329, %308 : vector<16x64xf32>
    %331 = arith.mulf %330, %308 : vector<16x64xf32>
    %332 = math.exp %331 : vector<16x64xf32>
    %333 = arith.mulf %328, %332 : vector<16x64xf32>
    %cst_181 = arith.constant 1.000000e+00 : f32
    %334 = vector.broadcast %cst_181 : f32 to vector<16x64xf32>
    %335 = arith.subf %334, %333 : vector<16x64xf32>
    %cst_182 = arith.constant 0.000000e+00 : f32
    %336 = vector.broadcast %cst_182 : f32 to vector<16x64xf32>
    %337 = arith.cmpf oge, %307, %336 : vector<16x64xf32>
    %cst_183 = arith.constant 0.000000e+00 : f32
    %338 = vector.broadcast %cst_183 : f32 to vector<16x64xf32>
    %339 = arith.subf %338, %335 : vector<16x64xf32>
    %340 = arith.select %337, %335, %339 : vector<16x64xi1>, vector<16x64xf32>
    %cst_184 = arith.constant 5.000000e-01 : f32
    %341 = vector.broadcast %cst_184 : f32 to vector<16x64xf32>
    %342 = arith.mulf %341, %305 : vector<16x64xf32>
    %cst_185 = arith.constant 1.000000e+00 : f32
    %343 = vector.broadcast %cst_185 : f32 to vector<16x64xf32>
    %344 = arith.addf %343, %340 : vector<16x64xf32>
    %345 = arith.mulf %342, %344 : vector<16x64xf32>
    %c0_186 = arith.constant 0 : index
    %c0_187 = arith.constant 0 : index
    %346 = vector.load %arg16[%c0_186, %c0_187] : memref<64x32xf32, #tpu.memory_space<vmem>>, vector<64x32xf32>
    %cst_188 = arith.constant dense<0.000000e+00> : vector<16x32xf32>
    %347 = tpu.matmul %345, %346, %cst_188 {dimension_numbers = #tpu.dot_dimension_numbers<[1], [0], [0], [1], [0, 0, 1, 1], [], []>} : vector<16x64xf32>, vector<64x32xf32>, vector<16x32xf32> -> vector<16x32xf32>
    %348 = arith.addf %276, %347 : vector<16x32xf32>
    %c0_189 = arith.constant 0 : index
    %c0_190 = arith.constant 0 : index
    %349 = vector.load %arg15[%c0_189, %c0_190] : memref<1x32xf32, #tpu.memory_space<vmem>>, vector<1x32xf32>
    %350 = vector.broadcast %349 : vector<1x32xf32> to vector<16x32xf32>
    %351 = arith.addf %348, %350 : vector<16x32xf32>
    %c0_191 = arith.constant 0 : index
    %c0_192 = arith.constant 0 : index
    %352 = vector.load %arg36[%c0_191, %c0_192] : memref<1x32xf32, #tpu.memory_space<vmem>>, vector<1x32xf32>
    %c0_193 = arith.constant 0 : index
    %c0_194 = arith.constant 0 : index
    %353 = vector.load %arg35[%c0_193, %c0_194] : memref<1x32xf32, #tpu.memory_space<vmem>>, vector<1x32xf32>
    %cst_195 = arith.constant dense<0.000000e+00> : vector<16xf32>
    %354 = vector.multi_reduction <add>, %351, %cst_195 [1] : vector<16x32xf32> to vector<16xf32>
    %355 = vector.shape_cast %354 : vector<16xf32> to vector<16x1xf32>
    %cst_196 = arith.constant 3.200000e+01 : f32
    %356 = vector.broadcast %cst_196 : f32 to vector<16x1xf32>
    %357 = arith.divf %355, %356 : vector<16x1xf32>
    %358 = vector.broadcast %357 : vector<16x1xf32> to vector<16x32xf32>
    %359 = arith.subf %351, %358 : vector<16x32xf32>
    %360 = arith.mulf %359, %359 : vector<16x32xf32>
    %cst_197 = arith.constant dense<0.000000e+00> : vector<16xf32>
    %361 = vector.multi_reduction <add>, %360, %cst_197 [1] : vector<16x32xf32> to vector<16xf32>
    %362 = vector.shape_cast %361 : vector<16xf32> to vector<16x1xf32>
    %cst_198 = arith.constant 3.200000e+01 : f32
    %363 = vector.broadcast %cst_198 : f32 to vector<16x1xf32>
    %364 = arith.divf %362, %363 : vector<16x1xf32>
    %365 = vector.broadcast %357 : vector<16x1xf32> to vector<16x32xf32>
    %366 = arith.subf %351, %365 : vector<16x32xf32>
    %cst_199 = arith.constant 9.99999974E-6 : f32
    %367 = vector.broadcast %cst_199 : f32 to vector<16x1xf32>
    %368 = arith.addf %364, %367 : vector<16x1xf32>
    %369 = math.rsqrt %368 : vector<16x1xf32>
    %370 = vector.broadcast %369 : vector<16x1xf32> to vector<16x32xf32>
    %371 = arith.mulf %366, %370 : vector<16x32xf32>
    %372 = vector.broadcast %352 : vector<1x32xf32> to vector<16x32xf32>
    %373 = arith.mulf %371, %372 : vector<16x32xf32>
    %374 = vector.broadcast %353 : vector<1x32xf32> to vector<16x32xf32>
    %375 = arith.addf %373, %374 : vector<16x32xf32>
    %c0_200 = arith.constant 0 : index
    %c0_201 = arith.constant 0 : index
    %c0_202 = arith.constant 0 : index
    %376 = vector.load %arg42[%c0_200, %c0_201, %c0_202] : memref<4x32x8xf32, #tpu.memory_space<vmem>>, vector<1x32x8xf32>
    %377 = vector.shape_cast %376 : vector<1x32x8xf32> to vector<32x8xf32>
    %cst_203 = arith.constant dense<0.000000e+00> : vector<16x8xf32>
    %378 = tpu.matmul %375, %377, %cst_203 {dimension_numbers = #tpu.dot_dimension_numbers<[1], [0], [0], [1], [0, 0, 1, 1], [], []>} : vector<16x32xf32>, vector<32x8xf32>, vector<16x8xf32> -> vector<16x8xf32>
    %c0_204 = arith.constant 0 : index
    %c0_205 = arith.constant 0 : index
    %c0_206 = arith.constant 0 : index
    %379 = vector.load %arg41[%c0_204, %c0_205, %c0_206] : memref<4x1x8xf32, #tpu.memory_space<vmem>>, vector<1x1x8xf32>
    %380 = vector.shape_cast %379 : vector<1x1x8xf32> to vector<1x8xf32>
    %381 = vector.broadcast %380 : vector<1x8xf32> to vector<16x8xf32>
    %382 = arith.addf %378, %381 : vector<16x8xf32>
    %c0_207 = arith.constant 0 : index
    %c0_208 = arith.constant 0 : index
    %c0_209 = arith.constant 0 : index
    %383 = vector.load %arg34[%c0_207, %c0_208, %c0_209] : memref<4x32x8xf32, #tpu.memory_space<vmem>>, vector<1x32x8xf32>
    %384 = vector.shape_cast %383 : vector<1x32x8xf32> to vector<32x8xf32>
    %cst_210 = arith.constant dense<0.000000e+00> : vector<16x8xf32>
    %385 = tpu.matmul %375, %384, %cst_210 {dimension_numbers = #tpu.dot_dimension_numbers<[1], [0], [0], [1], [0, 0, 1, 1], [], []>} : vector<16x32xf32>, vector<32x8xf32>, vector<16x8xf32> -> vector<16x8xf32>
    %c0_211 = arith.constant 0 : index
    %c0_212 = arith.constant 0 : index
    %c0_213 = arith.constant 0 : index
    %386 = vector.load %arg33[%c0_211, %c0_212, %c0_213] : memref<4x1x8xf32, #tpu.memory_space<vmem>>, vector<1x1x8xf32>
    %387 = vector.shape_cast %386 : vector<1x1x8xf32> to vector<1x8xf32>
    %388 = vector.broadcast %387 : vector<1x8xf32> to vector<16x8xf32>
    %389 = arith.addf %385, %388 : vector<16x8xf32>
    %c0_214 = arith.constant 0 : index
    %c0_215 = arith.constant 0 : index
    %c0_216 = arith.constant 0 : index
    %390 = vector.load %arg44[%c0_214, %c0_215, %c0_216] : memref<4x32x8xf32, #tpu.memory_space<vmem>>, vector<1x32x8xf32>
    %391 = vector.shape_cast %390 : vector<1x32x8xf32> to vector<32x8xf32>
    %cst_217 = arith.constant dense<0.000000e+00> : vector<16x8xf32>
    %392 = tpu.matmul %375, %391, %cst_217 {dimension_numbers = #tpu.dot_dimension_numbers<[1], [0], [0], [1], [0, 0, 1, 1], [], []>} : vector<16x32xf32>, vector<32x8xf32>, vector<16x8xf32> -> vector<16x8xf32>
    %c0_218 = arith.constant 0 : index
    %c0_219 = arith.constant 0 : index
    %c0_220 = arith.constant 0 : index
    %393 = vector.load %arg43[%c0_218, %c0_219, %c0_220] : memref<4x1x8xf32, #tpu.memory_space<vmem>>, vector<1x1x8xf32>
    %394 = vector.shape_cast %393 : vector<1x1x8xf32> to vector<1x8xf32>
    %395 = vector.broadcast %394 : vector<1x8xf32> to vector<16x8xf32>
    %396 = arith.addf %392, %395 : vector<16x8xf32>
    %c0_221 = arith.constant 0 : index
    %c0_222 = arith.constant 0 : index
    %c0_223 = arith.constant 0 : index
    %397 = vector.load %arg40[%c0_221, %c0_222, %c0_223] : memref<4x8x32xf32, #tpu.memory_space<vmem>>, vector<1x8x32xf32>
    %398 = vector.shape_cast %397 : vector<1x8x32xf32> to vector<8x32xf32>
    %c1_224 = arith.constant 1 : index
    %c0_225 = arith.constant 0 : index
    %c0_226 = arith.constant 0 : index
    %399 = vector.load %arg42[%c1_224, %c0_225, %c0_226] : memref<4x32x8xf32, #tpu.memory_space<vmem>>, vector<1x32x8xf32>
    %400 = vector.shape_cast %399 : vector<1x32x8xf32> to vector<32x8xf32>
    %cst_227 = arith.constant dense<0.000000e+00> : vector<16x8xf32>
    %401 = tpu.matmul %375, %400, %cst_227 {dimension_numbers = #tpu.dot_dimension_numbers<[1], [0], [0], [1], [0, 0, 1, 1], [], []>} : vector<16x32xf32>, vector<32x8xf32>, vector<16x8xf32> -> vector<16x8xf32>
    %c1_228 = arith.constant 1 : index
    %c0_229 = arith.constant 0 : index
    %c0_230 = arith.constant 0 : index
    %402 = vector.load %arg41[%c1_228, %c0_229, %c0_230] : memref<4x1x8xf32, #tpu.memory_space<vmem>>, vector<1x1x8xf32>
    %403 = vector.shape_cast %402 : vector<1x1x8xf32> to vector<1x8xf32>
    %404 = vector.broadcast %403 : vector<1x8xf32> to vector<16x8xf32>
    %405 = arith.addf %401, %404 : vector<16x8xf32>
    %c1_231 = arith.constant 1 : index
    %c0_232 = arith.constant 0 : index
    %c0_233 = arith.constant 0 : index
    %406 = vector.load %arg34[%c1_231, %c0_232, %c0_233] : memref<4x32x8xf32, #tpu.memory_space<vmem>>, vector<1x32x8xf32>
    %407 = vector.shape_cast %406 : vector<1x32x8xf32> to vector<32x8xf32>
    %cst_234 = arith.constant dense<0.000000e+00> : vector<16x8xf32>
    %408 = tpu.matmul %375, %407, %cst_234 {dimension_numbers = #tpu.dot_dimension_numbers<[1], [0], [0], [1], [0, 0, 1, 1], [], []>} : vector<16x32xf32>, vector<32x8xf32>, vector<16x8xf32> -> vector<16x8xf32>
    %c1_235 = arith.constant 1 : index
    %c0_236 = arith.constant 0 : index
    %c0_237 = arith.constant 0 : index
    %409 = vector.load %arg33[%c1_235, %c0_236, %c0_237] : memref<4x1x8xf32, #tpu.memory_space<vmem>>, vector<1x1x8xf32>
    %410 = vector.shape_cast %409 : vector<1x1x8xf32> to vector<1x8xf32>
    %411 = vector.broadcast %410 : vector<1x8xf32> to vector<16x8xf32>
    %412 = arith.addf %408, %411 : vector<16x8xf32>
    %c1_238 = arith.constant 1 : index
    %c0_239 = arith.constant 0 : index
    %c0_240 = arith.constant 0 : index
    %413 = vector.load %arg44[%c1_238, %c0_239, %c0_240] : memref<4x32x8xf32, #tpu.memory_space<vmem>>, vector<1x32x8xf32>
    %414 = vector.shape_cast %413 : vector<1x32x8xf32> to vector<32x8xf32>
    %cst_241 = arith.constant dense<0.000000e+00> : vector<16x8xf32>
    %415 = tpu.matmul %375, %414, %cst_241 {dimension_numbers = #tpu.dot_dimension_numbers<[1], [0], [0], [1], [0, 0, 1, 1], [], []>} : vector<16x32xf32>, vector<32x8xf32>, vector<16x8xf32> -> vector<16x8xf32>
    %c1_242 = arith.constant 1 : index
    %c0_243 = arith.constant 0 : index
    %c0_244 = arith.constant 0 : index
    %416 = vector.load %arg43[%c1_242, %c0_243, %c0_244] : memref<4x1x8xf32, #tpu.memory_space<vmem>>, vector<1x1x8xf32>
    %417 = vector.shape_cast %416 : vector<1x1x8xf32> to vector<1x8xf32>
    %418 = vector.broadcast %417 : vector<1x8xf32> to vector<16x8xf32>
    %419 = arith.addf %415, %418 : vector<16x8xf32>
    %c1_245 = arith.constant 1 : index
    %c0_246 = arith.constant 0 : index
    %c0_247 = arith.constant 0 : index
    %420 = vector.load %arg40[%c1_245, %c0_246, %c0_247] : memref<4x8x32xf32, #tpu.memory_space<vmem>>, vector<1x8x32xf32>
    %421 = vector.shape_cast %420 : vector<1x8x32xf32> to vector<8x32xf32>
    %c2_248 = arith.constant 2 : index
    %c0_249 = arith.constant 0 : index
    %c0_250 = arith.constant 0 : index
    %422 = vector.load %arg42[%c2_248, %c0_249, %c0_250] : memref<4x32x8xf32, #tpu.memory_space<vmem>>, vector<1x32x8xf32>
    %423 = vector.shape_cast %422 : vector<1x32x8xf32> to vector<32x8xf32>
    %cst_251 = arith.constant dense<0.000000e+00> : vector<16x8xf32>
    %424 = tpu.matmul %375, %423, %cst_251 {dimension_numbers = #tpu.dot_dimension_numbers<[1], [0], [0], [1], [0, 0, 1, 1], [], []>} : vector<16x32xf32>, vector<32x8xf32>, vector<16x8xf32> -> vector<16x8xf32>
    %c2_252 = arith.constant 2 : index
    %c0_253 = arith.constant 0 : index
    %c0_254 = arith.constant 0 : index
    %425 = vector.load %arg41[%c2_252, %c0_253, %c0_254] : memref<4x1x8xf32, #tpu.memory_space<vmem>>, vector<1x1x8xf32>
    %426 = vector.shape_cast %425 : vector<1x1x8xf32> to vector<1x8xf32>
    %427 = vector.broadcast %426 : vector<1x8xf32> to vector<16x8xf32>
    %428 = arith.addf %424, %427 : vector<16x8xf32>
    %c2_255 = arith.constant 2 : index
    %c0_256 = arith.constant 0 : index
    %c0_257 = arith.constant 0 : index
    %429 = vector.load %arg34[%c2_255, %c0_256, %c0_257] : memref<4x32x8xf32, #tpu.memory_space<vmem>>, vector<1x32x8xf32>
    %430 = vector.shape_cast %429 : vector<1x32x8xf32> to vector<32x8xf32>
    %cst_258 = arith.constant dense<0.000000e+00> : vector<16x8xf32>
    %431 = tpu.matmul %375, %430, %cst_258 {dimension_numbers = #tpu.dot_dimension_numbers<[1], [0], [0], [1], [0, 0, 1, 1], [], []>} : vector<16x32xf32>, vector<32x8xf32>, vector<16x8xf32> -> vector<16x8xf32>
    %c2_259 = arith.constant 2 : index
    %c0_260 = arith.constant 0 : index
    %c0_261 = arith.constant 0 : index
    %432 = vector.load %arg33[%c2_259, %c0_260, %c0_261] : memref<4x1x8xf32, #tpu.memory_space<vmem>>, vector<1x1x8xf32>
    %433 = vector.shape_cast %432 : vector<1x1x8xf32> to vector<1x8xf32>
    %434 = vector.broadcast %433 : vector<1x8xf32> to vector<16x8xf32>
    %435 = arith.addf %431, %434 : vector<16x8xf32>
    %c2_262 = arith.constant 2 : index
    %c0_263 = arith.constant 0 : index
    %c0_264 = arith.constant 0 : index
    %436 = vector.load %arg44[%c2_262, %c0_263, %c0_264] : memref<4x32x8xf32, #tpu.memory_space<vmem>>, vector<1x32x8xf32>
    %437 = vector.shape_cast %436 : vector<1x32x8xf32> to vector<32x8xf32>
    %cst_265 = arith.constant dense<0.000000e+00> : vector<16x8xf32>
    %438 = tpu.matmul %375, %437, %cst_265 {dimension_numbers = #tpu.dot_dimension_numbers<[1], [0], [0], [1], [0, 0, 1, 1], [], []>} : vector<16x32xf32>, vector<32x8xf32>, vector<16x8xf32> -> vector<16x8xf32>
    %c2_266 = arith.constant 2 : index
    %c0_267 = arith.constant 0 : index
    %c0_268 = arith.constant 0 : index
    %439 = vector.load %arg43[%c2_266, %c0_267, %c0_268] : memref<4x1x8xf32, #tpu.memory_space<vmem>>, vector<1x1x8xf32>
    %440 = vector.shape_cast %439 : vector<1x1x8xf32> to vector<1x8xf32>
    %441 = vector.broadcast %440 : vector<1x8xf32> to vector<16x8xf32>
    %442 = arith.addf %438, %441 : vector<16x8xf32>
    %c2_269 = arith.constant 2 : index
    %c0_270 = arith.constant 0 : index
    %c0_271 = arith.constant 0 : index
    %443 = vector.load %arg40[%c2_269, %c0_270, %c0_271] : memref<4x8x32xf32, #tpu.memory_space<vmem>>, vector<1x8x32xf32>
    %444 = vector.shape_cast %443 : vector<1x8x32xf32> to vector<8x32xf32>
    %c3_272 = arith.constant 3 : index
    %c0_273 = arith.constant 0 : index
    %c0_274 = arith.constant 0 : index
    %445 = vector.load %arg42[%c3_272, %c0_273, %c0_274] : memref<4x32x8xf32, #tpu.memory_space<vmem>>, vector<1x32x8xf32>
    %446 = vector.shape_cast %445 : vector<1x32x8xf32> to vector<32x8xf32>
    %cst_275 = arith.constant dense<0.000000e+00> : vector<16x8xf32>
    %447 = tpu.matmul %375, %446, %cst_275 {dimension_numbers = #tpu.dot_dimension_numbers<[1], [0], [0], [1], [0, 0, 1, 1], [], []>} : vector<16x32xf32>, vector<32x8xf32>, vector<16x8xf32> -> vector<16x8xf32>
    %c3_276 = arith.constant 3 : index
    %c0_277 = arith.constant 0 : index
    %c0_278 = arith.constant 0 : index
    %448 = vector.load %arg41[%c3_276, %c0_277, %c0_278] : memref<4x1x8xf32, #tpu.memory_space<vmem>>, vector<1x1x8xf32>
    %449 = vector.shape_cast %448 : vector<1x1x8xf32> to vector<1x8xf32>
    %450 = vector.broadcast %449 : vector<1x8xf32> to vector<16x8xf32>
    %451 = arith.addf %447, %450 : vector<16x8xf32>
    %c3_279 = arith.constant 3 : index
    %c0_280 = arith.constant 0 : index
    %c0_281 = arith.constant 0 : index
    %452 = vector.load %arg34[%c3_279, %c0_280, %c0_281] : memref<4x32x8xf32, #tpu.memory_space<vmem>>, vector<1x32x8xf32>
    %453 = vector.shape_cast %452 : vector<1x32x8xf32> to vector<32x8xf32>
    %cst_282 = arith.constant dense<0.000000e+00> : vector<16x8xf32>
    %454 = tpu.matmul %375, %453, %cst_282 {dimension_numbers = #tpu.dot_dimension_numbers<[1], [0], [0], [1], [0, 0, 1, 1], [], []>} : vector<16x32xf32>, vector<32x8xf32>, vector<16x8xf32> -> vector<16x8xf32>
    %c3_283 = arith.constant 3 : index
    %c0_284 = arith.constant 0 : index
    %c0_285 = arith.constant 0 : index
    %455 = vector.load %arg33[%c3_283, %c0_284, %c0_285] : memref<4x1x8xf32, #tpu.memory_space<vmem>>, vector<1x1x8xf32>
    %456 = vector.shape_cast %455 : vector<1x1x8xf32> to vector<1x8xf32>
    %457 = vector.broadcast %456 : vector<1x8xf32> to vector<16x8xf32>
    %458 = arith.addf %454, %457 : vector<16x8xf32>
    %c3_286 = arith.constant 3 : index
    %c0_287 = arith.constant 0 : index
    %c0_288 = arith.constant 0 : index
    %459 = vector.load %arg44[%c3_286, %c0_287, %c0_288] : memref<4x32x8xf32, #tpu.memory_space<vmem>>, vector<1x32x8xf32>
    %460 = vector.shape_cast %459 : vector<1x32x8xf32> to vector<32x8xf32>
    %cst_289 = arith.constant dense<0.000000e+00> : vector<16x8xf32>
    %461 = tpu.matmul %375, %460, %cst_289 {dimension_numbers = #tpu.dot_dimension_numbers<[1], [0], [0], [1], [0, 0, 1, 1], [], []>} : vector<16x32xf32>, vector<32x8xf32>, vector<16x8xf32> -> vector<16x8xf32>
    %c3_290 = arith.constant 3 : index
    %c0_291 = arith.constant 0 : index
    %c0_292 = arith.constant 0 : index
    %462 = vector.load %arg43[%c3_290, %c0_291, %c0_292] : memref<4x1x8xf32, #tpu.memory_space<vmem>>, vector<1x1x8xf32>
    %463 = vector.shape_cast %462 : vector<1x1x8xf32> to vector<1x8xf32>
    %464 = vector.broadcast %463 : vector<1x8xf32> to vector<16x8xf32>
    %465 = arith.addf %461, %464 : vector<16x8xf32>
    %c3_293 = arith.constant 3 : index
    %c0_294 = arith.constant 0 : index
    %c0_295 = arith.constant 0 : index
    %466 = vector.load %arg40[%c3_293, %c0_294, %c0_295] : memref<4x8x32xf32, #tpu.memory_space<vmem>>, vector<1x8x32xf32>
    %467 = vector.shape_cast %466 : vector<1x8x32xf32> to vector<8x32xf32>
    %468 = vector.extract_strided_slice %382 {offsets = [0, 0], sizes = [8, 8], strides = [1, 1]} : vector<16x8xf32> to vector<8x8xf32>
    %469 = vector.extract_strided_slice %389 {offsets = [0, 0], sizes = [8, 8], strides = [1, 1]} : vector<16x8xf32> to vector<8x8xf32>
    %470 = vector.extract_strided_slice %396 {offsets = [0, 0], sizes = [8, 8], strides = [1, 1]} : vector<16x8xf32> to vector<8x8xf32>
    %cst_296 = arith.constant dense<0.000000e+00> : vector<8x8xf32>
    %471 = tpu.matmul %468, %469, %cst_296 {dimension_numbers = #tpu.dot_dimension_numbers<[1], [1], [0], [0], [0, 0, 1, 0], [], []>} : vector<8x8xf32>, vector<8x8xf32>, vector<8x8xf32> -> vector<8x8xf32>
    %cst_297 = arith.constant 0.353553385 : f32
    %472 = vector.broadcast %cst_297 : f32 to vector<8x8xf32>
    %473 = arith.mulf %471, %472 : vector<8x8xf32>
    %cst_298 = arith.constant dense<0xFF800000> : vector<8xf32>
    %474 = vector.multi_reduction <maximumf>, %473, %cst_298 [1] : vector<8x8xf32> to vector<8xf32>
    %475 = vector.shape_cast %474 : vector<8xf32> to vector<8x1xf32>
    %476 = vector.broadcast %475 : vector<8x1xf32> to vector<8x8xf32>
    %477 = arith.subf %473, %476 : vector<8x8xf32>
    %478 = math.exp %477 : vector<8x8xf32>
    %cst_299 = arith.constant dense<0.000000e+00> : vector<8xf32>
    %479 = vector.multi_reduction <add>, %478, %cst_299 [1] : vector<8x8xf32> to vector<8xf32>
    %480 = vector.shape_cast %479 : vector<8xf32> to vector<8x1xf32>
    %481 = tpu.reciprocal %480 {approx = true} : vector<8x1xf32> -> vector<8x1xf32>
    %482 = vector.broadcast %481 : vector<8x1xf32> to vector<8x8xf32>
    %483 = arith.mulf %478, %482 : vector<8x8xf32>
    %cst_300 = arith.constant dense<0.000000e+00> : vector<8x8xf32>
    %484 = tpu.matmul %483, %470, %cst_300 {dimension_numbers = #tpu.dot_dimension_numbers<[1], [0], [0], [1], [0, 0, 1, 1], [], []>} : vector<8x8xf32>, vector<8x8xf32>, vector<8x8xf32> -> vector<8x8xf32>
    %cst_301 = arith.constant dense<0.000000e+00> : vector<8x32xf32>
    %485 = tpu.matmul %484, %398, %cst_301 {dimension_numbers = #tpu.dot_dimension_numbers<[1], [0], [0], [1], [0, 0, 1, 1], [], []>} : vector<8x8xf32>, vector<8x32xf32>, vector<8x32xf32> -> vector<8x32xf32>
    %486 = vector.extract_strided_slice %405 {offsets = [0, 0], sizes = [8, 8], strides = [1, 1]} : vector<16x8xf32> to vector<8x8xf32>
    %487 = vector.extract_strided_slice %412 {offsets = [0, 0], sizes = [8, 8], strides = [1, 1]} : vector<16x8xf32> to vector<8x8xf32>
    %488 = vector.extract_strided_slice %419 {offsets = [0, 0], sizes = [8, 8], strides = [1, 1]} : vector<16x8xf32> to vector<8x8xf32>
    %cst_302 = arith.constant dense<0.000000e+00> : vector<8x8xf32>
    %489 = tpu.matmul %486, %487, %cst_302 {dimension_numbers = #tpu.dot_dimension_numbers<[1], [1], [0], [0], [0, 0, 1, 0], [], []>} : vector<8x8xf32>, vector<8x8xf32>, vector<8x8xf32> -> vector<8x8xf32>
    %cst_303 = arith.constant 0.353553385 : f32
    %490 = vector.broadcast %cst_303 : f32 to vector<8x8xf32>
    %491 = arith.mulf %489, %490 : vector<8x8xf32>
    %cst_304 = arith.constant dense<0xFF800000> : vector<8xf32>
    %492 = vector.multi_reduction <maximumf>, %491, %cst_304 [1] : vector<8x8xf32> to vector<8xf32>
    %493 = vector.shape_cast %492 : vector<8xf32> to vector<8x1xf32>
    %494 = vector.broadcast %493 : vector<8x1xf32> to vector<8x8xf32>
    %495 = arith.subf %491, %494 : vector<8x8xf32>
    %496 = math.exp %495 : vector<8x8xf32>
    %cst_305 = arith.constant dense<0.000000e+00> : vector<8xf32>
    %497 = vector.multi_reduction <add>, %496, %cst_305 [1] : vector<8x8xf32> to vector<8xf32>
    %498 = vector.shape_cast %497 : vector<8xf32> to vector<8x1xf32>
    %499 = tpu.reciprocal %498 {approx = true} : vector<8x1xf32> -> vector<8x1xf32>
    %500 = vector.broadcast %499 : vector<8x1xf32> to vector<8x8xf32>
    %501 = arith.mulf %496, %500 : vector<8x8xf32>
    %cst_306 = arith.constant dense<0.000000e+00> : vector<8x8xf32>
    %502 = tpu.matmul %501, %488, %cst_306 {dimension_numbers = #tpu.dot_dimension_numbers<[1], [0], [0], [1], [0, 0, 1, 1], [], []>} : vector<8x8xf32>, vector<8x8xf32>, vector<8x8xf32> -> vector<8x8xf32>
    %cst_307 = arith.constant dense<0.000000e+00> : vector<8x32xf32>
    %503 = tpu.matmul %502, %421, %cst_307 {dimension_numbers = #tpu.dot_dimension_numbers<[1], [0], [0], [1], [0, 0, 1, 1], [], []>} : vector<8x8xf32>, vector<8x32xf32>, vector<8x32xf32> -> vector<8x32xf32>
    %504 = vector.extract_strided_slice %428 {offsets = [0, 0], sizes = [8, 8], strides = [1, 1]} : vector<16x8xf32> to vector<8x8xf32>
    %505 = vector.extract_strided_slice %435 {offsets = [0, 0], sizes = [8, 8], strides = [1, 1]} : vector<16x8xf32> to vector<8x8xf32>
    %506 = vector.extract_strided_slice %442 {offsets = [0, 0], sizes = [8, 8], strides = [1, 1]} : vector<16x8xf32> to vector<8x8xf32>
    %cst_308 = arith.constant dense<0.000000e+00> : vector<8x8xf32>
    %507 = tpu.matmul %504, %505, %cst_308 {dimension_numbers = #tpu.dot_dimension_numbers<[1], [1], [0], [0], [0, 0, 1, 0], [], []>} : vector<8x8xf32>, vector<8x8xf32>, vector<8x8xf32> -> vector<8x8xf32>
    %cst_309 = arith.constant 0.353553385 : f32
    %508 = vector.broadcast %cst_309 : f32 to vector<8x8xf32>
    %509 = arith.mulf %507, %508 : vector<8x8xf32>
    %cst_310 = arith.constant dense<0xFF800000> : vector<8xf32>
    %510 = vector.multi_reduction <maximumf>, %509, %cst_310 [1] : vector<8x8xf32> to vector<8xf32>
    %511 = vector.shape_cast %510 : vector<8xf32> to vector<8x1xf32>
    %512 = vector.broadcast %511 : vector<8x1xf32> to vector<8x8xf32>
    %513 = arith.subf %509, %512 : vector<8x8xf32>
    %514 = math.exp %513 : vector<8x8xf32>
    %cst_311 = arith.constant dense<0.000000e+00> : vector<8xf32>
    %515 = vector.multi_reduction <add>, %514, %cst_311 [1] : vector<8x8xf32> to vector<8xf32>
    %516 = vector.shape_cast %515 : vector<8xf32> to vector<8x1xf32>
    %517 = tpu.reciprocal %516 {approx = true} : vector<8x1xf32> -> vector<8x1xf32>
    %518 = vector.broadcast %517 : vector<8x1xf32> to vector<8x8xf32>
    %519 = arith.mulf %514, %518 : vector<8x8xf32>
    %cst_312 = arith.constant dense<0.000000e+00> : vector<8x8xf32>
    %520 = tpu.matmul %519, %506, %cst_312 {dimension_numbers = #tpu.dot_dimension_numbers<[1], [0], [0], [1], [0, 0, 1, 1], [], []>} : vector<8x8xf32>, vector<8x8xf32>, vector<8x8xf32> -> vector<8x8xf32>
    %cst_313 = arith.constant dense<0.000000e+00> : vector<8x32xf32>
    %521 = tpu.matmul %520, %444, %cst_313 {dimension_numbers = #tpu.dot_dimension_numbers<[1], [0], [0], [1], [0, 0, 1, 1], [], []>} : vector<8x8xf32>, vector<8x32xf32>, vector<8x32xf32> -> vector<8x32xf32>
    %522 = vector.extract_strided_slice %451 {offsets = [0, 0], sizes = [8, 8], strides = [1, 1]} : vector<16x8xf32> to vector<8x8xf32>
    %523 = vector.extract_strided_slice %458 {offsets = [0, 0], sizes = [8, 8], strides = [1, 1]} : vector<16x8xf32> to vector<8x8xf32>
    %524 = vector.extract_strided_slice %465 {offsets = [0, 0], sizes = [8, 8], strides = [1, 1]} : vector<16x8xf32> to vector<8x8xf32>
    %cst_314 = arith.constant dense<0.000000e+00> : vector<8x8xf32>
    %525 = tpu.matmul %522, %523, %cst_314 {dimension_numbers = #tpu.dot_dimension_numbers<[1], [1], [0], [0], [0, 0, 1, 0], [], []>} : vector<8x8xf32>, vector<8x8xf32>, vector<8x8xf32> -> vector<8x8xf32>
    %cst_315 = arith.constant 0.353553385 : f32
    %526 = vector.broadcast %cst_315 : f32 to vector<8x8xf32>
    %527 = arith.mulf %525, %526 : vector<8x8xf32>
    %cst_316 = arith.constant dense<0xFF800000> : vector<8xf32>
    %528 = vector.multi_reduction <maximumf>, %527, %cst_316 [1] : vector<8x8xf32> to vector<8xf32>
    %529 = vector.shape_cast %528 : vector<8xf32> to vector<8x1xf32>
    %530 = vector.broadcast %529 : vector<8x1xf32> to vector<8x8xf32>
    %531 = arith.subf %527, %530 : vector<8x8xf32>
    %532 = math.exp %531 : vector<8x8xf32>
    %cst_317 = arith.constant dense<0.000000e+00> : vector<8xf32>
    %533 = vector.multi_reduction <add>, %532, %cst_317 [1] : vector<8x8xf32> to vector<8xf32>
    %534 = vector.shape_cast %533 : vector<8xf32> to vector<8x1xf32>
    %535 = tpu.reciprocal %534 {approx = true} : vector<8x1xf32> -> vector<8x1xf32>
    %536 = vector.broadcast %535 : vector<8x1xf32> to vector<8x8xf32>
    %537 = arith.mulf %532, %536 : vector<8x8xf32>
    %cst_318 = arith.constant dense<0.000000e+00> : vector<8x8xf32>
    %538 = tpu.matmul %537, %524, %cst_318 {dimension_numbers = #tpu.dot_dimension_numbers<[1], [0], [0], [1], [0, 0, 1, 1], [], []>} : vector<8x8xf32>, vector<8x8xf32>, vector<8x8xf32> -> vector<8x8xf32>
    %cst_319 = arith.constant dense<0.000000e+00> : vector<8x32xf32>
    %539 = tpu.matmul %538, %467, %cst_319 {dimension_numbers = #tpu.dot_dimension_numbers<[1], [0], [0], [1], [0, 0, 1, 1], [], []>} : vector<8x8xf32>, vector<8x32xf32>, vector<8x32xf32> -> vector<8x32xf32>
    %540 = arith.addf %485, %503 : vector<8x32xf32>
    %541 = arith.addf %521, %539 : vector<8x32xf32>
    %542 = arith.addf %540, %541 : vector<8x32xf32>
    %543 = vector.extract_strided_slice %382 {offsets = [8, 0], sizes = [8, 8], strides = [1, 1]} : vector<16x8xf32> to vector<8x8xf32>
    %544 = vector.extract_strided_slice %389 {offsets = [8, 0], sizes = [8, 8], strides = [1, 1]} : vector<16x8xf32> to vector<8x8xf32>
    %545 = vector.extract_strided_slice %396 {offsets = [8, 0], sizes = [8, 8], strides = [1, 1]} : vector<16x8xf32> to vector<8x8xf32>
    %cst_320 = arith.constant dense<0.000000e+00> : vector<8x8xf32>
    %546 = tpu.matmul %543, %544, %cst_320 {dimension_numbers = #tpu.dot_dimension_numbers<[1], [1], [0], [0], [0, 0, 1, 0], [], []>} : vector<8x8xf32>, vector<8x8xf32>, vector<8x8xf32> -> vector<8x8xf32>
    %cst_321 = arith.constant 0.353553385 : f32
    %547 = vector.broadcast %cst_321 : f32 to vector<8x8xf32>
    %548 = arith.mulf %546, %547 : vector<8x8xf32>
    %cst_322 = arith.constant dense<0xFF800000> : vector<8xf32>
    %549 = vector.multi_reduction <maximumf>, %548, %cst_322 [1] : vector<8x8xf32> to vector<8xf32>
    %550 = vector.shape_cast %549 : vector<8xf32> to vector<8x1xf32>
    %551 = vector.broadcast %550 : vector<8x1xf32> to vector<8x8xf32>
    %552 = arith.subf %548, %551 : vector<8x8xf32>
    %553 = math.exp %552 : vector<8x8xf32>
    %cst_323 = arith.constant dense<0.000000e+00> : vector<8xf32>
    %554 = vector.multi_reduction <add>, %553, %cst_323 [1] : vector<8x8xf32> to vector<8xf32>
    %555 = vector.shape_cast %554 : vector<8xf32> to vector<8x1xf32>
    %556 = tpu.reciprocal %555 {approx = true} : vector<8x1xf32> -> vector<8x1xf32>
    %557 = vector.broadcast %556 : vector<8x1xf32> to vector<8x8xf32>
    %558 = arith.mulf %553, %557 : vector<8x8xf32>
    %cst_324 = arith.constant dense<0.000000e+00> : vector<8x8xf32>
    %559 = tpu.matmul %558, %545, %cst_324 {dimension_numbers = #tpu.dot_dimension_numbers<[1], [0], [0], [1], [0, 0, 1, 1], [], []>} : vector<8x8xf32>, vector<8x8xf32>, vector<8x8xf32> -> vector<8x8xf32>
    %cst_325 = arith.constant dense<0.000000e+00> : vector<8x32xf32>
    %560 = tpu.matmul %559, %398, %cst_325 {dimension_numbers = #tpu.dot_dimension_numbers<[1], [0], [0], [1], [0, 0, 1, 1], [], []>} : vector<8x8xf32>, vector<8x32xf32>, vector<8x32xf32> -> vector<8x32xf32>
    %561 = vector.extract_strided_slice %405 {offsets = [8, 0], sizes = [8, 8], strides = [1, 1]} : vector<16x8xf32> to vector<8x8xf32>
    %562 = vector.extract_strided_slice %412 {offsets = [8, 0], sizes = [8, 8], strides = [1, 1]} : vector<16x8xf32> to vector<8x8xf32>
    %563 = vector.extract_strided_slice %419 {offsets = [8, 0], sizes = [8, 8], strides = [1, 1]} : vector<16x8xf32> to vector<8x8xf32>
    %cst_326 = arith.constant dense<0.000000e+00> : vector<8x8xf32>
    %564 = tpu.matmul %561, %562, %cst_326 {dimension_numbers = #tpu.dot_dimension_numbers<[1], [1], [0], [0], [0, 0, 1, 0], [], []>} : vector<8x8xf32>, vector<8x8xf32>, vector<8x8xf32> -> vector<8x8xf32>
    %cst_327 = arith.constant 0.353553385 : f32
    %565 = vector.broadcast %cst_327 : f32 to vector<8x8xf32>
    %566 = arith.mulf %564, %565 : vector<8x8xf32>
    %cst_328 = arith.constant dense<0xFF800000> : vector<8xf32>
    %567 = vector.multi_reduction <maximumf>, %566, %cst_328 [1] : vector<8x8xf32> to vector<8xf32>
    %568 = vector.shape_cast %567 : vector<8xf32> to vector<8x1xf32>
    %569 = vector.broadcast %568 : vector<8x1xf32> to vector<8x8xf32>
    %570 = arith.subf %566, %569 : vector<8x8xf32>
    %571 = math.exp %570 : vector<8x8xf32>
    %cst_329 = arith.constant dense<0.000000e+00> : vector<8xf32>
    %572 = vector.multi_reduction <add>, %571, %cst_329 [1] : vector<8x8xf32> to vector<8xf32>
    %573 = vector.shape_cast %572 : vector<8xf32> to vector<8x1xf32>
    %574 = tpu.reciprocal %573 {approx = true} : vector<8x1xf32> -> vector<8x1xf32>
    %575 = vector.broadcast %574 : vector<8x1xf32> to vector<8x8xf32>
    %576 = arith.mulf %571, %575 : vector<8x8xf32>
    %cst_330 = arith.constant dense<0.000000e+00> : vector<8x8xf32>
    %577 = tpu.matmul %576, %563, %cst_330 {dimension_numbers = #tpu.dot_dimension_numbers<[1], [0], [0], [1], [0, 0, 1, 1], [], []>} : vector<8x8xf32>, vector<8x8xf32>, vector<8x8xf32> -> vector<8x8xf32>
    %cst_331 = arith.constant dense<0.000000e+00> : vector<8x32xf32>
    %578 = tpu.matmul %577, %421, %cst_331 {dimension_numbers = #tpu.dot_dimension_numbers<[1], [0], [0], [1], [0, 0, 1, 1], [], []>} : vector<8x8xf32>, vector<8x32xf32>, vector<8x32xf32> -> vector<8x32xf32>
    %579 = vector.extract_strided_slice %428 {offsets = [8, 0], sizes = [8, 8], strides = [1, 1]} : vector<16x8xf32> to vector<8x8xf32>
    %580 = vector.extract_strided_slice %435 {offsets = [8, 0], sizes = [8, 8], strides = [1, 1]} : vector<16x8xf32> to vector<8x8xf32>
    %581 = vector.extract_strided_slice %442 {offsets = [8, 0], sizes = [8, 8], strides = [1, 1]} : vector<16x8xf32> to vector<8x8xf32>
    %cst_332 = arith.constant dense<0.000000e+00> : vector<8x8xf32>
    %582 = tpu.matmul %579, %580, %cst_332 {dimension_numbers = #tpu.dot_dimension_numbers<[1], [1], [0], [0], [0, 0, 1, 0], [], []>} : vector<8x8xf32>, vector<8x8xf32>, vector<8x8xf32> -> vector<8x8xf32>
    %cst_333 = arith.constant 0.353553385 : f32
    %583 = vector.broadcast %cst_333 : f32 to vector<8x8xf32>
    %584 = arith.mulf %582, %583 : vector<8x8xf32>
    %cst_334 = arith.constant dense<0xFF800000> : vector<8xf32>
    %585 = vector.multi_reduction <maximumf>, %584, %cst_334 [1] : vector<8x8xf32> to vector<8xf32>
    %586 = vector.shape_cast %585 : vector<8xf32> to vector<8x1xf32>
    %587 = vector.broadcast %586 : vector<8x1xf32> to vector<8x8xf32>
    %588 = arith.subf %584, %587 : vector<8x8xf32>
    %589 = math.exp %588 : vector<8x8xf32>
    %cst_335 = arith.constant dense<0.000000e+00> : vector<8xf32>
    %590 = vector.multi_reduction <add>, %589, %cst_335 [1] : vector<8x8xf32> to vector<8xf32>
    %591 = vector.shape_cast %590 : vector<8xf32> to vector<8x1xf32>
    %592 = tpu.reciprocal %591 {approx = true} : vector<8x1xf32> -> vector<8x1xf32>
    %593 = vector.broadcast %592 : vector<8x1xf32> to vector<8x8xf32>
    %594 = arith.mulf %589, %593 : vector<8x8xf32>
    %cst_336 = arith.constant dense<0.000000e+00> : vector<8x8xf32>
    %595 = tpu.matmul %594, %581, %cst_336 {dimension_numbers = #tpu.dot_dimension_numbers<[1], [0], [0], [1], [0, 0, 1, 1], [], []>} : vector<8x8xf32>, vector<8x8xf32>, vector<8x8xf32> -> vector<8x8xf32>
    %cst_337 = arith.constant dense<0.000000e+00> : vector<8x32xf32>
    %596 = tpu.matmul %595, %444, %cst_337 {dimension_numbers = #tpu.dot_dimension_numbers<[1], [0], [0], [1], [0, 0, 1, 1], [], []>} : vector<8x8xf32>, vector<8x32xf32>, vector<8x32xf32> -> vector<8x32xf32>
    %597 = vector.extract_strided_slice %451 {offsets = [8, 0], sizes = [8, 8], strides = [1, 1]} : vector<16x8xf32> to vector<8x8xf32>
    %598 = vector.extract_strided_slice %458 {offsets = [8, 0], sizes = [8, 8], strides = [1, 1]} : vector<16x8xf32> to vector<8x8xf32>
    %599 = vector.extract_strided_slice %465 {offsets = [8, 0], sizes = [8, 8], strides = [1, 1]} : vector<16x8xf32> to vector<8x8xf32>
    %cst_338 = arith.constant dense<0.000000e+00> : vector<8x8xf32>
    %600 = tpu.matmul %597, %598, %cst_338 {dimension_numbers = #tpu.dot_dimension_numbers<[1], [1], [0], [0], [0, 0, 1, 0], [], []>} : vector<8x8xf32>, vector<8x8xf32>, vector<8x8xf32> -> vector<8x8xf32>
    %cst_339 = arith.constant 0.353553385 : f32
    %601 = vector.broadcast %cst_339 : f32 to vector<8x8xf32>
    %602 = arith.mulf %600, %601 : vector<8x8xf32>
    %cst_340 = arith.constant dense<0xFF800000> : vector<8xf32>
    %603 = vector.multi_reduction <maximumf>, %602, %cst_340 [1] : vector<8x8xf32> to vector<8xf32>
    %604 = vector.shape_cast %603 : vector<8xf32> to vector<8x1xf32>
    %605 = vector.broadcast %604 : vector<8x1xf32> to vector<8x8xf32>
    %606 = arith.subf %602, %605 : vector<8x8xf32>
    %607 = math.exp %606 : vector<8x8xf32>
    %cst_341 = arith.constant dense<0.000000e+00> : vector<8xf32>
    %608 = vector.multi_reduction <add>, %607, %cst_341 [1] : vector<8x8xf32> to vector<8xf32>
    %609 = vector.shape_cast %608 : vector<8xf32> to vector<8x1xf32>
    %610 = tpu.reciprocal %609 {approx = true} : vector<8x1xf32> -> vector<8x1xf32>
    %611 = vector.broadcast %610 : vector<8x1xf32> to vector<8x8xf32>
    %612 = arith.mulf %607, %611 : vector<8x8xf32>
    %cst_342 = arith.constant dense<0.000000e+00> : vector<8x8xf32>
    %613 = tpu.matmul %612, %599, %cst_342 {dimension_numbers = #tpu.dot_dimension_numbers<[1], [0], [0], [1], [0, 0, 1, 1], [], []>} : vector<8x8xf32>, vector<8x8xf32>, vector<8x8xf32> -> vector<8x8xf32>
    %cst_343 = arith.constant dense<0.000000e+00> : vector<8x32xf32>
    %614 = tpu.matmul %613, %467, %cst_343 {dimension_numbers = #tpu.dot_dimension_numbers<[1], [0], [0], [1], [0, 0, 1, 1], [], []>} : vector<8x8xf32>, vector<8x32xf32>, vector<8x32xf32> -> vector<8x32xf32>
    %615 = arith.addf %560, %578 : vector<8x32xf32>
    %616 = arith.addf %596, %614 : vector<8x32xf32>
    %617 = arith.addf %615, %616 : vector<8x32xf32>
    %618 = tpu.concatenate %542, %617 in 0 : vector<8x32xf32>, vector<8x32xf32> -> vector<16x32xf32>
    %619 = arith.addf %351, %618 : vector<16x32xf32>
    %c0_344 = arith.constant 0 : index
    %c0_345 = arith.constant 0 : index
    %620 = vector.load %arg39[%c0_344, %c0_345] : memref<1x32xf32, #tpu.memory_space<vmem>>, vector<1x32xf32>
    %621 = vector.broadcast %620 : vector<1x32xf32> to vector<16x32xf32>
    %622 = arith.addf %619, %621 : vector<16x32xf32>
    %c0_346 = arith.constant 0 : index
    %c0_347 = arith.constant 0 : index
    %623 = vector.load %arg38[%c0_346, %c0_347] : memref<1x32xf32, #tpu.memory_space<vmem>>, vector<1x32xf32>
    %c0_348 = arith.constant 0 : index
    %c0_349 = arith.constant 0 : index
    %624 = vector.load %arg37[%c0_348, %c0_349] : memref<1x32xf32, #tpu.memory_space<vmem>>, vector<1x32xf32>
    %cst_350 = arith.constant dense<0.000000e+00> : vector<16xf32>
    %625 = vector.multi_reduction <add>, %622, %cst_350 [1] : vector<16x32xf32> to vector<16xf32>
    %626 = vector.shape_cast %625 : vector<16xf32> to vector<16x1xf32>
    %cst_351 = arith.constant 3.200000e+01 : f32
    %627 = vector.broadcast %cst_351 : f32 to vector<16x1xf32>
    %628 = arith.divf %626, %627 : vector<16x1xf32>
    %629 = vector.broadcast %628 : vector<16x1xf32> to vector<16x32xf32>
    %630 = arith.subf %622, %629 : vector<16x32xf32>
    %631 = arith.mulf %630, %630 : vector<16x32xf32>
    %cst_352 = arith.constant dense<0.000000e+00> : vector<16xf32>
    %632 = vector.multi_reduction <add>, %631, %cst_352 [1] : vector<16x32xf32> to vector<16xf32>
    %633 = vector.shape_cast %632 : vector<16xf32> to vector<16x1xf32>
    %cst_353 = arith.constant 3.200000e+01 : f32
    %634 = vector.broadcast %cst_353 : f32 to vector<16x1xf32>
    %635 = arith.divf %633, %634 : vector<16x1xf32>
    %636 = vector.broadcast %628 : vector<16x1xf32> to vector<16x32xf32>
    %637 = arith.subf %622, %636 : vector<16x32xf32>
    %cst_354 = arith.constant 9.99999974E-6 : f32
    %638 = vector.broadcast %cst_354 : f32 to vector<16x1xf32>
    %639 = arith.addf %635, %638 : vector<16x1xf32>
    %640 = math.rsqrt %639 : vector<16x1xf32>
    %641 = vector.broadcast %640 : vector<16x1xf32> to vector<16x32xf32>
    %642 = arith.mulf %637, %641 : vector<16x32xf32>
    %643 = vector.broadcast %623 : vector<1x32xf32> to vector<16x32xf32>
    %644 = arith.mulf %642, %643 : vector<16x32xf32>
    %645 = vector.broadcast %624 : vector<1x32xf32> to vector<16x32xf32>
    %646 = arith.addf %644, %645 : vector<16x32xf32>
    %c0_355 = arith.constant 0 : index
    %c0_356 = arith.constant 0 : index
    %647 = vector.load %arg30[%c0_355, %c0_356] : memref<32x64xf32, #tpu.memory_space<vmem>>, vector<32x64xf32>
    %cst_357 = arith.constant dense<0.000000e+00> : vector<16x64xf32>
    %648 = tpu.matmul %646, %647, %cst_357 {dimension_numbers = #tpu.dot_dimension_numbers<[1], [0], [0], [1], [0, 0, 1, 1], [], []>} : vector<16x32xf32>, vector<32x64xf32>, vector<16x64xf32> -> vector<16x64xf32>
    %c0_358 = arith.constant 0 : index
    %c0_359 = arith.constant 0 : index
    %649 = vector.load %arg29[%c0_358, %c0_359] : memref<1x64xf32, #tpu.memory_space<vmem>>, vector<1x64xf32>
    %650 = vector.broadcast %649 : vector<1x64xf32> to vector<16x64xf32>
    %651 = arith.addf %648, %650 : vector<16x64xf32>
    %cst_360 = arith.constant 0.707106769 : f32
    %652 = vector.broadcast %cst_360 : f32 to vector<16x64xf32>
    %653 = arith.mulf %651, %652 : vector<16x64xf32>
    %654 = math.absf %653 : vector<16x64xf32>
    %cst_361 = arith.constant 0.327591091 : f32
    %655 = vector.broadcast %cst_361 : f32 to vector<16x64xf32>
    %656 = arith.mulf %655, %654 : vector<16x64xf32>
    %cst_362 = arith.constant 1.000000e+00 : f32
    %657 = vector.broadcast %cst_362 : f32 to vector<16x64xf32>
    %658 = arith.addf %657, %656 : vector<16x64xf32>
    %cst_363 = arith.constant 1.000000e+00 : f32
    %659 = vector.broadcast %cst_363 : f32 to vector<16x64xf32>
    %660 = arith.divf %659, %658 : vector<16x64xf32>
    %cst_364 = arith.constant 1.06140542 : f32
    %661 = vector.broadcast %cst_364 : f32 to vector<16x64xf32>
    %662 = arith.mulf %661, %660 : vector<16x64xf32>
    %cst_365 = arith.constant -1.45315206 : f32
    %663 = vector.broadcast %cst_365 : f32 to vector<16x64xf32>
    %664 = arith.addf %662, %663 : vector<16x64xf32>
    %665 = arith.mulf %664, %660 : vector<16x64xf32>
    %cst_366 = arith.constant 1.42141378 : f32
    %666 = vector.broadcast %cst_366 : f32 to vector<16x64xf32>
    %667 = arith.addf %665, %666 : vector<16x64xf32>
    %668 = arith.mulf %667, %660 : vector<16x64xf32>
    %cst_367 = arith.constant -0.284496725 : f32
    %669 = vector.broadcast %cst_367 : f32 to vector<16x64xf32>
    %670 = arith.addf %668, %669 : vector<16x64xf32>
    %671 = arith.mulf %670, %660 : vector<16x64xf32>
    %cst_368 = arith.constant 0.254829586 : f32
    %672 = vector.broadcast %cst_368 : f32 to vector<16x64xf32>
    %673 = arith.addf %671, %672 : vector<16x64xf32>
    %674 = arith.mulf %673, %660 : vector<16x64xf32>
    %cst_369 = arith.constant 0.000000e+00 : f32
    %675 = vector.broadcast %cst_369 : f32 to vector<16x64xf32>
    %676 = arith.subf %675, %654 : vector<16x64xf32>
    %677 = arith.mulf %676, %654 : vector<16x64xf32>
    %678 = math.exp %677 : vector<16x64xf32>
    %679 = arith.mulf %674, %678 : vector<16x64xf32>
    %cst_370 = arith.constant 1.000000e+00 : f32
    %680 = vector.broadcast %cst_370 : f32 to vector<16x64xf32>
    %681 = arith.subf %680, %679 : vector<16x64xf32>
    %cst_371 = arith.constant 0.000000e+00 : f32
    %682 = vector.broadcast %cst_371 : f32 to vector<16x64xf32>
    %683 = arith.cmpf oge, %653, %682 : vector<16x64xf32>
    %cst_372 = arith.constant 0.000000e+00 : f32
    %684 = vector.broadcast %cst_372 : f32 to vector<16x64xf32>
    %685 = arith.subf %684, %681 : vector<16x64xf32>
    %686 = arith.select %683, %681, %685 : vector<16x64xi1>, vector<16x64xf32>
    %cst_373 = arith.constant 5.000000e-01 : f32
    %687 = vector.broadcast %cst_373 : f32 to vector<16x64xf32>
    %688 = arith.mulf %687, %651 : vector<16x64xf32>
    %cst_374 = arith.constant 1.000000e+00 : f32
    %689 = vector.broadcast %cst_374 : f32 to vector<16x64xf32>
    %690 = arith.addf %689, %686 : vector<16x64xf32>
    %691 = arith.mulf %688, %690 : vector<16x64xf32>
    %c0_375 = arith.constant 0 : index
    %c0_376 = arith.constant 0 : index
    %692 = vector.load %arg32[%c0_375, %c0_376] : memref<64x32xf32, #tpu.memory_space<vmem>>, vector<64x32xf32>
    %cst_377 = arith.constant dense<0.000000e+00> : vector<16x32xf32>
    %693 = tpu.matmul %691, %692, %cst_377 {dimension_numbers = #tpu.dot_dimension_numbers<[1], [0], [0], [1], [0, 0, 1, 1], [], []>} : vector<16x64xf32>, vector<64x32xf32>, vector<16x32xf32> -> vector<16x32xf32>
    %694 = arith.addf %622, %693 : vector<16x32xf32>
    %c0_378 = arith.constant 0 : index
    %c0_379 = arith.constant 0 : index
    %695 = vector.load %arg31[%c0_378, %c0_379] : memref<1x32xf32, #tpu.memory_space<vmem>>, vector<1x32xf32>
    %696 = vector.broadcast %695 : vector<1x32xf32> to vector<16x32xf32>
    %697 = arith.addf %694, %696 : vector<16x32xf32>
    %698 = vector.extract_strided_slice %697 {offsets = [0, 0], sizes = [1, 32], strides = [1, 1]} : vector<16x32xf32> to vector<1x32xf32>
    %c0_380 = arith.constant 0 : index
    %c0_381 = arith.constant 0 : index
    %c0_382 = arith.constant 0 : index
    %699 = vector.load %arg4[%c0_380, %c0_381, %c0_382] : memref<8x32x64xf32, #tpu.memory_space<vmem>>, vector<1x32x64xf32>
    %700 = vector.shape_cast %699 : vector<1x32x64xf32> to vector<32x64xf32>
    %cst_383 = arith.constant dense<0.000000e+00> : vector<1x64xf32>
    %701 = tpu.matmul %698, %700, %cst_383 {dimension_numbers = #tpu.dot_dimension_numbers<[1], [0], [0], [1], [0, 0, 1, 1], [], []>} : vector<1x32xf32>, vector<32x64xf32>, vector<1x64xf32> -> vector<1x64xf32>
    %702 = vector.extract_strided_slice %697 {offsets = [1, 0], sizes = [1, 32], strides = [1, 1]} : vector<16x32xf32> to vector<1x32xf32>
    %c1_384 = arith.constant 1 : index
    %c0_385 = arith.constant 0 : index
    %c0_386 = arith.constant 0 : index
    %703 = vector.load %arg4[%c1_384, %c0_385, %c0_386] : memref<8x32x64xf32, #tpu.memory_space<vmem>>, vector<1x32x64xf32>
    %704 = vector.shape_cast %703 : vector<1x32x64xf32> to vector<32x64xf32>
    %cst_387 = arith.constant dense<0.000000e+00> : vector<1x64xf32>
    %705 = tpu.matmul %702, %704, %cst_387 {dimension_numbers = #tpu.dot_dimension_numbers<[1], [0], [0], [1], [0, 0, 1, 1], [], []>} : vector<1x32xf32>, vector<32x64xf32>, vector<1x64xf32> -> vector<1x64xf32>
    %706 = vector.extract_strided_slice %697 {offsets = [2, 0], sizes = [1, 32], strides = [1, 1]} : vector<16x32xf32> to vector<1x32xf32>
    %c2_388 = arith.constant 2 : index
    %c0_389 = arith.constant 0 : index
    %c0_390 = arith.constant 0 : index
    %707 = vector.load %arg4[%c2_388, %c0_389, %c0_390] : memref<8x32x64xf32, #tpu.memory_space<vmem>>, vector<1x32x64xf32>
    %708 = vector.shape_cast %707 : vector<1x32x64xf32> to vector<32x64xf32>
    %cst_391 = arith.constant dense<0.000000e+00> : vector<1x64xf32>
    %709 = tpu.matmul %706, %708, %cst_391 {dimension_numbers = #tpu.dot_dimension_numbers<[1], [0], [0], [1], [0, 0, 1, 1], [], []>} : vector<1x32xf32>, vector<32x64xf32>, vector<1x64xf32> -> vector<1x64xf32>
    %710 = vector.extract_strided_slice %697 {offsets = [3, 0], sizes = [1, 32], strides = [1, 1]} : vector<16x32xf32> to vector<1x32xf32>
    %c3_392 = arith.constant 3 : index
    %c0_393 = arith.constant 0 : index
    %c0_394 = arith.constant 0 : index
    %711 = vector.load %arg4[%c3_392, %c0_393, %c0_394] : memref<8x32x64xf32, #tpu.memory_space<vmem>>, vector<1x32x64xf32>
    %712 = vector.shape_cast %711 : vector<1x32x64xf32> to vector<32x64xf32>
    %cst_395 = arith.constant dense<0.000000e+00> : vector<1x64xf32>
    %713 = tpu.matmul %710, %712, %cst_395 {dimension_numbers = #tpu.dot_dimension_numbers<[1], [0], [0], [1], [0, 0, 1, 1], [], []>} : vector<1x32xf32>, vector<32x64xf32>, vector<1x64xf32> -> vector<1x64xf32>
    %714 = vector.extract_strided_slice %697 {offsets = [4, 0], sizes = [1, 32], strides = [1, 1]} : vector<16x32xf32> to vector<1x32xf32>
    %c4 = arith.constant 4 : index
    %c0_396 = arith.constant 0 : index
    %c0_397 = arith.constant 0 : index
    %715 = vector.load %arg4[%c4, %c0_396, %c0_397] : memref<8x32x64xf32, #tpu.memory_space<vmem>>, vector<1x32x64xf32>
    %716 = vector.shape_cast %715 : vector<1x32x64xf32> to vector<32x64xf32>
    %cst_398 = arith.constant dense<0.000000e+00> : vector<1x64xf32>
    %717 = tpu.matmul %714, %716, %cst_398 {dimension_numbers = #tpu.dot_dimension_numbers<[1], [0], [0], [1], [0, 0, 1, 1], [], []>} : vector<1x32xf32>, vector<32x64xf32>, vector<1x64xf32> -> vector<1x64xf32>
    %718 = vector.extract_strided_slice %697 {offsets = [5, 0], sizes = [1, 32], strides = [1, 1]} : vector<16x32xf32> to vector<1x32xf32>
    %c5 = arith.constant 5 : index
    %c0_399 = arith.constant 0 : index
    %c0_400 = arith.constant 0 : index
    %719 = vector.load %arg4[%c5, %c0_399, %c0_400] : memref<8x32x64xf32, #tpu.memory_space<vmem>>, vector<1x32x64xf32>
    %720 = vector.shape_cast %719 : vector<1x32x64xf32> to vector<32x64xf32>
    %cst_401 = arith.constant dense<0.000000e+00> : vector<1x64xf32>
    %721 = tpu.matmul %718, %720, %cst_401 {dimension_numbers = #tpu.dot_dimension_numbers<[1], [0], [0], [1], [0, 0, 1, 1], [], []>} : vector<1x32xf32>, vector<32x64xf32>, vector<1x64xf32> -> vector<1x64xf32>
    %722 = vector.extract_strided_slice %697 {offsets = [6, 0], sizes = [1, 32], strides = [1, 1]} : vector<16x32xf32> to vector<1x32xf32>
    %c6 = arith.constant 6 : index
    %c0_402 = arith.constant 0 : index
    %c0_403 = arith.constant 0 : index
    %723 = vector.load %arg4[%c6, %c0_402, %c0_403] : memref<8x32x64xf32, #tpu.memory_space<vmem>>, vector<1x32x64xf32>
    %724 = vector.shape_cast %723 : vector<1x32x64xf32> to vector<32x64xf32>
    %cst_404 = arith.constant dense<0.000000e+00> : vector<1x64xf32>
    %725 = tpu.matmul %722, %724, %cst_404 {dimension_numbers = #tpu.dot_dimension_numbers<[1], [0], [0], [1], [0, 0, 1, 1], [], []>} : vector<1x32xf32>, vector<32x64xf32>, vector<1x64xf32> -> vector<1x64xf32>
    %726 = vector.extract_strided_slice %697 {offsets = [7, 0], sizes = [1, 32], strides = [1, 1]} : vector<16x32xf32> to vector<1x32xf32>
    %c7 = arith.constant 7 : index
    %c0_405 = arith.constant 0 : index
    %c0_406 = arith.constant 0 : index
    %727 = vector.load %arg4[%c7, %c0_405, %c0_406] : memref<8x32x64xf32, #tpu.memory_space<vmem>>, vector<1x32x64xf32>
    %728 = vector.shape_cast %727 : vector<1x32x64xf32> to vector<32x64xf32>
    %cst_407 = arith.constant dense<0.000000e+00> : vector<1x64xf32>
    %729 = tpu.matmul %726, %728, %cst_407 {dimension_numbers = #tpu.dot_dimension_numbers<[1], [0], [0], [1], [0, 0, 1, 1], [], []>} : vector<1x32xf32>, vector<32x64xf32>, vector<1x64xf32> -> vector<1x64xf32>
    %730 = arith.addf %701, %705 : vector<1x64xf32>
    %731 = arith.addf %709, %713 : vector<1x64xf32>
    %732 = arith.addf %717, %721 : vector<1x64xf32>
    %733 = arith.addf %725, %729 : vector<1x64xf32>
    %734 = arith.addf %730, %731 : vector<1x64xf32>
    %735 = arith.addf %732, %733 : vector<1x64xf32>
    %736 = arith.addf %734, %735 : vector<1x64xf32>
    %737 = vector.extract_strided_slice %697 {offsets = [8, 0], sizes = [1, 32], strides = [1, 1]} : vector<16x32xf32> to vector<1x32xf32>
    %c0_408 = arith.constant 0 : index
    %c0_409 = arith.constant 0 : index
    %c0_410 = arith.constant 0 : index
    %738 = vector.load %arg4[%c0_408, %c0_409, %c0_410] : memref<8x32x64xf32, #tpu.memory_space<vmem>>, vector<1x32x64xf32>
    %739 = vector.shape_cast %738 : vector<1x32x64xf32> to vector<32x64xf32>
    %cst_411 = arith.constant dense<0.000000e+00> : vector<1x64xf32>
    %740 = tpu.matmul %737, %739, %cst_411 {dimension_numbers = #tpu.dot_dimension_numbers<[1], [0], [0], [1], [0, 0, 1, 1], [], []>} : vector<1x32xf32>, vector<32x64xf32>, vector<1x64xf32> -> vector<1x64xf32>
    %741 = vector.extract_strided_slice %697 {offsets = [9, 0], sizes = [1, 32], strides = [1, 1]} : vector<16x32xf32> to vector<1x32xf32>
    %c1_412 = arith.constant 1 : index
    %c0_413 = arith.constant 0 : index
    %c0_414 = arith.constant 0 : index
    %742 = vector.load %arg4[%c1_412, %c0_413, %c0_414] : memref<8x32x64xf32, #tpu.memory_space<vmem>>, vector<1x32x64xf32>
    %743 = vector.shape_cast %742 : vector<1x32x64xf32> to vector<32x64xf32>
    %cst_415 = arith.constant dense<0.000000e+00> : vector<1x64xf32>
    %744 = tpu.matmul %741, %743, %cst_415 {dimension_numbers = #tpu.dot_dimension_numbers<[1], [0], [0], [1], [0, 0, 1, 1], [], []>} : vector<1x32xf32>, vector<32x64xf32>, vector<1x64xf32> -> vector<1x64xf32>
    %745 = vector.extract_strided_slice %697 {offsets = [10, 0], sizes = [1, 32], strides = [1, 1]} : vector<16x32xf32> to vector<1x32xf32>
    %c2_416 = arith.constant 2 : index
    %c0_417 = arith.constant 0 : index
    %c0_418 = arith.constant 0 : index
    %746 = vector.load %arg4[%c2_416, %c0_417, %c0_418] : memref<8x32x64xf32, #tpu.memory_space<vmem>>, vector<1x32x64xf32>
    %747 = vector.shape_cast %746 : vector<1x32x64xf32> to vector<32x64xf32>
    %cst_419 = arith.constant dense<0.000000e+00> : vector<1x64xf32>
    %748 = tpu.matmul %745, %747, %cst_419 {dimension_numbers = #tpu.dot_dimension_numbers<[1], [0], [0], [1], [0, 0, 1, 1], [], []>} : vector<1x32xf32>, vector<32x64xf32>, vector<1x64xf32> -> vector<1x64xf32>
    %749 = vector.extract_strided_slice %697 {offsets = [11, 0], sizes = [1, 32], strides = [1, 1]} : vector<16x32xf32> to vector<1x32xf32>
    %c3_420 = arith.constant 3 : index
    %c0_421 = arith.constant 0 : index
    %c0_422 = arith.constant 0 : index
    %750 = vector.load %arg4[%c3_420, %c0_421, %c0_422] : memref<8x32x64xf32, #tpu.memory_space<vmem>>, vector<1x32x64xf32>
    %751 = vector.shape_cast %750 : vector<1x32x64xf32> to vector<32x64xf32>
    %cst_423 = arith.constant dense<0.000000e+00> : vector<1x64xf32>
    %752 = tpu.matmul %749, %751, %cst_423 {dimension_numbers = #tpu.dot_dimension_numbers<[1], [0], [0], [1], [0, 0, 1, 1], [], []>} : vector<1x32xf32>, vector<32x64xf32>, vector<1x64xf32> -> vector<1x64xf32>
    %753 = vector.extract_strided_slice %697 {offsets = [12, 0], sizes = [1, 32], strides = [1, 1]} : vector<16x32xf32> to vector<1x32xf32>
    %c4_424 = arith.constant 4 : index
    %c0_425 = arith.constant 0 : index
    %c0_426 = arith.constant 0 : index
    %754 = vector.load %arg4[%c4_424, %c0_425, %c0_426] : memref<8x32x64xf32, #tpu.memory_space<vmem>>, vector<1x32x64xf32>
    %755 = vector.shape_cast %754 : vector<1x32x64xf32> to vector<32x64xf32>
    %cst_427 = arith.constant dense<0.000000e+00> : vector<1x64xf32>
    %756 = tpu.matmul %753, %755, %cst_427 {dimension_numbers = #tpu.dot_dimension_numbers<[1], [0], [0], [1], [0, 0, 1, 1], [], []>} : vector<1x32xf32>, vector<32x64xf32>, vector<1x64xf32> -> vector<1x64xf32>
    %757 = vector.extract_strided_slice %697 {offsets = [13, 0], sizes = [1, 32], strides = [1, 1]} : vector<16x32xf32> to vector<1x32xf32>
    %c5_428 = arith.constant 5 : index
    %c0_429 = arith.constant 0 : index
    %c0_430 = arith.constant 0 : index
    %758 = vector.load %arg4[%c5_428, %c0_429, %c0_430] : memref<8x32x64xf32, #tpu.memory_space<vmem>>, vector<1x32x64xf32>
    %759 = vector.shape_cast %758 : vector<1x32x64xf32> to vector<32x64xf32>
    %cst_431 = arith.constant dense<0.000000e+00> : vector<1x64xf32>
    %760 = tpu.matmul %757, %759, %cst_431 {dimension_numbers = #tpu.dot_dimension_numbers<[1], [0], [0], [1], [0, 0, 1, 1], [], []>} : vector<1x32xf32>, vector<32x64xf32>, vector<1x64xf32> -> vector<1x64xf32>
    %761 = vector.extract_strided_slice %697 {offsets = [14, 0], sizes = [1, 32], strides = [1, 1]} : vector<16x32xf32> to vector<1x32xf32>
    %c6_432 = arith.constant 6 : index
    %c0_433 = arith.constant 0 : index
    %c0_434 = arith.constant 0 : index
    %762 = vector.load %arg4[%c6_432, %c0_433, %c0_434] : memref<8x32x64xf32, #tpu.memory_space<vmem>>, vector<1x32x64xf32>
    %763 = vector.shape_cast %762 : vector<1x32x64xf32> to vector<32x64xf32>
    %cst_435 = arith.constant dense<0.000000e+00> : vector<1x64xf32>
    %764 = tpu.matmul %761, %763, %cst_435 {dimension_numbers = #tpu.dot_dimension_numbers<[1], [0], [0], [1], [0, 0, 1, 1], [], []>} : vector<1x32xf32>, vector<32x64xf32>, vector<1x64xf32> -> vector<1x64xf32>
    %765 = vector.extract_strided_slice %697 {offsets = [15, 0], sizes = [1, 32], strides = [1, 1]} : vector<16x32xf32> to vector<1x32xf32>
    %c7_436 = arith.constant 7 : index
    %c0_437 = arith.constant 0 : index
    %c0_438 = arith.constant 0 : index
    %766 = vector.load %arg4[%c7_436, %c0_437, %c0_438] : memref<8x32x64xf32, #tpu.memory_space<vmem>>, vector<1x32x64xf32>
    %767 = vector.shape_cast %766 : vector<1x32x64xf32> to vector<32x64xf32>
    %cst_439 = arith.constant dense<0.000000e+00> : vector<1x64xf32>
    %768 = tpu.matmul %765, %767, %cst_439 {dimension_numbers = #tpu.dot_dimension_numbers<[1], [0], [0], [1], [0, 0, 1, 1], [], []>} : vector<1x32xf32>, vector<32x64xf32>, vector<1x64xf32> -> vector<1x64xf32>
    %769 = arith.addf %740, %744 : vector<1x64xf32>
    %770 = arith.addf %748, %752 : vector<1x64xf32>
    %771 = arith.addf %756, %760 : vector<1x64xf32>
    %772 = arith.addf %764, %768 : vector<1x64xf32>
    %773 = arith.addf %769, %770 : vector<1x64xf32>
    %774 = arith.addf %771, %772 : vector<1x64xf32>
    %775 = arith.addf %773, %774 : vector<1x64xf32>
    %776 = tpu.concatenate %736, %775 in 0 : vector<1x64xf32>, vector<1x64xf32> -> vector<2x64xf32>
    %c0_440 = arith.constant 0 : index
    %c0_441 = arith.constant 0 : index
    %777 = vector.load %arg3[%c0_440, %c0_441] : memref<1x64xf32, #tpu.memory_space<vmem>>, vector<1x64xf32>
    %778 = vector.broadcast %777 : vector<1x64xf32> to vector<2x64xf32>
    %779 = arith.addf %776, %778 : vector<2x64xf32>
    %cst_442 = arith.constant 0.000000e+00 : f32
    %780 = vector.broadcast %cst_442 : f32 to vector<2x64xf32>
    %781 = arith.maximumf %779, %780 : vector<2x64xf32>
    %c0_443 = arith.constant 0 : index
    %c0_444 = arith.constant 0 : index
    %782 = vector.load %arg6[%c0_443, %c0_444] : memref<64x64xf32, #tpu.memory_space<vmem>>, vector<64x64xf32>
    %cst_445 = arith.constant dense<0.000000e+00> : vector<2x64xf32>
    %783 = tpu.matmul %781, %782, %cst_445 {dimension_numbers = #tpu.dot_dimension_numbers<[1], [0], [0], [1], [0, 0, 1, 1], [], []>} : vector<2x64xf32>, vector<64x64xf32>, vector<2x64xf32> -> vector<2x64xf32>
    %c0_446 = arith.constant 0 : index
    %c0_447 = arith.constant 0 : index
    %784 = vector.load %arg5[%c0_446, %c0_447] : memref<1x64xf32, #tpu.memory_space<vmem>>, vector<1x64xf32>
    %785 = vector.broadcast %784 : vector<1x64xf32> to vector<2x64xf32>
    %786 = arith.addf %783, %785 : vector<2x64xf32>
    %cst_448 = arith.constant 0.000000e+00 : f32
    %787 = vector.broadcast %cst_448 : f32 to vector<2x64xf32>
    %788 = arith.maximumf %786, %787 : vector<2x64xf32>
    %c0_449 = arith.constant 0 : index
    %c0_450 = arith.constant 0 : index
    %789 = vector.load %arg8[%c0_449, %c0_450] : memref<64x32xf32, #tpu.memory_space<vmem>>, vector<64x32xf32>
    %cst_451 = arith.constant dense<0.000000e+00> : vector<2x32xf32>
    %790 = tpu.matmul %788, %789, %cst_451 {dimension_numbers = #tpu.dot_dimension_numbers<[1], [0], [0], [1], [0, 0, 1, 1], [], []>} : vector<2x64xf32>, vector<64x32xf32>, vector<2x32xf32> -> vector<2x32xf32>
    %c0_452 = arith.constant 0 : index
    %c0_453 = arith.constant 0 : index
    %791 = vector.load %arg7[%c0_452, %c0_453] : memref<1x32xf32, #tpu.memory_space<vmem>>, vector<1x32xf32>
    %792 = vector.broadcast %791 : vector<1x32xf32> to vector<2x32xf32>
    %793 = arith.addf %790, %792 : vector<2x32xf32>
    %cst_454 = arith.constant 0.000000e+00 : f32
    %794 = vector.broadcast %cst_454 : f32 to vector<2x32xf32>
    %795 = arith.maximumf %793, %794 : vector<2x32xf32>
    %c0_455 = arith.constant 0 : index
    %c0_456 = arith.constant 0 : index
    %796 = vector.load %arg10[%c0_455, %c0_456] : memref<32x16xf32, #tpu.memory_space<vmem>>, vector<32x16xf32>
    %cst_457 = arith.constant dense<0.000000e+00> : vector<2x16xf32>
    %797 = tpu.matmul %795, %796, %cst_457 {dimension_numbers = #tpu.dot_dimension_numbers<[1], [0], [0], [1], [0, 0, 1, 1], [], []>} : vector<2x32xf32>, vector<32x16xf32>, vector<2x16xf32> -> vector<2x16xf32>
    %c0_458 = arith.constant 0 : index
    %c0_459 = arith.constant 0 : index
    %798 = vector.load %arg9[%c0_458, %c0_459] : memref<1x16xf32, #tpu.memory_space<vmem>>, vector<1x16xf32>
    %799 = vector.broadcast %798 : vector<1x16xf32> to vector<2x16xf32>
    %800 = arith.addf %797, %799 : vector<2x16xf32>
    %cst_460 = arith.constant 0.000000e+00 : f32
    %801 = vector.broadcast %cst_460 : f32 to vector<2x16xf32>
    %802 = arith.maximumf %800, %801 : vector<2x16xf32>
    %c0_461 = arith.constant 0 : index
    %c0_462 = arith.constant 0 : index
    %803 = vector.load %arg12[%c0_461, %c0_462] : memref<16x4xf32, #tpu.memory_space<vmem>>, vector<16x4xf32>
    %cst_463 = arith.constant dense<0.000000e+00> : vector<2x4xf32>
    %804 = tpu.matmul %802, %803, %cst_463 {dimension_numbers = #tpu.dot_dimension_numbers<[1], [0], [0], [1], [0, 0, 1, 1], [], []>} : vector<2x16xf32>, vector<16x4xf32>, vector<2x4xf32> -> vector<2x4xf32>
    %c0_464 = arith.constant 0 : index
    %c0_465 = arith.constant 0 : index
    %805 = vector.load %arg11[%c0_464, %c0_465] : memref<1x4xf32, #tpu.memory_space<vmem>>, vector<1x4xf32>
    %806 = vector.broadcast %805 : vector<1x4xf32> to vector<2x4xf32>
    %807 = arith.addf %804, %806 : vector<2x4xf32>
    %c0_466 = arith.constant 0 : index
    %c0_467 = arith.constant 0 : index
    %808 = vector.load %arg45[%c0_466, %c0_467] : memref<2x4xf32, #tpu.memory_space<vmem>>, vector<2x4xf32>
    tpu.vector_store %arg45[%c0_466, %c0_467], %807 {strides = array<i32>} : memref<2x4xf32, #tpu.memory_space<vmem>>, vector<2x4xf32>,
    return
  }
}

</mosaic_0001>

<llo_original>
// kernel: dqn_forward.1
$region0: #{dqn_forward.1}
  #allocation0 [shape = 'u32[]', space=smem, size = 0x4, offset = 0x4, fixed_abs, tag = 'smem constant byte address 0x4 - core index']
  #allocation1 [shape = 'u32[144,128]{1,0:T(1,128)}', space=vmem, size = 0x12000, scoped, tag = 'internal scratch']
  %s0 = inlined_call_operand.smem [shape: u32[46], index: -1, kind: input, shape index: {}]
  %s1 = sld [smem:[%s0]]
  %s2 = scalar_lea.smem %s0, 1
  %s3 = sld [smem:[%s2]]
  %s4 = scalar_lea.smem %s0, 2
  %s5 = sld [smem:[%s4]]
  %s6 = scalar_lea.smem %s0, 3
  %s7 = sld [smem:[%s6]]
  %s8 = scalar_lea.smem %s0, 4
  %s9 = sld [smem:[%s8]]
  %s10 = scalar_lea.smem %s0, 5
  %s11 = sld [smem:[%s10]]
  %s12 = scalar_lea.smem %s0, 6
  %s13 = sld [smem:[%s12]]
  %s14 = scalar_lea.smem %s0, 7
  %s15 = sld [smem:[%s14]]
  %s16 = scalar_lea.smem %s0, 8
  %s17 = sld [smem:[%s16]]
  %s18 = scalar_lea.smem %s0, 9
  %s19 = sld [smem:[%s18]]
  %s20 = scalar_lea.smem %s0, 10
  %s21 = sld [smem:[%s20]]
  %s22 = scalar_lea.smem %s0, 11
  %s23 = sld [smem:[%s22]]
  %s24 = scalar_lea.smem %s0, 12
  %s25 = sld [smem:[%s24]]
  %s26 = scalar_lea.smem %s0, 13
  %s27 = sld [smem:[%s26]]
  %s28 = scalar_lea.smem %s0, 14
  %s29 = sld [smem:[%s28]]
  %s30 = scalar_lea.smem %s0, 15
  %s31 = sld [smem:[%s30]]
  %s32 = scalar_lea.smem %s0, 16
  %s33 = sld [smem:[%s32]]
  %s34 = scalar_lea.smem %s0, 17
  %s35 = sld [smem:[%s34]]
  %s36 = scalar_lea.smem %s0, 18
  %s37 = sld [smem:[%s36]]
  %s38 = scalar_lea.smem %s0, 19
  %s39 = sld [smem:[%s38]]
  %s40 = scalar_lea.smem %s0, 20
  %s41 = sld [smem:[%s40]]
  %s42 = scalar_lea.smem %s0, 21
  %s43 = sld [smem:[%s42]]
  %s44 = scalar_lea.smem %s0, 22
  %s45 = sld [smem:[%s44]]
  %s46 = scalar_lea.smem %s0, 23
  %s47 = sld [smem:[%s46]]
  %s48 = scalar_lea.smem %s0, 24
  %s49 = sld [smem:[%s48]]
  %s50 = scalar_lea.smem %s0, 25
  %s51 = sld [smem:[%s50]]
  %s52 = scalar_lea.smem %s0, 26
  %s53 = sld [smem:[%s52]]
  %s54 = scalar_lea.smem %s0, 27
  %s55 = sld [smem:[%s54]]
  %s56 = scalar_lea.smem %s0, 28
  %s57 = sld [smem:[%s56]]
  %s58 = scalar_lea.smem %s0, 29
  %s59 = sld [smem:[%s58]]
  %s60 = scalar_lea.smem %s0, 30
  %s61 = sld [smem:[%s60]]
  %s62 = scalar_lea.smem %s0, 31
  %s63 = sld [smem:[%s62]]
  %s64 = scalar_lea.smem %s0, 32
  %s65 = sld [smem:[%s64]]
  %s66 = scalar_lea.smem %s0, 33
  %s67 = sld [smem:[%s66]]
  %s68 = scalar_lea.smem %s0, 34
  %s69 = sld [smem:[%s68]]
  %s70 = scalar_lea.smem %s0, 35
  %s71 = sld [smem:[%s70]]
  %s72 = scalar_lea.smem %s0, 36
  %s73 = sld [smem:[%s72]]
  %s74 = scalar_lea.smem %s0, 37
  %s75 = sld [smem:[%s74]]
  %s76 = scalar_lea.smem %s0, 38
  %s77 = sld [smem:[%s76]]
  %s78 = scalar_lea.smem %s0, 39
  %s79 = sld [smem:[%s78]]
  %s80 = scalar_lea.smem %s0, 40
  %s81 = sld [smem:[%s80]]
  %s82 = scalar_lea.smem %s0, 41
  %s83 = sld [smem:[%s82]]
  %s84 = scalar_lea.smem %s0, 42
  %s85 = sld [smem:[%s84]]
  %s86 = scalar_lea.smem %s0, 43
  %s87 = sld [smem:[%s86]]
  %s88 = scalar_lea.smem %s0, 44
  %s89 = sld [smem:[%s88]]
  %s90 = scalar_lea.smem %s0, 45
  %s91 = sld [smem:[%s90]]
  %s92 = sld [smem:[#allocation0]]
  $region190: #{dqn_forward.1} parent=0
    _
  %s94 = ssub.s32 1, %s92
  %s95 = scalar_select 0, %s94, %s92
  $region1: #{dqn_forward.1} parent=0
    #allocation2 [shape = 'u8[1024]{0}', space=vmem, size = 0x400, scoped, tag = 'output window, operand 0, single buffered']
    #allocation3 [shape = 's32[1]{0}', space=sflag, size = 0x4, scoped, tag = 'scoped memory for dqn_forward.1']
    %96 = vsyncpa [#allocation3], 0
    // Predicated region
    $region2: #{dqn_forward.1} parent=1 // pred_check
      _
    $region3: #{dqn_forward.1} parent=1 // pred_check_branch
      %98 = sbr.rel (0) target = $region5
    $region4: #{dqn_forward.1} parent=1 // pred_region
      _
    $region5: #{dqn_forward.1} parent=1 // pred_fallthru
      _
    // Predicated region
    $region6: #{dqn_forward.1} parent=1 // pred_check
      _
    $region7: #{dqn_forward.1} parent=1 // pred_check_branch
      %100 = sbr.rel (0) target = $region9
    $region8: #{dqn_forward.1} parent=1 // pred_region
      _
    $region9: #{dqn_forward.1} parent=1 // pred_fallthru
      _
    // Predicated region
    $region10: #{dqn_forward.1} parent=1 // pred_check
      _
    $region11: #{dqn_forward.1} parent=1 // pred_check_branch
      %102 = sbr.rel (0) target = $region13
    $region12: #{dqn_forward.1} parent=1 // pred_region
      _
    $region13: #{dqn_forward.1} parent=1 // pred_fallthru
      _
    // Predicated region
    $region14: #{dqn_forward.1} parent=1 // pred_check
      _
    $region15: #{dqn_forward.1} parent=1 // pred_check_branch
      %104 = sbr.rel (0) target = $region17
    $region16: #{dqn_forward.1} parent=1 // pred_region
      _
    $region17: #{dqn_forward.1} parent=1 // pred_fallthru
      _
    // Predicated region
    $region18: #{dqn_forward.1} parent=1 // pred_check
      _
    $region19: #{dqn_forward.1} parent=1 // pred_check_branch
      %106 = sbr.rel (0) target = $region21
    $region20: #{dqn_forward.1} parent=1 // pred_region
      _
    $region21: #{dqn_forward.1} parent=1 // pred_fallthru
      _
    // Predicated region
    $region22: #{dqn_forward.1} parent=1 // pred_check
      _
    $region23: #{dqn_forward.1} parent=1 // pred_check_branch
      %108 = sbr.rel (0) target = $region25
    $region24: #{dqn_forward.1} parent=1 // pred_region
      _
    $region25: #{dqn_forward.1} parent=1 // pred_fallthru
      _
    // Predicated region
    $region26: #{dqn_forward.1} parent=1 // pred_check
      _
    $region27: #{dqn_forward.1} parent=1 // pred_check_branch
      %110 = sbr.rel (0) target = $region29
    $region28: #{dqn_forward.1} parent=1 // pred_region
      _
    $region29: #{dqn_forward.1} parent=1 // pred_fallthru
      _
    // Predicated region
    $region30: #{dqn_forward.1} parent=1 // pred_check
      _
    $region31: #{dqn_forward.1} parent=1 // pred_check_branch
      %112 = sbr.rel (0) target = $region33
    $region32: #{dqn_forward.1} parent=1 // pred_region
      _
    $region33: #{dqn_forward.1} parent=1 // pred_fallthru
      _
    // Predicated region
    $region34: #{dqn_forward.1} parent=1 // pred_check
      _
    $region35: #{dqn_forward.1} parent=1 // pred_check_branch
      %114 = sbr.rel (0) target = $region37
    $region36: #{dqn_forward.1} parent=1 // pred_region
      _
    $region37: #{dqn_forward.1} parent=1 // pred_fallthru
      _
    // Predicated region
    $region38: #{dqn_forward.1} parent=1 // pred_check
      _
    $region39: #{dqn_forward.1} parent=1 // pred_check_branch
      %116 = sbr.rel (0) target = $region41
    $region40: #{dqn_forward.1} parent=1 // pred_region
      _
    $region41: #{dqn_forward.1} parent=1 // pred_fallthru
      _
    // Predicated region
    $region42: #{dqn_forward.1} parent=1 // pred_check
      _
    $region43: #{dqn_forward.1} parent=1 // pred_check_branch
      %118 = sbr.rel (0) target = $region45
    $region44: #{dqn_forward.1} parent=1 // pred_region
      _
    $region45: #{dqn_forward.1} parent=1 // pred_fallthru
      _
    // Predicated region
    $region46: #{dqn_forward.1} parent=1 // pred_check
      _
    $region47: #{dqn_forward.1} parent=1 // pred_check_branch
      %120 = sbr.rel (0) target = $region49
    $region48: #{dqn_forward.1} parent=1 // pred_region
      _
    $region49: #{dqn_forward.1} parent=1 // pred_fallthru
      _
    // Predicated region
    $region50: #{dqn_forward.1} parent=1 // pred_check
      _
    $region51: #{dqn_forward.1} parent=1 // pred_check_branch
      %122 = sbr.rel (0) target = $region53
    $region52: #{dqn_forward.1} parent=1 // pred_region
      _
    $region53: #{dqn_forward.1} parent=1 // pred_fallthru
      _
    // Predicated region
    $region54: #{dqn_forward.1} parent=1 // pred_check
      _
    $region55: #{dqn_forward.1} parent=1 // pred_check_branch
      %124 = sbr.rel (0) target = $region57
    $region56: #{dqn_forward.1} parent=1 // pred_region
      _
    $region57: #{dqn_forward.1} parent=1 // pred_fallthru
      _
    // Predicated region
    $region58: #{dqn_forward.1} parent=1 // pred_check
      _
    $region59: #{dqn_forward.1} parent=1 // pred_check_branch
      %126 = sbr.rel (0) target = $region61
    $region60: #{dqn_forward.1} parent=1 // pred_region
      _
    $region61: #{dqn_forward.1} parent=1 // pred_fallthru
      _
    // Predicated region
    $region62: #{dqn_forward.1} parent=1 // pred_check
      _
    $region63: #{dqn_forward.1} parent=1 // pred_check_branch
      %128 = sbr.rel (0) target = $region65
    $region64: #{dqn_forward.1} parent=1 // pred_region
      _
    $region65: #{dqn_forward.1} parent=1 // pred_fallthru
      _
    // Predicated region
    $region66: #{dqn_forward.1} parent=1 // pred_check
      _
    $region67: #{dqn_forward.1} parent=1 // pred_check_branch
      %130 = sbr.rel (0) target = $region69
    $region68: #{dqn_forward.1} parent=1 // pred_region
      _
    $region69: #{dqn_forward.1} parent=1 // pred_fallthru
      _
    // Predicated region
    $region70: #{dqn_forward.1} parent=1 // pred_check
      _
    $region71: #{dqn_forward.1} parent=1 // pred_check_branch
      %132 = sbr.rel (0) target = $region73
    $region72: #{dqn_forward.1} parent=1 // pred_region
      _
    $region73: #{dqn_forward.1} parent=1 // pred_fallthru
      _
    // Predicated region
    $region74: #{dqn_forward.1} parent=1 // pred_check
      _
    $region75: #{dqn_forward.1} parent=1 // pred_check_branch
      %134 = sbr.rel (0) target = $region77
    $region76: #{dqn_forward.1} parent=1 // pred_region
      _
    $region77: #{dqn_forward.1} parent=1 // pred_fallthru
      _
    // Predicated region
    $region78: #{dqn_forward.1} parent=1 // pred_check
      _
    $region79: #{dqn_forward.1} parent=1 // pred_check_branch
      %136 = sbr.rel (0) target = $region81
    $region80: #{dqn_forward.1} parent=1 // pred_region
      _
    $region81: #{dqn_forward.1} parent=1 // pred_fallthru
      _
    // Predicated region
    $region82: #{dqn_forward.1} parent=1 // pred_check
      _
    $region83: #{dqn_forward.1} parent=1 // pred_check_branch
      %138 = sbr.rel (0) target = $region85
    $region84: #{dqn_forward.1} parent=1 // pred_region
      _
    $region85: #{dqn_forward.1} parent=1 // pred_fallthru
      _
    // Predicated region
    $region86: #{dqn_forward.1} parent=1 // pred_check
      _
    $region87: #{dqn_forward.1} parent=1 // pred_check_branch
      %140 = sbr.rel (0) target = $region89
    $region88: #{dqn_forward.1} parent=1 // pred_region
      _
    $region89: #{dqn_forward.1} parent=1 // pred_fallthru
      _
    // Predicated region
    $region90: #{dqn_forward.1} parent=1 // pred_check
      _
    $region91: #{dqn_forward.1} parent=1 // pred_check_branch
      %142 = sbr.rel (0) target = $region93
    $region92: #{dqn_forward.1} parent=1 // pred_region
      _
    $region93: #{dqn_forward.1} parent=1 // pred_fallthru
      _
    // Predicated region
    $region94: #{dqn_forward.1} parent=1 // pred_check
      _
    $region95: #{dqn_forward.1} parent=1 // pred_check_branch
      %144 = sbr.rel (0) target = $region97
    $region96: #{dqn_forward.1} parent=1 // pred_region
      _
    $region97: #{dqn_forward.1} parent=1 // pred_fallthru
      _
    // Predicated region
    $region98: #{dqn_forward.1} parent=1 // pred_check
      _
    $region99: #{dqn_forward.1} parent=1 // pred_check_branch
      %146 = sbr.rel (0) target = $region101
    $region100: #{dqn_forward.1} parent=1 // pred_region
      _
    $region101: #{dqn_forward.1} parent=1 // pred_fallthru
      _
    // Predicated region
    $region102: #{dqn_forward.1} parent=1 // pred_check
      _
    $region103: #{dqn_forward.1} parent=1 // pred_check_branch
      %148 = sbr.rel (0) target = $region105
    $region104: #{dqn_forward.1} parent=1 // pred_region
      _
    $region105: #{dqn_forward.1} parent=1 // pred_fallthru
      _
    // Predicated region
    $region106: #{dqn_forward.1} parent=1 // pred_check
      _
    $region107: #{dqn_forward.1} parent=1 // pred_check_branch
      %150 = sbr.rel (0) target = $region109
    $region108: #{dqn_forward.1} parent=1 // pred_region
      _
    $region109: #{dqn_forward.1} parent=1 // pred_fallthru
      _
    // Predicated region
    $region110: #{dqn_forward.1} parent=1 // pred_check
      _
    $region111: #{dqn_forward.1} parent=1 // pred_check_branch
      %152 = sbr.rel (0) target = $region113
    $region112: #{dqn_forward.1} parent=1 // pred_region
      _
    $region113: #{dqn_forward.1} parent=1 // pred_fallthru
      _
    // Predicated region
    $region114: #{dqn_forward.1} parent=1 // pred_check
      _
    $region115: #{dqn_forward.1} parent=1 // pred_check_branch
      %154 = sbr.rel (0) target = $region117
    $region116: #{dqn_forward.1} parent=1 // pred_region
      _
    $region117: #{dqn_forward.1} parent=1 // pred_fallthru
      _
    // Predicated region
    $region118: #{dqn_forward.1} parent=1 // pred_check
      _
    $region119: #{dqn_forward.1} parent=1 // pred_check_branch
      %156 = sbr.rel (0) target = $region121
    $region120: #{dqn_forward.1} parent=1 // pred_region
      _
    $region121: #{dqn_forward.1} parent=1 // pred_fallthru
      _
    // Predicated region
    $region122: #{dqn_forward.1} parent=1 // pred_check
      _
    $region123: #{dqn_forward.1} parent=1 // pred_check_branch
      %158 = sbr.rel (0) target = $region125
    $region124: #{dqn_forward.1} parent=1 // pred_region
      _
    $region125: #{dqn_forward.1} parent=1 // pred_fallthru
      _
    // Predicated region
    $region126: #{dqn_forward.1} parent=1 // pred_check
      _
    $region127: #{dqn_forward.1} parent=1 // pred_check_branch
      %160 = sbr.rel (0) target = $region129
    $region128: #{dqn_forward.1} parent=1 // pred_region
      _
    $region129: #{dqn_forward.1} parent=1 // pred_fallthru
      _
    // Predicated region
    $region130: #{dqn_forward.1} parent=1 // pred_check
      _
    $region131: #{dqn_forward.1} parent=1 // pred_check_branch
      %162 = sbr.rel (0) target = $region133
    $region132: #{dqn_forward.1} parent=1 // pred_region
      _
    $region133: #{dqn_forward.1} parent=1 // pred_fallthru
      _
    // Predicated region
    $region134: #{dqn_forward.1} parent=1 // pred_check
      _
    $region135: #{dqn_forward.1} parent=1 // pred_check_branch
      %164 = sbr.rel (0) target = $region137
    $region136: #{dqn_forward.1} parent=1 // pred_region
      _
    $region137: #{dqn_forward.1} parent=1 // pred_fallthru
      _
    // Predicated region
    $region138: #{dqn_forward.1} parent=1 // pred_check
      _
    $region139: #{dqn_forward.1} parent=1 // pred_check_branch
      %166 = sbr.rel (0) target = $region141
    $region140: #{dqn_forward.1} parent=1 // pred_region
      _
    $region141: #{dqn_forward.1} parent=1 // pred_fallthru
      _
    // Predicated region
    $region142: #{dqn_forward.1} parent=1 // pred_check
      _
    $region143: #{dqn_forward.1} parent=1 // pred_check_branch
      %168 = sbr.rel (0) target = $region145
    $region144: #{dqn_forward.1} parent=1 // pred_region
      _
    $region145: #{dqn_forward.1} parent=1 // pred_fallthru
      _
    // Predicated region
    $region146: #{dqn_forward.1} parent=1 // pred_check
      _
    $region147: #{dqn_forward.1} parent=1 // pred_check_branch
      %170 = sbr.rel (0) target = $region149
    $region148: #{dqn_forward.1} parent=1 // pred_region
      _
    $region149: #{dqn_forward.1} parent=1 // pred_fallthru
      _
    // Predicated region
    $region150: #{dqn_forward.1} parent=1 // pred_check
      _
    $region151: #{dqn_forward.1} parent=1 // pred_check_branch
      %172 = sbr.rel (0) target = $region153
    $region152: #{dqn_forward.1} parent=1 // pred_region
      _
    $region153: #{dqn_forward.1} parent=1 // pred_fallthru
      _
    // Predicated region
    $region154: #{dqn_forward.1} parent=1 // pred_check
      _
    $region155: #{dqn_forward.1} parent=1 // pred_check_branch
      %174 = sbr.rel (0) target = $region157
    $region156: #{dqn_forward.1} parent=1 // pred_region
      _
    $region157: #{dqn_forward.1} parent=1 // pred_fallthru
      _
    // Predicated region
    $region158: #{dqn_forward.1} parent=1 // pred_check
      _
    $region159: #{dqn_forward.1} parent=1 // pred_check_branch
      %176 = sbr.rel (0) target = $region161
    $region160: #{dqn_forward.1} parent=1 // pred_region
      _
    $region161: #{dqn_forward.1} parent=1 // pred_fallthru
      _
    // Predicated region
    $region162: #{dqn_forward.1} parent=1 // pred_check
      _
    $region163: #{dqn_forward.1} parent=1 // pred_check_branch
      %178 = sbr.rel (0) target = $region165
    $region164: #{dqn_forward.1} parent=1 // pred_region
      _
    $region165: #{dqn_forward.1} parent=1 // pred_fallthru
      _
    // Predicated region
    $region166: #{dqn_forward.1} parent=1 // pred_check
      _
    $region167: #{dqn_forward.1} parent=1 // pred_check_branch
      %180 = sbr.rel (0) target = $region169
    $region168: #{dqn_forward.1} parent=1 // pred_region
      _
    $region169: #{dqn_forward.1} parent=1 // pred_fallthru
      _
    // Predicated region
    $region170: #{dqn_forward.1} parent=1 // pred_check
      _
    $region171: #{dqn_forward.1} parent=1 // pred_check_branch
      %182 = sbr.rel (0) target = $region173
    $region172: #{dqn_forward.1} parent=1 // pred_region
      _
    $region173: #{dqn_forward.1} parent=1 // pred_fallthru
      _
    // Predicated region
    $region174: #{dqn_forward.1} parent=1 // pred_check
      _
    $region175: #{dqn_forward.1} parent=1 // pred_check_branch
      %184 = sbr.rel (0) target = $region177
    $region176: #{dqn_forward.1} parent=1 // pred_region
      _
    $region177: #{dqn_forward.1} parent=1 // pred_fallthru
      _
    // Predicated region
    $region178: #{dqn_forward.1} parent=1 // pred_check
      _
    $region179: #{dqn_forward.1} parent=1 // pred_check_branch
      %186 = sbr.rel (0) target = $region181
    $region180: #{dqn_forward.1} parent=1 // pred_region
      _
    $region181: #{dqn_forward.1} parent=1 // pred_fallthru
      _
    %v187 = vld [vmem:[%s1] sm:$0xff]
    %v188 = vld [vmem:[%s1 + $0x8] sm:$0xff]
    %v189 = vld [vmem:[%s5] sm:$0xff]
    %v190 = vld [vmem:[%s5 + $0x8] sm:$0xff]
    %v191 = vld [vmem:[%s5 + $0x10] sm:$0xff]
    %v192 = vld [vmem:[%s5 + $0x18] sm:$0xff]
    %v193 = vld [vmem:[%s5 + $0x20] sm:$0xff]
    %v194 = vld [vmem:[%s5 + $0x28] sm:$0xff]
    %v195 = vld [vmem:[%s5 + $0x30] sm:$0xff]
    %v196 = vld [vmem:[%s5 + $0x38] sm:$0xff]
    %v197 = vld [vmem:[%s5 + $0x40] sm:$0xff]
    %v198 = vld [vmem:[%s5 + $0x48] sm:$0xff]
    %v199 = vld [vmem:[%s3] sm:$0x1]
    %v201 = vlaneseq
    %v202 = vshrl.u32 %v201, 7
    %v203 = vsub.s32 0, %v202
    %v204 = vrot.slane %v199, %v203
    %vm206 = vcmask 654336
    %v208 = vsel %vm206, %v187, 0
    %v211 = vsel %vm206, %v188, 0
    %213 = vmatprep.subr.mxu0 0.0
    %214 = vmatpush1.msra.mxu0 0.0
    %215 = vmatprep.subr.mxu0 0.0
    %216 = vmatpush1.msra.mxu0 0.0
    %217 = vmatprep.subr.mxu0 0.0
    %218 = vmatpush1.msra.mxu0 0.0
    %219 = vmatprep.subr.mxu0 0.0
    %220 = vmatpush1.msra.mxu0 0.0
    %221 = vmatprep.subr.mxu0 0.0
    %222 = vmatpush1.msra.mxu0 0.0
    %223 = vmatprep.subr.mxu0 0.0
    %224 = vmatpush1.msra.mxu0 0.0
    %225 = vmatprep.subr.mxu0 0.0
    %226 = vmatpush1.msra.mxu0 %v198
    %227 = vmatprep.subr.mxu0 0.0
    %228 = vmatpush1.msra.mxu0 %v197
    %229 = vmatprep.subr.mxu0 0.0
    %230 = vmatpush1.msra.mxu0 %v196
    %231 = vmatprep.subr.mxu0 0.0
    %232 = vmatpush1.msra.mxu0 %v195
    %233 = vmatprep.subr.mxu0 0.0
    %234 = vmatpush1.msra.mxu0 %v194
    %235 = vmatprep.subr.mxu0 0.0
    %236 = vmatpush1.msra.mxu0 %v193
    %237 = vmatprep.subr.mxu0 0.0
    %238 = vmatpush1.msra.mxu0 %v192
    %239 = vmatprep.subr.mxu0 0.0
    %240 = vmatpush1.msra.mxu0 %v191
    %241 = vmatprep.subr.mxu0 0.0
    %242 = vmatpush1.msra.mxu0 %v190
    %243 = vmatprep.subr.mxu0 0.0
    %244 = vmatpush1.msra.mxu0 %v189
    %245 = vmatprep.subr.mxu0 0.0
    %246 = vmatpush2.msra.mxu0 0.0
    %247 = vmatprep.subr.mxu0 0.0
    %248 = vmatpush2.msra.mxu0 0.0
    %249 = vmatprep.subr.mxu0 0.0
    %250 = vmatpush2.msra.mxu0 0.0
    %251 = vmatprep.subr.mxu0 0.0
    %252 = vmatpush2.msra.mxu0 0.0
    %253 = vmatprep.subr.mxu0 0.0
    %254 = vmatpush2.msra.mxu0 0.0
    %255 = vmatprep.subr.mxu0 0.0
    %256 = vmatpush2.msra.mxu0 0.0
    %257 = vmatprep.subr.mxu0 0.0
    %258 = vmatpush2.msra.mxu0 0.0
    %259 = vmatprep.subr.mxu0 0.0
    %260 = vmatpush2.msra.mxu0 0.0
    %261 = vmatprep.subr.mxu0 0.0
    %262 = vmatpush2.msra.mxu0 0.0
    %263 = vmatprep.subr.mxu0 0.0
    %264 = vmatpush2.msra.mxu0 0.0
    %265 = vmatprep.subr.mxu0 0.0
    %266 = vmatpush2.msra.mxu0 0.0
    %267 = vmatprep.subr.mxu0 0.0
    %268 = vmatpush2.msra.mxu0 0.0
    %269 = vmatprep.subr.mxu0 0.0
    %270 = vmatpush2.msra.mxu0 0.0
    %271 = vmatprep.subr.mxu0 0.0
    %272 = vmatpush2.msra.mxu0 0.0
    %273 = vmatprep.subr.mxu0 0.0
    %274 = vmatpush2.msra.mxu0 0.0
    %275 = vmatprep.subr.mxu0 0.0
    %276 = vmatpush2.msra.mxu0 0.0
    %277 = vmatprep.mubr.f32.mxu0 0.0
    %278 = vmatmul.mubr.f32.gmra.mxu0 %v208
    %v279 = vpop.f32.mrf.mxu0
    %v280 = vadd.f32 %v204, %v279
    %v281 = vpop.f32.mrf.mxu0
    %282 = vmatprep.mubr.f32.mxu0 0.0
    %283 = vmatmul.mubr.f32.gmra.mxu0 %v211
    %v284 = vpop.f32.mrf.mxu0
    %v285 = vadd.f32 %v204, %v284
    %v286 = vpop.f32.mrf.mxu0
    %287 = vdwg.mxu0
    %v288 = vld [vmem:[%s41] sm:$0x1]
    %v289 = vld [vmem:[%s39] sm:$0x1]
    %vm290 = vcmask 261120
    %v291 = vsel %vm290, %v280, 0.0
    %292 = vadd.xlane.f32.xlu0 %v291
    %v293 = vpop.xlane.xlu0 %292
    %v294 = vsel %vm290, %v285, 0.0
    %295 = vadd.xlane.f32.xlu0 %v294
    %v296 = vpop.xlane.xlu0 %295
    %v297 = vrcp.pop 32.0
    %v298 = vmul.f32 %v293, %v297
    %v299 = vmul.f32 %v296, %v297
    %v300 = vsub.f32 %v280, %v298
    %v301 = vsub.f32 %v285, %v299
    %v302 = vmul.f32 %v300, %v300
    %v303 = vmul.f32 %v301, %v301
    %v304 = vsel %vm290, %v302, 0.0
    %305 = vadd.xlane.f32.xlu0 %v304
    %v306 = vpop.xlane.xlu0 %305
    %v307 = vsel %vm290, %v303, 0.0
    %308 = vadd.xlane.f32.xlu0 %v307
    %v309 = vpop.xlane.xlu0 %308
    %v310 = vmul.f32 %v306, %v297
    %v311 = vmul.f32 %v309, %v297
    %v312 = vadd.f32 %v310, 1e-05
    %v313 = vadd.f32 %v311, 1e-05
    %v314 = vrsqrt.pop %v312
    %v315 = vrsqrt.pop %v313
    %v316 = vmul.f32 %v300, %v314
    %v317 = vmul.f32 %v301, %v315
    %v319 = vlaneseq
    %v320 = vshrl.u32 %v319, 7
    %v321 = vsub.s32 0, %v320
    %v322 = vrot.slane %v288, %v321
    %v324 = vmul.f32 %v316, %v322
    %v325 = vmul.f32 %v317, %v322
    %v327 = vlaneseq
    %v328 = vshrl.u32 %v327, 7
    %v329 = vsub.s32 0, %v328
    %v330 = vrot.slane %v289, %v329
    %v332 = vadd.f32 %v324, %v330
    %v333 = vadd.f32 %v325, %v330
    %v334 = vld [vmem:[%s53] sm:$0xff]
    %v335 = vld [vmem:[%s53 + $0x8] sm:$0xff]
    %v336 = vld [vmem:[%s53 + $0x10] sm:$0xff]
    %v337 = vld [vmem:[%s53 + $0x18] sm:$0xff]
    %v338 = vld [vmem:[%s51] sm:$0x1]
    %v340 = vlaneseq
    %v341 = vshrl.u32 %v340, 7
    %v342 = vsub.s32 0, %v341
    %v343 = vrot.slane %v338, %v342
    %v346 = vsel %vm290, %v332, 0
    %v349 = vsel %vm290, %v333, 0
    %351 = vmatprep.subr.mxu0 0.0
    %352 = vmatpush1.msra.mxu0 0.0
    %353 = vmatprep.subr.mxu0 0.0
    %354 = vmatpush1.msra.mxu0 0.0
    %355 = vmatprep.subr.mxu0 0.0
    %356 = vmatpush1.msra.mxu0 0.0
    %357 = vmatprep.subr.mxu0 0.0
    %358 = vmatpush1.msra.mxu0 0.0
    %359 = vmatprep.subr.mxu0 0.0
    %360 = vmatpush1.msra.mxu0 0.0
    %361 = vmatprep.subr.mxu0 0.0
    %362 = vmatpush1.msra.mxu0 0.0
    %363 = vmatprep.subr.mxu0 0.0
    %364 = vmatpush1.msra.mxu0 0.0
    %365 = vmatprep.subr.mxu0 0.0
    %366 = vmatpush1.msra.mxu0 0.0
    %367 = vmatprep.subr.mxu0 0.0
    %368 = vmatpush1.msra.mxu0 0.0
    %369 = vmatprep.subr.mxu0 0.0
    %370 = vmatpush1.msra.mxu0 0.0
    %371 = vmatprep.subr.mxu0 0.0
    %372 = vmatpush1.msra.mxu0 0.0
    %373 = vmatprep.subr.mxu0 0.0
    %374 = vmatpush1.msra.mxu0 0.0
    %375 = vmatprep.subr.mxu0 0.0
    %376 = vmatpush1.msra.mxu0 %v337
    %377 = vmatprep.subr.mxu0 0.0
    %378 = vmatpush1.msra.mxu0 %v336
    %379 = vmatprep.subr.mxu0 0.0
    %380 = vmatpush1.msra.mxu0 %v335
    %381 = vmatprep.subr.mxu0 0.0
    %382 = vmatpush1.msra.mxu0 %v334
    %383 = vmatprep.subr.mxu0 0.0
    %384 = vmatpush2.msra.mxu0 0.0
    %385 = vmatprep.subr.mxu0 0.0
    %386 = vmatpush2.msra.mxu0 0.0
    %387 = vmatprep.subr.mxu0 0.0
    %388 = vmatpush2.msra.mxu0 0.0
    %389 = vmatprep.subr.mxu0 0.0
    %390 = vmatpush2.msra.mxu0 0.0
    %391 = vmatprep.subr.mxu0 0.0
    %392 = vmatpush2.msra.mxu0 0.0
    %393 = vmatprep.subr.mxu0 0.0
    %394 = vmatpush2.msra.mxu0 0.0
    %395 = vmatprep.subr.mxu0 0.0
    %396 = vmatpush2.msra.mxu0 0.0
    %397 = vmatprep.subr.mxu0 0.0
    %398 = vmatpush2.msra.mxu0 0.0
    %399 = vmatprep.subr.mxu0 0.0
    %400 = vmatpush2.msra.mxu0 0.0
    %401 = vmatprep.subr.mxu0 0.0
    %402 = vmatpush2.msra.mxu0 0.0
    %403 = vmatprep.subr.mxu0 0.0
    %404 = vmatpush2.msra.mxu0 0.0
    %405 = vmatprep.subr.mxu0 0.0
    %406 = vmatpush2.msra.mxu0 0.0
    %407 = vmatprep.subr.mxu0 0.0
    %408 = vmatpush2.msra.mxu0 0.0
    %409 = vmatprep.subr.mxu0 0.0
    %410 = vmatpush2.msra.mxu0 0.0
    %411 = vmatprep.subr.mxu0 0.0
    %412 = vmatpush2.msra.mxu0 0.0
    %413 = vmatprep.subr.mxu0 0.0
    %414 = vmatpush2.msra.mxu0 0.0
    %415 = vmatprep.mubr.f32.mxu0 0.0
    %416 = vmatmul.mubr.f32.gmra.mxu0 %v346
    %v417 = vpop.f32.mrf.mxu0
    %v418 = vadd.f32 %v343, %v417
    %v419 = vpop.f32.mrf.mxu0
    %420 = vmatprep.mubr.f32.mxu0 0.0
    %421 = vmatmul.mubr.f32.gmra.mxu0 %v349
    %v422 = vpop.f32.mrf.mxu0
    %v423 = vadd.f32 %v343, %v422
    %v424 = vpop.f32.mrf.mxu0
    %425 = vdwg.mxu0
    %v426 = vld [vmem:[%s37] sm:$0xff]
    %v427 = vld [vmem:[%s37 + $0x8] sm:$0xff]
    %v428 = vld [vmem:[%s37 + $0x10] sm:$0xff]
    %v429 = vld [vmem:[%s37 + $0x18] sm:$0xff]
    %v430 = vld [vmem:[%s35] sm:$0x1]
    %v432 = vlaneseq
    %v433 = vshrl.u32 %v432, 7
    %v434 = vsub.s32 0, %v433
    %v435 = vrot.slane %v430, %v434
    %437 = vmatprep.subr.mxu0 0.0
    %438 = vmatpush1.msra.mxu0 0.0
    %439 = vmatprep.subr.mxu0 0.0
    %440 = vmatpush1.msra.mxu0 0.0
    %441 = vmatprep.subr.mxu0 0.0
    %442 = vmatpush1.msra.mxu0 0.0
    %443 = vmatprep.subr.mxu0 0.0
    %444 = vmatpush1.msra.mxu0 0.0
    %445 = vmatprep.subr.mxu0 0.0
    %446 = vmatpush1.msra.mxu0 0.0
    %447 = vmatprep.subr.mxu0 0.0
    %448 = vmatpush1.msra.mxu0 0.0
    %449 = vmatprep.subr.mxu0 0.0
    %450 = vmatpush1.msra.mxu0 0.0
    %451 = vmatprep.subr.mxu0 0.0
    %452 = vmatpush1.msra.mxu0 0.0
    %453 = vmatprep.subr.mxu0 0.0
    %454 = vmatpush1.msra.mxu0 0.0
    %455 = vmatprep.subr.mxu0 0.0
    %456 = vmatpush1.msra.mxu0 0.0
    %457 = vmatprep.subr.mxu0 0.0
    %458 = vmatpush1.msra.mxu0 0.0
    %459 = vmatprep.subr.mxu0 0.0
    %460 = vmatpush1.msra.mxu0 0.0
    %461 = vmatprep.subr.mxu0 0.0
    %462 = vmatpush1.msra.mxu0 %v429
    %463 = vmatprep.subr.mxu0 0.0
    %464 = vmatpush1.msra.mxu0 %v428
    %465 = vmatprep.subr.mxu0 0.0
    %466 = vmatpush1.msra.mxu0 %v427
    %467 = vmatprep.subr.mxu0 0.0
    %468 = vmatpush1.msra.mxu0 %v426
    %469 = vmatprep.subr.mxu0 0.0
    %470 = vmatpush2.msra.mxu0 0.0
    %471 = vmatprep.subr.mxu0 0.0
    %472 = vmatpush2.msra.mxu0 0.0
    %473 = vmatprep.subr.mxu0 0.0
    %474 = vmatpush2.msra.mxu0 0.0
    %475 = vmatprep.subr.mxu0 0.0
    %476 = vmatpush2.msra.mxu0 0.0
    %477 = vmatprep.subr.mxu0 0.0
    %478 = vmatpush2.msra.mxu0 0.0
    %479 = vmatprep.subr.mxu0 0.0
    %480 = vmatpush2.msra.mxu0 0.0
    %481 = vmatprep.subr.mxu0 0.0
    %482 = vmatpush2.msra.mxu0 0.0
    %483 = vmatprep.subr.mxu0 0.0
    %484 = vmatpush2.msra.mxu0 0.0
    %485 = vmatprep.subr.mxu0 0.0
    %486 = vmatpush2.msra.mxu0 0.0
    %487 = vmatprep.subr.mxu0 0.0
    %488 = vmatpush2.msra.mxu0 0.0
    %489 = vmatprep.subr.mxu0 0.0
    %490 = vmatpush2.msra.mxu0 0.0
    %491 = vmatprep.subr.mxu0 0.0
    %492 = vmatpush2.msra.mxu0 0.0
    %493 = vmatprep.subr.mxu0 0.0
    %494 = vmatpush2.msra.mxu0 0.0
    %495 = vmatprep.subr.mxu0 0.0
    %496 = vmatpush2.msra.mxu0 0.0
    %497 = vmatprep.subr.mxu0 0.0
    %498 = vmatpush2.msra.mxu0 0.0
    %499 = vmatprep.subr.mxu0 0.0
    %500 = vmatpush2.msra.mxu0 0.0
    %501 = vmatprep.mubr.f32.mxu0 0.0
    %502 = vmatmul.mubr.f32.gmra.mxu0 %v346
    %v503 = vpop.f32.mrf.mxu0
    %v504 = vadd.f32 %v435, %v503
    %v505 = vpop.f32.mrf.mxu0
    %506 = vmatprep.mubr.f32.mxu0 0.0
    %507 = vmatmul.mubr.f32.gmra.mxu0 %v349
    %v508 = vpop.f32.mrf.mxu0
    %v509 = vadd.f32 %v435, %v508
    %v510 = vpop.f32.mrf.mxu0
    %511 = vdwg.mxu0
    %v512 = vld [vmem:[%s57] sm:$0xff]
    %v513 = vld [vmem:[%s57 + $0x8] sm:$0xff]
    %v514 = vld [vmem:[%s57 + $0x10] sm:$0xff]
    %v515 = vld [vmem:[%s57 + $0x18] sm:$0xff]
    %v516 = vld [vmem:[%s55] sm:$0x1]
    %v518 = vlaneseq
    %v519 = vshrl.u32 %v518, 7
    %v520 = vsub.s32 0, %v519
    %v521 = vrot.slane %v516, %v520
    %523 = vmatprep.subr.mxu0 0.0
    %524 = vmatpush1.msra.mxu0 0.0
    %525 = vmatprep.subr.mxu0 0.0
    %526 = vmatpush1.msra.mxu0 0.0
    %527 = vmatprep.subr.mxu0 0.0
    %528 = vmatpush1.msra.mxu0 0.0
    %529 = vmatprep.subr.mxu0 0.0
    %530 = vmatpush1.msra.mxu0 0.0
    %531 = vmatprep.subr.mxu0 0.0
    %532 = vmatpush1.msra.mxu0 0.0
    %533 = vmatprep.subr.mxu0 0.0
    %534 = vmatpush1.msra.mxu0 0.0
    %535 = vmatprep.subr.mxu0 0.0
    %536 = vmatpush1.msra.mxu0 0.0
    %537 = vmatprep.subr.mxu0 0.0
    %538 = vmatpush1.msra.mxu0 0.0
    %539 = vmatprep.subr.mxu0 0.0
    %540 = vmatpush1.msra.mxu0 0.0
    %541 = vmatprep.subr.mxu0 0.0
    %542 = vmatpush1.msra.mxu0 0.0
    %543 = vmatprep.subr.mxu0 0.0
    %544 = vmatpush1.msra.mxu0 0.0
    %545 = vmatprep.subr.mxu0 0.0
    %546 = vmatpush1.msra.mxu0 0.0
    %547 = vmatprep.subr.mxu0 0.0
    %548 = vmatpush1.msra.mxu0 %v515
    %549 = vmatprep.subr.mxu0 0.0
    %550 = vmatpush1.msra.mxu0 %v514
    %551 = vmatprep.subr.mxu0 0.0
    %552 = vmatpush1.msra.mxu0 %v513
    %553 = vmatprep.subr.mxu0 0.0
    %554 = vmatpush1.msra.mxu0 %v512
    %555 = vmatprep.subr.mxu0 0.0
    %556 = vmatpush2.msra.mxu0 0.0
    %557 = vmatprep.subr.mxu0 0.0
    %558 = vmatpush2.msra.mxu0 0.0
    %559 = vmatprep.subr.mxu0 0.0
    %560 = vmatpush2.msra.mxu0 0.0
    %561 = vmatprep.subr.mxu0 0.0
    %562 = vmatpush2.msra.mxu0 0.0
    %563 = vmatprep.subr.mxu0 0.0
    %564 = vmatpush2.msra.mxu0 0.0
    %565 = vmatprep.subr.mxu0 0.0
    %566 = vmatpush2.msra.mxu0 0.0
    %567 = vmatprep.subr.mxu0 0.0
    %568 = vmatpush2.msra.mxu0 0.0
    %569 = vmatprep.subr.mxu0 0.0
    %570 = vmatpush2.msra.mxu0 0.0
    %571 = vmatprep.subr.mxu0 0.0
    %572 = vmatpush2.msra.mxu0 0.0
    %573 = vmatprep.subr.mxu0 0.0
    %574 = vmatpush2.msra.mxu0 0.0
    %575 = vmatprep.subr.mxu0 0.0
    %576 = vmatpush2.msra.mxu0 0.0
    %577 = vmatprep.subr.mxu0 0.0
    %578 = vmatpush2.msra.mxu0 0.0
    %579 = vmatprep.subr.mxu0 0.0
    %580 = vmatpush2.msra.mxu0 0.0
    %581 = vmatprep.subr.mxu0 0.0
    %582 = vmatpush2.msra.mxu0 0.0
    %583 = vmatprep.subr.mxu0 0.0
    %584 = vmatpush2.msra.mxu0 0.0
    %585 = vmatprep.subr.mxu0 0.0
    %586 = vmatpush2.msra.mxu0 0.0
    %587 = vmatprep.mubr.f32.mxu0 0.0
    %588 = vmatmul.mubr.f32.gmra.mxu0 %v346
    %v589 = vpop.f32.mrf.mxu0
    %v590 = vadd.f32 %v521, %v589
    %v591 = vpop.f32.mrf.mxu0
    %592 = vmatprep.mubr.f32.mxu0 0.0
    %593 = vmatmul.mubr.f32.gmra.mxu0 %v349
    %v594 = vpop.f32.mrf.mxu0
    %v595 = vadd.f32 %v521, %v594
    %v596 = vpop.f32.mrf.mxu0
    %597 = vdwg.mxu0
    %v598 = vld [vmem:[%s49] sm:$0xff]
    %s599 = scalar_lea.vmem %s53, 32
    %v600 = vld [vmem:[%s599] sm:$0xff]
    %v601 = vld [vmem:[%s599 + $0x8] sm:$0xff]
    %v602 = vld [vmem:[%s599 + $0x10] sm:$0xff]
    %v603 = vld [vmem:[%s599 + $0x18] sm:$0xff]
    %s604 = scalar_lea.vmem %s51, 1
    %v605 = vld [vmem:[%s604] sm:$0x1]
    %v607 = vlaneseq
    %v608 = vshrl.u32 %v607, 7
    %v609 = vsub.s32 0, %v608
    %v610 = vrot.slane %v605, %v609
    %612 = vmatprep.subr.mxu0 0.0
    %613 = vmatpush1.msra.mxu0 0.0
    %614 = vmatprep.subr.mxu0 0.0
    %615 = vmatpush1.msra.mxu0 0.0
    %616 = vmatprep.subr.mxu0 0.0
    %617 = vmatpush1.msra.mxu0 0.0
    %618 = vmatprep.subr.mxu0 0.0
    %619 = vmatpush1.msra.mxu0 0.0
    %620 = vmatprep.subr.mxu0 0.0
    %621 = vmatpush1.msra.mxu0 0.0
    %622 = vmatprep.subr.mxu0 0.0
    %623 = vmatpush1.msra.mxu0 0.0
    %624 = vmatprep.subr.mxu0 0.0
    %625 = vmatpush1.msra.mxu0 0.0
    %626 = vmatprep.subr.mxu0 0.0
    %627 = vmatpush1.msra.mxu0 0.0
    %628 = vmatprep.subr.mxu0 0.0
    %629 = vmatpush1.msra.mxu0 0.0
    %630 = vmatprep.subr.mxu0 0.0
    %631 = vmatpush1.msra.mxu0 0.0
    %632 = vmatprep.subr.mxu0 0.0
    %633 = vmatpush1.msra.mxu0 0.0
    %634 = vmatprep.subr.mxu0 0.0
    %635 = vmatpush1.msra.mxu0 0.0
    %636 = vmatprep.subr.mxu0 0.0
    %637 = vmatpush1.msra.mxu0 %v603
    %638 = vmatprep.subr.mxu0 0.0
    %639 = vmatpush1.msra.mxu0 %v602
    %640 = vmatprep.subr.mxu0 0.0
    %641 = vmatpush1.msra.mxu0 %v601
    %642 = vmatprep.subr.mxu0 0.0
    %643 = vmatpush1.msra.mxu0 %v600
    %644 = vmatprep.subr.mxu0 0.0
    %645 = vmatpush2.msra.mxu0 0.0
    %646 = vmatprep.subr.mxu0 0.0
    %647 = vmatpush2.msra.mxu0 0.0
    %648 = vmatprep.subr.mxu0 0.0
    %649 = vmatpush2.msra.mxu0 0.0
    %650 = vmatprep.subr.mxu0 0.0
    %651 = vmatpush2.msra.mxu0 0.0
    %652 = vmatprep.subr.mxu0 0.0
    %653 = vmatpush2.msra.mxu0 0.0
    %654 = vmatprep.subr.mxu0 0.0
    %655 = vmatpush2.msra.mxu0 0.0
    %656 = vmatprep.subr.mxu0 0.0
    %657 = vmatpush2.msra.mxu0 0.0
    %658 = vmatprep.subr.mxu0 0.0
    %659 = vmatpush2.msra.mxu0 0.0
    %660 = vmatprep.subr.mxu0 0.0
    %661 = vmatpush2.msra.mxu0 0.0
    %662 = vmatprep.subr.mxu0 0.0
    %663 = vmatpush2.msra.mxu0 0.0
    %664 = vmatprep.subr.mxu0 0.0
    %665 = vmatpush2.msra.mxu0 0.0
    %666 = vmatprep.subr.mxu0 0.0
    %667 = vmatpush2.msra.mxu0 0.0
    %668 = vmatprep.subr.mxu0 0.0
    %669 = vmatpush2.msra.mxu0 0.0
    %670 = vmatprep.subr.mxu0 0.0
    %671 = vmatpush2.msra.mxu0 0.0
    %672 = vmatprep.subr.mxu0 0.0
    %673 = vmatpush2.msra.mxu0 0.0
    %674 = vmatprep.subr.mxu0 0.0
    %675 = vmatpush2.msra.mxu0 0.0
    %676 = vmatprep.mubr.f32.mxu0 0.0
    %677 = vmatmul.mubr.f32.gmra.mxu0 %v346
    %v678 = vpop.f32.mrf.mxu0
    %v679 = vadd.f32 %v610, %v678
    %v680 = vpop.f32.mrf.mxu0
    %681 = vmatprep.mubr.f32.mxu0 0.0
    %682 = vmatmul.mubr.f32.gmra.mxu0 %v349
    %v683 = vpop.f32.mrf.mxu0
    %v684 = vadd.f32 %v610, %v683
    %v685 = vpop.f32.mrf.mxu0
    %686 = vdwg.mxu0
    %s687 = scalar_lea.vmem %s37, 32
    %v688 = vld [vmem:[%s687] sm:$0xff]
    %v689 = vld [vmem:[%s687 + $0x8] sm:$0xff]
    %v690 = vld [vmem:[%s687 + $0x10] sm:$0xff]
    %v691 = vld [vmem:[%s687 + $0x18] sm:$0xff]
    %s692 = scalar_lea.vmem %s35, 1
    %v693 = vld [vmem:[%s692] sm:$0x1]
    %v695 = vlaneseq
    %v696 = vshrl.u32 %v695, 7
    %v697 = vsub.s32 0, %v696
    %v698 = vrot.slane %v693, %v697
    %700 = vmatprep.subr.mxu0 0.0
    %701 = vmatpush1.msra.mxu0 0.0
    %702 = vmatprep.subr.mxu0 0.0
    %703 = vmatpush1.msra.mxu0 0.0
    %704 = vmatprep.subr.mxu0 0.0
    %705 = vmatpush1.msra.mxu0 0.0
    %706 = vmatprep.subr.mxu0 0.0
    %707 = vmatpush1.msra.mxu0 0.0
    %708 = vmatprep.subr.mxu0 0.0
    %709 = vmatpush1.msra.mxu0 0.0
    %710 = vmatprep.subr.mxu0 0.0
    %711 = vmatpush1.msra.mxu0 0.0
    %712 = vmatprep.subr.mxu0 0.0
    %713 = vmatpush1.msra.mxu0 0.0
    %714 = vmatprep.subr.mxu0 0.0
    %715 = vmatpush1.msra.mxu0 0.0
    %716 = vmatprep.subr.mxu0 0.0
    %717 = vmatpush1.msra.mxu0 0.0
    %718 = vmatprep.subr.mxu0 0.0
    %719 = vmatpush1.msra.mxu0 0.0
    %720 = vmatprep.subr.mxu0 0.0
    %721 = vmatpush1.msra.mxu0 0.0
    %722 = vmatprep.subr.mxu0 0.0
    %723 = vmatpush1.msra.mxu0 0.0
    %724 = vmatprep.subr.mxu0 0.0
    %725 = vmatpush1.msra.mxu0 %v691
    %726 = vmatprep.subr.mxu0 0.0
    %727 = vmatpush1.msra.mxu0 %v690
    %728 = vmatprep.subr.mxu0 0.0
    %729 = vmatpush1.msra.mxu0 %v689
    %730 = vmatprep.subr.mxu0 0.0
    %731 = vmatpush1.msra.mxu0 %v688
    %732 = vmatprep.subr.mxu0 0.0
    %733 = vmatpush2.msra.mxu0 0.0
    %734 = vmatprep.subr.mxu0 0.0
    %735 = vmatpush2.msra.mxu0 0.0
    %736 = vmatprep.subr.mxu0 0.0
    %737 = vmatpush2.msra.mxu0 0.0
    %738 = vmatprep.subr.mxu0 0.0
    %739 = vmatpush2.msra.mxu0 0.0
    %740 = vmatprep.subr.mxu0 0.0
    %741 = vmatpush2.msra.mxu0 0.0
    %742 = vmatprep.subr.mxu0 0.0
    %743 = vmatpush2.msra.mxu0 0.0
    %744 = vmatprep.subr.mxu0 0.0
    %745 = vmatpush2.msra.mxu0 0.0
    %746 = vmatprep.subr.mxu0 0.0
    %747 = vmatpush2.msra.mxu0 0.0
    %748 = vmatprep.subr.mxu0 0.0
    %749 = vmatpush2.msra.mxu0 0.0
    %750 = vmatprep.subr.mxu0 0.0
    %751 = vmatpush2.msra.mxu0 0.0
    %752 = vmatprep.subr.mxu0 0.0
    %753 = vmatpush2.msra.mxu0 0.0
    %754 = vmatprep.subr.mxu0 0.0
    %755 = vmatpush2.msra.mxu0 0.0
    %756 = vmatprep.subr.mxu0 0.0
    %757 = vmatpush2.msra.mxu0 0.0
    %758 = vmatprep.subr.mxu0 0.0
    %759 = vmatpush2.msra.mxu0 0.0
    %760 = vmatprep.subr.mxu0 0.0
    %761 = vmatpush2.msra.mxu0 0.0
    %762 = vmatprep.subr.mxu0 0.0
    %763 = vmatpush2.msra.mxu0 0.0
    %764 = vmatprep.mubr.f32.mxu0 0.0
    %765 = vmatmul.mubr.f32.gmra.mxu0 %v346
    %v766 = vpop.f32.mrf.mxu0
    %v767 = vadd.f32 %v698, %v766
    %v768 = vpop.f32.mrf.mxu0
    %769 = vmatprep.mubr.f32.mxu0 0.0
    %770 = vmatmul.mubr.f32.gmra.mxu0 %v349
    %v771 = vpop.f32.mrf.mxu0
    %v772 = vadd.f32 %v698, %v771
    %v773 = vpop.f32.mrf.mxu0
    %774 = vdwg.mxu0
    %s775 = scalar_lea.vmem %s57, 32
    %v776 = vld [vmem:[%s775] sm:$0xff]
    %v777 = vld [vmem:[%s775 + $0x8] sm:$0xff]
    %v778 = vld [vmem:[%s775 + $0x10] sm:$0xff]
    %v779 = vld [vmem:[%s775 + $0x18] sm:$0xff]
    %s780 = scalar_lea.vmem %s55, 1
    %v781 = vld [vmem:[%s780] sm:$0x1]
    %v783 = vlaneseq
    %v784 = vshrl.u32 %v783, 7
    %v785 = vsub.s32 0, %v784
    %v786 = vrot.slane %v781, %v785
    %788 = vmatprep.subr.mxu0 0.0
    %789 = vmatpush1.msra.mxu0 0.0
    %790 = vmatprep.subr.mxu0 0.0
    %791 = vmatpush1.msra.mxu0 0.0
    %792 = vmatprep.subr.mxu0 0.0
    %793 = vmatpush1.msra.mxu0 0.0
    %794 = vmatprep.subr.mxu0 0.0
    %795 = vmatpush1.msra.mxu0 0.0
    %796 = vmatprep.subr.mxu0 0.0
    %797 = vmatpush1.msra.mxu0 0.0
    %798 = vmatprep.subr.mxu0 0.0
    %799 = vmatpush1.msra.mxu0 0.0
    %800 = vmatprep.subr.mxu0 0.0
    %801 = vmatpush1.msra.mxu0 0.0
    %802 = vmatprep.subr.mxu0 0.0
    %803 = vmatpush1.msra.mxu0 0.0
    %804 = vmatprep.subr.mxu0 0.0
    %805 = vmatpush1.msra.mxu0 0.0
    %806 = vmatprep.subr.mxu0 0.0
    %807 = vmatpush1.msra.mxu0 0.0
    %808 = vmatprep.subr.mxu0 0.0
    %809 = vmatpush1.msra.mxu0 0.0
    %810 = vmatprep.subr.mxu0 0.0
    %811 = vmatpush1.msra.mxu0 0.0
    %812 = vmatprep.subr.mxu0 0.0
    %813 = vmatpush1.msra.mxu0 %v779
    %814 = vmatprep.subr.mxu0 0.0
    %815 = vmatpush1.msra.mxu0 %v778
    %816 = vmatprep.subr.mxu0 0.0
    %817 = vmatpush1.msra.mxu0 %v777
    %818 = vmatprep.subr.mxu0 0.0
    %819 = vmatpush1.msra.mxu0 %v776
    %820 = vmatprep.subr.mxu0 0.0
    %821 = vmatpush2.msra.mxu0 0.0
    %822 = vmatprep.subr.mxu0 0.0
    %823 = vmatpush2.msra.mxu0 0.0
    %824 = vmatprep.subr.mxu0 0.0
    %825 = vmatpush2.msra.mxu0 0.0
    %826 = vmatprep.subr.mxu0 0.0
    %827 = vmatpush2.msra.mxu0 0.0
    %828 = vmatprep.subr.mxu0 0.0
    %829 = vmatpush2.msra.mxu0 0.0
    %830 = vmatprep.subr.mxu0 0.0
    %831 = vmatpush2.msra.mxu0 0.0
    %832 = vmatprep.subr.mxu0 0.0
    %833 = vmatpush2.msra.mxu0 0.0
    %834 = vmatprep.subr.mxu0 0.0
    %835 = vmatpush2.msra.mxu0 0.0
    %836 = vmatprep.subr.mxu0 0.0
    %837 = vmatpush2.msra.mxu0 0.0
    %838 = vmatprep.subr.mxu0 0.0
    %839 = vmatpush2.msra.mxu0 0.0
    %840 = vmatprep.subr.mxu0 0.0
    %841 = vmatpush2.msra.mxu0 0.0
    %842 = vmatprep.subr.mxu0 0.0
    %843 = vmatpush2.msra.mxu0 0.0
    %844 = vmatprep.subr.mxu0 0.0
    %845 = vmatpush2.msra.mxu0 0.0
    %846 = vmatprep.subr.mxu0 0.0
    %847 = vmatpush2.msra.mxu0 0.0
    %848 = vmatprep.subr.mxu0 0.0
    %849 = vmatpush2.msra.mxu0 0.0
    %850 = vmatprep.subr.mxu0 0.0
    %851 = vmatpush2.msra.mxu0 0.0
    %852 = vmatprep.mubr.f32.mxu0 0.0
    %853 = vmatmul.mubr.f32.gmra.mxu0 %v346
    %v854 = vpop.f32.mrf.mxu0
    %v855 = vadd.f32 %v786, %v854
    %v856 = vpop.f32.mrf.mxu0
    %857 = vmatprep.mubr.f32.mxu0 0.0
    %858 = vmatmul.mubr.f32.gmra.mxu0 %v349
    %v859 = vpop.f32.mrf.mxu0
    %v860 = vadd.f32 %v786, %v859
    %v861 = vpop.f32.mrf.mxu0
    %862 = vdwg.mxu0
    %s863 = scalar_lea.vmem %s49, 8
    %v864 = vld [vmem:[%s863] sm:$0xff]
    %s865 = scalar_lea.vmem %s53, 64
    %v866 = vld [vmem:[%s865] sm:$0xff]
    %v867 = vld [vmem:[%s865 + $0x8] sm:$0xff]
    %v868 = vld [vmem:[%s865 + $0x10] sm:$0xff]
    %v869 = vld [vmem:[%s865 + $0x18] sm:$0xff]
    %s870 = scalar_lea.vmem %s51, 2
    %v871 = vld [vmem:[%s870] sm:$0x1]
    %v873 = vlaneseq
    %v874 = vshrl.u32 %v873, 7
    %v875 = vsub.s32 0, %v874
    %v876 = vrot.slane %v871, %v875
    %878 = vmatprep.subr.mxu0 0.0
    %879 = vmatpush1.msra.mxu0 0.0
    %880 = vmatprep.subr.mxu0 0.0
    %881 = vmatpush1.msra.mxu0 0.0
    %882 = vmatprep.subr.mxu0 0.0
    %883 = vmatpush1.msra.mxu0 0.0
    %884 = vmatprep.subr.mxu0 0.0
    %885 = vmatpush1.msra.mxu0 0.0
    %886 = vmatprep.subr.mxu0 0.0
    %887 = vmatpush1.msra.mxu0 0.0
    %888 = vmatprep.subr.mxu0 0.0
    %889 = vmatpush1.msra.mxu0 0.0
    %890 = vmatprep.subr.mxu0 0.0
    %891 = vmatpush1.msra.mxu0 0.0
    %892 = vmatprep.subr.mxu0 0.0
    %893 = vmatpush1.msra.mxu0 0.0
    %894 = vmatprep.subr.mxu0 0.0
    %895 = vmatpush1.msra.mxu0 0.0
    %896 = vmatprep.subr.mxu0 0.0
    %897 = vmatpush1.msra.mxu0 0.0
    %898 = vmatprep.subr.mxu0 0.0
    %899 = vmatpush1.msra.mxu0 0.0
    %900 = vmatprep.subr.mxu0 0.0
    %901 = vmatpush1.msra.mxu0 0.0
    %902 = vmatprep.subr.mxu0 0.0
    %903 = vmatpush1.msra.mxu0 %v869
    %904 = vmatprep.subr.mxu0 0.0
    %905 = vmatpush1.msra.mxu0 %v868
    %906 = vmatprep.subr.mxu0 0.0
    %907 = vmatpush1.msra.mxu0 %v867
    %908 = vmatprep.subr.mxu0 0.0
    %909 = vmatpush1.msra.mxu0 %v866
    %910 = vmatprep.subr.mxu0 0.0
    %911 = vmatpush2.msra.mxu0 0.0
    %912 = vmatprep.subr.mxu0 0.0
    %913 = vmatpush2.msra.mxu0 0.0
    %914 = vmatprep.subr.mxu0 0.0
    %915 = vmatpush2.msra.mxu0 0.0
    %916 = vmatprep.subr.mxu0 0.0
    %917 = vmatpush2.msra.mxu0 0.0
    %918 = vmatprep.subr.mxu0 0.0
    %919 = vmatpush2.msra.mxu0 0.0
    %920 = vmatprep.subr.mxu0 0.0
    %921 = vmatpush2.msra.mxu0 0.0
    %922 = vmatprep.subr.mxu0 0.0
    %923 = vmatpush2.msra.mxu0 0.0
    %924 = vmatprep.subr.mxu0 0.0
    %925 = vmatpush2.msra.mxu0 0.0
    %926 = vmatprep.subr.mxu0 0.0
    %927 = vmatpush2.msra.mxu0 0.0
    %928 = vmatprep.subr.mxu0 0.0
    %929 = vmatpush2.msra.mxu0 0.0
    %930 = vmatprep.subr.mxu0 0.0
    %931 = vmatpush2.msra.mxu0 0.0
    %932 = vmatprep.subr.mxu0 0.0
    %933 = vmatpush2.msra.mxu0 0.0
    %934 = vmatprep.subr.mxu0 0.0
    %935 = vmatpush2.msra.mxu0 0.0
    %936 = vmatprep.subr.mxu0 0.0
    %937 = vmatpush2.msra.mxu0 0.0
    %938 = vmatprep.subr.mxu0 0.0
    %939 = vmatpush2.msra.mxu0 0.0
    %940 = vmatprep.subr.mxu0 0.0
    %941 = vmatpush2.msra.mxu0 0.0
    %942 = vmatprep.mubr.f32.mxu0 0.0
    %943 = vmatmul.mubr.f32.gmra.mxu0 %v346
    %v944 = vpop.f32.mrf.mxu0
    %v945 = vadd.f32 %v876, %v944
    %v946 = vpop.f32.mrf.mxu0
    %947 = vmatprep.mubr.f32.mxu0 0.0
    %948 = vmatmul.mubr.f32.gmra.mxu0 %v349
    %v949 = vpop.f32.mrf.mxu0
    %v950 = vadd.f32 %v876, %v949
    %v951 = vpop.f32.mrf.mxu0
    %952 = vdwg.mxu0
    %s953 = scalar_lea.vmem %s37, 64
    %v954 = vld [vmem:[%s953] sm:$0xff]
    %v955 = vld [vmem:[%s953 + $0x8] sm:$0xff]
    %v956 = vld [vmem:[%s953 + $0x10] sm:$0xff]
    %v957 = vld [vmem:[%s953 + $0x18] sm:$0xff]
    %s958 = scalar_lea.vmem %s35, 2
    %v959 = vld [vmem:[%s958] sm:$0x1]
    %v961 = vlaneseq
    %v962 = vshrl.u32 %v961, 7
    %v963 = vsub.s32 0, %v962
    %v964 = vrot.slane %v959, %v963
    %966 = vmatprep.subr.mxu0 0.0
    %967 = vmatpush1.msra.mxu0 0.0
    %968 = vmatprep.subr.mxu0 0.0
    %969 = vmatpush1.msra.mxu0 0.0
    %970 = vmatprep.subr.mxu0 0.0
    %971 = vmatpush1.msra.mxu0 0.0
    %972 = vmatprep.subr.mxu0 0.0
    %973 = vmatpush1.msra.mxu0 0.0
    %974 = vmatprep.subr.mxu0 0.0
    %975 = vmatpush1.msra.mxu0 0.0
    %976 = vmatprep.subr.mxu0 0.0
    %977 = vmatpush1.msra.mxu0 0.0
    %978 = vmatprep.subr.mxu0 0.0
    %979 = vmatpush1.msra.mxu0 0.0
    %980 = vmatprep.subr.mxu0 0.0
    %981 = vmatpush1.msra.mxu0 0.0
    %982 = vmatprep.subr.mxu0 0.0
    %983 = vmatpush1.msra.mxu0 0.0
    %984 = vmatprep.subr.mxu0 0.0
    %985 = vmatpush1.msra.mxu0 0.0
    %986 = vmatprep.subr.mxu0 0.0
    %987 = vmatpush1.msra.mxu0 0.0
    %988 = vmatprep.subr.mxu0 0.0
    %989 = vmatpush1.msra.mxu0 0.0
    %990 = vmatprep.subr.mxu0 0.0
    %991 = vmatpush1.msra.mxu0 %v957
    %992 = vmatprep.subr.mxu0 0.0
    %993 = vmatpush1.msra.mxu0 %v956
    %994 = vmatprep.subr.mxu0 0.0
    %995 = vmatpush1.msra.mxu0 %v955
    %996 = vmatprep.subr.mxu0 0.0
    %997 = vmatpush1.msra.mxu0 %v954
    %998 = vmatprep.subr.mxu0 0.0
    %999 = vmatpush2.msra.mxu0 0.0
    %1000 = vmatprep.subr.mxu0 0.0
    %1001 = vmatpush2.msra.mxu0 0.0
    %1002 = vmatprep.subr.mxu0 0.0
    %1003 = vmatpush2.msra.mxu0 0.0
    %1004 = vmatprep.subr.mxu0 0.0
    %1005 = vmatpush2.msra.mxu0 0.0
    %1006 = vmatprep.subr.mxu0 0.0
    %1007 = vmatpush2.msra.mxu0 0.0
    %1008 = vmatprep.subr.mxu0 0.0
    %1009 = vmatpush2.msra.mxu0 0.0
    %1010 = vmatprep.subr.mxu0 0.0
    %1011 = vmatpush2.msra.mxu0 0.0
    %1012 = vmatprep.subr.mxu0 0.0
    %1013 = vmatpush2.msra.mxu0 0.0
    %1014 = vmatprep.subr.mxu0 0.0
    %1015 = vmatpush2.msra.mxu0 0.0
    %1016 = vmatprep.subr.mxu0 0.0
    %1017 = vmatpush2.msra.mxu0 0.0
    %1018 = vmatprep.subr.mxu0 0.0
    %1019 = vmatpush2.msra.mxu0 0.0
    %1020 = vmatprep.subr.mxu0 0.0
    %1021 = vmatpush2.msra.mxu0 0.0
    %1022 = vmatprep.subr.mxu0 0.0
    %1023 = vmatpush2.msra.mxu0 0.0
    %1024 = vmatprep.subr.mxu0 0.0
    %1025 = vmatpush2.msra.mxu0 0.0
    %1026 = vmatprep.subr.mxu0 0.0
    %1027 = vmatpush2.msra.mxu0 0.0
    %1028 = vmatprep.subr.mxu0 0.0
    %1029 = vmatpush2.msra.mxu0 0.0
    %1030 = vmatprep.mubr.f32.mxu0 0.0
    %1031 = vmatmul.mubr.f32.gmra.mxu0 %v346
    %v1032 = vpop.f32.mrf.mxu0
    %v1033 = vadd.f32 %v964, %v1032
    %v1034 = vpop.f32.mrf.mxu0
    %1035 = vmatprep.mubr.f32.mxu0 0.0
    %1036 = vmatmul.mubr.f32.gmra.mxu0 %v349
    %v1037 = vpop.f32.mrf.mxu0
    %v1038 = vadd.f32 %v964, %v1037
    %v1039 = vpop.f32.mrf.mxu0
    %1040 = vdwg.mxu0
    %s1041 = scalar_lea.vmem %s57, 64
    %v1042 = vld [vmem:[%s1041] sm:$0xff]
    %v1043 = vld [vmem:[%s1041 + $0x8] sm:$0xff]
    %v1044 = vld [vmem:[%s1041 + $0x10] sm:$0xff]
    %v1045 = vld [vmem:[%s1041 + $0x18] sm:$0xff]
    %s1046 = scalar_lea.vmem %s55, 2
    %v1047 = vld [vmem:[%s1046] sm:$0x1]
    %v1049 = vlaneseq
    %v1050 = vshrl.u32 %v1049, 7
    %v1051 = vsub.s32 0, %v1050
    %v1052 = vrot.slane %v1047, %v1051
    %1054 = vmatprep.subr.mxu0 0.0
    %1055 = vmatpush1.msra.mxu0 0.0
    %1056 = vmatprep.subr.mxu0 0.0
    %1057 = vmatpush1.msra.mxu0 0.0
    %1058 = vmatprep.subr.mxu0 0.0
    %1059 = vmatpush1.msra.mxu0 0.0
    %1060 = vmatprep.subr.mxu0 0.0
    %1061 = vmatpush1.msra.mxu0 0.0
    %1062 = vmatprep.subr.mxu0 0.0
    %1063 = vmatpush1.msra.mxu0 0.0
    %1064 = vmatprep.subr.mxu0 0.0
    %1065 = vmatpush1.msra.mxu0 0.0
    %1066 = vmatprep.subr.mxu0 0.0
    %1067 = vmatpush1.msra.mxu0 0.0
    %1068 = vmatprep.subr.mxu0 0.0
    %1069 = vmatpush1.msra.mxu0 0.0
    %1070 = vmatprep.subr.mxu0 0.0
    %1071 = vmatpush1.msra.mxu0 0.0
    %1072 = vmatprep.subr.mxu0 0.0
    %1073 = vmatpush1.msra.mxu0 0.0
    %1074 = vmatprep.subr.mxu0 0.0
    %1075 = vmatpush1.msra.mxu0 0.0
    %1076 = vmatprep.subr.mxu0 0.0
    %1077 = vmatpush1.msra.mxu0 0.0
    %1078 = vmatprep.subr.mxu0 0.0
    %1079 = vmatpush1.msra.mxu0 %v1045
    %1080 = vmatprep.subr.mxu0 0.0
    %1081 = vmatpush1.msra.mxu0 %v1044
    %1082 = vmatprep.subr.mxu0 0.0
    %1083 = vmatpush1.msra.mxu0 %v1043
    %1084 = vmatprep.subr.mxu0 0.0
    %1085 = vmatpush1.msra.mxu0 %v1042
    %1086 = vmatprep.subr.mxu0 0.0
    %1087 = vmatpush2.msra.mxu0 0.0
    %1088 = vmatprep.subr.mxu0 0.0
    %1089 = vmatpush2.msra.mxu0 0.0
    %1090 = vmatprep.subr.mxu0 0.0
    %1091 = vmatpush2.msra.mxu0 0.0
    %1092 = vmatprep.subr.mxu0 0.0
    %1093 = vmatpush2.msra.mxu0 0.0
    %1094 = vmatprep.subr.mxu0 0.0
    %1095 = vmatpush2.msra.mxu0 0.0
    %1096 = vmatprep.subr.mxu0 0.0
    %1097 = vmatpush2.msra.mxu0 0.0
    %1098 = vmatprep.subr.mxu0 0.0
    %1099 = vmatpush2.msra.mxu0 0.0
    %1100 = vmatprep.subr.mxu0 0.0
    %1101 = vmatpush2.msra.mxu0 0.0
    %1102 = vmatprep.subr.mxu0 0.0
    %1103 = vmatpush2.msra.mxu0 0.0
    %1104 = vmatprep.subr.mxu0 0.0
    %1105 = vmatpush2.msra.mxu0 0.0
    %1106 = vmatprep.subr.mxu0 0.0
    %1107 = vmatpush2.msra.mxu0 0.0
    %1108 = vmatprep.subr.mxu0 0.0
    %1109 = vmatpush2.msra.mxu0 0.0
    %1110 = vmatprep.subr.mxu0 0.0
    %1111 = vmatpush2.msra.mxu0 0.0
    %1112 = vmatprep.subr.mxu0 0.0
    %1113 = vmatpush2.msra.mxu0 0.0
    %1114 = vmatprep.subr.mxu0 0.0
    %1115 = vmatpush2.msra.mxu0 0.0
    %1116 = vmatprep.subr.mxu0 0.0
    %1117 = vmatpush2.msra.mxu0 0.0
    %1118 = vmatprep.mubr.f32.mxu0 0.0
    %1119 = vmatmul.mubr.f32.gmra.mxu0 %v346
    %v1120 = vpop.f32.mrf.mxu0
    %v1121 = vadd.f32 %v1052, %v1120
    %v1122 = vpop.f32.mrf.mxu0
    %1123 = vmatprep.mubr.f32.mxu0 0.0
    %1124 = vmatmul.mubr.f32.gmra.mxu0 %v349
    %v1125 = vpop.f32.mrf.mxu0
    %v1126 = vadd.f32 %v1052, %v1125
    %v1127 = vpop.f32.mrf.mxu0
    %1128 = vdwg.mxu0
    %s1129 = scalar_lea.vmem %s49, 16
    %v1130 = vld [vmem:[%s1129] sm:$0xff]
    %s1131 = scalar_lea.vmem %s53, 96
    %v1132 = vld [vmem:[%s1131] sm:$0xff]
    %v1133 = vld [vmem:[%s1131 + $0x8] sm:$0xff]
    %v1134 = vld [vmem:[%s1131 + $0x10] sm:$0xff]
    %v1135 = vld [vmem:[%s1131 + $0x18] sm:$0xff]
    %s1136 = scalar_lea.vmem %s51, 3
    %v1137 = vld [vmem:[%s1136] sm:$0x1]
    %v1139 = vlaneseq
    %v1140 = vshrl.u32 %v1139, 7
    %v1141 = vsub.s32 0, %v1140
    %v1142 = vrot.slane %v1137, %v1141
    %1144 = vmatprep.subr.mxu0 0.0
    %1145 = vmatpush1.msra.mxu0 0.0
    %1146 = vmatprep.subr.mxu0 0.0
    %1147 = vmatpush1.msra.mxu0 0.0
    %1148 = vmatprep.subr.mxu0 0.0
    %1149 = vmatpush1.msra.mxu0 0.0
    %1150 = vmatprep.subr.mxu0 0.0
    %1151 = vmatpush1.msra.mxu0 0.0
    %1152 = vmatprep.subr.mxu0 0.0
    %1153 = vmatpush1.msra.mxu0 0.0
    %1154 = vmatprep.subr.mxu0 0.0
    %1155 = vmatpush1.msra.mxu0 0.0
    %1156 = vmatprep.subr.mxu0 0.0
    %1157 = vmatpush1.msra.mxu0 0.0
    %1158 = vmatprep.subr.mxu0 0.0
    %1159 = vmatpush1.msra.mxu0 0.0
    %1160 = vmatprep.subr.mxu0 0.0
    %1161 = vmatpush1.msra.mxu0 0.0
    %1162 = vmatprep.subr.mxu0 0.0
    %1163 = vmatpush1.msra.mxu0 0.0
    %1164 = vmatprep.subr.mxu0 0.0
    %1165 = vmatpush1.msra.mxu0 0.0
    %1166 = vmatprep.subr.mxu0 0.0
    %1167 = vmatpush1.msra.mxu0 0.0
    %1168 = vmatprep.subr.mxu0 0.0
    %1169 = vmatpush1.msra.mxu0 %v1135
    %1170 = vmatprep.subr.mxu0 0.0
    %1171 = vmatpush1.msra.mxu0 %v1134
    %1172 = vmatprep.subr.mxu0 0.0
    %1173 = vmatpush1.msra.mxu0 %v1133
    %1174 = vmatprep.subr.mxu0 0.0
    %1175 = vmatpush1.msra.mxu0 %v1132
    %1176 = vmatprep.subr.mxu0 0.0
    %1177 = vmatpush2.msra.mxu0 0.0
    %1178 = vmatprep.subr.mxu0 0.0
    %1179 = vmatpush2.msra.mxu0 0.0
    %1180 = vmatprep.subr.mxu0 0.0
    %1181 = vmatpush2.msra.mxu0 0.0
    %1182 = vmatprep.subr.mxu0 0.0
    %1183 = vmatpush2.msra.mxu0 0.0
    %1184 = vmatprep.subr.mxu0 0.0
    %1185 = vmatpush2.msra.mxu0 0.0
    %1186 = vmatprep.subr.mxu0 0.0
    %1187 = vmatpush2.msra.mxu0 0.0
    %1188 = vmatprep.subr.mxu0 0.0
    %1189 = vmatpush2.msra.mxu0 0.0
    %1190 = vmatprep.subr.mxu0 0.0
    %1191 = vmatpush2.msra.mxu0 0.0
    %1192 = vmatprep.subr.mxu0 0.0
    %1193 = vmatpush2.msra.mxu0 0.0
    %1194 = vmatprep.subr.mxu0 0.0
    %1195 = vmatpush2.msra.mxu0 0.0
    %1196 = vmatprep.subr.mxu0 0.0
    %1197 = vmatpush2.msra.mxu0 0.0
    %1198 = vmatprep.subr.mxu0 0.0
    %1199 = vmatpush2.msra.mxu0 0.0
    %1200 = vmatprep.subr.mxu0 0.0
    %1201 = vmatpush2.msra.mxu0 0.0
    %1202 = vmatprep.subr.mxu0 0.0
    %1203 = vmatpush2.msra.mxu0 0.0
    %1204 = vmatprep.subr.mxu0 0.0
    %1205 = vmatpush2.msra.mxu0 0.0
    %1206 = vmatprep.subr.mxu0 0.0
    %1207 = vmatpush2.msra.mxu0 0.0
    %1208 = vmatprep.mubr.f32.mxu0 0.0
    %1209 = vmatmul.mubr.f32.gmra.mxu0 %v346
    %v1210 = vpop.f32.mrf.mxu0
    %v1211 = vadd.f32 %v1142, %v1210
    %v1212 = vpop.f32.mrf.mxu0
    %1213 = vmatprep.mubr.f32.mxu0 0.0
    %1214 = vmatmul.mubr.f32.gmra.mxu0 %v349
    %v1215 = vpop.f32.mrf.mxu0
    %v1216 = vadd.f32 %v1142, %v1215
    %v1217 = vpop.f32.mrf.mxu0
    %1218 = vdwg.mxu0
    %s1219 = scalar_lea.vmem %s37, 96
    %v1220 = vld [vmem:[%s1219] sm:$0xff]
    %v1221 = vld [vmem:[%s1219 + $0x8] sm:$0xff]
    %v1222 = vld [vmem:[%s1219 + $0x10] sm:$0xff]
    %v1223 = vld [vmem:[%s1219 + $0x18] sm:$0xff]
    %s1224 = scalar_lea.vmem %s35, 3
    %v1225 = vld [vmem:[%s1224] sm:$0x1]
    %v1227 = vlaneseq
    %v1228 = vshrl.u32 %v1227, 7
    %v1229 = vsub.s32 0, %v1228
    %v1230 = vrot.slane %v1225, %v1229
    %1232 = vmatprep.subr.mxu0 0.0
    %1233 = vmatpush1.msra.mxu0 0.0
    %1234 = vmatprep.subr.mxu0 0.0
    %1235 = vmatpush1.msra.mxu0 0.0
    %1236 = vmatprep.subr.mxu0 0.0
    %1237 = vmatpush1.msra.mxu0 0.0
    %1238 = vmatprep.subr.mxu0 0.0
    %1239 = vmatpush1.msra.mxu0 0.0
    %1240 = vmatprep.subr.mxu0 0.0
    %1241 = vmatpush1.msra.mxu0 0.0
    %1242 = vmatprep.subr.mxu0 0.0
    %1243 = vmatpush1.msra.mxu0 0.0
    %1244 = vmatprep.subr.mxu0 0.0
    %1245 = vmatpush1.msra.mxu0 0.0
    %1246 = vmatprep.subr.mxu0 0.0
    %1247 = vmatpush1.msra.mxu0 0.0
    %1248 = vmatprep.subr.mxu0 0.0
    %1249 = vmatpush1.msra.mxu0 0.0
    %1250 = vmatprep.subr.mxu0 0.0
    %1251 = vmatpush1.msra.mxu0 0.0
    %1252 = vmatprep.subr.mxu0 0.0
    %1253 = vmatpush1.msra.mxu0 0.0
    %1254 = vmatprep.subr.mxu0 0.0
    %1255 = vmatpush1.msra.mxu0 0.0
    %1256 = vmatprep.subr.mxu0 0.0
    %1257 = vmatpush1.msra.mxu0 %v1223
    %1258 = vmatprep.subr.mxu0 0.0
    %1259 = vmatpush1.msra.mxu0 %v1222
    %1260 = vmatprep.subr.mxu0 0.0
    %1261 = vmatpush1.msra.mxu0 %v1221
    %1262 = vmatprep.subr.mxu0 0.0
    %1263 = vmatpush1.msra.mxu0 %v1220
    %1264 = vmatprep.subr.mxu0 0.0
    %1265 = vmatpush2.msra.mxu0 0.0
    %1266 = vmatprep.subr.mxu0 0.0
    %1267 = vmatpush2.msra.mxu0 0.0
    %1268 = vmatprep.subr.mxu0 0.0
    %1269 = vmatpush2.msra.mxu0 0.0
    %1270 = vmatprep.subr.mxu0 0.0
    %1271 = vmatpush2.msra.mxu0 0.0
    %1272 = vmatprep.subr.mxu0 0.0
    %1273 = vmatpush2.msra.mxu0 0.0
    %1274 = vmatprep.subr.mxu0 0.0
    %1275 = vmatpush2.msra.mxu0 0.0
    %1276 = vmatprep.subr.mxu0 0.0
    %1277 = vmatpush2.msra.mxu0 0.0
    %1278 = vmatprep.subr.mxu0 0.0
    %1279 = vmatpush2.msra.mxu0 0.0
    %1280 = vmatprep.subr.mxu0 0.0
    %1281 = vmatpush2.msra.mxu0 0.0
    %1282 = vmatprep.subr.mxu0 0.0
    %1283 = vmatpush2.msra.mxu0 0.0
    %1284 = vmatprep.subr.mxu0 0.0
    %1285 = vmatpush2.msra.mxu0 0.0
    %1286 = vmatprep.subr.mxu0 0.0
    %1287 = vmatpush2.msra.mxu0 0.0
    %1288 = vmatprep.subr.mxu0 0.0
    %1289 = vmatpush2.msra.mxu0 0.0
    %1290 = vmatprep.subr.mxu0 0.0
    %1291 = vmatpush2.msra.mxu0 0.0
    %1292 = vmatprep.subr.mxu0 0.0
    %1293 = vmatpush2.msra.mxu0 0.0
    %1294 = vmatprep.subr.mxu0 0.0
    %1295 = vmatpush2.msra.mxu0 0.0
    %1296 = vmatprep.mubr.f32.mxu0 0.0
    %1297 = vmatmul.mubr.f32.gmra.mxu0 %v346
    %v1298 = vpop.f32.mrf.mxu0
    %v1299 = vadd.f32 %v1230, %v1298
    %v1300 = vpop.f32.mrf.mxu0
    %1301 = vmatprep.mubr.f32.mxu0 0.0
    %1302 = vmatmul.mubr.f32.gmra.mxu0 %v349
    %v1303 = vpop.f32.mrf.mxu0
    %v1304 = vadd.f32 %v1230, %v1303
    %v1305 = vpop.f32.mrf.mxu0
    %1306 = vdwg.mxu0
    %s1307 = scalar_lea.vmem %s57, 96
    %v1308 = vld [vmem:[%s1307] sm:$0xff]
    %v1309 = vld [vmem:[%s1307 + $0x8] sm:$0xff]
    %v1310 = vld [vmem:[%s1307 + $0x10] sm:$0xff]
    %v1311 = vld [vmem:[%s1307 + $0x18] sm:$0xff]
    %s1312 = scalar_lea.vmem %s55, 3
    %v1313 = vld [vmem:[%s1312] sm:$0x1]
    %v1315 = vlaneseq
    %v1316 = vshrl.u32 %v1315, 7
    %v1317 = vsub.s32 0, %v1316
    %v1318 = vrot.slane %v1313, %v1317
    %1320 = vmatprep.subr.mxu0 0.0
    %1321 = vmatpush1.msra.mxu0 0.0
    %1322 = vmatprep.subr.mxu0 0.0
    %1323 = vmatpush1.msra.mxu0 0.0
    %1324 = vmatprep.subr.mxu0 0.0
    %1325 = vmatpush1.msra.mxu0 0.0
    %1326 = vmatprep.subr.mxu0 0.0
    %1327 = vmatpush1.msra.mxu0 0.0
    %1328 = vmatprep.subr.mxu0 0.0
    %1329 = vmatpush1.msra.mxu0 0.0
    %1330 = vmatprep.subr.mxu0 0.0
    %1331 = vmatpush1.msra.mxu0 0.0
    %1332 = vmatprep.subr.mxu0 0.0
    %1333 = vmatpush1.msra.mxu0 0.0
    %1334 = vmatprep.subr.mxu0 0.0
    %1335 = vmatpush1.msra.mxu0 0.0
    %1336 = vmatprep.subr.mxu0 0.0
    %1337 = vmatpush1.msra.mxu0 0.0
    %1338 = vmatprep.subr.mxu0 0.0
    %1339 = vmatpush1.msra.mxu0 0.0
    %1340 = vmatprep.subr.mxu0 0.0
    %1341 = vmatpush1.msra.mxu0 0.0
    %1342 = vmatprep.subr.mxu0 0.0
    %1343 = vmatpush1.msra.mxu0 0.0
    %1344 = vmatprep.subr.mxu0 0.0
    %1345 = vmatpush1.msra.mxu0 %v1311
    %1346 = vmatprep.subr.mxu0 0.0
    %1347 = vmatpush1.msra.mxu0 %v1310
    %1348 = vmatprep.subr.mxu0 0.0
    %1349 = vmatpush1.msra.mxu0 %v1309
    %1350 = vmatprep.subr.mxu0 0.0
    %1351 = vmatpush1.msra.mxu0 %v1308
    %1352 = vmatprep.subr.mxu0 0.0
    %1353 = vmatpush2.msra.mxu0 0.0
    %1354 = vmatprep.subr.mxu0 0.0
    %1355 = vmatpush2.msra.mxu0 0.0
    %1356 = vmatprep.subr.mxu0 0.0
    %1357 = vmatpush2.msra.mxu0 0.0
    %1358 = vmatprep.subr.mxu0 0.0
    %1359 = vmatpush2.msra.mxu0 0.0
    %1360 = vmatprep.subr.mxu0 0.0
    %1361 = vmatpush2.msra.mxu0 0.0
    %1362 = vmatprep.subr.mxu0 0.0
    %1363 = vmatpush2.msra.mxu0 0.0
    %1364 = vmatprep.subr.mxu0 0.0
    %1365 = vmatpush2.msra.mxu0 0.0
    %1366 = vmatprep.subr.mxu0 0.0
    %1367 = vmatpush2.msra.mxu0 0.0
    %1368 = vmatprep.subr.mxu0 0.0
    %1369 = vmatpush2.msra.mxu0 0.0
    %1370 = vmatprep.subr.mxu0 0.0
    %1371 = vmatpush2.msra.mxu0 0.0
    %1372 = vmatprep.subr.mxu0 0.0
    %1373 = vmatpush2.msra.mxu0 0.0
    %1374 = vmatprep.subr.mxu0 0.0
    %1375 = vmatpush2.msra.mxu0 0.0
    %1376 = vmatprep.subr.mxu0 0.0
    %1377 = vmatpush2.msra.mxu0 0.0
    %1378 = vmatprep.subr.mxu0 0.0
    %1379 = vmatpush2.msra.mxu0 0.0
    %1380 = vmatprep.subr.mxu0 0.0
    %1381 = vmatpush2.msra.mxu0 0.0
    %1382 = vmatprep.subr.mxu0 0.0
    %1383 = vmatpush2.msra.mxu0 0.0
    %1384 = vmatprep.mubr.f32.mxu0 0.0
    %1385 = vmatmul.mubr.f32.gmra.mxu0 %v346
    %v1386 = vpop.f32.mrf.mxu0
    %v1387 = vadd.f32 %v1318, %v1386
    %v1388 = vpop.f32.mrf.mxu0
    %1389 = vmatprep.mubr.f32.mxu0 0.0
    %1390 = vmatmul.mubr.f32.gmra.mxu0 %v349
    %v1391 = vpop.f32.mrf.mxu0
    %v1392 = vadd.f32 %v1318, %v1391
    %v1393 = vpop.f32.mrf.mxu0
    %1394 = vdwg.mxu0
    %s1395 = scalar_lea.vmem %s49, 24
    %v1396 = vld [vmem:[%s1395] sm:$0xff]
    %vm1397 = vcmask 64512
    %v1399 = vsel %vm1397, %v418, 0
    %v1402 = vsel %vm1397, %v504, 0
    %1404 = vmatprep.subr.mxu0 0.0
    %1405 = vmatpush1.xpose.msra.mxu0 0.0
    %1406 = vmatprep.subr.mxu0 0.0
    %1407 = vmatpush1.xpose.msra.mxu0 0.0
    %1408 = vmatprep.subr.mxu0 0.0
    %1409 = vmatpush1.xpose.msra.mxu0 0.0
    %1410 = vmatprep.subr.mxu0 0.0
    %1411 = vmatpush1.xpose.msra.mxu0 0.0
    %1412 = vmatprep.subr.mxu0 0.0
    %1413 = vmatpush1.xpose.msra.mxu0 0.0
    %1414 = vmatprep.subr.mxu0 0.0
    %1415 = vmatpush1.xpose.msra.mxu0 0.0
    %1416 = vmatprep.subr.mxu0 0.0
    %1417 = vmatpush1.xpose.msra.mxu0 0.0
    %1418 = vmatprep.subr.mxu0 0.0
    %1419 = vmatpush1.xpose.msra.mxu0 0.0
    %1420 = vmatprep.subr.mxu0 0.0
    %1421 = vmatpush1.xpose.msra.mxu0 0.0
    %1422 = vmatprep.subr.mxu0 0.0
    %1423 = vmatpush1.xpose.msra.mxu0 0.0
    %1424 = vmatprep.subr.mxu0 0.0
    %1425 = vmatpush1.xpose.msra.mxu0 0.0
    %1426 = vmatprep.subr.mxu0 0.0
    %1427 = vmatpush1.xpose.msra.mxu0 0.0
    %1428 = vmatprep.subr.mxu0 0.0
    %1429 = vmatpush1.xpose.msra.mxu0 0.0
    %1430 = vmatprep.subr.mxu0 0.0
    %1431 = vmatpush1.xpose.msra.mxu0 0.0
    %1432 = vmatprep.subr.mxu0 0.0
    %1433 = vmatpush1.xpose.msra.mxu0 0.0
    %1434 = vmatprep.subr.mxu0 0.0
    %1435 = vmatpush1.xpose.msra.mxu0 %v1402
    %1436 = vmatprep.subr.mxu0 0.0
    %1437 = vmatpush2.xpose.msra.mxu0 0.0
    %1438 = vmatprep.subr.mxu0 0.0
    %1439 = vmatpush2.xpose.msra.mxu0 0.0
    %1440 = vmatprep.subr.mxu0 0.0
    %1441 = vmatpush2.xpose.msra.mxu0 0.0
    %1442 = vmatprep.subr.mxu0 0.0
    %1443 = vmatpush2.xpose.msra.mxu0 0.0
    %1444 = vmatprep.subr.mxu0 0.0
    %1445 = vmatpush2.xpose.msra.mxu0 0.0
    %1446 = vmatprep.subr.mxu0 0.0
    %1447 = vmatpush2.xpose.msra.mxu0 0.0
    %1448 = vmatprep.subr.mxu0 0.0
    %1449 = vmatpush2.xpose.msra.mxu0 0.0
    %1450 = vmatprep.subr.mxu0 0.0
    %1451 = vmatpush2.xpose.msra.mxu0 0.0
    %1452 = vmatprep.subr.mxu0 0.0
    %1453 = vmatpush2.xpose.msra.mxu0 0.0
    %1454 = vmatprep.subr.mxu0 0.0
    %1455 = vmatpush2.xpose.msra.mxu0 0.0
    %1456 = vmatprep.subr.mxu0 0.0
    %1457 = vmatpush2.xpose.msra.mxu0 0.0
    %1458 = vmatprep.subr.mxu0 0.0
    %1459 = vmatpush2.xpose.msra.mxu0 0.0
    %1460 = vmatprep.subr.mxu0 0.0
    %1461 = vmatpush2.xpose.msra.mxu0 0.0
    %1462 = vmatprep.subr.mxu0 0.0
    %1463 = vmatpush2.xpose.msra.mxu0 0.0
    %1464 = vmatprep.subr.mxu0 0.0
    %1465 = vmatpush2.xpose.msra.mxu0 0.0
    %1466 = vmatprep.subr.mxu0 0.0
    %1467 = vmatpush2.xpose.msra.mxu0 0.0
    %1468 = vmatprep.mubr.f32.mxu0 0.0
    %1469 = vmatmul.mubr.f32.gmra.mxu0 %v1399
    %v1470 = vpop.f32.mrf.mxu0
    %v1471 = vadd.f32 0.0, %v1470
    %v1472 = vpop.f32.mrf.mxu0
    %1473 = vdwg.mxu0
    %v1474 = vmul.f32 %v1471, 0.35355338
    %v1475 = vsel %vm1397, %v1474, -inf
    %1476 = vmax.xlane.f32.xlu0 %v1475
    %v1477 = vpop.xlane.xlu0 %1476
    %v1478 = vsub.f32 %v1474, %v1477
    %v1479 = vmul.f32 %v1478, 1.442695
    %v1480 = vpow.pop %v1479
    %v1481 = vsel %vm1397, %v1480, 0.0
    %1482 = vadd.xlane.f32.xlu0 %v1481
    %v1483 = vpop.xlane.xlu0 %1482
    %v1484 = vrcp.pop %v1483
    %v1485 = vmul.f32 %v1480, %v1484
    %v1487 = vsel %vm1397, %v1485, 0
    %1489 = vmatprep.subr.mxu0 0.0
    %1490 = vmatpush1.msra.mxu0 0.0
    %1491 = vmatprep.subr.mxu0 0.0
    %1492 = vmatpush1.msra.mxu0 0.0
    %1493 = vmatprep.subr.mxu0 0.0
    %1494 = vmatpush1.msra.mxu0 0.0
    %1495 = vmatprep.subr.mxu0 0.0
    %1496 = vmatpush1.msra.mxu0 0.0
    %1497 = vmatprep.subr.mxu0 0.0
    %1498 = vmatpush1.msra.mxu0 0.0
    %1499 = vmatprep.subr.mxu0 0.0
    %1500 = vmatpush1.msra.mxu0 0.0
    %1501 = vmatprep.subr.mxu0 0.0
    %1502 = vmatpush1.msra.mxu0 0.0
    %1503 = vmatprep.subr.mxu0 0.0
    %1504 = vmatpush1.msra.mxu0 0.0
    %1505 = vmatprep.subr.mxu0 0.0
    %1506 = vmatpush1.msra.mxu0 0.0
    %1507 = vmatprep.subr.mxu0 0.0
    %1508 = vmatpush1.msra.mxu0 0.0
    %1509 = vmatprep.subr.mxu0 0.0
    %1510 = vmatpush1.msra.mxu0 0.0
    %1511 = vmatprep.subr.mxu0 0.0
    %1512 = vmatpush1.msra.mxu0 0.0
    %1513 = vmatprep.subr.mxu0 0.0
    %1514 = vmatpush1.msra.mxu0 0.0
    %1515 = vmatprep.subr.mxu0 0.0
    %1516 = vmatpush1.msra.mxu0 0.0
    %1517 = vmatprep.subr.mxu0 0.0
    %1518 = vmatpush1.msra.mxu0 0.0
    %1519 = vmatprep.subr.mxu0 0.0
    %1520 = vmatpush1.msra.mxu0 %v590
    %1521 = vmatprep.subr.mxu0 0.0
    %1522 = vmatpush2.msra.mxu0 0.0
    %1523 = vmatprep.subr.mxu0 0.0
    %1524 = vmatpush2.msra.mxu0 0.0
    %1525 = vmatprep.subr.mxu0 0.0
    %1526 = vmatpush2.msra.mxu0 0.0
    %1527 = vmatprep.subr.mxu0 0.0
    %1528 = vmatpush2.msra.mxu0 0.0
    %1529 = vmatprep.subr.mxu0 0.0
    %1530 = vmatpush2.msra.mxu0 0.0
    %1531 = vmatprep.subr.mxu0 0.0
    %1532 = vmatpush2.msra.mxu0 0.0
    %1533 = vmatprep.subr.mxu0 0.0
    %1534 = vmatpush2.msra.mxu0 0.0
    %1535 = vmatprep.subr.mxu0 0.0
    %1536 = vmatpush2.msra.mxu0 0.0
    %1537 = vmatprep.subr.mxu0 0.0
    %1538 = vmatpush2.msra.mxu0 0.0
    %1539 = vmatprep.subr.mxu0 0.0
    %1540 = vmatpush2.msra.mxu0 0.0
    %1541 = vmatprep.subr.mxu0 0.0
    %1542 = vmatpush2.msra.mxu0 0.0
    %1543 = vmatprep.subr.mxu0 0.0
    %1544 = vmatpush2.msra.mxu0 0.0
    %1545 = vmatprep.subr.mxu0 0.0
    %1546 = vmatpush2.msra.mxu0 0.0
    %1547 = vmatprep.subr.mxu0 0.0
    %1548 = vmatpush2.msra.mxu0 0.0
    %1549 = vmatprep.subr.mxu0 0.0
    %1550 = vmatpush2.msra.mxu0 0.0
    %1551 = vmatprep.subr.mxu0 0.0
    %1552 = vmatpush2.msra.mxu0 0.0
    %1553 = vmatprep.mubr.f32.mxu0 0.0
    %1554 = vmatmul.mubr.f32.gmra.mxu0 %v1487
    %v1555 = vpop.f32.mrf.mxu0
    %v1556 = vadd.f32 0.0, %v1555
    %v1557 = vpop.f32.mrf.mxu0
    %1558 = vdwg.mxu0
    %v1560 = vsel %vm1397, %v679, 0
    %v1563 = vsel %vm1397, %v767, 0
    %1565 = vmatprep.subr.mxu0 0.0
    %1566 = vmatpush1.xpose.msra.mxu0 0.0
    %1567 = vmatprep.subr.mxu0 0.0
    %1568 = vmatpush1.xpose.msra.mxu0 0.0
    %1569 = vmatprep.subr.mxu0 0.0
    %1570 = vmatpush1.xpose.msra.mxu0 0.0
    %1571 = vmatprep.subr.mxu0 0.0
    %1572 = vmatpush1.xpose.msra.mxu0 0.0
    %1573 = vmatprep.subr.mxu0 0.0
    %1574 = vmatpush1.xpose.msra.mxu0 0.0
    %1575 = vmatprep.subr.mxu0 0.0
    %1576 = vmatpush1.xpose.msra.mxu0 0.0
    %1577 = vmatprep.subr.mxu0 0.0
    %1578 = vmatpush1.xpose.msra.mxu0 0.0
    %1579 = vmatprep.subr.mxu0 0.0
    %1580 = vmatpush1.xpose.msra.mxu0 0.0
    %1581 = vmatprep.subr.mxu0 0.0
    %1582 = vmatpush1.xpose.msra.mxu0 0.0
    %1583 = vmatprep.subr.mxu0 0.0
    %1584 = vmatpush1.xpose.msra.mxu0 0.0
    %1585 = vmatprep.subr.mxu0 0.0
    %1586 = vmatpush1.xpose.msra.mxu0 0.0
    %1587 = vmatprep.subr.mxu0 0.0
    %1588 = vmatpush1.xpose.msra.mxu0 0.0
    %1589 = vmatprep.subr.mxu0 0.0
    %1590 = vmatpush1.xpose.msra.mxu0 0.0
    %1591 = vmatprep.subr.mxu0 0.0
    %1592 = vmatpush1.xpose.msra.mxu0 0.0
    %1593 = vmatprep.subr.mxu0 0.0
    %1594 = vmatpush1.xpose.msra.mxu0 0.0
    %1595 = vmatprep.subr.mxu0 0.0
    %1596 = vmatpush1.xpose.msra.mxu0 %v1563
    %1597 = vmatprep.subr.mxu0 0.0
    %1598 = vmatpush2.xpose.msra.mxu0 0.0
    %1599 = vmatprep.subr.mxu0 0.0
    %1600 = vmatpush2.xpose.msra.mxu0 0.0
    %1601 = vmatprep.subr.mxu0 0.0
    %1602 = vmatpush2.xpose.msra.mxu0 0.0
    %1603 = vmatprep.subr.mxu0 0.0
    %1604 = vmatpush2.xpose.msra.mxu0 0.0
    %1605 = vmatprep.subr.mxu0 0.0
    %1606 = vmatpush2.xpose.msra.mxu0 0.0
    %1607 = vmatprep.subr.mxu0 0.0
    %1608 = vmatpush2.xpose.msra.mxu0 0.0
    %1609 = vmatprep.subr.mxu0 0.0
    %1610 = vmatpush2.xpose.msra.mxu0 0.0
    %1611 = vmatprep.subr.mxu0 0.0
    %1612 = vmatpush2.xpose.msra.mxu0 0.0
    %1613 = vmatprep.subr.mxu0 0.0
    %1614 = vmatpush2.xpose.msra.mxu0 0.0
    %1615 = vmatprep.subr.mxu0 0.0
    %1616 = vmatpush2.xpose.msra.mxu0 0.0
    %1617 = vmatprep.subr.mxu0 0.0
    %1618 = vmatpush2.xpose.msra.mxu0 0.0
    %1619 = vmatprep.subr.mxu0 0.0
    %1620 = vmatpush2.xpose.msra.mxu0 0.0
    %1621 = vmatprep.subr.mxu0 0.0
    %1622 = vmatpush2.xpose.msra.mxu0 0.0
    %1623 = vmatprep.subr.mxu0 0.0
    %1624 = vmatpush2.xpose.msra.mxu0 0.0
    %1625 = vmatprep.subr.mxu0 0.0
    %1626 = vmatpush2.xpose.msra.mxu0 0.0
    %1627 = vmatprep.subr.mxu0 0.0
    %1628 = vmatpush2.xpose.msra.mxu0 0.0
    %1629 = vmatprep.mubr.f32.mxu0 0.0
    %1630 = vmatmul.mubr.f32.gmra.mxu0 %v1560
    %v1631 = vpop.f32.mrf.mxu0
    %v1632 = vadd.f32 0.0, %v1631
    %v1633 = vpop.f32.mrf.mxu0
    %1634 = vdwg.mxu0
    %v1635 = vmul.f32 %v1632, 0.35355338
    %v1636 = vsel %vm1397, %v1635, -inf
    %1637 = vmax.xlane.f32.xlu0 %v1636
    %v1638 = vpop.xlane.xlu0 %1637
    %v1639 = vsub.f32 %v1635, %v1638
    %v1640 = vmul.f32 %v1639, 1.442695
    %v1641 = vpow.pop %v1640
    %v1642 = vsel %vm1397, %v1641, 0.0
    %1643 = vadd.xlane.f32.xlu0 %v1642
    %v1644 = vpop.xlane.xlu0 %1643
    %v1645 = vrcp.pop %v1644
    %v1646 = vmul.f32 %v1641, %v1645
    %v1648 = vsel %vm1397, %v1646, 0
    %1650 = vmatprep.subr.mxu0 0.0
    %1651 = vmatpush1.msra.mxu0 0.0
    %1652 = vmatprep.subr.mxu0 0.0
    %1653 = vmatpush1.msra.mxu0 0.0
    %1654 = vmatprep.subr.mxu0 0.0
    %1655 = vmatpush1.msra.mxu0 0.0
    %1656 = vmatprep.subr.mxu0 0.0
    %1657 = vmatpush1.msra.mxu0 0.0
    %1658 = vmatprep.subr.mxu0 0.0
    %1659 = vmatpush1.msra.mxu0 0.0
    %1660 = vmatprep.subr.mxu0 0.0
    %1661 = vmatpush1.msra.mxu0 0.0
    %1662 = vmatprep.subr.mxu0 0.0
    %1663 = vmatpush1.msra.mxu0 0.0
    %1664 = vmatprep.subr.mxu0 0.0
    %1665 = vmatpush1.msra.mxu0 0.0
    %1666 = vmatprep.subr.mxu0 0.0
    %1667 = vmatpush1.msra.mxu0 0.0
    %1668 = vmatprep.subr.mxu0 0.0
    %1669 = vmatpush1.msra.mxu0 0.0
    %1670 = vmatprep.subr.mxu0 0.0
    %1671 = vmatpush1.msra.mxu0 0.0
    %1672 = vmatprep.subr.mxu0 0.0
    %1673 = vmatpush1.msra.mxu0 0.0
    %1674 = vmatprep.subr.mxu0 0.0
    %1675 = vmatpush1.msra.mxu0 0.0
    %1676 = vmatprep.subr.mxu0 0.0
    %1677 = vmatpush1.msra.mxu0 0.0
    %1678 = vmatprep.subr.mxu0 0.0
    %1679 = vmatpush1.msra.mxu0 0.0
    %1680 = vmatprep.subr.mxu0 0.0
    %1681 = vmatpush1.msra.mxu0 %v855
    %1682 = vmatprep.subr.mxu0 0.0
    %1683 = vmatpush2.msra.mxu0 0.0
    %1684 = vmatprep.subr.mxu0 0.0
    %1685 = vmatpush2.msra.mxu0 0.0
    %1686 = vmatprep.subr.mxu0 0.0
    %1687 = vmatpush2.msra.mxu0 0.0
    %1688 = vmatprep.subr.mxu0 0.0
    %1689 = vmatpush2.msra.mxu0 0.0
    %1690 = vmatprep.subr.mxu0 0.0
    %1691 = vmatpush2.msra.mxu0 0.0
    %1692 = vmatprep.subr.mxu0 0.0
    %1693 = vmatpush2.msra.mxu0 0.0
    %1694 = vmatprep.subr.mxu0 0.0
    %1695 = vmatpush2.msra.mxu0 0.0
    %1696 = vmatprep.subr.mxu0 0.0
    %1697 = vmatpush2.msra.mxu0 0.0
    %1698 = vmatprep.subr.mxu0 0.0
    %1699 = vmatpush2.msra.mxu0 0.0
    %1700 = vmatprep.subr.mxu0 0.0
    %1701 = vmatpush2.msra.mxu0 0.0
    %1702 = vmatprep.subr.mxu0 0.0
    %1703 = vmatpush2.msra.mxu0 0.0
    %1704 = vmatprep.subr.mxu0 0.0
    %1705 = vmatpush2.msra.mxu0 0.0
    %1706 = vmatprep.subr.mxu0 0.0
    %1707 = vmatpush2.msra.mxu0 0.0
    %1708 = vmatprep.subr.mxu0 0.0
    %1709 = vmatpush2.msra.mxu0 0.0
    %1710 = vmatprep.subr.mxu0 0.0
    %1711 = vmatpush2.msra.mxu0 0.0
    %1712 = vmatprep.subr.mxu0 0.0
    %1713 = vmatpush2.msra.mxu0 0.0
    %1714 = vmatprep.mubr.f32.mxu0 0.0
    %1715 = vmatmul.mubr.f32.gmra.mxu0 %v1648
    %v1716 = vpop.f32.mrf.mxu0
    %v1717 = vadd.f32 0.0, %v1716
    %v1718 = vpop.f32.mrf.mxu0
    %1719 = vdwg.mxu0
    %v1721 = vsel %vm1397, %v1717, 0
    %1723 = vmatprep.subr.mxu0 0.0
    %1724 = vmatpush1.msra.mxu0 0.0
    %1725 = vmatprep.subr.mxu0 0.0
    %1726 = vmatpush1.msra.mxu0 0.0
    %1727 = vmatprep.subr.mxu0 0.0
    %1728 = vmatpush1.msra.mxu0 0.0
    %1729 = vmatprep.subr.mxu0 0.0
    %1730 = vmatpush1.msra.mxu0 0.0
    %1731 = vmatprep.subr.mxu0 0.0
    %1732 = vmatpush1.msra.mxu0 0.0
    %1733 = vmatprep.subr.mxu0 0.0
    %1734 = vmatpush1.msra.mxu0 0.0
    %1735 = vmatprep.subr.mxu0 0.0
    %1736 = vmatpush1.msra.mxu0 0.0
    %1737 = vmatprep.subr.mxu0 0.0
    %1738 = vmatpush1.msra.mxu0 0.0
    %1739 = vmatprep.subr.mxu0 0.0
    %1740 = vmatpush1.msra.mxu0 0.0
    %1741 = vmatprep.subr.mxu0 0.0
    %1742 = vmatpush1.msra.mxu0 0.0
    %1743 = vmatprep.subr.mxu0 0.0
    %1744 = vmatpush1.msra.mxu0 0.0
    %1745 = vmatprep.subr.mxu0 0.0
    %1746 = vmatpush1.msra.mxu0 0.0
    %1747 = vmatprep.subr.mxu0 0.0
    %1748 = vmatpush1.msra.mxu0 0.0
    %1749 = vmatprep.subr.mxu0 0.0
    %1750 = vmatpush1.msra.mxu0 0.0
    %1751 = vmatprep.subr.mxu0 0.0
    %1752 = vmatpush1.msra.mxu0 0.0
    %1753 = vmatprep.subr.mxu0 0.0
    %1754 = vmatpush1.msra.mxu0 %v864
    %1755 = vmatprep.subr.mxu0 0.0
    %1756 = vmatpush2.msra.mxu0 0.0
    %1757 = vmatprep.subr.mxu0 0.0
    %1758 = vmatpush2.msra.mxu0 0.0
    %1759 = vmatprep.subr.mxu0 0.0
    %1760 = vmatpush2.msra.mxu0 0.0
    %1761 = vmatprep.subr.mxu0 0.0
    %1762 = vmatpush2.msra.mxu0 0.0
    %1763 = vmatprep.subr.mxu0 0.0
    %1764 = vmatpush2.msra.mxu0 0.0
    %1765 = vmatprep.subr.mxu0 0.0
    %1766 = vmatpush2.msra.mxu0 0.0
    %1767 = vmatprep.subr.mxu0 0.0
    %1768 = vmatpush2.msra.mxu0 0.0
    %1769 = vmatprep.subr.mxu0 0.0
    %1770 = vmatpush2.msra.mxu0 0.0
    %1771 = vmatprep.subr.mxu0 0.0
    %1772 = vmatpush2.msra.mxu0 0.0
    %1773 = vmatprep.subr.mxu0 0.0
    %1774 = vmatpush2.msra.mxu0 0.0
    %1775 = vmatprep.subr.mxu0 0.0
    %1776 = vmatpush2.msra.mxu0 0.0
    %1777 = vmatprep.subr.mxu0 0.0
    %1778 = vmatpush2.msra.mxu0 0.0
    %1779 = vmatprep.subr.mxu0 0.0
    %1780 = vmatpush2.msra.mxu0 0.0
    %1781 = vmatprep.subr.mxu0 0.0
    %1782 = vmatpush2.msra.mxu0 0.0
    %1783 = vmatprep.subr.mxu0 0.0
    %1784 = vmatpush2.msra.mxu0 0.0
    %1785 = vmatprep.subr.mxu0 0.0
    %1786 = vmatpush2.msra.mxu0 0.0
    %1787 = vmatprep.mubr.f32.mxu0 0.0
    %1788 = vmatmul.mubr.f32.gmra.mxu0 %v1721
    %v1789 = vpop.f32.mrf.mxu0
    %v1790 = vadd.f32 0.0, %v1789
    %v1791 = vpop.f32.mrf.mxu0
    %1792 = vdwg.mxu0
    %v1794 = vsel %vm1397, %v945, 0
    %v1797 = vsel %vm1397, %v1033, 0
    %1799 = vmatprep.subr.mxu0 0.0
    %1800 = vmatpush1.xpose.msra.mxu0 0.0
    %1801 = vmatprep.subr.mxu0 0.0
    %1802 = vmatpush1.xpose.msra.mxu0 0.0
    %1803 = vmatprep.subr.mxu0 0.0
    %1804 = vmatpush1.xpose.msra.mxu0 0.0
    %1805 = vmatprep.subr.mxu0 0.0
    %1806 = vmatpush1.xpose.msra.mxu0 0.0
    %1807 = vmatprep.subr.mxu0 0.0
    %1808 = vmatpush1.xpose.msra.mxu0 0.0
    %1809 = vmatprep.subr.mxu0 0.0
    %1810 = vmatpush1.xpose.msra.mxu0 0.0
    %1811 = vmatprep.subr.mxu0 0.0
    %1812 = vmatpush1.xpose.msra.mxu0 0.0
    %1813 = vmatprep.subr.mxu0 0.0
    %1814 = vmatpush1.xpose.msra.mxu0 0.0
    %1815 = vmatprep.subr.mxu0 0.0
    %1816 = vmatpush1.xpose.msra.mxu0 0.0
    %1817 = vmatprep.subr.mxu0 0.0
    %1818 = vmatpush1.xpose.msra.mxu0 0.0
    %1819 = vmatprep.subr.mxu0 0.0
    %1820 = vmatpush1.xpose.msra.mxu0 0.0
    %1821 = vmatprep.subr.mxu0 0.0
    %1822 = vmatpush1.xpose.msra.mxu0 0.0
    %1823 = vmatprep.subr.mxu0 0.0
    %1824 = vmatpush1.xpose.msra.mxu0 0.0
    %1825 = vmatprep.subr.mxu0 0.0
    %1826 = vmatpush1.xpose.msra.mxu0 0.0
    %1827 = vmatprep.subr.mxu0 0.0
    %1828 = vmatpush1.xpose.msra.mxu0 0.0
    %1829 = vmatprep.subr.mxu0 0.0
    %1830 = vmatpush1.xpose.msra.mxu0 %v1797
    %1831 = vmatprep.subr.mxu0 0.0
    %1832 = vmatpush2.xpose.msra.mxu0 0.0
    %1833 = vmatprep.subr.mxu0 0.0
    %1834 = vmatpush2.xpose.msra.mxu0 0.0
    %1835 = vmatprep.subr.mxu0 0.0
    %1836 = vmatpush2.xpose.msra.mxu0 0.0
    %1837 = vmatprep.subr.mxu0 0.0
    %1838 = vmatpush2.xpose.msra.mxu0 0.0
    %1839 = vmatprep.subr.mxu0 0.0
    %1840 = vmatpush2.xpose.msra.mxu0 0.0
    %1841 = vmatprep.subr.mxu0 0.0
    %1842 = vmatpush2.xpose.msra.mxu0 0.0
    %1843 = vmatprep.subr.mxu0 0.0
    %1844 = vmatpush2.xpose.msra.mxu0 0.0
    %1845 = vmatprep.subr.mxu0 0.0
    %1846 = vmatpush2.xpose.msra.mxu0 0.0
    %1847 = vmatprep.subr.mxu0 0.0
    %1848 = vmatpush2.xpose.msra.mxu0 0.0
    %1849 = vmatprep.subr.mxu0 0.0
    %1850 = vmatpush2.xpose.msra.mxu0 0.0
    %1851 = vmatprep.subr.mxu0 0.0
    %1852 = vmatpush2.xpose.msra.mxu0 0.0
    %1853 = vmatprep.subr.mxu0 0.0
    %1854 = vmatpush2.xpose.msra.mxu0 0.0
    %1855 = vmatprep.subr.mxu0 0.0
    %1856 = vmatpush2.xpose.msra.mxu0 0.0
    %1857 = vmatprep.subr.mxu0 0.0
    %1858 = vmatpush2.xpose.msra.mxu0 0.0
    %1859 = vmatprep.subr.mxu0 0.0
    %1860 = vmatpush2.xpose.msra.mxu0 0.0
    %1861 = vmatprep.subr.mxu0 0.0
    %1862 = vmatpush2.xpose.msra.mxu0 0.0
    %1863 = vmatprep.mubr.f32.mxu0 0.0
    %1864 = vmatmul.mubr.f32.gmra.mxu0 %v1794
    %v1865 = vpop.f32.mrf.mxu0
    %v1866 = vadd.f32 0.0, %v1865
    %v1867 = vpop.f32.mrf.mxu0
    %1868 = vdwg.mxu0
    %v1869 = vmul.f32 %v1866, 0.35355338
    %v1870 = vsel %vm1397, %v1869, -inf
    %1871 = vmax.xlane.f32.xlu0 %v1870
    %v1872 = vpop.xlane.xlu0 %1871
    %v1873 = vsub.f32 %v1869, %v1872
    %v1874 = vmul.f32 %v1873, 1.442695
    %v1875 = vpow.pop %v1874
    %v1876 = vsel %vm1397, %v1875, 0.0
    %1877 = vadd.xlane.f32.xlu0 %v1876
    %v1878 = vpop.xlane.xlu0 %1877
    %v1879 = vrcp.pop %v1878
    %v1880 = vmul.f32 %v1875, %v1879
    %v1882 = vsel %vm1397, %v1880, 0
    %1884 = vmatprep.subr.mxu0 0.0
    %1885 = vmatpush1.msra.mxu0 0.0
    %1886 = vmatprep.subr.mxu0 0.0
    %1887 = vmatpush1.msra.mxu0 0.0
    %1888 = vmatprep.subr.mxu0 0.0
    %1889 = vmatpush1.msra.mxu0 0.0
    %1890 = vmatprep.subr.mxu0 0.0
    %1891 = vmatpush1.msra.mxu0 0.0
    %1892 = vmatprep.subr.mxu0 0.0
    %1893 = vmatpush1.msra.mxu0 0.0
    %1894 = vmatprep.subr.mxu0 0.0
    %1895 = vmatpush1.msra.mxu0 0.0
    %1896 = vmatprep.subr.mxu0 0.0
    %1897 = vmatpush1.msra.mxu0 0.0
    %1898 = vmatprep.subr.mxu0 0.0
    %1899 = vmatpush1.msra.mxu0 0.0
    %1900 = vmatprep.subr.mxu0 0.0
    %1901 = vmatpush1.msra.mxu0 0.0
    %1902 = vmatprep.subr.mxu0 0.0
    %1903 = vmatpush1.msra.mxu0 0.0
    %1904 = vmatprep.subr.mxu0 0.0
    %1905 = vmatpush1.msra.mxu0 0.0
    %1906 = vmatprep.subr.mxu0 0.0
    %1907 = vmatpush1.msra.mxu0 0.0
    %1908 = vmatprep.subr.mxu0 0.0
    %1909 = vmatpush1.msra.mxu0 0.0
    %1910 = vmatprep.subr.mxu0 0.0
    %1911 = vmatpush1.msra.mxu0 0.0
    %1912 = vmatprep.subr.mxu0 0.0
    %1913 = vmatpush1.msra.mxu0 0.0
    %1914 = vmatprep.subr.mxu0 0.0
    %1915 = vmatpush1.msra.mxu0 %v1121
    %1916 = vmatprep.subr.mxu0 0.0
    %1917 = vmatpush2.msra.mxu0 0.0
    %1918 = vmatprep.subr.mxu0 0.0
    %1919 = vmatpush2.msra.mxu0 0.0
    %1920 = vmatprep.subr.mxu0 0.0
    %1921 = vmatpush2.msra.mxu0 0.0
    %1922 = vmatprep.subr.mxu0 0.0
    %1923 = vmatpush2.msra.mxu0 0.0
    %1924 = vmatprep.subr.mxu0 0.0
    %1925 = vmatpush2.msra.mxu0 0.0
    %1926 = vmatprep.subr.mxu0 0.0
    %1927 = vmatpush2.msra.mxu0 0.0
    %1928 = vmatprep.subr.mxu0 0.0
    %1929 = vmatpush2.msra.mxu0 0.0
    %1930 = vmatprep.subr.mxu0 0.0
    %1931 = vmatpush2.msra.mxu0 0.0
    %1932 = vmatprep.subr.mxu0 0.0
    %1933 = vmatpush2.msra.mxu0 0.0
    %1934 = vmatprep.subr.mxu0 0.0
    %1935 = vmatpush2.msra.mxu0 0.0
    %1936 = vmatprep.subr.mxu0 0.0
    %1937 = vmatpush2.msra.mxu0 0.0
    %1938 = vmatprep.subr.mxu0 0.0
    %1939 = vmatpush2.msra.mxu0 0.0
    %1940 = vmatprep.subr.mxu0 0.0
    %1941 = vmatpush2.msra.mxu0 0.0
    %1942 = vmatprep.subr.mxu0 0.0
    %1943 = vmatpush2.msra.mxu0 0.0
    %1944 = vmatprep.subr.mxu0 0.0
    %1945 = vmatpush2.msra.mxu0 0.0
    %1946 = vmatprep.subr.mxu0 0.0
    %1947 = vmatpush2.msra.mxu0 0.0
    %1948 = vmatprep.mubr.f32.mxu0 0.0
    %1949 = vmatmul.mubr.f32.gmra.mxu0 %v1882
    %v1950 = vpop.f32.mrf.mxu0
    %v1951 = vadd.f32 0.0, %v1950
    %v1952 = vpop.f32.mrf.mxu0
    %1953 = vdwg.mxu0
    %v1955 = vsel %vm1397, %v1211, 0
    %v1958 = vsel %vm1397, %v1299, 0
    %1960 = vmatprep.subr.mxu0 0.0
    %1961 = vmatpush1.xpose.msra.mxu0 0.0
    %1962 = vmatprep.subr.mxu0 0.0
    %1963 = vmatpush1.xpose.msra.mxu0 0.0
    %1964 = vmatprep.subr.mxu0 0.0
    %1965 = vmatpush1.xpose.msra.mxu0 0.0
    %1966 = vmatprep.subr.mxu0 0.0
    %1967 = vmatpush1.xpose.msra.mxu0 0.0
    %1968 = vmatprep.subr.mxu0 0.0
    %1969 = vmatpush1.xpose.msra.mxu0 0.0
    %1970 = vmatprep.subr.mxu0 0.0
    %1971 = vmatpush1.xpose.msra.mxu0 0.0
    %1972 = vmatprep.subr.mxu0 0.0
    %1973 = vmatpush1.xpose.msra.mxu0 0.0
    %1974 = vmatprep.subr.mxu0 0.0
    %1975 = vmatpush1.xpose.msra.mxu0 0.0
    %1976 = vmatprep.subr.mxu0 0.0
    %1977 = vmatpush1.xpose.msra.mxu0 0.0
    %1978 = vmatprep.subr.mxu0 0.0
    %1979 = vmatpush1.xpose.msra.mxu0 0.0
    %1980 = vmatprep.subr.mxu0 0.0
    %1981 = vmatpush1.xpose.msra.mxu0 0.0
    %1982 = vmatprep.subr.mxu0 0.0
    %1983 = vmatpush1.xpose.msra.mxu0 0.0
    %1984 = vmatprep.subr.mxu0 0.0
    %1985 = vmatpush1.xpose.msra.mxu0 0.0
    %1986 = vmatprep.subr.mxu0 0.0
    %1987 = vmatpush1.xpose.msra.mxu0 0.0
    %1988 = vmatprep.subr.mxu0 0.0
    %1989 = vmatpush1.xpose.msra.mxu0 0.0
    %1990 = vmatprep.subr.mxu0 0.0
    %1991 = vmatpush1.xpose.msra.mxu0 %v1958
    %1992 = vmatprep.subr.mxu0 0.0
    %1993 = vmatpush2.xpose.msra.mxu0 0.0
    %1994 = vmatprep.subr.mxu0 0.0
    %1995 = vmatpush2.xpose.msra.mxu0 0.0
    %1996 = vmatprep.subr.mxu0 0.0
    %1997 = vmatpush2.xpose.msra.mxu0 0.0
    %1998 = vmatprep.subr.mxu0 0.0
    %1999 = vmatpush2.xpose.msra.mxu0 0.0
    %2000 = vmatprep.subr.mxu0 0.0
    %2001 = vmatpush2.xpose.msra.mxu0 0.0
    %2002 = vmatprep.subr.mxu0 0.0
    %2003 = vmatpush2.xpose.msra.mxu0 0.0
    %2004 = vmatprep.subr.mxu0 0.0
    %2005 = vmatpush2.xpose.msra.mxu0 0.0
    %2006 = vmatprep.subr.mxu0 0.0
    %2007 = vmatpush2.xpose.msra.mxu0 0.0
    %2008 = vmatprep.subr.mxu0 0.0
    %2009 = vmatpush2.xpose.msra.mxu0 0.0
    %2010 = vmatprep.subr.mxu0 0.0
    %2011 = vmatpush2.xpose.msra.mxu0 0.0
    %2012 = vmatprep.subr.mxu0 0.0
    %2013 = vmatpush2.xpose.msra.mxu0 0.0
    %2014 = vmatprep.subr.mxu0 0.0
    %2015 = vmatpush2.xpose.msra.mxu0 0.0
    %2016 = vmatprep.subr.mxu0 0.0
    %2017 = vmatpush2.xpose.msra.mxu0 0.0
    %2018 = vmatprep.subr.mxu0 0.0
    %2019 = vmatpush2.xpose.msra.mxu0 0.0
    %2020 = vmatprep.subr.mxu0 0.0
    %2021 = vmatpush2.xpose.msra.mxu0 0.0
    %2022 = vmatprep.subr.mxu0 0.0
    %2023 = vmatpush2.xpose.msra.mxu0 0.0
    %2024 = vmatprep.mubr.f32.mxu0 0.0
    %2025 = vmatmul.mubr.f32.gmra.mxu0 %v1955
    %v2026 = vpop.f32.mrf.mxu0
    %v2027 = vadd.f32 0.0, %v2026
    %v2028 = vpop.f32.mrf.mxu0
    %2029 = vdwg.mxu0
    %v2030 = vmul.f32 %v2027, 0.35355338
    %v2031 = vsel %vm1397, %v2030, -inf
    %2032 = vmax.xlane.f32.xlu0 %v2031
    %v2033 = vpop.xlane.xlu0 %2032
    %v2034 = vsub.f32 %v2030, %v2033
    %v2035 = vmul.f32 %v2034, 1.442695
    %v2036 = vpow.pop %v2035
    %v2037 = vsel %vm1397, %v2036, 0.0
    %2038 = vadd.xlane.f32.xlu0 %v2037
    %v2039 = vpop.xlane.xlu0 %2038
    %v2040 = vrcp.pop %v2039
    %v2041 = vmul.f32 %v2036, %v2040
    %v2043 = vsel %vm1397, %v2041, 0
    %2045 = vmatprep.subr.mxu0 0.0
    %2046 = vmatpush1.msra.mxu0 0.0
    %2047 = vmatprep.subr.mxu0 0.0
    %2048 = vmatpush1.msra.mxu0 0.0
    %2049 = vmatprep.subr.mxu0 0.0
    %2050 = vmatpush1.msra.mxu0 0.0
    %2051 = vmatprep.subr.mxu0 0.0
    %2052 = vmatpush1.msra.mxu0 0.0
    %2053 = vmatprep.subr.mxu0 0.0
    %2054 = vmatpush1.msra.mxu0 0.0
    %2055 = vmatprep.subr.mxu0 0.0
    %2056 = vmatpush1.msra.mxu0 0.0
    %2057 = vmatprep.subr.mxu0 0.0
    %2058 = vmatpush1.msra.mxu0 0.0
    %2059 = vmatprep.subr.mxu0 0.0
    %2060 = vmatpush1.msra.mxu0 0.0
    %2061 = vmatprep.subr.mxu0 0.0
    %2062 = vmatpush1.msra.mxu0 0.0
    %2063 = vmatprep.subr.mxu0 0.0
    %2064 = vmatpush1.msra.mxu0 0.0
    %2065 = vmatprep.subr.mxu0 0.0
    %2066 = vmatpush1.msra.mxu0 0.0
    %2067 = vmatprep.subr.mxu0 0.0
    %2068 = vmatpush1.msra.mxu0 0.0
    %2069 = vmatprep.subr.mxu0 0.0
    %2070 = vmatpush1.msra.mxu0 0.0
    %2071 = vmatprep.subr.mxu0 0.0
    %2072 = vmatpush1.msra.mxu0 0.0
    %2073 = vmatprep.subr.mxu0 0.0
    %2074 = vmatpush1.msra.mxu0 0.0
    %2075 = vmatprep.subr.mxu0 0.0
    %2076 = vmatpush1.msra.mxu0 %v1387
    %2077 = vmatprep.subr.mxu0 0.0
    %2078 = vmatpush2.msra.mxu0 0.0
    %2079 = vmatprep.subr.mxu0 0.0
    %2080 = vmatpush2.msra.mxu0 0.0
    %2081 = vmatprep.subr.mxu0 0.0
    %2082 = vmatpush2.msra.mxu0 0.0
    %2083 = vmatprep.subr.mxu0 0.0
    %2084 = vmatpush2.msra.mxu0 0.0
    %2085 = vmatprep.subr.mxu0 0.0
    %2086 = vmatpush2.msra.mxu0 0.0
    %2087 = vmatprep.subr.mxu0 0.0
    %2088 = vmatpush2.msra.mxu0 0.0
    %2089 = vmatprep.subr.mxu0 0.0
    %2090 = vmatpush2.msra.mxu0 0.0
    %2091 = vmatprep.subr.mxu0 0.0
    %2092 = vmatpush2.msra.mxu0 0.0
    %2093 = vmatprep.subr.mxu0 0.0
    %2094 = vmatpush2.msra.mxu0 0.0
    %2095 = vmatprep.subr.mxu0 0.0
    %2096 = vmatpush2.msra.mxu0 0.0
    %2097 = vmatprep.subr.mxu0 0.0
    %2098 = vmatpush2.msra.mxu0 0.0
    %2099 = vmatprep.subr.mxu0 0.0
    %2100 = vmatpush2.msra.mxu0 0.0
    %2101 = vmatprep.subr.mxu0 0.0
    %2102 = vmatpush2.msra.mxu0 0.0
    %2103 = vmatprep.subr.mxu0 0.0
    %2104 = vmatpush2.msra.mxu0 0.0
    %2105 = vmatprep.subr.mxu0 0.0
    %2106 = vmatpush2.msra.mxu0 0.0
    %2107 = vmatprep.subr.mxu0 0.0
    %2108 = vmatpush2.msra.mxu0 0.0
    %2109 = vmatprep.mubr.f32.mxu0 0.0
    %2110 = vmatmul.mubr.f32.gmra.mxu0 %v2043
    %v2111 = vpop.f32.mrf.mxu0
    %v2112 = vadd.f32 0.0, %v2111
    %v2113 = vpop.f32.mrf.mxu0
    %2114 = vdwg.mxu0
    %v2116 = vsel %vm1397, %v2112, 0
    %2118 = vmatprep.subr.mxu0 0.0
    %2119 = vmatpush1.msra.mxu0 0.0
    %2120 = vmatprep.subr.mxu0 0.0
    %2121 = vmatpush1.msra.mxu0 0.0
    %2122 = vmatprep.subr.mxu0 0.0
    %2123 = vmatpush1.msra.mxu0 0.0
    %2124 = vmatprep.subr.mxu0 0.0
    %2125 = vmatpush1.msra.mxu0 0.0
    %2126 = vmatprep.subr.mxu0 0.0
    %2127 = vmatpush1.msra.mxu0 0.0
    %2128 = vmatprep.subr.mxu0 0.0
    %2129 = vmatpush1.msra.mxu0 0.0
    %2130 = vmatprep.subr.mxu0 0.0
    %2131 = vmatpush1.msra.mxu0 0.0
    %2132 = vmatprep.subr.mxu0 0.0
    %2133 = vmatpush1.msra.mxu0 0.0
    %2134 = vmatprep.subr.mxu0 0.0
    %2135 = vmatpush1.msra.mxu0 0.0
    %2136 = vmatprep.subr.mxu0 0.0
    %2137 = vmatpush1.msra.mxu0 0.0
    %2138 = vmatprep.subr.mxu0 0.0
    %2139 = vmatpush1.msra.mxu0 0.0
    %2140 = vmatprep.subr.mxu0 0.0
    %2141 = vmatpush1.msra.mxu0 0.0
    %2142 = vmatprep.subr.mxu0 0.0
    %2143 = vmatpush1.msra.mxu0 0.0
    %2144 = vmatprep.subr.mxu0 0.0
    %2145 = vmatpush1.msra.mxu0 0.0
    %2146 = vmatprep.subr.mxu0 0.0
    %2147 = vmatpush1.msra.mxu0 0.0
    %2148 = vmatprep.subr.mxu0 0.0
    %2149 = vmatpush1.msra.mxu0 %v1396
    %2150 = vmatprep.subr.mxu0 0.0
    %2151 = vmatpush2.msra.mxu0 0.0
    %2152 = vmatprep.subr.mxu0 0.0
    %2153 = vmatpush2.msra.mxu0 0.0
    %2154 = vmatprep.subr.mxu0 0.0
    %2155 = vmatpush2.msra.mxu0 0.0
    %2156 = vmatprep.subr.mxu0 0.0
    %2157 = vmatpush2.msra.mxu0 0.0
    %2158 = vmatprep.subr.mxu0 0.0
    %2159 = vmatpush2.msra.mxu0 0.0
    %2160 = vmatprep.subr.mxu0 0.0
    %2161 = vmatpush2.msra.mxu0 0.0
    %2162 = vmatprep.subr.mxu0 0.0
    %2163 = vmatpush2.msra.mxu0 0.0
    %2164 = vmatprep.subr.mxu0 0.0
    %2165 = vmatpush2.msra.mxu0 0.0
    %2166 = vmatprep.subr.mxu0 0.0
    %2167 = vmatpush2.msra.mxu0 0.0
    %2168 = vmatprep.subr.mxu0 0.0
    %2169 = vmatpush2.msra.mxu0 0.0
    %2170 = vmatprep.subr.mxu0 0.0
    %2171 = vmatpush2.msra.mxu0 0.0
    %2172 = vmatprep.subr.mxu0 0.0
    %2173 = vmatpush2.msra.mxu0 0.0
    %2174 = vmatprep.subr.mxu0 0.0
    %2175 = vmatpush2.msra.mxu0 0.0
    %2176 = vmatprep.subr.mxu0 0.0
    %2177 = vmatpush2.msra.mxu0 0.0
    %2178 = vmatprep.subr.mxu0 0.0
    %2179 = vmatpush2.msra.mxu0 0.0
    %2180 = vmatprep.subr.mxu0 0.0
    %2181 = vmatpush2.msra.mxu0 0.0
    %2182 = vmatprep.mubr.f32.mxu0 0.0
    %2183 = vmatmul.mubr.f32.gmra.mxu0 %v2116
    %v2184 = vpop.f32.mrf.mxu0
    %v2185 = vadd.f32 0.0, %v2184
    %v2186 = vpop.f32.mrf.mxu0
    %2187 = vdwg.mxu0
    %v2189 = vsel %vm1397, %v1556, 0
    %2191 = vmatprep.subr.mxu0 0.0
    %2192 = vmatpush1.msra.mxu0 0.0
    %2193 = vmatprep.subr.mxu0 0.0
    %2194 = vmatpush1.msra.mxu0 0.0
    %2195 = vmatprep.subr.mxu0 0.0
    %2196 = vmatpush1.msra.mxu0 0.0
    %2197 = vmatprep.subr.mxu0 0.0
    %2198 = vmatpush1.msra.mxu0 0.0
    %2199 = vmatprep.subr.mxu0 0.0
    %2200 = vmatpush1.msra.mxu0 0.0
    %2201 = vmatprep.subr.mxu0 0.0
    %2202 = vmatpush1.msra.mxu0 0.0
    %2203 = vmatprep.subr.mxu0 0.0
    %2204 = vmatpush1.msra.mxu0 0.0
    %2205 = vmatprep.subr.mxu0 0.0
    %2206 = vmatpush1.msra.mxu0 0.0
    %2207 = vmatprep.subr.mxu0 0.0
    %2208 = vmatpush1.msra.mxu0 0.0
    %2209 = vmatprep.subr.mxu0 0.0
    %2210 = vmatpush1.msra.mxu0 0.0
    %2211 = vmatprep.subr.mxu0 0.0
    %2212 = vmatpush1.msra.mxu0 0.0
    %2213 = vmatprep.subr.mxu0 0.0
    %2214 = vmatpush1.msra.mxu0 0.0
    %2215 = vmatprep.subr.mxu0 0.0
    %2216 = vmatpush1.msra.mxu0 0.0
    %2217 = vmatprep.subr.mxu0 0.0
    %2218 = vmatpush1.msra.mxu0 0.0
    %2219 = vmatprep.subr.mxu0 0.0
    %2220 = vmatpush1.msra.mxu0 0.0
    %2221 = vmatprep.subr.mxu0 0.0
    %2222 = vmatpush1.msra.mxu0 %v598
    %2223 = vmatprep.subr.mxu0 0.0
    %2224 = vmatpush2.msra.mxu0 0.0
    %2225 = vmatprep.subr.mxu0 0.0
    %2226 = vmatpush2.msra.mxu0 0.0
    %2227 = vmatprep.subr.mxu0 0.0
    %2228 = vmatpush2.msra.mxu0 0.0
    %2229 = vmatprep.subr.mxu0 0.0
    %2230 = vmatpush2.msra.mxu0 0.0
    %2231 = vmatprep.subr.mxu0 0.0
    %2232 = vmatpush2.msra.mxu0 0.0
    %2233 = vmatprep.subr.mxu0 0.0
    %2234 = vmatpush2.msra.mxu0 0.0
    %2235 = vmatprep.subr.mxu0 0.0
    %2236 = vmatpush2.msra.mxu0 0.0
    %2237 = vmatprep.subr.mxu0 0.0
    %2238 = vmatpush2.msra.mxu0 0.0
    %2239 = vmatprep.subr.mxu0 0.0
    %2240 = vmatpush2.msra.mxu0 0.0
    %2241 = vmatprep.subr.mxu0 0.0
    %2242 = vmatpush2.msra.mxu0 0.0
    %2243 = vmatprep.subr.mxu0 0.0
    %2244 = vmatpush2.msra.mxu0 0.0
    %2245 = vmatprep.subr.mxu0 0.0
    %2246 = vmatpush2.msra.mxu0 0.0
    %2247 = vmatprep.subr.mxu0 0.0
    %2248 = vmatpush2.msra.mxu0 0.0
    %2249 = vmatprep.subr.mxu0 0.0
    %2250 = vmatpush2.msra.mxu0 0.0
    %2251 = vmatprep.subr.mxu0 0.0
    %2252 = vmatpush2.msra.mxu0 0.0
    %2253 = vmatprep.subr.mxu0 0.0
    %2254 = vmatpush2.msra.mxu0 0.0
    %2255 = vmatprep.mubr.f32.mxu0 0.0
    %2256 = vmatmul.mubr.f32.gmra.mxu0 %v2189
    %v2257 = vpop.f32.mrf.mxu0
    %v2258 = vadd.f32 %v1790, %v2257
    %v2259 = vpop.f32.mrf.mxu0
    %2260 = vdwg.mxu0
    %v2262 = vsel %vm1397, %v1951, 0
    %2264 = vmatprep.subr.mxu0 0.0
    %2265 = vmatpush1.msra.mxu0 0.0
    %2266 = vmatprep.subr.mxu0 0.0
    %2267 = vmatpush1.msra.mxu0 0.0
    %2268 = vmatprep.subr.mxu0 0.0
    %2269 = vmatpush1.msra.mxu0 0.0
    %2270 = vmatprep.subr.mxu0 0.0
    %2271 = vmatpush1.msra.mxu0 0.0
    %2272 = vmatprep.subr.mxu0 0.0
    %2273 = vmatpush1.msra.mxu0 0.0
    %2274 = vmatprep.subr.mxu0 0.0
    %2275 = vmatpush1.msra.mxu0 0.0
    %2276 = vmatprep.subr.mxu0 0.0
    %2277 = vmatpush1.msra.mxu0 0.0
    %2278 = vmatprep.subr.mxu0 0.0
    %2279 = vmatpush1.msra.mxu0 0.0
    %2280 = vmatprep.subr.mxu0 0.0
    %2281 = vmatpush1.msra.mxu0 0.0
    %2282 = vmatprep.subr.mxu0 0.0
    %2283 = vmatpush1.msra.mxu0 0.0
    %2284 = vmatprep.subr.mxu0 0.0
    %2285 = vmatpush1.msra.mxu0 0.0
    %2286 = vmatprep.subr.mxu0 0.0
    %2287 = vmatpush1.msra.mxu0 0.0
    %2288 = vmatprep.subr.mxu0 0.0
    %2289 = vmatpush1.msra.mxu0 0.0
    %2290 = vmatprep.subr.mxu0 0.0
    %2291 = vmatpush1.msra.mxu0 0.0
    %2292 = vmatprep.subr.mxu0 0.0
    %2293 = vmatpush1.msra.mxu0 0.0
    %2294 = vmatprep.subr.mxu0 0.0
    %2295 = vmatpush1.msra.mxu0 %v1130
    %2296 = vmatprep.subr.mxu0 0.0
    %2297 = vmatpush2.msra.mxu0 0.0
    %2298 = vmatprep.subr.mxu0 0.0
    %2299 = vmatpush2.msra.mxu0 0.0
    %2300 = vmatprep.subr.mxu0 0.0
    %2301 = vmatpush2.msra.mxu0 0.0
    %2302 = vmatprep.subr.mxu0 0.0
    %2303 = vmatpush2.msra.mxu0 0.0
    %2304 = vmatprep.subr.mxu0 0.0
    %2305 = vmatpush2.msra.mxu0 0.0
    %2306 = vmatprep.subr.mxu0 0.0
    %2307 = vmatpush2.msra.mxu0 0.0
    %2308 = vmatprep.subr.mxu0 0.0
    %2309 = vmatpush2.msra.mxu0 0.0
    %2310 = vmatprep.subr.mxu0 0.0
    %2311 = vmatpush2.msra.mxu0 0.0
    %2312 = vmatprep.subr.mxu0 0.0
    %2313 = vmatpush2.msra.mxu0 0.0
    %2314 = vmatprep.subr.mxu0 0.0
    %2315 = vmatpush2.msra.mxu0 0.0
    %2316 = vmatprep.subr.mxu0 0.0
    %2317 = vmatpush2.msra.mxu0 0.0
    %2318 = vmatprep.subr.mxu0 0.0
    %2319 = vmatpush2.msra.mxu0 0.0
    %2320 = vmatprep.subr.mxu0 0.0
    %2321 = vmatpush2.msra.mxu0 0.0
    %2322 = vmatprep.subr.mxu0 0.0
    %2323 = vmatpush2.msra.mxu0 0.0
    %2324 = vmatprep.subr.mxu0 0.0
    %2325 = vmatpush2.msra.mxu0 0.0
    %2326 = vmatprep.subr.mxu0 0.0
    %2327 = vmatpush2.msra.mxu0 0.0
    %2328 = vmatprep.mubr.f32.mxu0 0.0
    %2329 = vmatmul.mubr.f32.gmra.mxu0 %v2262
    %v2330 = vpop.f32.mrf.mxu0
    %v2331 = vadd.f32 %v2185, %v2330
    %v2332 = vpop.f32.mrf.mxu0
    %2333 = vdwg.mxu0
    %v2334 = vadd.f32 %v2258, %v2331
    %v2336 = vsel %vm1397, %v423, 0
    %v2339 = vsel %vm1397, %v509, 0
    %2341 = vmatprep.subr.mxu0 0.0
    %2342 = vmatpush1.xpose.msra.mxu0 0.0
    %2343 = vmatprep.subr.mxu0 0.0
    %2344 = vmatpush1.xpose.msra.mxu0 0.0
    %2345 = vmatprep.subr.mxu0 0.0
    %2346 = vmatpush1.xpose.msra.mxu0 0.0
    %2347 = vmatprep.subr.mxu0 0.0
    %2348 = vmatpush1.xpose.msra.mxu0 0.0
    %2349 = vmatprep.subr.mxu0 0.0
    %2350 = vmatpush1.xpose.msra.mxu0 0.0
    %2351 = vmatprep.subr.mxu0 0.0
    %2352 = vmatpush1.xpose.msra.mxu0 0.0
    %2353 = vmatprep.subr.mxu0 0.0
    %2354 = vmatpush1.xpose.msra.mxu0 0.0
    %2355 = vmatprep.subr.mxu0 0.0
    %2356 = vmatpush1.xpose.msra.mxu0 0.0
    %2357 = vmatprep.subr.mxu0 0.0
    %2358 = vmatpush1.xpose.msra.mxu0 0.0
    %2359 = vmatprep.subr.mxu0 0.0
    %2360 = vmatpush1.xpose.msra.mxu0 0.0
    %2361 = vmatprep.subr.mxu0 0.0
    %2362 = vmatpush1.xpose.msra.mxu0 0.0
    %2363 = vmatprep.subr.mxu0 0.0
    %2364 = vmatpush1.xpose.msra.mxu0 0.0
    %2365 = vmatprep.subr.mxu0 0.0
    %2366 = vmatpush1.xpose.msra.mxu0 0.0
    %2367 = vmatprep.subr.mxu0 0.0
    %2368 = vmatpush1.xpose.msra.mxu0 0.0
    %2369 = vmatprep.subr.mxu0 0.0
    %2370 = vmatpush1.xpose.msra.mxu0 0.0
    %2371 = vmatprep.subr.mxu0 0.0
    %2372 = vmatpush1.xpose.msra.mxu0 %v2339
    %2373 = vmatprep.subr.mxu0 0.0
    %2374 = vmatpush2.xpose.msra.mxu0 0.0
    %2375 = vmatprep.subr.mxu0 0.0
    %2376 = vmatpush2.xpose.msra.mxu0 0.0
    %2377 = vmatprep.subr.mxu0 0.0
    %2378 = vmatpush2.xpose.msra.mxu0 0.0
    %2379 = vmatprep.subr.mxu0 0.0
    %2380 = vmatpush2.xpose.msra.mxu0 0.0
    %2381 = vmatprep.subr.mxu0 0.0
    %2382 = vmatpush2.xpose.msra.mxu0 0.0
    %2383 = vmatprep.subr.mxu0 0.0
    %2384 = vmatpush2.xpose.msra.mxu0 0.0
    %2385 = vmatprep.subr.mxu0 0.0
    %2386 = vmatpush2.xpose.msra.mxu0 0.0
    %2387 = vmatprep.subr.mxu0 0.0
    %2388 = vmatpush2.xpose.msra.mxu0 0.0
    %2389 = vmatprep.subr.mxu0 0.0
    %2390 = vmatpush2.xpose.msra.mxu0 0.0
    %2391 = vmatprep.subr.mxu0 0.0
    %2392 = vmatpush2.xpose.msra.mxu0 0.0
    %2393 = vmatprep.subr.mxu0 0.0
    %2394 = vmatpush2.xpose.msra.mxu0 0.0
    %2395 = vmatprep.subr.mxu0 0.0
    %2396 = vmatpush2.xpose.msra.mxu0 0.0
    %2397 = vmatprep.subr.mxu0 0.0
    %2398 = vmatpush2.xpose.msra.mxu0 0.0
    %2399 = vmatprep.subr.mxu0 0.0
    %2400 = vmatpush2.xpose.msra.mxu0 0.0
    %2401 = vmatprep.subr.mxu0 0.0
    %2402 = vmatpush2.xpose.msra.mxu0 0.0
    %2403 = vmatprep.subr.mxu0 0.0
    %2404 = vmatpush2.xpose.msra.mxu0 0.0
    %2405 = vmatprep.mubr.f32.mxu0 0.0
    %2406 = vmatmul.mubr.f32.gmra.mxu0 %v2336
    %v2407 = vpop.f32.mrf.mxu0
    %v2408 = vadd.f32 0.0, %v2407
    %v2409 = vpop.f32.mrf.mxu0
    %2410 = vdwg.mxu0
    %v2411 = vmul.f32 %v2408, 0.35355338
    %v2412 = vsel %vm1397, %v2411, -inf
    %2413 = vmax.xlane.f32.xlu0 %v2412
    %v2414 = vpop.xlane.xlu0 %2413
    %v2415 = vsub.f32 %v2411, %v2414
    %v2416 = vmul.f32 %v2415, 1.442695
    %v2417 = vpow.pop %v2416
    %v2418 = vsel %vm1397, %v2417, 0.0
    %2419 = vadd.xlane.f32.xlu0 %v2418
    %v2420 = vpop.xlane.xlu0 %2419
    %v2421 = vrcp.pop %v2420
    %v2422 = vmul.f32 %v2417, %v2421
    %v2424 = vsel %vm1397, %v2422, 0
    %2426 = vmatprep.subr.mxu0 0.0
    %2427 = vmatpush1.msra.mxu0 0.0
    %2428 = vmatprep.subr.mxu0 0.0
    %2429 = vmatpush1.msra.mxu0 0.0
    %2430 = vmatprep.subr.mxu0 0.0
    %2431 = vmatpush1.msra.mxu0 0.0
    %2432 = vmatprep.subr.mxu0 0.0
    %2433 = vmatpush1.msra.mxu0 0.0
    %2434 = vmatprep.subr.mxu0 0.0
    %2435 = vmatpush1.msra.mxu0 0.0
    %2436 = vmatprep.subr.mxu0 0.0
    %2437 = vmatpush1.msra.mxu0 0.0
    %2438 = vmatprep.subr.mxu0 0.0
    %2439 = vmatpush1.msra.mxu0 0.0
    %2440 = vmatprep.subr.mxu0 0.0
    %2441 = vmatpush1.msra.mxu0 0.0
    %2442 = vmatprep.subr.mxu0 0.0
    %2443 = vmatpush1.msra.mxu0 0.0
    %2444 = vmatprep.subr.mxu0 0.0
    %2445 = vmatpush1.msra.mxu0 0.0
    %2446 = vmatprep.subr.mxu0 0.0
    %2447 = vmatpush1.msra.mxu0 0.0
    %2448 = vmatprep.subr.mxu0 0.0
    %2449 = vmatpush1.msra.mxu0 0.0
    %2450 = vmatprep.subr.mxu0 0.0
    %2451 = vmatpush1.msra.mxu0 0.0
    %2452 = vmatprep.subr.mxu0 0.0
    %2453 = vmatpush1.msra.mxu0 0.0
    %2454 = vmatprep.subr.mxu0 0.0
    %2455 = vmatpush1.msra.mxu0 0.0
    %2456 = vmatprep.subr.mxu0 0.0
    %2457 = vmatpush1.msra.mxu0 %v595
    %2458 = vmatprep.subr.mxu0 0.0
    %2459 = vmatpush2.msra.mxu0 0.0
    %2460 = vmatprep.subr.mxu0 0.0
    %2461 = vmatpush2.msra.mxu0 0.0
    %2462 = vmatprep.subr.mxu0 0.0
    %2463 = vmatpush2.msra.mxu0 0.0
    %2464 = vmatprep.subr.mxu0 0.0
    %2465 = vmatpush2.msra.mxu0 0.0
    %2466 = vmatprep.subr.mxu0 0.0
    %2467 = vmatpush2.msra.mxu0 0.0
    %2468 = vmatprep.subr.mxu0 0.0
    %2469 = vmatpush2.msra.mxu0 0.0
    %2470 = vmatprep.subr.mxu0 0.0
    %2471 = vmatpush2.msra.mxu0 0.0
    %2472 = vmatprep.subr.mxu0 0.0
    %2473 = vmatpush2.msra.mxu0 0.0
    %2474 = vmatprep.subr.mxu0 0.0
    %2475 = vmatpush2.msra.mxu0 0.0
    %2476 = vmatprep.subr.mxu0 0.0
    %2477 = vmatpush2.msra.mxu0 0.0
    %2478 = vmatprep.subr.mxu0 0.0
    %2479 = vmatpush2.msra.mxu0 0.0
    %2480 = vmatprep.subr.mxu0 0.0
    %2481 = vmatpush2.msra.mxu0 0.0
    %2482 = vmatprep.subr.mxu0 0.0
    %2483 = vmatpush2.msra.mxu0 0.0
    %2484 = vmatprep.subr.mxu0 0.0
    %2485 = vmatpush2.msra.mxu0 0.0
    %2486 = vmatprep.subr.mxu0 0.0
    %2487 = vmatpush2.msra.mxu0 0.0
    %2488 = vmatprep.subr.mxu0 0.0
    %2489 = vmatpush2.msra.mxu0 0.0
    %2490 = vmatprep.mubr.f32.mxu0 0.0
    %2491 = vmatmul.mubr.f32.gmra.mxu0 %v2424
    %v2492 = vpop.f32.mrf.mxu0
    %v2493 = vadd.f32 0.0, %v2492
    %v2494 = vpop.f32.mrf.mxu0
    %2495 = vdwg.mxu0
    %v2497 = vsel %vm1397, %v684, 0
    %v2500 = vsel %vm1397, %v772, 0
    %2502 = vmatprep.subr.mxu0 0.0
    %2503 = vmatpush1.xpose.msra.mxu0 0.0
    %2504 = vmatprep.subr.mxu0 0.0
    %2505 = vmatpush1.xpose.msra.mxu0 0.0
    %2506 = vmatprep.subr.mxu0 0.0
    %2507 = vmatpush1.xpose.msra.mxu0 0.0
    %2508 = vmatprep.subr.mxu0 0.0
    %2509 = vmatpush1.xpose.msra.mxu0 0.0
    %2510 = vmatprep.subr.mxu0 0.0
    %2511 = vmatpush1.xpose.msra.mxu0 0.0
    %2512 = vmatprep.subr.mxu0 0.0
    %2513 = vmatpush1.xpose.msra.mxu0 0.0
    %2514 = vmatprep.subr.mxu0 0.0
    %2515 = vmatpush1.xpose.msra.mxu0 0.0
    %2516 = vmatprep.subr.mxu0 0.0
    %2517 = vmatpush1.xpose.msra.mxu0 0.0
    %2518 = vmatprep.subr.mxu0 0.0
    %2519 = vmatpush1.xpose.msra.mxu0 0.0
    %2520 = vmatprep.subr.mxu0 0.0
    %2521 = vmatpush1.xpose.msra.mxu0 0.0
    %2522 = vmatprep.subr.mxu0 0.0
    %2523 = vmatpush1.xpose.msra.mxu0 0.0
    %2524 = vmatprep.subr.mxu0 0.0
    %2525 = vmatpush1.xpose.msra.mxu0 0.0
    %2526 = vmatprep.subr.mxu0 0.0
    %2527 = vmatpush1.xpose.msra.mxu0 0.0
    %2528 = vmatprep.subr.mxu0 0.0
    %2529 = vmatpush1.xpose.msra.mxu0 0.0
    %2530 = vmatprep.subr.mxu0 0.0
    %2531 = vmatpush1.xpose.msra.mxu0 0.0
    %2532 = vmatprep.subr.mxu0 0.0
    %2533 = vmatpush1.xpose.msra.mxu0 %v2500
    %2534 = vmatprep.subr.mxu0 0.0
    %2535 = vmatpush2.xpose.msra.mxu0 0.0
    %2536 = vmatprep.subr.mxu0 0.0
    %2537 = vmatpush2.xpose.msra.mxu0 0.0
    %2538 = vmatprep.subr.mxu0 0.0
    %2539 = vmatpush2.xpose.msra.mxu0 0.0
    %2540 = vmatprep.subr.mxu0 0.0
    %2541 = vmatpush2.xpose.msra.mxu0 0.0
    %2542 = vmatprep.subr.mxu0 0.0
    %2543 = vmatpush2.xpose.msra.mxu0 0.0
    %2544 = vmatprep.subr.mxu0 0.0
    %2545 = vmatpush2.xpose.msra.mxu0 0.0
    %2546 = vmatprep.subr.mxu0 0.0
    %2547 = vmatpush2.xpose.msra.mxu0 0.0
    %2548 = vmatprep.subr.mxu0 0.0
    %2549 = vmatpush2.xpose.msra.mxu0 0.0
    %2550 = vmatprep.subr.mxu0 0.0
    %2551 = vmatpush2.xpose.msra.mxu0 0.0
    %2552 = vmatprep.subr.mxu0 0.0
    %2553 = vmatpush2.xpose.msra.mxu0 0.0
    %2554 = vmatprep.subr.mxu0 0.0
    %2555 = vmatpush2.xpose.msra.mxu0 0.0
    %2556 = vmatprep.subr.mxu0 0.0
    %2557 = vmatpush2.xpose.msra.mxu0 0.0
    %2558 = vmatprep.subr.mxu0 0.0
    %2559 = vmatpush2.xpose.msra.mxu0 0.0
    %2560 = vmatprep.subr.mxu0 0.0
    %2561 = vmatpush2.xpose.msra.mxu0 0.0
    %2562 = vmatprep.subr.mxu0 0.0
    %2563 = vmatpush2.xpose.msra.mxu0 0.0
    %2564 = vmatprep.subr.mxu0 0.0
    %2565 = vmatpush2.xpose.msra.mxu0 0.0
    %2566 = vmatprep.mubr.f32.mxu0 0.0
    %2567 = vmatmul.mubr.f32.gmra.mxu0 %v2497
    %v2568 = vpop.f32.mrf.mxu0
    %v2569 = vadd.f32 0.0, %v2568
    %v2570 = vpop.f32.mrf.mxu0
    %2571 = vdwg.mxu0
    %v2572 = vmul.f32 %v2569, 0.35355338
    %v2573 = vsel %vm1397, %v2572, -inf
    %2574 = vmax.xlane.f32.xlu0 %v2573
    %v2575 = vpop.xlane.xlu0 %2574
    %v2576 = vsub.f32 %v2572, %v2575
    %v2577 = vmul.f32 %v2576, 1.442695
    %v2578 = vpow.pop %v2577
    %v2579 = vsel %vm1397, %v2578, 0.0
    %2580 = vadd.xlane.f32.xlu0 %v2579
    %v2581 = vpop.xlane.xlu0 %2580
    %v2582 = vrcp.pop %v2581
    %v2583 = vmul.f32 %v2578, %v2582
    %v2585 = vsel %vm1397, %v2583, 0
    %2587 = vmatprep.subr.mxu0 0.0
    %2588 = vmatpush1.msra.mxu0 0.0
    %2589 = vmatprep.subr.mxu0 0.0
    %2590 = vmatpush1.msra.mxu0 0.0
    %2591 = vmatprep.subr.mxu0 0.0
    %2592 = vmatpush1.msra.mxu0 0.0
    %2593 = vmatprep.subr.mxu0 0.0
    %2594 = vmatpush1.msra.mxu0 0.0
    %2595 = vmatprep.subr.mxu0 0.0
    %2596 = vmatpush1.msra.mxu0 0.0
    %2597 = vmatprep.subr.mxu0 0.0
    %2598 = vmatpush1.msra.mxu0 0.0
    %2599 = vmatprep.subr.mxu0 0.0
    %2600 = vmatpush1.msra.mxu0 0.0
    %2601 = vmatprep.subr.mxu0 0.0
    %2602 = vmatpush1.msra.mxu0 0.0
    %2603 = vmatprep.subr.mxu0 0.0
    %2604 = vmatpush1.msra.mxu0 0.0
    %2605 = vmatprep.subr.mxu0 0.0
    %2606 = vmatpush1.msra.mxu0 0.0
    %2607 = vmatprep.subr.mxu0 0.0
    %2608 = vmatpush1.msra.mxu0 0.0
    %2609 = vmatprep.subr.mxu0 0.0
    %2610 = vmatpush1.msra.mxu0 0.0
    %2611 = vmatprep.subr.mxu0 0.0
    %2612 = vmatpush1.msra.mxu0 0.0
    %2613 = vmatprep.subr.mxu0 0.0
    %2614 = vmatpush1.msra.mxu0 0.0
    %2615 = vmatprep.subr.mxu0 0.0
    %2616 = vmatpush1.msra.mxu0 0.0
    %2617 = vmatprep.subr.mxu0 0.0
    %2618 = vmatpush1.msra.mxu0 %v860
    %2619 = vmatprep.subr.mxu0 0.0
    %2620 = vmatpush2.msra.mxu0 0.0
    %2621 = vmatprep.subr.mxu0 0.0
    %2622 = vmatpush2.msra.mxu0 0.0
    %2623 = vmatprep.subr.mxu0 0.0
    %2624 = vmatpush2.msra.mxu0 0.0
    %2625 = vmatprep.subr.mxu0 0.0
    %2626 = vmatpush2.msra.mxu0 0.0
    %2627 = vmatprep.subr.mxu0 0.0
    %2628 = vmatpush2.msra.mxu0 0.0
    %2629 = vmatprep.subr.mxu0 0.0
    %2630 = vmatpush2.msra.mxu0 0.0
    %2631 = vmatprep.subr.mxu0 0.0
    %2632 = vmatpush2.msra.mxu0 0.0
    %2633 = vmatprep.subr.mxu0 0.0
    %2634 = vmatpush2.msra.mxu0 0.0
    %2635 = vmatprep.subr.mxu0 0.0
    %2636 = vmatpush2.msra.mxu0 0.0
    %2637 = vmatprep.subr.mxu0 0.0
    %2638 = vmatpush2.msra.mxu0 0.0
    %2639 = vmatprep.subr.mxu0 0.0
    %2640 = vmatpush2.msra.mxu0 0.0
    %2641 = vmatprep.subr.mxu0 0.0
    %2642 = vmatpush2.msra.mxu0 0.0
    %2643 = vmatprep.subr.mxu0 0.0
    %2644 = vmatpush2.msra.mxu0 0.0
    %2645 = vmatprep.subr.mxu0 0.0
    %2646 = vmatpush2.msra.mxu0 0.0
    %2647 = vmatprep.subr.mxu0 0.0
    %2648 = vmatpush2.msra.mxu0 0.0
    %2649 = vmatprep.subr.mxu0 0.0
    %2650 = vmatpush2.msra.mxu0 0.0
    %2651 = vmatprep.mubr.f32.mxu0 0.0
    %2652 = vmatmul.mubr.f32.gmra.mxu0 %v2585
    %v2653 = vpop.f32.mrf.mxu0
    %v2654 = vadd.f32 0.0, %v2653
    %v2655 = vpop.f32.mrf.mxu0
    %2656 = vdwg.mxu0
    %v2658 = vsel %vm1397, %v2654, 0
    %2660 = vmatprep.subr.mxu0 0.0
    %2661 = vmatpush1.msra.mxu0 0.0
    %2662 = vmatprep.subr.mxu0 0.0
    %2663 = vmatpush1.msra.mxu0 0.0
    %2664 = vmatprep.subr.mxu0 0.0
    %2665 = vmatpush1.msra.mxu0 0.0
    %2666 = vmatprep.subr.mxu0 0.0
    %2667 = vmatpush1.msra.mxu0 0.0
    %2668 = vmatprep.subr.mxu0 0.0
    %2669 = vmatpush1.msra.mxu0 0.0
    %2670 = vmatprep.subr.mxu0 0.0
    %2671 = vmatpush1.msra.mxu0 0.0
    %2672 = vmatprep.subr.mxu0 0.0
    %2673 = vmatpush1.msra.mxu0 0.0
    %2674 = vmatprep.subr.mxu0 0.0
    %2675 = vmatpush1.msra.mxu0 0.0
    %2676 = vmatprep.subr.mxu0 0.0
    %2677 = vmatpush1.msra.mxu0 0.0
    %2678 = vmatprep.subr.mxu0 0.0
    %2679 = vmatpush1.msra.mxu0 0.0
    %2680 = vmatprep.subr.mxu0 0.0
    %2681 = vmatpush1.msra.mxu0 0.0
    %2682 = vmatprep.subr.mxu0 0.0
    %2683 = vmatpush1.msra.mxu0 0.0
    %2684 = vmatprep.subr.mxu0 0.0
    %2685 = vmatpush1.msra.mxu0 0.0
    %2686 = vmatprep.subr.mxu0 0.0
    %2687 = vmatpush1.msra.mxu0 0.0
    %2688 = vmatprep.subr.mxu0 0.0
    %2689 = vmatpush1.msra.mxu0 0.0
    %2690 = vmatprep.subr.mxu0 0.0
    %2691 = vmatpush1.msra.mxu0 %v864
    %2692 = vmatprep.subr.mxu0 0.0
    %2693 = vmatpush2.msra.mxu0 0.0
    %2694 = vmatprep.subr.mxu0 0.0
    %2695 = vmatpush2.msra.mxu0 0.0
    %2696 = vmatprep.subr.mxu0 0.0
    %2697 = vmatpush2.msra.mxu0 0.0
    %2698 = vmatprep.subr.mxu0 0.0
    %2699 = vmatpush2.msra.mxu0 0.0
    %2700 = vmatprep.subr.mxu0 0.0
    %2701 = vmatpush2.msra.mxu0 0.0
    %2702 = vmatprep.subr.mxu0 0.0
    %2703 = vmatpush2.msra.mxu0 0.0
    %2704 = vmatprep.subr.mxu0 0.0
    %2705 = vmatpush2.msra.mxu0 0.0
    %2706 = vmatprep.subr.mxu0 0.0
    %2707 = vmatpush2.msra.mxu0 0.0
    %2708 = vmatprep.subr.mxu0 0.0
    %2709 = vmatpush2.msra.mxu0 0.0
    %2710 = vmatprep.subr.mxu0 0.0
    %2711 = vmatpush2.msra.mxu0 0.0
    %2712 = vmatprep.subr.mxu0 0.0
    %2713 = vmatpush2.msra.mxu0 0.0
    %2714 = vmatprep.subr.mxu0 0.0
    %2715 = vmatpush2.msra.mxu0 0.0
    %2716 = vmatprep.subr.mxu0 0.0
    %2717 = vmatpush2.msra.mxu0 0.0
    %2718 = vmatprep.subr.mxu0 0.0
    %2719 = vmatpush2.msra.mxu0 0.0
    %2720 = vmatprep.subr.mxu0 0.0
    %2721 = vmatpush2.msra.mxu0 0.0
    %2722 = vmatprep.subr.mxu0 0.0
    %2723 = vmatpush2.msra.mxu0 0.0
    %2724 = vmatprep.mubr.f32.mxu0 0.0
    %2725 = vmatmul.mubr.f32.gmra.mxu0 %v2658
    %v2726 = vpop.f32.mrf.mxu0
    %v2727 = vadd.f32 0.0, %v2726
    %v2728 = vpop.f32.mrf.mxu0
    %2729 = vdwg.mxu0
    %v2731 = vsel %vm1397, %v950, 0
    %v2734 = vsel %vm1397, %v1038, 0
    %2736 = vmatprep.subr.mxu0 0.0
    %2737 = vmatpush1.xpose.msra.mxu0 0.0
    %2738 = vmatprep.subr.mxu0 0.0
    %2739 = vmatpush1.xpose.msra.mxu0 0.0
    %2740 = vmatprep.subr.mxu0 0.0
    %2741 = vmatpush1.xpose.msra.mxu0 0.0
    %2742 = vmatprep.subr.mxu0 0.0
    %2743 = vmatpush1.xpose.msra.mxu0 0.0
    %2744 = vmatprep.subr.mxu0 0.0
    %2745 = vmatpush1.xpose.msra.mxu0 0.0
    %2746 = vmatprep.subr.mxu0 0.0
    %2747 = vmatpush1.xpose.msra.mxu0 0.0
    %2748 = vmatprep.subr.mxu0 0.0
    %2749 = vmatpush1.xpose.msra.mxu0 0.0
    %2750 = vmatprep.subr.mxu0 0.0
    %2751 = vmatpush1.xpose.msra.mxu0 0.0
    %2752 = vmatprep.subr.mxu0 0.0
    %2753 = vmatpush1.xpose.msra.mxu0 0.0
    %2754 = vmatprep.subr.mxu0 0.0
    %2755 = vmatpush1.xpose.msra.mxu0 0.0
    %2756 = vmatprep.subr.mxu0 0.0
    %2757 = vmatpush1.xpose.msra.mxu0 0.0
    %2758 = vmatprep.subr.mxu0 0.0
    %2759 = vmatpush1.xpose.msra.mxu0 0.0
    %2760 = vmatprep.subr.mxu0 0.0
    %2761 = vmatpush1.xpose.msra.mxu0 0.0
    %2762 = vmatprep.subr.mxu0 0.0
    %2763 = vmatpush1.xpose.msra.mxu0 0.0
    %2764 = vmatprep.subr.mxu0 0.0
    %2765 = vmatpush1.xpose.msra.mxu0 0.0
    %2766 = vmatprep.subr.mxu0 0.0
    %2767 = vmatpush1.xpose.msra.mxu0 %v2734
    %2768 = vmatprep.subr.mxu0 0.0
    %2769 = vmatpush2.xpose.msra.mxu0 0.0
    %2770 = vmatprep.subr.mxu0 0.0
    %2771 = vmatpush2.xpose.msra.mxu0 0.0
    %2772 = vmatprep.subr.mxu0 0.0
    %2773 = vmatpush2.xpose.msra.mxu0 0.0
    %2774 = vmatprep.subr.mxu0 0.0
    %2775 = vmatpush2.xpose.msra.mxu0 0.0
    %2776 = vmatprep.subr.mxu0 0.0
    %2777 = vmatpush2.xpose.msra.mxu0 0.0
    %2778 = vmatprep.subr.mxu0 0.0
    %2779 = vmatpush2.xpose.msra.mxu0 0.0
    %2780 = vmatprep.subr.mxu0 0.0
    %2781 = vmatpush2.xpose.msra.mxu0 0.0
    %2782 = vmatprep.subr.mxu0 0.0
    %2783 = vmatpush2.xpose.msra.mxu0 0.0
    %2784 = vmatprep.subr.mxu0 0.0
    %2785 = vmatpush2.xpose.msra.mxu0 0.0
    %2786 = vmatprep.subr.mxu0 0.0
    %2787 = vmatpush2.xpose.msra.mxu0 0.0
    %2788 = vmatprep.subr.mxu0 0.0
    %2789 = vmatpush2.xpose.msra.mxu0 0.0
    %2790 = vmatprep.subr.mxu0 0.0
    %2791 = vmatpush2.xpose.msra.mxu0 0.0
    %2792 = vmatprep.subr.mxu0 0.0
    %2793 = vmatpush2.xpose.msra.mxu0 0.0
    %2794 = vmatprep.subr.mxu0 0.0
    %2795 = vmatpush2.xpose.msra.mxu0 0.0
    %2796 = vmatprep.subr.mxu0 0.0
    %2797 = vmatpush2.xpose.msra.mxu0 0.0
    %2798 = vmatprep.subr.mxu0 0.0
    %2799 = vmatpush2.xpose.msra.mxu0 0.0
    %2800 = vmatprep.mubr.f32.mxu0 0.0
    %2801 = vmatmul.mubr.f32.gmra.mxu0 %v2731
    %v2802 = vpop.f32.mrf.mxu0
    %v2803 = vadd.f32 0.0, %v2802
    %v2804 = vpop.f32.mrf.mxu0
    %2805 = vdwg.mxu0
    %v2806 = vmul.f32 %v2803, 0.35355338
    %v2807 = vsel %vm1397, %v2806, -inf
    %2808 = vmax.xlane.f32.xlu0 %v2807
    %v2809 = vpop.xlane.xlu0 %2808
    %v2810 = vsub.f32 %v2806, %v2809
    %v2811 = vmul.f32 %v2810, 1.442695
    %v2812 = vpow.pop %v2811
    %v2813 = vsel %vm1397, %v2812, 0.0
    %2814 = vadd.xlane.f32.xlu0 %v2813
    %v2815 = vpop.xlane.xlu0 %2814
    %v2816 = vrcp.pop %v2815
    %v2817 = vmul.f32 %v2812, %v2816
    %v2819 = vsel %vm1397, %v2817, 0
    %2821 = vmatprep.subr.mxu0 0.0
    %2822 = vmatpush1.msra.mxu0 0.0
    %2823 = vmatprep.subr.mxu0 0.0
    %2824 = vmatpush1.msra.mxu0 0.0
    %2825 = vmatprep.subr.mxu0 0.0
    %2826 = vmatpush1.msra.mxu0 0.0
    %2827 = vmatprep.subr.mxu0 0.0
    %2828 = vmatpush1.msra.mxu0 0.0
    %2829 = vmatprep.subr.mxu0 0.0
    %2830 = vmatpush1.msra.mxu0 0.0
    %2831 = vmatprep.subr.mxu0 0.0
    %2832 = vmatpush1.msra.mxu0 0.0
    %2833 = vmatprep.subr.mxu0 0.0
    %2834 = vmatpush1.msra.mxu0 0.0
    %2835 = vmatprep.subr.mxu0 0.0
    %2836 = vmatpush1.msra.mxu0 0.0
    %2837 = vmatprep.subr.mxu0 0.0
    %2838 = vmatpush1.msra.mxu0 0.0
    %2839 = vmatprep.subr.mxu0 0.0
    %2840 = vmatpush1.msra.mxu0 0.0
    %2841 = vmatprep.subr.mxu0 0.0
    %2842 = vmatpush1.msra.mxu0 0.0
    %2843 = vmatprep.subr.mxu0 0.0
    %2844 = vmatpush1.msra.mxu0 0.0
    %2845 = vmatprep.subr.mxu0 0.0
    %2846 = vmatpush1.msra.mxu0 0.0
    %2847 = vmatprep.subr.mxu0 0.0
    %2848 = vmatpush1.msra.mxu0 0.0
    %2849 = vmatprep.subr.mxu0 0.0
    %2850 = vmatpush1.msra.mxu0 0.0
    %2851 = vmatprep.subr.mxu0 0.0
    %2852 = vmatpush1.msra.mxu0 %v1126
    %2853 = vmatprep.subr.mxu0 0.0
    %2854 = vmatpush2.msra.mxu0 0.0
    %2855 = vmatprep.subr.mxu0 0.0
    %2856 = vmatpush2.msra.mxu0 0.0
    %2857 = vmatprep.subr.mxu0 0.0
    %2858 = vmatpush2.msra.mxu0 0.0
    %2859 = vmatprep.subr.mxu0 0.0
    %2860 = vmatpush2.msra.mxu0 0.0
    %2861 = vmatprep.subr.mxu0 0.0
    %2862 = vmatpush2.msra.mxu0 0.0
    %2863 = vmatprep.subr.mxu0 0.0
    %2864 = vmatpush2.msra.mxu0 0.0
    %2865 = vmatprep.subr.mxu0 0.0
    %2866 = vmatpush2.msra.mxu0 0.0
    %2867 = vmatprep.subr.mxu0 0.0
    %2868 = vmatpush2.msra.mxu0 0.0
    %2869 = vmatprep.subr.mxu0 0.0
    %2870 = vmatpush2.msra.mxu0 0.0
    %2871 = vmatprep.subr.mxu0 0.0
    %2872 = vmatpush2.msra.mxu0 0.0
    %2873 = vmatprep.subr.mxu0 0.0
    %2874 = vmatpush2.msra.mxu0 0.0
    %2875 = vmatprep.subr.mxu0 0.0
    %2876 = vmatpush2.msra.mxu0 0.0
    %2877 = vmatprep.subr.mxu0 0.0
    %2878 = vmatpush2.msra.mxu0 0.0
    %2879 = vmatprep.subr.mxu0 0.0
    %2880 = vmatpush2.msra.mxu0 0.0
    %2881 = vmatprep.subr.mxu0 0.0
    %2882 = vmatpush2.msra.mxu0 0.0
    %2883 = vmatprep.subr.mxu0 0.0
    %2884 = vmatpush2.msra.mxu0 0.0
    %2885 = vmatprep.mubr.f32.mxu0 0.0
    %2886 = vmatmul.mubr.f32.gmra.mxu0 %v2819
    %v2887 = vpop.f32.mrf.mxu0
    %v2888 = vadd.f32 0.0, %v2887
    %v2889 = vpop.f32.mrf.mxu0
    %2890 = vdwg.mxu0
    %v2892 = vsel %vm1397, %v1216, 0
    %v2895 = vsel %vm1397, %v1304, 0
    %2897 = vmatprep.subr.mxu0 0.0
    %2898 = vmatpush1.xpose.msra.mxu0 0.0
    %2899 = vmatprep.subr.mxu0 0.0
    %2900 = vmatpush1.xpose.msra.mxu0 0.0
    %2901 = vmatprep.subr.mxu0 0.0
    %2902 = vmatpush1.xpose.msra.mxu0 0.0
    %2903 = vmatprep.subr.mxu0 0.0
    %2904 = vmatpush1.xpose.msra.mxu0 0.0
    %2905 = vmatprep.subr.mxu0 0.0
    %2906 = vmatpush1.xpose.msra.mxu0 0.0
    %2907 = vmatprep.subr.mxu0 0.0
    %2908 = vmatpush1.xpose.msra.mxu0 0.0
    %2909 = vmatprep.subr.mxu0 0.0
    %2910 = vmatpush1.xpose.msra.mxu0 0.0
    %2911 = vmatprep.subr.mxu0 0.0
    %2912 = vmatpush1.xpose.msra.mxu0 0.0
    %2913 = vmatprep.subr.mxu0 0.0
    %2914 = vmatpush1.xpose.msra.mxu0 0.0
    %2915 = vmatprep.subr.mxu0 0.0
    %2916 = vmatpush1.xpose.msra.mxu0 0.0
    %2917 = vmatprep.subr.mxu0 0.0
    %2918 = vmatpush1.xpose.msra.mxu0 0.0
    %2919 = vmatprep.subr.mxu0 0.0
    %2920 = vmatpush1.xpose.msra.mxu0 0.0
    %2921 = vmatprep.subr.mxu0 0.0
    %2922 = vmatpush1.xpose.msra.mxu0 0.0
    %2923 = vmatprep.subr.mxu0 0.0
    %2924 = vmatpush1.xpose.msra.mxu0 0.0
    %2925 = vmatprep.subr.mxu0 0.0
    %2926 = vmatpush1.xpose.msra.mxu0 0.0
    %2927 = vmatprep.subr.mxu0 0.0
    %2928 = vmatpush1.xpose.msra.mxu0 %v2895
    %2929 = vmatprep.subr.mxu0 0.0
    %2930 = vmatpush2.xpose.msra.mxu0 0.0
    %2931 = vmatprep.subr.mxu0 0.0
    %2932 = vmatpush2.xpose.msra.mxu0 0.0
    %2933 = vmatprep.subr.mxu0 0.0
    %2934 = vmatpush2.xpose.msra.mxu0 0.0
    %2935 = vmatprep.subr.mxu0 0.0
    %2936 = vmatpush2.xpose.msra.mxu0 0.0
    %2937 = vmatprep.subr.mxu0 0.0
    %2938 = vmatpush2.xpose.msra.mxu0 0.0
    %2939 = vmatprep.subr.mxu0 0.0
    %2940 = vmatpush2.xpose.msra.mxu0 0.0
    %2941 = vmatprep.subr.mxu0 0.0
    %2942 = vmatpush2.xpose.msra.mxu0 0.0
    %2943 = vmatprep.subr.mxu0 0.0
    %2944 = vmatpush2.xpose.msra.mxu0 0.0
    %2945 = vmatprep.subr.mxu0 0.0
    %2946 = vmatpush2.xpose.msra.mxu0 0.0
    %2947 = vmatprep.subr.mxu0 0.0
    %2948 = vmatpush2.xpose.msra.mxu0 0.0
    %2949 = vmatprep.subr.mxu0 0.0
    %2950 = vmatpush2.xpose.msra.mxu0 0.0
    %2951 = vmatprep.subr.mxu0 0.0
    %2952 = vmatpush2.xpose.msra.mxu0 0.0
    %2953 = vmatprep.subr.mxu0 0.0
    %2954 = vmatpush2.xpose.msra.mxu0 0.0
    %2955 = vmatprep.subr.mxu0 0.0
    %2956 = vmatpush2.xpose.msra.mxu0 0.0
    %2957 = vmatprep.subr.mxu0 0.0
    %2958 = vmatpush2.xpose.msra.mxu0 0.0
    %2959 = vmatprep.subr.mxu0 0.0
    %2960 = vmatpush2.xpose.msra.mxu0 0.0
    %2961 = vmatprep.mubr.f32.mxu0 0.0
    %2962 = vmatmul.mubr.f32.gmra.mxu0 %v2892
    %v2963 = vpop.f32.mrf.mxu0
    %v2964 = vadd.f32 0.0, %v2963
    %v2965 = vpop.f32.mrf.mxu0
    %2966 = vdwg.mxu0
    %v2967 = vmul.f32 %v2964, 0.35355338
    %v2968 = vsel %vm1397, %v2967, -inf
    %2969 = vmax.xlane.f32.xlu0 %v2968
    %v2970 = vpop.xlane.xlu0 %2969
    %v2971 = vsub.f32 %v2967, %v2970
    %v2972 = vmul.f32 %v2971, 1.442695
    %v2973 = vpow.pop %v2972
    %v2974 = vsel %vm1397, %v2973, 0.0
    %2975 = vadd.xlane.f32.xlu0 %v2974
    %v2976 = vpop.xlane.xlu0 %2975
    %v2977 = vrcp.pop %v2976
    %v2978 = vmul.f32 %v2973, %v2977
    %v2980 = vsel %vm1397, %v2978, 0
    %2982 = vmatprep.subr.mxu0 0.0
    %2983 = vmatpush1.msra.mxu0 0.0
    %2984 = vmatprep.subr.mxu0 0.0
    %2985 = vmatpush1.msra.mxu0 0.0
    %2986 = vmatprep.subr.mxu0 0.0
    %2987 = vmatpush1.msra.mxu0 0.0
    %2988 = vmatprep.subr.mxu0 0.0
    %2989 = vmatpush1.msra.mxu0 0.0
    %2990 = vmatprep.subr.mxu0 0.0
    %2991 = vmatpush1.msra.mxu0 0.0
    %2992 = vmatprep.subr.mxu0 0.0
    %2993 = vmatpush1.msra.mxu0 0.0
    %2994 = vmatprep.subr.mxu0 0.0
    %2995 = vmatpush1.msra.mxu0 0.0
    %2996 = vmatprep.subr.mxu0 0.0
    %2997 = vmatpush1.msra.mxu0 0.0
    %2998 = vmatprep.subr.mxu0 0.0
    %2999 = vmatpush1.msra.mxu0 0.0
    %3000 = vmatprep.subr.mxu0 0.0
    %3001 = vmatpush1.msra.mxu0 0.0
    %3002 = vmatprep.subr.mxu0 0.0
    %3003 = vmatpush1.msra.mxu0 0.0
    %3004 = vmatprep.subr.mxu0 0.0
    %3005 = vmatpush1.msra.mxu0 0.0
    %3006 = vmatprep.subr.mxu0 0.0
    %3007 = vmatpush1.msra.mxu0 0.0
    %3008 = vmatprep.subr.mxu0 0.0
    %3009 = vmatpush1.msra.mxu0 0.0
    %3010 = vmatprep.subr.mxu0 0.0
    %3011 = vmatpush1.msra.mxu0 0.0
    %3012 = vmatprep.subr.mxu0 0.0
    %3013 = vmatpush1.msra.mxu0 %v1392
    %3014 = vmatprep.subr.mxu0 0.0
    %3015 = vmatpush2.msra.mxu0 0.0
    %3016 = vmatprep.subr.mxu0 0.0
    %3017 = vmatpush2.msra.mxu0 0.0
    %3018 = vmatprep.subr.mxu0 0.0
    %3019 = vmatpush2.msra.mxu0 0.0
    %3020 = vmatprep.subr.mxu0 0.0
    %3021 = vmatpush2.msra.mxu0 0.0
    %3022 = vmatprep.subr.mxu0 0.0
    %3023 = vmatpush2.msra.mxu0 0.0
    %3024 = vmatprep.subr.mxu0 0.0
    %3025 = vmatpush2.msra.mxu0 0.0
    %3026 = vmatprep.subr.mxu0 0.0
    %3027 = vmatpush2.msra.mxu0 0.0
    %3028 = vmatprep.subr.mxu0 0.0
    %3029 = vmatpush2.msra.mxu0 0.0
    %3030 = vmatprep.subr.mxu0 0.0
    %3031 = vmatpush2.msra.mxu0 0.0
    %3032 = vmatprep.subr.mxu0 0.0
    %3033 = vmatpush2.msra.mxu0 0.0
    %3034 = vmatprep.subr.mxu0 0.0
    %3035 = vmatpush2.msra.mxu0 0.0
    %3036 = vmatprep.subr.mxu0 0.0
    %3037 = vmatpush2.msra.mxu0 0.0
    %3038 = vmatprep.subr.mxu0 0.0
    %3039 = vmatpush2.msra.mxu0 0.0
    %3040 = vmatprep.subr.mxu0 0.0
    %3041 = vmatpush2.msra.mxu0 0.0
    %3042 = vmatprep.subr.mxu0 0.0
    %3043 = vmatpush2.msra.mxu0 0.0
    %3044 = vmatprep.subr.mxu0 0.0
    %3045 = vmatpush2.msra.mxu0 0.0
    %3046 = vmatprep.mubr.f32.mxu0 0.0
    %3047 = vmatmul.mubr.f32.gmra.mxu0 %v2980
    %v3048 = vpop.f32.mrf.mxu0
    %v3049 = vadd.f32 0.0, %v3048
    %v3050 = vpop.f32.mrf.mxu0
    %3051 = vdwg.mxu0
    %v3053 = vsel %vm1397, %v3049, 0
    %3055 = vmatprep.subr.mxu0 0.0
    %3056 = vmatpush1.msra.mxu0 0.0
    %3057 = vmatprep.subr.mxu0 0.0
    %3058 = vmatpush1.msra.mxu0 0.0
    %3059 = vmatprep.subr.mxu0 0.0
    %3060 = vmatpush1.msra.mxu0 0.0
    %3061 = vmatprep.subr.mxu0 0.0
    %3062 = vmatpush1.msra.mxu0 0.0
    %3063 = vmatprep.subr.mxu0 0.0
    %3064 = vmatpush1.msra.mxu0 0.0
    %3065 = vmatprep.subr.mxu0 0.0
    %3066 = vmatpush1.msra.mxu0 0.0
    %3067 = vmatprep.subr.mxu0 0.0
    %3068 = vmatpush1.msra.mxu0 0.0
    %3069 = vmatprep.subr.mxu0 0.0
    %3070 = vmatpush1.msra.mxu0 0.0
    %3071 = vmatprep.subr.mxu0 0.0
    %3072 = vmatpush1.msra.mxu0 0.0
    %3073 = vmatprep.subr.mxu0 0.0
    %3074 = vmatpush1.msra.mxu0 0.0
    %3075 = vmatprep.subr.mxu0 0.0
    %3076 = vmatpush1.msra.mxu0 0.0
    %3077 = vmatprep.subr.mxu0 0.0
    %3078 = vmatpush1.msra.mxu0 0.0
    %3079 = vmatprep.subr.mxu0 0.0
    %3080 = vmatpush1.msra.mxu0 0.0
    %3081 = vmatprep.subr.mxu0 0.0
    %3082 = vmatpush1.msra.mxu0 0.0
    %3083 = vmatprep.subr.mxu0 0.0
    %3084 = vmatpush1.msra.mxu0 0.0
    %3085 = vmatprep.subr.mxu0 0.0
    %3086 = vmatpush1.msra.mxu0 %v1396
    %3087 = vmatprep.subr.mxu0 0.0
    %3088 = vmatpush2.msra.mxu0 0.0
    %3089 = vmatprep.subr.mxu0 0.0
    %3090 = vmatpush2.msra.mxu0 0.0
    %3091 = vmatprep.subr.mxu0 0.0
    %3092 = vmatpush2.msra.mxu0 0.0
    %3093 = vmatprep.subr.mxu0 0.0
    %3094 = vmatpush2.msra.mxu0 0.0
    %3095 = vmatprep.subr.mxu0 0.0
    %3096 = vmatpush2.msra.mxu0 0.0
    %3097 = vmatprep.subr.mxu0 0.0
    %3098 = vmatpush2.msra.mxu0 0.0
    %3099 = vmatprep.subr.mxu0 0.0
    %3100 = vmatpush2.msra.mxu0 0.0
    %3101 = vmatprep.subr.mxu0 0.0
    %3102 = vmatpush2.msra.mxu0 0.0
    %3103 = vmatprep.subr.mxu0 0.0
    %3104 = vmatpush2.msra.mxu0 0.0
    %3105 = vmatprep.subr.mxu0 0.0
    %3106 = vmatpush2.msra.mxu0 0.0
    %3107 = vmatprep.subr.mxu0 0.0
    %3108 = vmatpush2.msra.mxu0 0.0
    %3109 = vmatprep.subr.mxu0 0.0
    %3110 = vmatpush2.msra.mxu0 0.0
    %3111 = vmatprep.subr.mxu0 0.0
    %3112 = vmatpush2.msra.mxu0 0.0
    %3113 = vmatprep.subr.mxu0 0.0
    %3114 = vmatpush2.msra.mxu0 0.0
    %3115 = vmatprep.subr.mxu0 0.0
    %3116 = vmatpush2.msra.mxu0 0.0
    %3117 = vmatprep.subr.mxu0 0.0
    %3118 = vmatpush2.msra.mxu0 0.0
    %3119 = vmatprep.mubr.f32.mxu0 0.0
    %3120 = vmatmul.mubr.f32.gmra.mxu0 %v3053
    %v3121 = vpop.f32.mrf.mxu0
    %v3122 = vadd.f32 0.0, %v3121
    %v3123 = vpop.f32.mrf.mxu0
    %3124 = vdwg.mxu0
    %v3126 = vsel %vm1397, %v2493, 0
    %3128 = vmatprep.subr.mxu0 0.0
    %3129 = vmatpush1.msra.mxu0 0.0
    %3130 = vmatprep.subr.mxu0 0.0
    %3131 = vmatpush1.msra.mxu0 0.0
    %3132 = vmatprep.subr.mxu0 0.0
    %3133 = vmatpush1.msra.mxu0 0.0
    %3134 = vmatprep.subr.mxu0 0.0
    %3135 = vmatpush1.msra.mxu0 0.0
    %3136 = vmatprep.subr.mxu0 0.0
    %3137 = vmatpush1.msra.mxu0 0.0
    %3138 = vmatprep.subr.mxu0 0.0
    %3139 = vmatpush1.msra.mxu0 0.0
    %3140 = vmatprep.subr.mxu0 0.0
    %3141 = vmatpush1.msra.mxu0 0.0
    %3142 = vmatprep.subr.mxu0 0.0
    %3143 = vmatpush1.msra.mxu0 0.0
    %3144 = vmatprep.subr.mxu0 0.0
    %3145 = vmatpush1.msra.mxu0 0.0
    %3146 = vmatprep.subr.mxu0 0.0
    %3147 = vmatpush1.msra.mxu0 0.0
    %3148 = vmatprep.subr.mxu0 0.0
    %3149 = vmatpush1.msra.mxu0 0.0
    %3150 = vmatprep.subr.mxu0 0.0
    %3151 = vmatpush1.msra.mxu0 0.0
    %3152 = vmatprep.subr.mxu0 0.0
    %3153 = vmatpush1.msra.mxu0 0.0
    %3154 = vmatprep.subr.mxu0 0.0
    %3155 = vmatpush1.msra.mxu0 0.0
    %3156 = vmatprep.subr.mxu0 0.0
    %3157 = vmatpush1.msra.mxu0 0.0
    %3158 = vmatprep.subr.mxu0 0.0
    %3159 = vmatpush1.msra.mxu0 %v598
    %3160 = vmatprep.subr.mxu0 0.0
    %3161 = vmatpush2.msra.mxu0 0.0
    %3162 = vmatprep.subr.mxu0 0.0
    %3163 = vmatpush2.msra.mxu0 0.0
    %3164 = vmatprep.subr.mxu0 0.0
    %3165 = vmatpush2.msra.mxu0 0.0
    %3166 = vmatprep.subr.mxu0 0.0
    %3167 = vmatpush2.msra.mxu0 0.0
    %3168 = vmatprep.subr.mxu0 0.0
    %3169 = vmatpush2.msra.mxu0 0.0
    %3170 = vmatprep.subr.mxu0 0.0
    %3171 = vmatpush2.msra.mxu0 0.0
    %3172 = vmatprep.subr.mxu0 0.0
    %3173 = vmatpush2.msra.mxu0 0.0
    %3174 = vmatprep.subr.mxu0 0.0
    %3175 = vmatpush2.msra.mxu0 0.0
    %3176 = vmatprep.subr.mxu0 0.0
    %3177 = vmatpush2.msra.mxu0 0.0
    %3178 = vmatprep.subr.mxu0 0.0
    %3179 = vmatpush2.msra.mxu0 0.0
    %3180 = vmatprep.subr.mxu0 0.0
    %3181 = vmatpush2.msra.mxu0 0.0
    %3182 = vmatprep.subr.mxu0 0.0
    %3183 = vmatpush2.msra.mxu0 0.0
    %3184 = vmatprep.subr.mxu0 0.0
    %3185 = vmatpush2.msra.mxu0 0.0
    %3186 = vmatprep.subr.mxu0 0.0
    %3187 = vmatpush2.msra.mxu0 0.0
    %3188 = vmatprep.subr.mxu0 0.0
    %3189 = vmatpush2.msra.mxu0 0.0
    %3190 = vmatprep.subr.mxu0 0.0
    %3191 = vmatpush2.msra.mxu0 0.0
    %3192 = vmatprep.mubr.f32.mxu0 0.0
    %3193 = vmatmul.mubr.f32.gmra.mxu0 %v3126
    %v3194 = vpop.f32.mrf.mxu0
    %v3195 = vadd.f32 %v2727, %v3194
    %v3196 = vpop.f32.mrf.mxu0
    %3197 = vdwg.mxu0
    %v3199 = vsel %vm1397, %v2888, 0
    %3201 = vmatprep.subr.mxu0 0.0
    %3202 = vmatpush1.msra.mxu0 0.0
    %3203 = vmatprep.subr.mxu0 0.0
    %3204 = vmatpush1.msra.mxu0 0.0
    %3205 = vmatprep.subr.mxu0 0.0
    %3206 = vmatpush1.msra.mxu0 0.0
    %3207 = vmatprep.subr.mxu0 0.0
    %3208 = vmatpush1.msra.mxu0 0.0
    %3209 = vmatprep.subr.mxu0 0.0
    %3210 = vmatpush1.msra.mxu0 0.0
    %3211 = vmatprep.subr.mxu0 0.0
    %3212 = vmatpush1.msra.mxu0 0.0
    %3213 = vmatprep.subr.mxu0 0.0
    %3214 = vmatpush1.msra.mxu0 0.0
    %3215 = vmatprep.subr.mxu0 0.0
    %3216 = vmatpush1.msra.mxu0 0.0
    %3217 = vmatprep.subr.mxu0 0.0
    %3218 = vmatpush1.msra.mxu0 0.0
    %3219 = vmatprep.subr.mxu0 0.0
    %3220 = vmatpush1.msra.mxu0 0.0
    %3221 = vmatprep.subr.mxu0 0.0
    %3222 = vmatpush1.msra.mxu0 0.0
    %3223 = vmatprep.subr.mxu0 0.0
    %3224 = vmatpush1.msra.mxu0 0.0
    %3225 = vmatprep.subr.mxu0 0.0
    %3226 = vmatpush1.msra.mxu0 0.0
    %3227 = vmatprep.subr.mxu0 0.0
    %3228 = vmatpush1.msra.mxu0 0.0
    %3229 = vmatprep.subr.mxu0 0.0
    %3230 = vmatpush1.msra.mxu0 0.0
    %3231 = vmatprep.subr.mxu0 0.0
    %3232 = vmatpush1.msra.mxu0 %v1130
    %3233 = vmatprep.subr.mxu0 0.0
    %3234 = vmatpush2.msra.mxu0 0.0
    %3235 = vmatprep.subr.mxu0 0.0
    %3236 = vmatpush2.msra.mxu0 0.0
    %3237 = vmatprep.subr.mxu0 0.0
    %3238 = vmatpush2.msra.mxu0 0.0
    %3239 = vmatprep.subr.mxu0 0.0
    %3240 = vmatpush2.msra.mxu0 0.0
    %3241 = vmatprep.subr.mxu0 0.0
    %3242 = vmatpush2.msra.mxu0 0.0
    %3243 = vmatprep.subr.mxu0 0.0
    %3244 = vmatpush2.msra.mxu0 0.0
    %3245 = vmatprep.subr.mxu0 0.0
    %3246 = vmatpush2.msra.mxu0 0.0
    %3247 = vmatprep.subr.mxu0 0.0
    %3248 = vmatpush2.msra.mxu0 0.0
    %3249 = vmatprep.subr.mxu0 0.0
    %3250 = vmatpush2.msra.mxu0 0.0
    %3251 = vmatprep.subr.mxu0 0.0
    %3252 = vmatpush2.msra.mxu0 0.0
    %3253 = vmatprep.subr.mxu0 0.0
    %3254 = vmatpush2.msra.mxu0 0.0
    %3255 = vmatprep.subr.mxu0 0.0
    %3256 = vmatpush2.msra.mxu0 0.0
    %3257 = vmatprep.subr.mxu0 0.0
    %3258 = vmatpush2.msra.mxu0 0.0
    %3259 = vmatprep.subr.mxu0 0.0
    %3260 = vmatpush2.msra.mxu0 0.0
    %3261 = vmatprep.subr.mxu0 0.0
    %3262 = vmatpush2.msra.mxu0 0.0
    %3263 = vmatprep.subr.mxu0 0.0
    %3264 = vmatpush2.msra.mxu0 0.0
    %3265 = vmatprep.mubr.f32.mxu0 0.0
    %3266 = vmatmul.mubr.f32.gmra.mxu0 %v3199
    %v3267 = vpop.f32.mrf.mxu0
    %v3268 = vadd.f32 %v3122, %v3267
    %v3269 = vpop.f32.mrf.mxu0
    %3270 = vdwg.mxu0
    %v3271 = vadd.f32 %v3195, %v3268
    %v3272 = vadd.f32 %v280, %v2334
    %v3273 = vadd.f32 %v285, %v3271
    %v3274 = vld [vmem:[%s47] sm:$0x1]
    %v3276 = vlaneseq
    %v3277 = vshrl.u32 %v3276, 7
    %v3278 = vsub.s32 0, %v3277
    %v3279 = vrot.slane %v3274, %v3278
    %v3281 = vadd.f32 %v3272, %v3279
    %v3282 = vadd.f32 %v3273, %v3279
    %v3283 = vld [vmem:[%s45] sm:$0x1]
    %v3284 = vld [vmem:[%s43] sm:$0x1]
    %v3285 = vsel %vm290, %v3281, 0.0
    %3286 = vadd.xlane.f32.xlu0 %v3285
    %v3287 = vpop.xlane.xlu0 %3286
    %v3288 = vsel %vm290, %v3282, 0.0
    %3289 = vadd.xlane.f32.xlu0 %v3288
    %v3290 = vpop.xlane.xlu0 %3289
    %v3291 = vmul.f32 %v3287, %v297
    %v3292 = vmul.f32 %v3290, %v297
    %v3293 = vsub.f32 %v3281, %v3291
    %v3294 = vsub.f32 %v3282, %v3292
    %v3295 = vmul.f32 %v3293, %v3293
    %v3296 = vmul.f32 %v3294, %v3294
    %v3297 = vsel %vm290, %v3295, 0.0
    %3298 = vadd.xlane.f32.xlu0 %v3297
    %v3299 = vpop.xlane.xlu0 %3298
    %v3300 = vsel %vm290, %v3296, 0.0
    %3301 = vadd.xlane.f32.xlu0 %v3300
    %v3302 = vpop.xlane.xlu0 %3301
    %v3303 = vmul.f32 %v3299, %v297
    %v3304 = vmul.f32 %v3302, %v297
    %v3305 = vadd.f32 %v3303, 1e-05
    %v3306 = vadd.f32 %v3304, 1e-05
    %v3307 = vrsqrt.pop %v3305
    %v3308 = vrsqrt.pop %v3306
    %v3309 = vmul.f32 %v3293, %v3307
    %v3310 = vmul.f32 %v3294, %v3308
    %v3312 = vlaneseq
    %v3313 = vshrl.u32 %v3312, 7
    %v3314 = vsub.s32 0, %v3313
    %v3315 = vrot.slane %v3283, %v3314
    %v3317 = vmul.f32 %v3309, %v3315
    %v3318 = vmul.f32 %v3310, %v3315
    %v3320 = vlaneseq
    %v3321 = vshrl.u32 %v3320, 7
    %v3322 = vsub.s32 0, %v3321
    %v3323 = vrot.slane %v3284, %v3322
    %v3325 = vadd.f32 %v3317, %v3323
    %v3326 = vadd.f32 %v3318, %v3323
    %v3327 = vld [vmem:[%s29] sm:$0xff]
    %v3328 = vld [vmem:[%s29 + $0x8] sm:$0xff]
    %v3329 = vld [vmem:[%s29 + $0x10] sm:$0xff]
    %v3330 = vld [vmem:[%s29 + $0x18] sm:$0xff]
    %v3331 = vld [vmem:[%s27] sm:$0x1]
    %v3333 = vlaneseq
    %v3334 = vshrl.u32 %v3333, 7
    %v3335 = vsub.s32 0, %v3334
    %v3336 = vrot.slane %v3331, %v3335
    %v3339 = vsel %vm290, %v3325, 0
    %v3342 = vsel %vm290, %v3326, 0
    %3344 = vmatprep.subr.mxu0 0.0
    %3345 = vmatpush1.msra.mxu0 0.0
    %3346 = vmatprep.subr.mxu0 0.0
    %3347 = vmatpush1.msra.mxu0 0.0
    %3348 = vmatprep.subr.mxu0 0.0
    %3349 = vmatpush1.msra.mxu0 0.0
    %3350 = vmatprep.subr.mxu0 0.0
    %3351 = vmatpush1.msra.mxu0 0.0
    %3352 = vmatprep.subr.mxu0 0.0
    %3353 = vmatpush1.msra.mxu0 0.0
    %3354 = vmatprep.subr.mxu0 0.0
    %3355 = vmatpush1.msra.mxu0 0.0
    %3356 = vmatprep.subr.mxu0 0.0
    %3357 = vmatpush1.msra.mxu0 0.0
    %3358 = vmatprep.subr.mxu0 0.0
    %3359 = vmatpush1.msra.mxu0 0.0
    %3360 = vmatprep.subr.mxu0 0.0
    %3361 = vmatpush1.msra.mxu0 0.0
    %3362 = vmatprep.subr.mxu0 0.0
    %3363 = vmatpush1.msra.mxu0 0.0
    %3364 = vmatprep.subr.mxu0 0.0
    %3365 = vmatpush1.msra.mxu0 0.0
    %3366 = vmatprep.subr.mxu0 0.0
    %3367 = vmatpush1.msra.mxu0 0.0
    %3368 = vmatprep.subr.mxu0 0.0
    %3369 = vmatpush1.msra.mxu0 %v3330
    %3370 = vmatprep.subr.mxu0 0.0
    %3371 = vmatpush1.msra.mxu0 %v3329
    %3372 = vmatprep.subr.mxu0 0.0
    %3373 = vmatpush1.msra.mxu0 %v3328
    %3374 = vmatprep.subr.mxu0 0.0
    %3375 = vmatpush1.msra.mxu0 %v3327
    %3376 = vmatprep.subr.mxu0 0.0
    %3377 = vmatpush2.msra.mxu0 0.0
    %3378 = vmatprep.subr.mxu0 0.0
    %3379 = vmatpush2.msra.mxu0 0.0
    %3380 = vmatprep.subr.mxu0 0.0
    %3381 = vmatpush2.msra.mxu0 0.0
    %3382 = vmatprep.subr.mxu0 0.0
    %3383 = vmatpush2.msra.mxu0 0.0
    %3384 = vmatprep.subr.mxu0 0.0
    %3385 = vmatpush2.msra.mxu0 0.0
    %3386 = vmatprep.subr.mxu0 0.0
    %3387 = vmatpush2.msra.mxu0 0.0
    %3388 = vmatprep.subr.mxu0 0.0
    %3389 = vmatpush2.msra.mxu0 0.0
    %3390 = vmatprep.subr.mxu0 0.0
    %3391 = vmatpush2.msra.mxu0 0.0
    %3392 = vmatprep.subr.mxu0 0.0
    %3393 = vmatpush2.msra.mxu0 0.0
    %3394 = vmatprep.subr.mxu0 0.0
    %3395 = vmatpush2.msra.mxu0 0.0
    %3396 = vmatprep.subr.mxu0 0.0
    %3397 = vmatpush2.msra.mxu0 0.0
    %3398 = vmatprep.subr.mxu0 0.0
    %3399 = vmatpush2.msra.mxu0 0.0
    %3400 = vmatprep.subr.mxu0 0.0
    %3401 = vmatpush2.msra.mxu0 0.0
    %3402 = vmatprep.subr.mxu0 0.0
    %3403 = vmatpush2.msra.mxu0 0.0
    %3404 = vmatprep.subr.mxu0 0.0
    %3405 = vmatpush2.msra.mxu0 0.0
    %3406 = vmatprep.subr.mxu0 0.0
    %3407 = vmatpush2.msra.mxu0 0.0
    %3408 = vmatprep.mubr.f32.mxu0 0.0
    %3409 = vmatmul.mubr.f32.gmra.mxu0 %v3339
    %v3410 = vpop.f32.mrf.mxu0
    %v3411 = vadd.f32 %v3336, %v3410
    %v3412 = vpop.f32.mrf.mxu0
    %3413 = vmatprep.mubr.f32.mxu0 0.0
    %3414 = vmatmul.mubr.f32.gmra.mxu0 %v3342
    %v3415 = vpop.f32.mrf.mxu0
    %v3416 = vadd.f32 %v3336, %v3415
    %v3417 = vpop.f32.mrf.mxu0
    %3418 = vdwg.mxu0
    %v3419 = vmul.f32 %v3411, 0.70710677
    %v3420 = vmul.f32 %v3416, 0.70710677
    %v3421 = vand.u32 2147483647, %v3419
    %v3422 = vand.u32 2147483647, %v3420
    %v3423 = vmul.f32 %v3421, 0.3275911
    %v3424 = vmul.f32 %v3422, 0.3275911
    %v3425 = vadd.f32 %v3423, 1.0
    %v3426 = vadd.f32 %v3424, 1.0
    %v3427 = vrcp.pop %v3425
    %v3428 = vmul.f32 1.0, %v3427
    %v3429 = vrcp.pop %v3426
    %v3430 = vmul.f32 1.0, %v3429
    %v3431 = vmul.f32 %v3428, 1.0614054
    %v3432 = vmul.f32 %v3430, 1.0614054
    %v3433 = vadd.f32 %v3431, -1.4531521
    %v3434 = vadd.f32 %v3432, -1.4531521
    %v3435 = vmul.f32 %v3433, %v3428
    %v3436 = vmul.f32 %v3434, %v3430
    %v3437 = vadd.f32 %v3435, 1.4214138
    %v3438 = vadd.f32 %v3436, 1.4214138
    %v3439 = vmul.f32 %v3437, %v3428
    %v3440 = vmul.f32 %v3438, %v3430
    %v3441 = vadd.f32 %v3439, -0.28449672
    %v3442 = vadd.f32 %v3440, -0.28449672
    %v3443 = vmul.f32 %v3441, %v3428
    %v3444 = vmul.f32 %v3442, %v3430
    %v3445 = vadd.f32 %v3443, 0.2548296
    %v3446 = vadd.f32 %v3444, 0.2548296
    %v3447 = vmul.f32 %v3445, %v3428
    %v3448 = vmul.f32 %v3446, %v3430
    %v3449 = vsub.f32 0.0, %v3421
    %v3450 = vsub.f32 0.0, %v3422
    %v3451 = vmul.f32 %v3449, %v3421
    %v3452 = vmul.f32 %v3450, %v3422
    %v3453 = vmul.f32 %v3451, 1.442695
    %v3454 = vpow.pop %v3453
    %v3455 = vmul.f32 %v3452, 1.442695
    %v3456 = vpow.pop %v3455
    %v3457 = vmul.f32 %v3447, %v3454
    %v3458 = vmul.f32 %v3448, %v3456
    %v3459 = vsub.f32 1.0, %v3457
    %v3460 = vsub.f32 1.0, %v3458
    %vm3461 = vcmp.ge.f32.partialorder %v3419, 0.0
    %vm3462 = vcmp.ge.f32.partialorder %v3420, 0.0
    %v3463 = vsub.f32 0.0, %v3459
    %v3464 = vsub.f32 0.0, %v3460
    %v3465 = vsel %vm3461, %v3459, %v3463
    %v3466 = vsel %vm3462, %v3460, %v3464
    %v3467 = vmul.f32 %v3411, 0.5
    %v3468 = vmul.f32 %v3416, 0.5
    %v3469 = vadd.f32 %v3465, 1.0
    %v3470 = vadd.f32 %v3466, 1.0
    %v3471 = vmul.f32 %v3467, %v3469
    %v3472 = vmul.f32 %v3468, %v3470
    %v3473 = vld [vmem:[%s33] sm:$0xff]
    %v3474 = vld [vmem:[%s33 + $0x8] sm:$0xff]
    %v3475 = vld [vmem:[%s33 + $0x10] sm:$0xff]
    %v3476 = vld [vmem:[%s33 + $0x18] sm:$0xff]
    %v3477 = vld [vmem:[%s33 + $0x20] sm:$0xff]
    %v3478 = vld [vmem:[%s33 + $0x28] sm:$0xff]
    %v3479 = vld [vmem:[%s33 + $0x30] sm:$0xff]
    %v3480 = vld [vmem:[%s33 + $0x38] sm:$0xff]
    %vm3481 = vcmask 523264
    %v3483 = vsel %vm3481, %v3471, 0
    %v3486 = vsel %vm3481, %v3472, 0
    %3488 = vmatprep.subr.mxu0 0.0
    %3489 = vmatpush1.msra.mxu0 0.0
    %3490 = vmatprep.subr.mxu0 0.0
    %3491 = vmatpush1.msra.mxu0 0.0
    %3492 = vmatprep.subr.mxu0 0.0
    %3493 = vmatpush1.msra.mxu0 0.0
    %3494 = vmatprep.subr.mxu0 0.0
    %3495 = vmatpush1.msra.mxu0 0.0
    %3496 = vmatprep.subr.mxu0 0.0
    %3497 = vmatpush1.msra.mxu0 0.0
    %3498 = vmatprep.subr.mxu0 0.0
    %3499 = vmatpush1.msra.mxu0 0.0
    %3500 = vmatprep.subr.mxu0 0.0
    %3501 = vmatpush1.msra.mxu0 0.0
    %3502 = vmatprep.subr.mxu0 0.0
    %3503 = vmatpush1.msra.mxu0 0.0
    %3504 = vmatprep.subr.mxu0 0.0
    %3505 = vmatpush1.msra.mxu0 %v3480
    %3506 = vmatprep.subr.mxu0 0.0
    %3507 = vmatpush1.msra.mxu0 %v3479
    %3508 = vmatprep.subr.mxu0 0.0
    %3509 = vmatpush1.msra.mxu0 %v3478
    %3510 = vmatprep.subr.mxu0 0.0
    %3511 = vmatpush1.msra.mxu0 %v3477
    %3512 = vmatprep.subr.mxu0 0.0
    %3513 = vmatpush1.msra.mxu0 %v3476
    %3514 = vmatprep.subr.mxu0 0.0
    %3515 = vmatpush1.msra.mxu0 %v3475
    %3516 = vmatprep.subr.mxu0 0.0
    %3517 = vmatpush1.msra.mxu0 %v3474
    %3518 = vmatprep.subr.mxu0 0.0
    %3519 = vmatpush1.msra.mxu0 %v3473
    %3520 = vmatprep.subr.mxu0 0.0
    %3521 = vmatpush2.msra.mxu0 0.0
    %3522 = vmatprep.subr.mxu0 0.0
    %3523 = vmatpush2.msra.mxu0 0.0
    %3524 = vmatprep.subr.mxu0 0.0
    %3525 = vmatpush2.msra.mxu0 0.0
    %3526 = vmatprep.subr.mxu0 0.0
    %3527 = vmatpush2.msra.mxu0 0.0
    %3528 = vmatprep.subr.mxu0 0.0
    %3529 = vmatpush2.msra.mxu0 0.0
    %3530 = vmatprep.subr.mxu0 0.0
    %3531 = vmatpush2.msra.mxu0 0.0
    %3532 = vmatprep.subr.mxu0 0.0
    %3533 = vmatpush2.msra.mxu0 0.0
    %3534 = vmatprep.subr.mxu0 0.0
    %3535 = vmatpush2.msra.mxu0 0.0
    %3536 = vmatprep.subr.mxu0 0.0
    %3537 = vmatpush2.msra.mxu0 0.0
    %3538 = vmatprep.subr.mxu0 0.0
    %3539 = vmatpush2.msra.mxu0 0.0
    %3540 = vmatprep.subr.mxu0 0.0
    %3541 = vmatpush2.msra.mxu0 0.0
    %3542 = vmatprep.subr.mxu0 0.0
    %3543 = vmatpush2.msra.mxu0 0.0
    %3544 = vmatprep.subr.mxu0 0.0
    %3545 = vmatpush2.msra.mxu0 0.0
    %3546 = vmatprep.subr.mxu0 0.0
    %3547 = vmatpush2.msra.mxu0 0.0
    %3548 = vmatprep.subr.mxu0 0.0
    %3549 = vmatpush2.msra.mxu0 0.0
    %3550 = vmatprep.subr.mxu0 0.0
    %3551 = vmatpush2.msra.mxu0 0.0
    %3552 = vmatprep.mubr.f32.mxu0 0.0
    %3553 = vmatmul.mubr.f32.gmra.mxu0 %v3483
    %v3554 = vpop.f32.mrf.mxu0
    %v3555 = vadd.f32 0.0, %v3554
    %v3556 = vpop.f32.mrf.mxu0
    %3557 = vmatprep.mubr.f32.mxu0 0.0
    %3558 = vmatmul.mubr.f32.gmra.mxu0 %v3486
    %v3559 = vpop.f32.mrf.mxu0
    %v3560 = vadd.f32 0.0, %v3559
    %v3561 = vpop.f32.mrf.mxu0
    %3562 = vdwg.mxu0
    %v3563 = vadd.f32 %v3281, %v3555
    %v3564 = vadd.f32 %v3282, %v3560
    %v3565 = vld [vmem:[%s31] sm:$0x1]
    %v3567 = vlaneseq
    %v3568 = vshrl.u32 %v3567, 7
    %v3569 = vsub.s32 0, %v3568
    %v3570 = vrot.slane %v3565, %v3569
    %v3572 = vadd.f32 %v3563, %v3570
    %v3573 = vadd.f32 %v3564, %v3570
    %v3574 = vld [vmem:[%s73] sm:$0x1]
    %v3575 = vld [vmem:[%s71] sm:$0x1]
    %v3576 = vsel %vm290, %v3572, 0.0
    %3577 = vadd.xlane.f32.xlu0 %v3576
    %v3578 = vpop.xlane.xlu0 %3577
    %v3579 = vsel %vm290, %v3573, 0.0
    %3580 = vadd.xlane.f32.xlu0 %v3579
    %v3581 = vpop.xlane.xlu0 %3580
    %v3582 = vmul.f32 %v3578, %v297
    %v3583 = vmul.f32 %v3581, %v297
    %v3584 = vsub.f32 %v3572, %v3582
    %v3585 = vsub.f32 %v3573, %v3583
    %v3586 = vmul.f32 %v3584, %v3584
    %v3587 = vmul.f32 %v3585, %v3585
    %v3588 = vsel %vm290, %v3586, 0.0
    %3589 = vadd.xlane.f32.xlu0 %v3588
    %v3590 = vpop.xlane.xlu0 %3589
    %v3591 = vsel %vm290, %v3587, 0.0
    %3592 = vadd.xlane.f32.xlu0 %v3591
    %v3593 = vpop.xlane.xlu0 %3592
    %v3594 = vmul.f32 %v3590, %v297
    %v3595 = vmul.f32 %v3593, %v297
    %v3596 = vadd.f32 %v3594, 1e-05
    %v3597 = vadd.f32 %v3595, 1e-05
    %v3598 = vrsqrt.pop %v3596
    %v3599 = vrsqrt.pop %v3597
    %v3600 = vmul.f32 %v3584, %v3598
    %v3601 = vmul.f32 %v3585, %v3599
    %v3603 = vlaneseq
    %v3604 = vshrl.u32 %v3603, 7
    %v3605 = vsub.s32 0, %v3604
    %v3606 = vrot.slane %v3574, %v3605
    %v3608 = vmul.f32 %v3600, %v3606
    %v3609 = vmul.f32 %v3601, %v3606
    %v3611 = vlaneseq
    %v3612 = vshrl.u32 %v3611, 7
    %v3613 = vsub.s32 0, %v3612
    %v3614 = vrot.slane %v3575, %v3613
    %v3616 = vadd.f32 %v3608, %v3614
    %v3617 = vadd.f32 %v3609, %v3614
    %v3618 = vld [vmem:[%s85] sm:$0xff]
    %v3619 = vld [vmem:[%s85 + $0x8] sm:$0xff]
    %v3620 = vld [vmem:[%s85 + $0x10] sm:$0xff]
    %v3621 = vld [vmem:[%s85 + $0x18] sm:$0xff]
    %v3622 = vld [vmem:[%s83] sm:$0x1]
    %v3624 = vlaneseq
    %v3625 = vshrl.u32 %v3624, 7
    %v3626 = vsub.s32 0, %v3625
    %v3627 = vrot.slane %v3622, %v3626
    %v3630 = vsel %vm290, %v3616, 0
    %v3633 = vsel %vm290, %v3617, 0
    %3635 = vmatprep.subr.mxu0 0.0
    %3636 = vmatpush1.msra.mxu0 0.0
    %3637 = vmatprep.subr.mxu0 0.0
    %3638 = vmatpush1.msra.mxu0 0.0
    %3639 = vmatprep.subr.mxu0 0.0
    %3640 = vmatpush1.msra.mxu0 0.0
    %3641 = vmatprep.subr.mxu0 0.0
    %3642 = vmatpush1.msra.mxu0 0.0
    %3643 = vmatprep.subr.mxu0 0.0
    %3644 = vmatpush1.msra.mxu0 0.0
    %3645 = vmatprep.subr.mxu0 0.0
    %3646 = vmatpush1.msra.mxu0 0.0
    %3647 = vmatprep.subr.mxu0 0.0
    %3648 = vmatpush1.msra.mxu0 0.0
    %3649 = vmatprep.subr.mxu0 0.0
    %3650 = vmatpush1.msra.mxu0 0.0
    %3651 = vmatprep.subr.mxu0 0.0
    %3652 = vmatpush1.msra.mxu0 0.0
    %3653 = vmatprep.subr.mxu0 0.0
    %3654 = vmatpush1.msra.mxu0 0.0
    %3655 = vmatprep.subr.mxu0 0.0
    %3656 = vmatpush1.msra.mxu0 0.0
    %3657 = vmatprep.subr.mxu0 0.0
    %3658 = vmatpush1.msra.mxu0 0.0
    %3659 = vmatprep.subr.mxu0 0.0
    %3660 = vmatpush1.msra.mxu0 %v3621
    %3661 = vmatprep.subr.mxu0 0.0
    %3662 = vmatpush1.msra.mxu0 %v3620
    %3663 = vmatprep.subr.mxu0 0.0
    %3664 = vmatpush1.msra.mxu0 %v3619
    %3665 = vmatprep.subr.mxu0 0.0
    %3666 = vmatpush1.msra.mxu0 %v3618
    %3667 = vmatprep.subr.mxu0 0.0
    %3668 = vmatpush2.msra.mxu0 0.0
    %3669 = vmatprep.subr.mxu0 0.0
    %3670 = vmatpush2.msra.mxu0 0.0
    %3671 = vmatprep.subr.mxu0 0.0
    %3672 = vmatpush2.msra.mxu0 0.0
    %3673 = vmatprep.subr.mxu0 0.0
    %3674 = vmatpush2.msra.mxu0 0.0
    %3675 = vmatprep.subr.mxu0 0.0
    %3676 = vmatpush2.msra.mxu0 0.0
    %3677 = vmatprep.subr.mxu0 0.0
    %3678 = vmatpush2.msra.mxu0 0.0
    %3679 = vmatprep.subr.mxu0 0.0
    %3680 = vmatpush2.msra.mxu0 0.0
    %3681 = vmatprep.subr.mxu0 0.0
    %3682 = vmatpush2.msra.mxu0 0.0
    %3683 = vmatprep.subr.mxu0 0.0
    %3684 = vmatpush2.msra.mxu0 0.0
    %3685 = vmatprep.subr.mxu0 0.0
    %3686 = vmatpush2.msra.mxu0 0.0
    %3687 = vmatprep.subr.mxu0 0.0
    %3688 = vmatpush2.msra.mxu0 0.0
    %3689 = vmatprep.subr.mxu0 0.0
    %3690 = vmatpush2.msra.mxu0 0.0
    %3691 = vmatprep.subr.mxu0 0.0
    %3692 = vmatpush2.msra.mxu0 0.0
    %3693 = vmatprep.subr.mxu0 0.0
    %3694 = vmatpush2.msra.mxu0 0.0
    %3695 = vmatprep.subr.mxu0 0.0
    %3696 = vmatpush2.msra.mxu0 0.0
    %3697 = vmatprep.subr.mxu0 0.0
    %3698 = vmatpush2.msra.mxu0 0.0
    %3699 = vmatprep.mubr.f32.mxu0 0.0
    %3700 = vmatmul.mubr.f32.gmra.mxu0 %v3630
    %v3701 = vpop.f32.mrf.mxu0
    %v3702 = vadd.f32 %v3627, %v3701
    %v3703 = vpop.f32.mrf.mxu0
    %3704 = vmatprep.mubr.f32.mxu0 0.0
    %3705 = vmatmul.mubr.f32.gmra.mxu0 %v3633
    %v3706 = vpop.f32.mrf.mxu0
    %v3707 = vadd.f32 %v3627, %v3706
    %v3708 = vpop.f32.mrf.mxu0
    %3709 = vdwg.mxu0
    %v3710 = vld [vmem:[%s69] sm:$0xff]
    %v3711 = vld [vmem:[%s69 + $0x8] sm:$0xff]
    %v3712 = vld [vmem:[%s69 + $0x10] sm:$0xff]
    %v3713 = vld [vmem:[%s69 + $0x18] sm:$0xff]
    %v3714 = vld [vmem:[%s67] sm:$0x1]
    %v3716 = vlaneseq
    %v3717 = vshrl.u32 %v3716, 7
    %v3718 = vsub.s32 0, %v3717
    %v3719 = vrot.slane %v3714, %v3718
    %3721 = vmatprep.subr.mxu0 0.0
    %3722 = vmatpush1.msra.mxu0 0.0
    %3723 = vmatprep.subr.mxu0 0.0
    %3724 = vmatpush1.msra.mxu0 0.0
    %3725 = vmatprep.subr.mxu0 0.0
    %3726 = vmatpush1.msra.mxu0 0.0
    %3727 = vmatprep.subr.mxu0 0.0
    %3728 = vmatpush1.msra.mxu0 0.0
    %3729 = vmatprep.subr.mxu0 0.0
    %3730 = vmatpush1.msra.mxu0 0.0
    %3731 = vmatprep.subr.mxu0 0.0
    %3732 = vmatpush1.msra.mxu0 0.0
    %3733 = vmatprep.subr.mxu0 0.0
    %3734 = vmatpush1.msra.mxu0 0.0
    %3735 = vmatprep.subr.mxu0 0.0
    %3736 = vmatpush1.msra.mxu0 0.0
    %3737 = vmatprep.subr.mxu0 0.0
    %3738 = vmatpush1.msra.mxu0 0.0
    %3739 = vmatprep.subr.mxu0 0.0
    %3740 = vmatpush1.msra.mxu0 0.0
    %3741 = vmatprep.subr.mxu0 0.0
    %3742 = vmatpush1.msra.mxu0 0.0
    %3743 = vmatprep.subr.mxu0 0.0
    %3744 = vmatpush1.msra.mxu0 0.0
    %3745 = vmatprep.subr.mxu0 0.0
    %3746 = vmatpush1.msra.mxu0 %v3713
    %3747 = vmatprep.subr.mxu0 0.0
    %3748 = vmatpush1.msra.mxu0 %v3712
    %3749 = vmatprep.subr.mxu0 0.0
    %3750 = vmatpush1.msra.mxu0 %v3711
    %3751 = vmatprep.subr.mxu0 0.0
    %3752 = vmatpush1.msra.mxu0 %v3710
    %3753 = vmatprep.subr.mxu0 0.0
    %3754 = vmatpush2.msra.mxu0 0.0
    %3755 = vmatprep.subr.mxu0 0.0
    %3756 = vmatpush2.msra.mxu0 0.0
    %3757 = vmatprep.subr.mxu0 0.0
    %3758 = vmatpush2.msra.mxu0 0.0
    %3759 = vmatprep.subr.mxu0 0.0
    %3760 = vmatpush2.msra.mxu0 0.0
    %3761 = vmatprep.subr.mxu0 0.0
    %3762 = vmatpush2.msra.mxu0 0.0
    %3763 = vmatprep.subr.mxu0 0.0
    %3764 = vmatpush2.msra.mxu0 0.0
    %3765 = vmatprep.subr.mxu0 0.0
    %3766 = vmatpush2.msra.mxu0 0.0
    %3767 = vmatprep.subr.mxu0 0.0
    %3768 = vmatpush2.msra.mxu0 0.0
    %3769 = vmatprep.subr.mxu0 0.0
    %3770 = vmatpush2.msra.mxu0 0.0
    %3771 = vmatprep.subr.mxu0 0.0
    %3772 = vmatpush2.msra.mxu0 0.0
    %3773 = vmatprep.subr.mxu0 0.0
    %3774 = vmatpush2.msra.mxu0 0.0
    %3775 = vmatprep.subr.mxu0 0.0
    %3776 = vmatpush2.msra.mxu0 0.0
    %3777 = vmatprep.subr.mxu0 0.0
    %3778 = vmatpush2.msra.mxu0 0.0
    %3779 = vmatprep.subr.mxu0 0.0
    %3780 = vmatpush2.msra.mxu0 0.0
    %3781 = vmatprep.subr.mxu0 0.0
    %3782 = vmatpush2.msra.mxu0 0.0
    %3783 = vmatprep.subr.mxu0 0.0
    %3784 = vmatpush2.msra.mxu0 0.0
    %3785 = vmatprep.mubr.f32.mxu0 0.0
    %3786 = vmatmul.mubr.f32.gmra.mxu0 %v3630
    %v3787 = vpop.f32.mrf.mxu0
    %v3788 = vadd.f32 %v3719, %v3787
    %v3789 = vpop.f32.mrf.mxu0
    %3790 = vmatprep.mubr.f32.mxu0 0.0
    %3791 = vmatmul.mubr.f32.gmra.mxu0 %v3633
    %v3792 = vpop.f32.mrf.mxu0
    %v3793 = vadd.f32 %v3719, %v3792
    %v3794 = vpop.f32.mrf.mxu0
    %3795 = vdwg.mxu0
    %v3796 = vld [vmem:[%s89] sm:$0xff]
    %v3797 = vld [vmem:[%s89 + $0x8] sm:$0xff]
    %v3798 = vld [vmem:[%s89 + $0x10] sm:$0xff]
    %v3799 = vld [vmem:[%s89 + $0x18] sm:$0xff]
    %v3800 = vld [vmem:[%s87] sm:$0x1]
    %v3802 = vlaneseq
    %v3803 = vshrl.u32 %v3802, 7
    %v3804 = vsub.s32 0, %v3803
    %v3805 = vrot.slane %v3800, %v3804
    %3807 = vmatprep.subr.mxu0 0.0
    %3808 = vmatpush1.msra.mxu0 0.0
    %3809 = vmatprep.subr.mxu0 0.0
    %3810 = vmatpush1.msra.mxu0 0.0
    %3811 = vmatprep.subr.mxu0 0.0
    %3812 = vmatpush1.msra.mxu0 0.0
    %3813 = vmatprep.subr.mxu0 0.0
    %3814 = vmatpush1.msra.mxu0 0.0
    %3815 = vmatprep.subr.mxu0 0.0
    %3816 = vmatpush1.msra.mxu0 0.0
    %3817 = vmatprep.subr.mxu0 0.0
    %3818 = vmatpush1.msra.mxu0 0.0
    %3819 = vmatprep.subr.mxu0 0.0
    %3820 = vmatpush1.msra.mxu0 0.0
    %3821 = vmatprep.subr.mxu0 0.0
    %3822 = vmatpush1.msra.mxu0 0.0
    %3823 = vmatprep.subr.mxu0 0.0
    %3824 = vmatpush1.msra.mxu0 0.0
    %3825 = vmatprep.subr.mxu0 0.0
    %3826 = vmatpush1.msra.mxu0 0.0
    %3827 = vmatprep.subr.mxu0 0.0
    %3828 = vmatpush1.msra.mxu0 0.0
    %3829 = vmatprep.subr.mxu0 0.0
    %3830 = vmatpush1.msra.mxu0 0.0
    %3831 = vmatprep.subr.mxu0 0.0
    %3832 = vmatpush1.msra.mxu0 %v3799
    %3833 = vmatprep.subr.mxu0 0.0
    %3834 = vmatpush1.msra.mxu0 %v3798
    %3835 = vmatprep.subr.mxu0 0.0
    %3836 = vmatpush1.msra.mxu0 %v3797
    %3837 = vmatprep.subr.mxu0 0.0
    %3838 = vmatpush1.msra.mxu0 %v3796
    %3839 = vmatprep.subr.mxu0 0.0
    %3840 = vmatpush2.msra.mxu0 0.0
    %3841 = vmatprep.subr.mxu0 0.0
    %3842 = vmatpush2.msra.mxu0 0.0
    %3843 = vmatprep.subr.mxu0 0.0
    %3844 = vmatpush2.msra.mxu0 0.0
    %3845 = vmatprep.subr.mxu0 0.0
    %3846 = vmatpush2.msra.mxu0 0.0
    %3847 = vmatprep.subr.mxu0 0.0
    %3848 = vmatpush2.msra.mxu0 0.0
    %3849 = vmatprep.subr.mxu0 0.0
    %3850 = vmatpush2.msra.mxu0 0.0
    %3851 = vmatprep.subr.mxu0 0.0
    %3852 = vmatpush2.msra.mxu0 0.0
    %3853 = vmatprep.subr.mxu0 0.0
    %3854 = vmatpush2.msra.mxu0 0.0
    %3855 = vmatprep.subr.mxu0 0.0
    %3856 = vmatpush2.msra.mxu0 0.0
    %3857 = vmatprep.subr.mxu0 0.0
    %3858 = vmatpush2.msra.mxu0 0.0
    %3859 = vmatprep.subr.mxu0 0.0
    %3860 = vmatpush2.msra.mxu0 0.0
    %3861 = vmatprep.subr.mxu0 0.0
    %3862 = vmatpush2.msra.mxu0 0.0
    %3863 = vmatprep.subr.mxu0 0.0
    %3864 = vmatpush2.msra.mxu0 0.0
    %3865 = vmatprep.subr.mxu0 0.0
    %3866 = vmatpush2.msra.mxu0 0.0
    %3867 = vmatprep.subr.mxu0 0.0
    %3868 = vmatpush2.msra.mxu0 0.0
    %3869 = vmatprep.subr.mxu0 0.0
    %3870 = vmatpush2.msra.mxu0 0.0
    %3871 = vmatprep.mubr.f32.mxu0 0.0
    %3872 = vmatmul.mubr.f32.gmra.mxu0 %v3630
    %v3873 = vpop.f32.mrf.mxu0
    %v3874 = vadd.f32 %v3805, %v3873
    %v3875 = vpop.f32.mrf.mxu0
    %3876 = vmatprep.mubr.f32.mxu0 0.0
    %3877 = vmatmul.mubr.f32.gmra.mxu0 %v3633
    %v3878 = vpop.f32.mrf.mxu0
    %v3879 = vadd.f32 %v3805, %v3878
    %v3880 = vpop.f32.mrf.mxu0
    %3881 = vdwg.mxu0
    %v3882 = vld [vmem:[%s81] sm:$0xff]
    %s3883 = scalar_lea.vmem %s85, 32
    %v3884 = vld [vmem:[%s3883] sm:$0xff]
    %v3885 = vld [vmem:[%s3883 + $0x8] sm:$0xff]
    %v3886 = vld [vmem:[%s3883 + $0x10] sm:$0xff]
    %v3887 = vld [vmem:[%s3883 + $0x18] sm:$0xff]
    %s3888 = scalar_lea.vmem %s83, 1
    %v3889 = vld [vmem:[%s3888] sm:$0x1]
    %v3891 = vlaneseq
    %v3892 = vshrl.u32 %v3891, 7
    %v3893 = vsub.s32 0, %v3892
    %v3894 = vrot.slane %v3889, %v3893
    %3896 = vmatprep.subr.mxu0 0.0
    %3897 = vmatpush1.msra.mxu0 0.0
    %3898 = vmatprep.subr.mxu0 0.0
    %3899 = vmatpush1.msra.mxu0 0.0
    %3900 = vmatprep.subr.mxu0 0.0
    %3901 = vmatpush1.msra.mxu0 0.0
    %3902 = vmatprep.subr.mxu0 0.0
    %3903 = vmatpush1.msra.mxu0 0.0
    %3904 = vmatprep.subr.mxu0 0.0
    %3905 = vmatpush1.msra.mxu0 0.0
    %3906 = vmatprep.subr.mxu0 0.0
    %3907 = vmatpush1.msra.mxu0 0.0
    %3908 = vmatprep.subr.mxu0 0.0
    %3909 = vmatpush1.msra.mxu0 0.0
    %3910 = vmatprep.subr.mxu0 0.0
    %3911 = vmatpush1.msra.mxu0 0.0
    %3912 = vmatprep.subr.mxu0 0.0
    %3913 = vmatpush1.msra.mxu0 0.0
    %3914 = vmatprep.subr.mxu0 0.0
    %3915 = vmatpush1.msra.mxu0 0.0
    %3916 = vmatprep.subr.mxu0 0.0
    %3917 = vmatpush1.msra.mxu0 0.0
    %3918 = vmatprep.subr.mxu0 0.0
    %3919 = vmatpush1.msra.mxu0 0.0
    %3920 = vmatprep.subr.mxu0 0.0
    %3921 = vmatpush1.msra.mxu0 %v3887
    %3922 = vmatprep.subr.mxu0 0.0
    %3923 = vmatpush1.msra.mxu0 %v3886
    %3924 = vmatprep.subr.mxu0 0.0
    %3925 = vmatpush1.msra.mxu0 %v3885
    %3926 = vmatprep.subr.mxu0 0.0
    %3927 = vmatpush1.msra.mxu0 %v3884
    %3928 = vmatprep.subr.mxu0 0.0
    %3929 = vmatpush2.msra.mxu0 0.0
    %3930 = vmatprep.subr.mxu0 0.0
    %3931 = vmatpush2.msra.mxu0 0.0
    %3932 = vmatprep.subr.mxu0 0.0
    %3933 = vmatpush2.msra.mxu0 0.0
    %3934 = vmatprep.subr.mxu0 0.0
    %3935 = vmatpush2.msra.mxu0 0.0
    %3936 = vmatprep.subr.mxu0 0.0
    %3937 = vmatpush2.msra.mxu0 0.0
    %3938 = vmatprep.subr.mxu0 0.0
    %3939 = vmatpush2.msra.mxu0 0.0
    %3940 = vmatprep.subr.mxu0 0.0
    %3941 = vmatpush2.msra.mxu0 0.0
    %3942 = vmatprep.subr.mxu0 0.0
    %3943 = vmatpush2.msra.mxu0 0.0
    %3944 = vmatprep.subr.mxu0 0.0
    %3945 = vmatpush2.msra.mxu0 0.0
    %3946 = vmatprep.subr.mxu0 0.0
    %3947 = vmatpush2.msra.mxu0 0.0
    %3948 = vmatprep.subr.mxu0 0.0
    %3949 = vmatpush2.msra.mxu0 0.0
    %3950 = vmatprep.subr.mxu0 0.0
    %3951 = vmatpush2.msra.mxu0 0.0
    %3952 = vmatprep.subr.mxu0 0.0
    %3953 = vmatpush2.msra.mxu0 0.0
    %3954 = vmatprep.subr.mxu0 0.0
    %3955 = vmatpush2.msra.mxu0 0.0
    %3956 = vmatprep.subr.mxu0 0.0
    %3957 = vmatpush2.msra.mxu0 0.0
    %3958 = vmatprep.subr.mxu0 0.0
    %3959 = vmatpush2.msra.mxu0 0.0
    %3960 = vmatprep.mubr.f32.mxu0 0.0
    %3961 = vmatmul.mubr.f32.gmra.mxu0 %v3630
    %v3962 = vpop.f32.mrf.mxu0
    %v3963 = vadd.f32 %v3894, %v3962
    %v3964 = vpop.f32.mrf.mxu0
    %3965 = vmatprep.mubr.f32.mxu0 0.0
    %3966 = vmatmul.mubr.f32.gmra.mxu0 %v3633
    %v3967 = vpop.f32.mrf.mxu0
    %v3968 = vadd.f32 %v3894, %v3967
    %v3969 = vpop.f32.mrf.mxu0
    %3970 = vdwg.mxu0
    %s3971 = scalar_lea.vmem %s69, 32
    %v3972 = vld [vmem:[%s3971] sm:$0xff]
    %v3973 = vld [vmem:[%s3971 + $0x8] sm:$0xff]
    %v3974 = vld [vmem:[%s3971 + $0x10] sm:$0xff]
    %v3975 = vld [vmem:[%s3971 + $0x18] sm:$0xff]
    %s3976 = scalar_lea.vmem %s67, 1
    %v3977 = vld [vmem:[%s3976] sm:$0x1]
    %v3979 = vlaneseq
    %v3980 = vshrl.u32 %v3979, 7
    %v3981 = vsub.s32 0, %v3980
    %v3982 = vrot.slane %v3977, %v3981
    %3984 = vmatprep.subr.mxu0 0.0
    %3985 = vmatpush1.msra.mxu0 0.0
    %3986 = vmatprep.subr.mxu0 0.0
    %3987 = vmatpush1.msra.mxu0 0.0
    %3988 = vmatprep.subr.mxu0 0.0
    %3989 = vmatpush1.msra.mxu0 0.0
    %3990 = vmatprep.subr.mxu0 0.0
    %3991 = vmatpush1.msra.mxu0 0.0
    %3992 = vmatprep.subr.mxu0 0.0
    %3993 = vmatpush1.msra.mxu0 0.0
    %3994 = vmatprep.subr.mxu0 0.0
    %3995 = vmatpush1.msra.mxu0 0.0
    %3996 = vmatprep.subr.mxu0 0.0
    %3997 = vmatpush1.msra.mxu0 0.0
    %3998 = vmatprep.subr.mxu0 0.0
    %3999 = vmatpush1.msra.mxu0 0.0
    %4000 = vmatprep.subr.mxu0 0.0
    %4001 = vmatpush1.msra.mxu0 0.0
    %4002 = vmatprep.subr.mxu0 0.0
    %4003 = vmatpush1.msra.mxu0 0.0
    %4004 = vmatprep.subr.mxu0 0.0
    %4005 = vmatpush1.msra.mxu0 0.0
    %4006 = vmatprep.subr.mxu0 0.0
    %4007 = vmatpush1.msra.mxu0 0.0
    %4008 = vmatprep.subr.mxu0 0.0
    %4009 = vmatpush1.msra.mxu0 %v3975
    %4010 = vmatprep.subr.mxu0 0.0
    %4011 = vmatpush1.msra.mxu0 %v3974
    %4012 = vmatprep.subr.mxu0 0.0
    %4013 = vmatpush1.msra.mxu0 %v3973
    %4014 = vmatprep.subr.mxu0 0.0
    %4015 = vmatpush1.msra.mxu0 %v3972
    %4016 = vmatprep.subr.mxu0 0.0
    %4017 = vmatpush2.msra.mxu0 0.0
    %4018 = vmatprep.subr.mxu0 0.0
    %4019 = vmatpush2.msra.mxu0 0.0
    %4020 = vmatprep.subr.mxu0 0.0
    %4021 = vmatpush2.msra.mxu0 0.0
    %4022 = vmatprep.subr.mxu0 0.0
    %4023 = vmatpush2.msra.mxu0 0.0
    %4024 = vmatprep.subr.mxu0 0.0
    %4025 = vmatpush2.msra.mxu0 0.0
    %4026 = vmatprep.subr.mxu0 0.0
    %4027 = vmatpush2.msra.mxu0 0.0
    %4028 = vmatprep.subr.mxu0 0.0
    %4029 = vmatpush2.msra.mxu0 0.0
    %4030 = vmatprep.subr.mxu0 0.0
    %4031 = vmatpush2.msra.mxu0 0.0
    %4032 = vmatprep.subr.mxu0 0.0
    %4033 = vmatpush2.msra.mxu0 0.0
    %4034 = vmatprep.subr.mxu0 0.0
    %4035 = vmatpush2.msra.mxu0 0.0
    %4036 = vmatprep.subr.mxu0 0.0
    %4037 = vmatpush2.msra.mxu0 0.0
    %4038 = vmatprep.subr.mxu0 0.0
    %4039 = vmatpush2.msra.mxu0 0.0
    %4040 = vmatprep.subr.mxu0 0.0
    %4041 = vmatpush2.msra.mxu0 0.0
    %4042 = vmatprep.subr.mxu0 0.0
    %4043 = vmatpush2.msra.mxu0 0.0
    %4044 = vmatprep.subr.mxu0 0.0
    %4045 = vmatpush2.msra.mxu0 0.0
    %4046 = vmatprep.subr.mxu0 0.0
    %4047 = vmatpush2.msra.mxu0 0.0
    %4048 = vmatprep.mubr.f32.mxu0 0.0
    %4049 = vmatmul.mubr.f32.gmra.mxu0 %v3630
    %v4050 = vpop.f32.mrf.mxu0
    %v4051 = vadd.f32 %v3982, %v4050
    %v4052 = vpop.f32.mrf.mxu0
    %4053 = vmatprep.mubr.f32.mxu0 0.0
    %4054 = vmatmul.mubr.f32.gmra.mxu0 %v3633
    %v4055 = vpop.f32.mrf.mxu0
    %v4056 = vadd.f32 %v3982, %v4055
    %v4057 = vpop.f32.mrf.mxu0
    %4058 = vdwg.mxu0
    %s4059 = scalar_lea.vmem %s89, 32
    %v4060 = vld [vmem:[%s4059] sm:$0xff]
    %v4061 = vld [vmem:[%s4059 + $0x8] sm:$0xff]
    %v4062 = vld [vmem:[%s4059 + $0x10] sm:$0xff]
    %v4063 = vld [vmem:[%s4059 + $0x18] sm:$0xff]
    %s4064 = scalar_lea.vmem %s87, 1
    %v4065 = vld [vmem:[%s4064] sm:$0x1]
    %v4067 = vlaneseq
    %v4068 = vshrl.u32 %v4067, 7
    %v4069 = vsub.s32 0, %v4068
    %v4070 = vrot.slane %v4065, %v4069
    %4072 = vmatprep.subr.mxu0 0.0
    %4073 = vmatpush1.msra.mxu0 0.0
    %4074 = vmatprep.subr.mxu0 0.0
    %4075 = vmatpush1.msra.mxu0 0.0
    %4076 = vmatprep.subr.mxu0 0.0
    %4077 = vmatpush1.msra.mxu0 0.0
    %4078 = vmatprep.subr.mxu0 0.0
    %4079 = vmatpush1.msra.mxu0 0.0
    %4080 = vmatprep.subr.mxu0 0.0
    %4081 = vmatpush1.msra.mxu0 0.0
    %4082 = vmatprep.subr.mxu0 0.0
    %4083 = vmatpush1.msra.mxu0 0.0
    %4084 = vmatprep.subr.mxu0 0.0
    %4085 = vmatpush1.msra.mxu0 0.0
    %4086 = vmatprep.subr.mxu0 0.0
    %4087 = vmatpush1.msra.mxu0 0.0
    %4088 = vmatprep.subr.mxu0 0.0
    %4089 = vmatpush1.msra.mxu0 0.0
    %4090 = vmatprep.subr.mxu0 0.0
    %4091 = vmatpush1.msra.mxu0 0.0
    %4092 = vmatprep.subr.mxu0 0.0
    %4093 = vmatpush1.msra.mxu0 0.0
    %4094 = vmatprep.subr.mxu0 0.0
    %4095 = vmatpush1.msra.mxu0 0.0
    %4096 = vmatprep.subr.mxu0 0.0
    %4097 = vmatpush1.msra.mxu0 %v4063
    %4098 = vmatprep.subr.mxu0 0.0
    %4099 = vmatpush1.msra.mxu0 %v4062
    %4100 = vmatprep.subr.mxu0 0.0
    %4101 = vmatpush1.msra.mxu0 %v4061
    %4102 = vmatprep.subr.mxu0 0.0
    %4103 = vmatpush1.msra.mxu0 %v4060
    %4104 = vmatprep.subr.mxu0 0.0
    %4105 = vmatpush2.msra.mxu0 0.0
    %4106 = vmatprep.subr.mxu0 0.0
    %4107 = vmatpush2.msra.mxu0 0.0
    %4108 = vmatprep.subr.mxu0 0.0
    %4109 = vmatpush2.msra.mxu0 0.0
    %4110 = vmatprep.subr.mxu0 0.0
    %4111 = vmatpush2.msra.mxu0 0.0
    %4112 = vmatprep.subr.mxu0 0.0
    %4113 = vmatpush2.msra.mxu0 0.0
    %4114 = vmatprep.subr.mxu0 0.0
    %4115 = vmatpush2.msra.mxu0 0.0
    %4116 = vmatprep.subr.mxu0 0.0
    %4117 = vmatpush2.msra.mxu0 0.0
    %4118 = vmatprep.subr.mxu0 0.0
    %4119 = vmatpush2.msra.mxu0 0.0
    %4120 = vmatprep.subr.mxu0 0.0
    %4121 = vmatpush2.msra.mxu0 0.0
    %4122 = vmatprep.subr.mxu0 0.0
    %4123 = vmatpush2.msra.mxu0 0.0
    %4124 = vmatprep.subr.mxu0 0.0
    %4125 = vmatpush2.msra.mxu0 0.0
    %4126 = vmatprep.subr.mxu0 0.0
    %4127 = vmatpush2.msra.mxu0 0.0
    %4128 = vmatprep.subr.mxu0 0.0
    %4129 = vmatpush2.msra.mxu0 0.0
    %4130 = vmatprep.subr.mxu0 0.0
    %4131 = vmatpush2.msra.mxu0 0.0
    %4132 = vmatprep.subr.mxu0 0.0
    %4133 = vmatpush2.msra.mxu0 0.0
    %4134 = vmatprep.subr.mxu0 0.0
    %4135 = vmatpush2.msra.mxu0 0.0
    %4136 = vmatprep.mubr.f32.mxu0 0.0
    %4137 = vmatmul.mubr.f32.gmra.mxu0 %v3630
    %v4138 = vpop.f32.mrf.mxu0
    %v4139 = vadd.f32 %v4070, %v4138
    %v4140 = vpop.f32.mrf.mxu0
    %4141 = vmatprep.mubr.f32.mxu0 0.0
    %4142 = vmatmul.mubr.f32.gmra.mxu0 %v3633
    %v4143 = vpop.f32.mrf.mxu0
    %v4144 = vadd.f32 %v4070, %v4143
    %v4145 = vpop.f32.mrf.mxu0
    %4146 = vdwg.mxu0
    %s4147 = scalar_lea.vmem %s81, 8
    %v4148 = vld [vmem:[%s4147] sm:$0xff]
    %s4149 = scalar_lea.vmem %s85, 64
    %v4150 = vld [vmem:[%s4149] sm:$0xff]
    %v4151 = vld [vmem:[%s4149 + $0x8] sm:$0xff]
    %v4152 = vld [vmem:[%s4149 + $0x10] sm:$0xff]
    %v4153 = vld [vmem:[%s4149 + $0x18] sm:$0xff]
    %s4154 = scalar_lea.vmem %s83, 2
    %v4155 = vld [vmem:[%s4154] sm:$0x1]
    %v4157 = vlaneseq
    %v4158 = vshrl.u32 %v4157, 7
    %v4159 = vsub.s32 0, %v4158
    %v4160 = vrot.slane %v4155, %v4159
    %4162 = vmatprep.subr.mxu0 0.0
    %4163 = vmatpush1.msra.mxu0 0.0
    %4164 = vmatprep.subr.mxu0 0.0
    %4165 = vmatpush1.msra.mxu0 0.0
    %4166 = vmatprep.subr.mxu0 0.0
    %4167 = vmatpush1.msra.mxu0 0.0
    %4168 = vmatprep.subr.mxu0 0.0
    %4169 = vmatpush1.msra.mxu0 0.0
    %4170 = vmatprep.subr.mxu0 0.0
    %4171 = vmatpush1.msra.mxu0 0.0
    %4172 = vmatprep.subr.mxu0 0.0
    %4173 = vmatpush1.msra.mxu0 0.0
    %4174 = vmatprep.subr.mxu0 0.0
    %4175 = vmatpush1.msra.mxu0 0.0
    %4176 = vmatprep.subr.mxu0 0.0
    %4177 = vmatpush1.msra.mxu0 0.0
    %4178 = vmatprep.subr.mxu0 0.0
    %4179 = vmatpush1.msra.mxu0 0.0
    %4180 = vmatprep.subr.mxu0 0.0
    %4181 = vmatpush1.msra.mxu0 0.0
    %4182 = vmatprep.subr.mxu0 0.0
    %4183 = vmatpush1.msra.mxu0 0.0
    %4184 = vmatprep.subr.mxu0 0.0
    %4185 = vmatpush1.msra.mxu0 0.0
    %4186 = vmatprep.subr.mxu0 0.0
    %4187 = vmatpush1.msra.mxu0 %v4153
    %4188 = vmatprep.subr.mxu0 0.0
    %4189 = vmatpush1.msra.mxu0 %v4152
    %4190 = vmatprep.subr.mxu0 0.0
    %4191 = vmatpush1.msra.mxu0 %v4151
    %4192 = vmatprep.subr.mxu0 0.0
    %4193 = vmatpush1.msra.mxu0 %v4150
    %4194 = vmatprep.subr.mxu0 0.0
    %4195 = vmatpush2.msra.mxu0 0.0
    %4196 = vmatprep.subr.mxu0 0.0
    %4197 = vmatpush2.msra.mxu0 0.0
    %4198 = vmatprep.subr.mxu0 0.0
    %4199 = vmatpush2.msra.mxu0 0.0
    %4200 = vmatprep.subr.mxu0 0.0
    %4201 = vmatpush2.msra.mxu0 0.0
    %4202 = vmatprep.subr.mxu0 0.0
    %4203 = vmatpush2.msra.mxu0 0.0
    %4204 = vmatprep.subr.mxu0 0.0
    %4205 = vmatpush2.msra.mxu0 0.0
    %4206 = vmatprep.subr.mxu0 0.0
    %4207 = vmatpush2.msra.mxu0 0.0
    %4208 = vmatprep.subr.mxu0 0.0
    %4209 = vmatpush2.msra.mxu0 0.0
    %4210 = vmatprep.subr.mxu0 0.0
    %4211 = vmatpush2.msra.mxu0 0.0
    %4212 = vmatprep.subr.mxu0 0.0
    %4213 = vmatpush2.msra.mxu0 0.0
    %4214 = vmatprep.subr.mxu0 0.0
    %4215 = vmatpush2.msra.mxu0 0.0
    %4216 = vmatprep.subr.mxu0 0.0
    %4217 = vmatpush2.msra.mxu0 0.0
    %4218 = vmatprep.subr.mxu0 0.0
    %4219 = vmatpush2.msra.mxu0 0.0
    %4220 = vmatprep.subr.mxu0 0.0
    %4221 = vmatpush2.msra.mxu0 0.0
    %4222 = vmatprep.subr.mxu0 0.0
    %4223 = vmatpush2.msra.mxu0 0.0
    %4224 = vmatprep.subr.mxu0 0.0
    %4225 = vmatpush2.msra.mxu0 0.0
    %4226 = vmatprep.mubr.f32.mxu0 0.0
    %4227 = vmatmul.mubr.f32.gmra.mxu0 %v3630
    %v4228 = vpop.f32.mrf.mxu0
    %v4229 = vadd.f32 %v4160, %v4228
    %v4230 = vpop.f32.mrf.mxu0
    %4231 = vmatprep.mubr.f32.mxu0 0.0
    %4232 = vmatmul.mubr.f32.gmra.mxu0 %v3633
    %v4233 = vpop.f32.mrf.mxu0
    %v4234 = vadd.f32 %v4160, %v4233
    %v4235 = vpop.f32.mrf.mxu0
    %4236 = vdwg.mxu0
    %s4237 = scalar_lea.vmem %s69, 64
    %v4238 = vld [vmem:[%s4237] sm:$0xff]
    %v4239 = vld [vmem:[%s4237 + $0x8] sm:$0xff]
    %v4240 = vld [vmem:[%s4237 + $0x10] sm:$0xff]
    %v4241 = vld [vmem:[%s4237 + $0x18] sm:$0xff]
    %s4242 = scalar_lea.vmem %s67, 2
    %v4243 = vld [vmem:[%s4242] sm:$0x1]
    %v4245 = vlaneseq
    %v4246 = vshrl.u32 %v4245, 7
    %v4247 = vsub.s32 0, %v4246
    %v4248 = vrot.slane %v4243, %v4247
    %4250 = vmatprep.subr.mxu0 0.0
    %4251 = vmatpush1.msra.mxu0 0.0
    %4252 = vmatprep.subr.mxu0 0.0
    %4253 = vmatpush1.msra.mxu0 0.0
    %4254 = vmatprep.subr.mxu0 0.0
    %4255 = vmatpush1.msra.mxu0 0.0
    %4256 = vmatprep.subr.mxu0 0.0
    %4257 = vmatpush1.msra.mxu0 0.0
    %4258 = vmatprep.subr.mxu0 0.0
    %4259 = vmatpush1.msra.mxu0 0.0
    %4260 = vmatprep.subr.mxu0 0.0
    %4261 = vmatpush1.msra.mxu0 0.0
    %4262 = vmatprep.subr.mxu0 0.0
    %4263 = vmatpush1.msra.mxu0 0.0
    %4264 = vmatprep.subr.mxu0 0.0
    %4265 = vmatpush1.msra.mxu0 0.0
    %4266 = vmatprep.subr.mxu0 0.0
    %4267 = vmatpush1.msra.mxu0 0.0
    %4268 = vmatprep.subr.mxu0 0.0
    %4269 = vmatpush1.msra.mxu0 0.0
    %4270 = vmatprep.subr.mxu0 0.0
    %4271 = vmatpush1.msra.mxu0 0.0
    %4272 = vmatprep.subr.mxu0 0.0
    %4273 = vmatpush1.msra.mxu0 0.0
    %4274 = vmatprep.subr.mxu0 0.0
    %4275 = vmatpush1.msra.mxu0 %v4241
    %4276 = vmatprep.subr.mxu0 0.0
    %4277 = vmatpush1.msra.mxu0 %v4240
    %4278 = vmatprep.subr.mxu0 0.0
    %4279 = vmatpush1.msra.mxu0 %v4239
    %4280 = vmatprep.subr.mxu0 0.0
    %4281 = vmatpush1.msra.mxu0 %v4238
    %4282 = vmatprep.subr.mxu0 0.0
    %4283 = vmatpush2.msra.mxu0 0.0
    %4284 = vmatprep.subr.mxu0 0.0
    %4285 = vmatpush2.msra.mxu0 0.0
    %4286 = vmatprep.subr.mxu0 0.0
    %4287 = vmatpush2.msra.mxu0 0.0
    %4288 = vmatprep.subr.mxu0 0.0
    %4289 = vmatpush2.msra.mxu0 0.0
    %4290 = vmatprep.subr.mxu0 0.0
    %4291 = vmatpush2.msra.mxu0 0.0
    %4292 = vmatprep.subr.mxu0 0.0
    %4293 = vmatpush2.msra.mxu0 0.0
    %4294 = vmatprep.subr.mxu0 0.0
    %4295 = vmatpush2.msra.mxu0 0.0
    %4296 = vmatprep.subr.mxu0 0.0
    %4297 = vmatpush2.msra.mxu0 0.0
    %4298 = vmatprep.subr.mxu0 0.0
    %4299 = vmatpush2.msra.mxu0 0.0
    %4300 = vmatprep.subr.mxu0 0.0
    %4301 = vmatpush2.msra.mxu0 0.0
    %4302 = vmatprep.subr.mxu0 0.0
    %4303 = vmatpush2.msra.mxu0 0.0
    %4304 = vmatprep.subr.mxu0 0.0
    %4305 = vmatpush2.msra.mxu0 0.0
    %4306 = vmatprep.subr.mxu0 0.0
    %4307 = vmatpush2.msra.mxu0 0.0
    %4308 = vmatprep.subr.mxu0 0.0
    %4309 = vmatpush2.msra.mxu0 0.0
    %4310 = vmatprep.subr.mxu0 0.0
    %4311 = vmatpush2.msra.mxu0 0.0
    %4312 = vmatprep.subr.mxu0 0.0
    %4313 = vmatpush2.msra.mxu0 0.0
    %4314 = vmatprep.mubr.f32.mxu0 0.0
    %4315 = vmatmul.mubr.f32.gmra.mxu0 %v3630
    %v4316 = vpop.f32.mrf.mxu0
    %v4317 = vadd.f32 %v4248, %v4316
    %v4318 = vpop.f32.mrf.mxu0
    %4319 = vmatprep.mubr.f32.mxu0 0.0
    %4320 = vmatmul.mubr.f32.gmra.mxu0 %v3633
    %v4321 = vpop.f32.mrf.mxu0
    %v4322 = vadd.f32 %v4248, %v4321
    %v4323 = vpop.f32.mrf.mxu0
    %4324 = vdwg.mxu0
    %s4325 = scalar_lea.vmem %s89, 64
    %v4326 = vld [vmem:[%s4325] sm:$0xff]
    %v4327 = vld [vmem:[%s4325 + $0x8] sm:$0xff]
    %v4328 = vld [vmem:[%s4325 + $0x10] sm:$0xff]
    %v4329 = vld [vmem:[%s4325 + $0x18] sm:$0xff]
    %s4330 = scalar_lea.vmem %s87, 2
    %v4331 = vld [vmem:[%s4330] sm:$0x1]
    %v4333 = vlaneseq
    %v4334 = vshrl.u32 %v4333, 7
    %v4335 = vsub.s32 0, %v4334
    %v4336 = vrot.slane %v4331, %v4335
    %4338 = vmatprep.subr.mxu0 0.0
    %4339 = vmatpush1.msra.mxu0 0.0
    %4340 = vmatprep.subr.mxu0 0.0
    %4341 = vmatpush1.msra.mxu0 0.0
    %4342 = vmatprep.subr.mxu0 0.0
    %4343 = vmatpush1.msra.mxu0 0.0
    %4344 = vmatprep.subr.mxu0 0.0
    %4345 = vmatpush1.msra.mxu0 0.0
    %4346 = vmatprep.subr.mxu0 0.0
    %4347 = vmatpush1.msra.mxu0 0.0
    %4348 = vmatprep.subr.mxu0 0.0
    %4349 = vmatpush1.msra.mxu0 0.0
    %4350 = vmatprep.subr.mxu0 0.0
    %4351 = vmatpush1.msra.mxu0 0.0
    %4352 = vmatprep.subr.mxu0 0.0
    %4353 = vmatpush1.msra.mxu0 0.0
    %4354 = vmatprep.subr.mxu0 0.0
    %4355 = vmatpush1.msra.mxu0 0.0
    %4356 = vmatprep.subr.mxu0 0.0
    %4357 = vmatpush1.msra.mxu0 0.0
    %4358 = vmatprep.subr.mxu0 0.0
    %4359 = vmatpush1.msra.mxu0 0.0
    %4360 = vmatprep.subr.mxu0 0.0
    %4361 = vmatpush1.msra.mxu0 0.0
    %4362 = vmatprep.subr.mxu0 0.0
    %4363 = vmatpush1.msra.mxu0 %v4329
    %4364 = vmatprep.subr.mxu0 0.0
    %4365 = vmatpush1.msra.mxu0 %v4328
    %4366 = vmatprep.subr.mxu0 0.0
    %4367 = vmatpush1.msra.mxu0 %v4327
    %4368 = vmatprep.subr.mxu0 0.0
    %4369 = vmatpush1.msra.mxu0 %v4326
    %4370 = vmatprep.subr.mxu0 0.0
    %4371 = vmatpush2.msra.mxu0 0.0
    %4372 = vmatprep.subr.mxu0 0.0
    %4373 = vmatpush2.msra.mxu0 0.0
    %4374 = vmatprep.subr.mxu0 0.0
    %4375 = vmatpush2.msra.mxu0 0.0
    %4376 = vmatprep.subr.mxu0 0.0
    %4377 = vmatpush2.msra.mxu0 0.0
    %4378 = vmatprep.subr.mxu0 0.0
    %4379 = vmatpush2.msra.mxu0 0.0
    %4380 = vmatprep.subr.mxu0 0.0
    %4381 = vmatpush2.msra.mxu0 0.0
    %4382 = vmatprep.subr.mxu0 0.0
    %4383 = vmatpush2.msra.mxu0 0.0
    %4384 = vmatprep.subr.mxu0 0.0
    %4385 = vmatpush2.msra.mxu0 0.0
    %4386 = vmatprep.subr.mxu0 0.0
    %4387 = vmatpush2.msra.mxu0 0.0
    %4388 = vmatprep.subr.mxu0 0.0
    %4389 = vmatpush2.msra.mxu0 0.0
    %4390 = vmatprep.subr.mxu0 0.0
    %4391 = vmatpush2.msra.mxu0 0.0
    %4392 = vmatprep.subr.mxu0 0.0
    %4393 = vmatpush2.msra.mxu0 0.0
    %4394 = vmatprep.subr.mxu0 0.0
    %4395 = vmatpush2.msra.mxu0 0.0
    %4396 = vmatprep.subr.mxu0 0.0
    %4397 = vmatpush2.msra.mxu0 0.0
    %4398 = vmatprep.subr.mxu0 0.0
    %4399 = vmatpush2.msra.mxu0 0.0
    %4400 = vmatprep.subr.mxu0 0.0
    %4401 = vmatpush2.msra.mxu0 0.0
    %4402 = vmatprep.mubr.f32.mxu0 0.0
    %4403 = vmatmul.mubr.f32.gmra.mxu0 %v3630
    %v4404 = vpop.f32.mrf.mxu0
    %v4405 = vadd.f32 %v4336, %v4404
    %v4406 = vpop.f32.mrf.mxu0
    %4407 = vmatprep.mubr.f32.mxu0 0.0
    %4408 = vmatmul.mubr.f32.gmra.mxu0 %v3633
    %v4409 = vpop.f32.mrf.mxu0
    %v4410 = vadd.f32 %v4336, %v4409
    %v4411 = vpop.f32.mrf.mxu0
    %4412 = vdwg.mxu0
    %s4413 = scalar_lea.vmem %s81, 16
    %v4414 = vld [vmem:[%s4413] sm:$0xff]
    %s4415 = scalar_lea.vmem %s85, 96
    %v4416 = vld [vmem:[%s4415] sm:$0xff]
    %v4417 = vld [vmem:[%s4415 + $0x8] sm:$0xff]
    %v4418 = vld [vmem:[%s4415 + $0x10] sm:$0xff]
    %v4419 = vld [vmem:[%s4415 + $0x18] sm:$0xff]
    %s4420 = scalar_lea.vmem %s83, 3
    %v4421 = vld [vmem:[%s4420] sm:$0x1]
    %v4423 = vlaneseq
    %v4424 = vshrl.u32 %v4423, 7
    %v4425 = vsub.s32 0, %v4424
    %v4426 = vrot.slane %v4421, %v4425
    %4428 = vmatprep.subr.mxu0 0.0
    %4429 = vmatpush1.msra.mxu0 0.0
    %4430 = vmatprep.subr.mxu0 0.0
    %4431 = vmatpush1.msra.mxu0 0.0
    %4432 = vmatprep.subr.mxu0 0.0
    %4433 = vmatpush1.msra.mxu0 0.0
    %4434 = vmatprep.subr.mxu0 0.0
    %4435 = vmatpush1.msra.mxu0 0.0
    %4436 = vmatprep.subr.mxu0 0.0
    %4437 = vmatpush1.msra.mxu0 0.0
    %4438 = vmatprep.subr.mxu0 0.0
    %4439 = vmatpush1.msra.mxu0 0.0
    %4440 = vmatprep.subr.mxu0 0.0
    %4441 = vmatpush1.msra.mxu0 0.0
    %4442 = vmatprep.subr.mxu0 0.0
    %4443 = vmatpush1.msra.mxu0 0.0
    %4444 = vmatprep.subr.mxu0 0.0
    %4445 = vmatpush1.msra.mxu0 0.0
    %4446 = vmatprep.subr.mxu0 0.0
    %4447 = vmatpush1.msra.mxu0 0.0
    %4448 = vmatprep.subr.mxu0 0.0
    %4449 = vmatpush1.msra.mxu0 0.0
    %4450 = vmatprep.subr.mxu0 0.0
    %4451 = vmatpush1.msra.mxu0 0.0
    %4452 = vmatprep.subr.mxu0 0.0
    %4453 = vmatpush1.msra.mxu0 %v4419
    %4454 = vmatprep.subr.mxu0 0.0
    %4455 = vmatpush1.msra.mxu0 %v4418
    %4456 = vmatprep.subr.mxu0 0.0
    %4457 = vmatpush1.msra.mxu0 %v4417
    %4458 = vmatprep.subr.mxu0 0.0
    %4459 = vmatpush1.msra.mxu0 %v4416
    %4460 = vmatprep.subr.mxu0 0.0
    %4461 = vmatpush2.msra.mxu0 0.0
    %4462 = vmatprep.subr.mxu0 0.0
    %4463 = vmatpush2.msra.mxu0 0.0
    %4464 = vmatprep.subr.mxu0 0.0
    %4465 = vmatpush2.msra.mxu0 0.0
    %4466 = vmatprep.subr.mxu0 0.0
    %4467 = vmatpush2.msra.mxu0 0.0
    %4468 = vmatprep.subr.mxu0 0.0
    %4469 = vmatpush2.msra.mxu0 0.0
    %4470 = vmatprep.subr.mxu0 0.0
    %4471 = vmatpush2.msra.mxu0 0.0
    %4472 = vmatprep.subr.mxu0 0.0
    %4473 = vmatpush2.msra.mxu0 0.0
    %4474 = vmatprep.subr.mxu0 0.0
    %4475 = vmatpush2.msra.mxu0 0.0
    %4476 = vmatprep.subr.mxu0 0.0
    %4477 = vmatpush2.msra.mxu0 0.0
    %4478 = vmatprep.subr.mxu0 0.0
    %4479 = vmatpush2.msra.mxu0 0.0
    %4480 = vmatprep.subr.mxu0 0.0
    %4481 = vmatpush2.msra.mxu0 0.0
    %4482 = vmatprep.subr.mxu0 0.0
    %4483 = vmatpush2.msra.mxu0 0.0
    %4484 = vmatprep.subr.mxu0 0.0
    %4485 = vmatpush2.msra.mxu0 0.0
    %4486 = vmatprep.subr.mxu0 0.0
    %4487 = vmatpush2.msra.mxu0 0.0
    %4488 = vmatprep.subr.mxu0 0.0
    %4489 = vmatpush2.msra.mxu0 0.0
    %4490 = vmatprep.subr.mxu0 0.0
    %4491 = vmatpush2.msra.mxu0 0.0
    %4492 = vmatprep.mubr.f32.mxu0 0.0
    %4493 = vmatmul.mubr.f32.gmra.mxu0 %v3630
    %v4494 = vpop.f32.mrf.mxu0
    %v4495 = vadd.f32 %v4426, %v4494
    %v4496 = vpop.f32.mrf.mxu0
    %4497 = vmatprep.mubr.f32.mxu0 0.0
    %4498 = vmatmul.mubr.f32.gmra.mxu0 %v3633
    %v4499 = vpop.f32.mrf.mxu0
    %v4500 = vadd.f32 %v4426, %v4499
    %v4501 = vpop.f32.mrf.mxu0
    %4502 = vdwg.mxu0
    %s4503 = scalar_lea.vmem %s69, 96
    %v4504 = vld [vmem:[%s4503] sm:$0xff]
    %v4505 = vld [vmem:[%s4503 + $0x8] sm:$0xff]
    %v4506 = vld [vmem:[%s4503 + $0x10] sm:$0xff]
    %v4507 = vld [vmem:[%s4503 + $0x18] sm:$0xff]
    %s4508 = scalar_lea.vmem %s67, 3
    %v4509 = vld [vmem:[%s4508] sm:$0x1]
    %v4511 = vlaneseq
    %v4512 = vshrl.u32 %v4511, 7
    %v4513 = vsub.s32 0, %v4512
    %v4514 = vrot.slane %v4509, %v4513
    %4516 = vmatprep.subr.mxu0 0.0
    %4517 = vmatpush1.msra.mxu0 0.0
    %4518 = vmatprep.subr.mxu0 0.0
    %4519 = vmatpush1.msra.mxu0 0.0
    %4520 = vmatprep.subr.mxu0 0.0
    %4521 = vmatpush1.msra.mxu0 0.0
    %4522 = vmatprep.subr.mxu0 0.0
    %4523 = vmatpush1.msra.mxu0 0.0
    %4524 = vmatprep.subr.mxu0 0.0
    %4525 = vmatpush1.msra.mxu0 0.0
    %4526 = vmatprep.subr.mxu0 0.0
    %4527 = vmatpush1.msra.mxu0 0.0
    %4528 = vmatprep.subr.mxu0 0.0
    %4529 = vmatpush1.msra.mxu0 0.0
    %4530 = vmatprep.subr.mxu0 0.0
    %4531 = vmatpush1.msra.mxu0 0.0
    %4532 = vmatprep.subr.mxu0 0.0
    %4533 = vmatpush1.msra.mxu0 0.0
    %4534 = vmatprep.subr.mxu0 0.0
    %4535 = vmatpush1.msra.mxu0 0.0
    %4536 = vmatprep.subr.mxu0 0.0
    %4537 = vmatpush1.msra.mxu0 0.0
    %4538 = vmatprep.subr.mxu0 0.0
    %4539 = vmatpush1.msra.mxu0 0.0
    %4540 = vmatprep.subr.mxu0 0.0
    %4541 = vmatpush1.msra.mxu0 %v4507
    %4542 = vmatprep.subr.mxu0 0.0
    %4543 = vmatpush1.msra.mxu0 %v4506
    %4544 = vmatprep.subr.mxu0 0.0
    %4545 = vmatpush1.msra.mxu0 %v4505
    %4546 = vmatprep.subr.mxu0 0.0
    %4547 = vmatpush1.msra.mxu0 %v4504
    %4548 = vmatprep.subr.mxu0 0.0
    %4549 = vmatpush2.msra.mxu0 0.0
    %4550 = vmatprep.subr.mxu0 0.0
    %4551 = vmatpush2.msra.mxu0 0.0
    %4552 = vmatprep.subr.mxu0 0.0
    %4553 = vmatpush2.msra.mxu0 0.0
    %4554 = vmatprep.subr.mxu0 0.0
    %4555 = vmatpush2.msra.mxu0 0.0
    %4556 = vmatprep.subr.mxu0 0.0
    %4557 = vmatpush2.msra.mxu0 0.0
    %4558 = vmatprep.subr.mxu0 0.0
    %4559 = vmatpush2.msra.mxu0 0.0
    %4560 = vmatprep.subr.mxu0 0.0
    %4561 = vmatpush2.msra.mxu0 0.0
    %4562 = vmatprep.subr.mxu0 0.0
    %4563 = vmatpush2.msra.mxu0 0.0
    %4564 = vmatprep.subr.mxu0 0.0
    %4565 = vmatpush2.msra.mxu0 0.0
    %4566 = vmatprep.subr.mxu0 0.0
    %4567 = vmatpush2.msra.mxu0 0.0
    %4568 = vmatprep.subr.mxu0 0.0
    %4569 = vmatpush2.msra.mxu0 0.0
    %4570 = vmatprep.subr.mxu0 0.0
    %4571 = vmatpush2.msra.mxu0 0.0
    %4572 = vmatprep.subr.mxu0 0.0
    %4573 = vmatpush2.msra.mxu0 0.0
    %4574 = vmatprep.subr.mxu0 0.0
    %4575 = vmatpush2.msra.mxu0 0.0
    %4576 = vmatprep.subr.mxu0 0.0
    %4577 = vmatpush2.msra.mxu0 0.0
    %4578 = vmatprep.subr.mxu0 0.0
    %4579 = vmatpush2.msra.mxu0 0.0
    %4580 = vmatprep.mubr.f32.mxu0 0.0
    %4581 = vmatmul.mubr.f32.gmra.mxu0 %v3630
    %v4582 = vpop.f32.mrf.mxu0
    %v4583 = vadd.f32 %v4514, %v4582
    %v4584 = vpop.f32.mrf.mxu0
    %4585 = vmatprep.mubr.f32.mxu0 0.0
    %4586 = vmatmul.mubr.f32.gmra.mxu0 %v3633
    %v4587 = vpop.f32.mrf.mxu0
    %v4588 = vadd.f32 %v4514, %v4587
    %v4589 = vpop.f32.mrf.mxu0
    %4590 = vdwg.mxu0
    %s4591 = scalar_lea.vmem %s89, 96
    %v4592 = vld [vmem:[%s4591] sm:$0xff]
    %v4593 = vld [vmem:[%s4591 + $0x8] sm:$0xff]
    %v4594 = vld [vmem:[%s4591 + $0x10] sm:$0xff]
    %v4595 = vld [vmem:[%s4591 + $0x18] sm:$0xff]
    %s4596 = scalar_lea.vmem %s87, 3
    %v4597 = vld [vmem:[%s4596] sm:$0x1]
    %v4599 = vlaneseq
    %v4600 = vshrl.u32 %v4599, 7
    %v4601 = vsub.s32 0, %v4600
    %v4602 = vrot.slane %v4597, %v4601
    %4604 = vmatprep.subr.mxu0 0.0
    %4605 = vmatpush1.msra.mxu0 0.0
    %4606 = vmatprep.subr.mxu0 0.0
    %4607 = vmatpush1.msra.mxu0 0.0
    %4608 = vmatprep.subr.mxu0 0.0
    %4609 = vmatpush1.msra.mxu0 0.0
    %4610 = vmatprep.subr.mxu0 0.0
    %4611 = vmatpush1.msra.mxu0 0.0
    %4612 = vmatprep.subr.mxu0 0.0
    %4613 = vmatpush1.msra.mxu0 0.0
    %4614 = vmatprep.subr.mxu0 0.0
    %4615 = vmatpush1.msra.mxu0 0.0
    %4616 = vmatprep.subr.mxu0 0.0
    %4617 = vmatpush1.msra.mxu0 0.0
    %4618 = vmatprep.subr.mxu0 0.0
    %4619 = vmatpush1.msra.mxu0 0.0
    %4620 = vmatprep.subr.mxu0 0.0
    %4621 = vmatpush1.msra.mxu0 0.0
    %4622 = vmatprep.subr.mxu0 0.0
    %4623 = vmatpush1.msra.mxu0 0.0
    %4624 = vmatprep.subr.mxu0 0.0
    %4625 = vmatpush1.msra.mxu0 0.0
    %4626 = vmatprep.subr.mxu0 0.0
    %4627 = vmatpush1.msra.mxu0 0.0
    %4628 = vmatprep.subr.mxu0 0.0
    %4629 = vmatpush1.msra.mxu0 %v4595
    %4630 = vmatprep.subr.mxu0 0.0
    %4631 = vmatpush1.msra.mxu0 %v4594
    %4632 = vmatprep.subr.mxu0 0.0
    %4633 = vmatpush1.msra.mxu0 %v4593
    %4634 = vmatprep.subr.mxu0 0.0
    %4635 = vmatpush1.msra.mxu0 %v4592
    %4636 = vmatprep.subr.mxu0 0.0
    %4637 = vmatpush2.msra.mxu0 0.0
    %4638 = vmatprep.subr.mxu0 0.0
    %4639 = vmatpush2.msra.mxu0 0.0
    %4640 = vmatprep.subr.mxu0 0.0
    %4641 = vmatpush2.msra.mxu0 0.0
    %4642 = vmatprep.subr.mxu0 0.0
    %4643 = vmatpush2.msra.mxu0 0.0
    %4644 = vmatprep.subr.mxu0 0.0
    %4645 = vmatpush2.msra.mxu0 0.0
    %4646 = vmatprep.subr.mxu0 0.0
    %4647 = vmatpush2.msra.mxu0 0.0
    %4648 = vmatprep.subr.mxu0 0.0
    %4649 = vmatpush2.msra.mxu0 0.0
    %4650 = vmatprep.subr.mxu0 0.0
    %4651 = vmatpush2.msra.mxu0 0.0
    %4652 = vmatprep.subr.mxu0 0.0
    %4653 = vmatpush2.msra.mxu0 0.0
    %4654 = vmatprep.subr.mxu0 0.0
    %4655 = vmatpush2.msra.mxu0 0.0
    %4656 = vmatprep.subr.mxu0 0.0
    %4657 = vmatpush2.msra.mxu0 0.0
    %4658 = vmatprep.subr.mxu0 0.0
    %4659 = vmatpush2.msra.mxu0 0.0
    %4660 = vmatprep.subr.mxu0 0.0
    %4661 = vmatpush2.msra.mxu0 0.0
    %4662 = vmatprep.subr.mxu0 0.0
    %4663 = vmatpush2.msra.mxu0 0.0
    %4664 = vmatprep.subr.mxu0 0.0
    %4665 = vmatpush2.msra.mxu0 0.0
    %4666 = vmatprep.subr.mxu0 0.0
    %4667 = vmatpush2.msra.mxu0 0.0
    %4668 = vmatprep.mubr.f32.mxu0 0.0
    %4669 = vmatmul.mubr.f32.gmra.mxu0 %v3630
    %v4670 = vpop.f32.mrf.mxu0
    %v4671 = vadd.f32 %v4602, %v4670
    %v4672 = vpop.f32.mrf.mxu0
    %4673 = vmatprep.mubr.f32.mxu0 0.0
    %4674 = vmatmul.mubr.f32.gmra.mxu0 %v3633
    %v4675 = vpop.f32.mrf.mxu0
    %v4676 = vadd.f32 %v4602, %v4675
    %v4677 = vpop.f32.mrf.mxu0
    %4678 = vdwg.mxu0
    %s4679 = scalar_lea.vmem %s81, 24
    %v4680 = vld [vmem:[%s4679] sm:$0xff]
    %v4682 = vsel %vm1397, %v3702, 0
    %v4685 = vsel %vm1397, %v3788, 0
    %4687 = vmatprep.subr.mxu0 0.0
    %4688 = vmatpush1.xpose.msra.mxu0 0.0
    %4689 = vmatprep.subr.mxu0 0.0
    %4690 = vmatpush1.xpose.msra.mxu0 0.0
    %4691 = vmatprep.subr.mxu0 0.0
    %4692 = vmatpush1.xpose.msra.mxu0 0.0
    %4693 = vmatprep.subr.mxu0 0.0
    %4694 = vmatpush1.xpose.msra.mxu0 0.0
    %4695 = vmatprep.subr.mxu0 0.0
    %4696 = vmatpush1.xpose.msra.mxu0 0.0
    %4697 = vmatprep.subr.mxu0 0.0
    %4698 = vmatpush1.xpose.msra.mxu0 0.0
    %4699 = vmatprep.subr.mxu0 0.0
    %4700 = vmatpush1.xpose.msra.mxu0 0.0
    %4701 = vmatprep.subr.mxu0 0.0
    %4702 = vmatpush1.xpose.msra.mxu0 0.0
    %4703 = vmatprep.subr.mxu0 0.0
    %4704 = vmatpush1.xpose.msra.mxu0 0.0
    %4705 = vmatprep.subr.mxu0 0.0
    %4706 = vmatpush1.xpose.msra.mxu0 0.0
    %4707 = vmatprep.subr.mxu0 0.0
    %4708 = vmatpush1.xpose.msra.mxu0 0.0
    %4709 = vmatprep.subr.mxu0 0.0
    %4710 = vmatpush1.xpose.msra.mxu0 0.0
    %4711 = vmatprep.subr.mxu0 0.0
    %4712 = vmatpush1.xpose.msra.mxu0 0.0
    %4713 = vmatprep.subr.mxu0 0.0
    %4714 = vmatpush1.xpose.msra.mxu0 0.0
    %4715 = vmatprep.subr.mxu0 0.0
    %4716 = vmatpush1.xpose.msra.mxu0 0.0
    %4717 = vmatprep.subr.mxu0 0.0
    %4718 = vmatpush1.xpose.msra.mxu0 %v4685
    %4719 = vmatprep.subr.mxu0 0.0
    %4720 = vmatpush2.xpose.msra.mxu0 0.0
    %4721 = vmatprep.subr.mxu0 0.0
    %4722 = vmatpush2.xpose.msra.mxu0 0.0
    %4723 = vmatprep.subr.mxu0 0.0
    %4724 = vmatpush2.xpose.msra.mxu0 0.0
    %4725 = vmatprep.subr.mxu0 0.0
    %4726 = vmatpush2.xpose.msra.mxu0 0.0
    %4727 = vmatprep.subr.mxu0 0.0
    %4728 = vmatpush2.xpose.msra.mxu0 0.0
    %4729 = vmatprep.subr.mxu0 0.0
    %4730 = vmatpush2.xpose.msra.mxu0 0.0
    %4731 = vmatprep.subr.mxu0 0.0
    %4732 = vmatpush2.xpose.msra.mxu0 0.0
    %4733 = vmatprep.subr.mxu0 0.0
    %4734 = vmatpush2.xpose.msra.mxu0 0.0
    %4735 = vmatprep.subr.mxu0 0.0
    %4736 = vmatpush2.xpose.msra.mxu0 0.0
    %4737 = vmatprep.subr.mxu0 0.0
    %4738 = vmatpush2.xpose.msra.mxu0 0.0
    %4739 = vmatprep.subr.mxu0 0.0
    %4740 = vmatpush2.xpose.msra.mxu0 0.0
    %4741 = vmatprep.subr.mxu0 0.0
    %4742 = vmatpush2.xpose.msra.mxu0 0.0
    %4743 = vmatprep.subr.mxu0 0.0
    %4744 = vmatpush2.xpose.msra.mxu0 0.0
    %4745 = vmatprep.subr.mxu0 0.0
    %4746 = vmatpush2.xpose.msra.mxu0 0.0
    %4747 = vmatprep.subr.mxu0 0.0
    %4748 = vmatpush2.xpose.msra.mxu0 0.0
    %4749 = vmatprep.subr.mxu0 0.0
    %4750 = vmatpush2.xpose.msra.mxu0 0.0
    %4751 = vmatprep.mubr.f32.mxu0 0.0
    %4752 = vmatmul.mubr.f32.gmra.mxu0 %v4682
    %v4753 = vpop.f32.mrf.mxu0
    %v4754 = vadd.f32 0.0, %v4753
    %v4755 = vpop.f32.mrf.mxu0
    %4756 = vdwg.mxu0
    %v4757 = vmul.f32 %v4754, 0.35355338
    %v4758 = vsel %vm1397, %v4757, -inf
    %4759 = vmax.xlane.f32.xlu0 %v4758
    %v4760 = vpop.xlane.xlu0 %4759
    %v4761 = vsub.f32 %v4757, %v4760
    %v4762 = vmul.f32 %v4761, 1.442695
    %v4763 = vpow.pop %v4762
    %v4764 = vsel %vm1397, %v4763, 0.0
    %4765 = vadd.xlane.f32.xlu0 %v4764
    %v4766 = vpop.xlane.xlu0 %4765
    %v4767 = vrcp.pop %v4766
    %v4768 = vmul.f32 %v4763, %v4767
    %v4770 = vsel %vm1397, %v4768, 0
    %4772 = vmatprep.subr.mxu0 0.0
    %4773 = vmatpush1.msra.mxu0 0.0
    %4774 = vmatprep.subr.mxu0 0.0
    %4775 = vmatpush1.msra.mxu0 0.0
    %4776 = vmatprep.subr.mxu0 0.0
    %4777 = vmatpush1.msra.mxu0 0.0
    %4778 = vmatprep.subr.mxu0 0.0
    %4779 = vmatpush1.msra.mxu0 0.0
    %4780 = vmatprep.subr.mxu0 0.0
    %4781 = vmatpush1.msra.mxu0 0.0
    %4782 = vmatprep.subr.mxu0 0.0
    %4783 = vmatpush1.msra.mxu0 0.0
    %4784 = vmatprep.subr.mxu0 0.0
    %4785 = vmatpush1.msra.mxu0 0.0
    %4786 = vmatprep.subr.mxu0 0.0
    %4787 = vmatpush1.msra.mxu0 0.0
    %4788 = vmatprep.subr.mxu0 0.0
    %4789 = vmatpush1.msra.mxu0 0.0
    %4790 = vmatprep.subr.mxu0 0.0
    %4791 = vmatpush1.msra.mxu0 0.0
    %4792 = vmatprep.subr.mxu0 0.0
    %4793 = vmatpush1.msra.mxu0 0.0
    %4794 = vmatprep.subr.mxu0 0.0
    %4795 = vmatpush1.msra.mxu0 0.0
    %4796 = vmatprep.subr.mxu0 0.0
    %4797 = vmatpush1.msra.mxu0 0.0
    %4798 = vmatprep.subr.mxu0 0.0
    %4799 = vmatpush1.msra.mxu0 0.0
    %4800 = vmatprep.subr.mxu0 0.0
    %4801 = vmatpush1.msra.mxu0 0.0
    %4802 = vmatprep.subr.mxu0 0.0
    %4803 = vmatpush1.msra.mxu0 %v3874
    %4804 = vmatprep.subr.mxu0 0.0
    %4805 = vmatpush2.msra.mxu0 0.0
    %4806 = vmatprep.subr.mxu0 0.0
    %4807 = vmatpush2.msra.mxu0 0.0
    %4808 = vmatprep.subr.mxu0 0.0
    %4809 = vmatpush2.msra.mxu0 0.0
    %4810 = vmatprep.subr.mxu0 0.0
    %4811 = vmatpush2.msra.mxu0 0.0
    %4812 = vmatprep.subr.mxu0 0.0
    %4813 = vmatpush2.msra.mxu0 0.0
    %4814 = vmatprep.subr.mxu0 0.0
    %4815 = vmatpush2.msra.mxu0 0.0
    %4816 = vmatprep.subr.mxu0 0.0
    %4817 = vmatpush2.msra.mxu0 0.0
    %4818 = vmatprep.subr.mxu0 0.0
    %4819 = vmatpush2.msra.mxu0 0.0
    %4820 = vmatprep.subr.mxu0 0.0
    %4821 = vmatpush2.msra.mxu0 0.0
    %4822 = vmatprep.subr.mxu0 0.0
    %4823 = vmatpush2.msra.mxu0 0.0
    %4824 = vmatprep.subr.mxu0 0.0
    %4825 = vmatpush2.msra.mxu0 0.0
    %4826 = vmatprep.subr.mxu0 0.0
    %4827 = vmatpush2.msra.mxu0 0.0
    %4828 = vmatprep.subr.mxu0 0.0
    %4829 = vmatpush2.msra.mxu0 0.0
    %4830 = vmatprep.subr.mxu0 0.0
    %4831 = vmatpush2.msra.mxu0 0.0
    %4832 = vmatprep.subr.mxu0 0.0
    %4833 = vmatpush2.msra.mxu0 0.0
    %4834 = vmatprep.subr.mxu0 0.0
    %4835 = vmatpush2.msra.mxu0 0.0
    %4836 = vmatprep.mubr.f32.mxu0 0.0
    %4837 = vmatmul.mubr.f32.gmra.mxu0 %v4770
    %v4838 = vpop.f32.mrf.mxu0
    %v4839 = vadd.f32 0.0, %v4838
    %v4840 = vpop.f32.mrf.mxu0
    %4841 = vdwg.mxu0
    %v4843 = vsel %vm1397, %v3963, 0
    %v4846 = vsel %vm1397, %v4051, 0
    %4848 = vmatprep.subr.mxu0 0.0
    %4849 = vmatpush1.xpose.msra.mxu0 0.0
    %4850 = vmatprep.subr.mxu0 0.0
    %4851 = vmatpush1.xpose.msra.mxu0 0.0
    %4852 = vmatprep.subr.mxu0 0.0
    %4853 = vmatpush1.xpose.msra.mxu0 0.0
    %4854 = vmatprep.subr.mxu0 0.0
    %4855 = vmatpush1.xpose.msra.mxu0 0.0
    %4856 = vmatprep.subr.mxu0 0.0
    %4857 = vmatpush1.xpose.msra.mxu0 0.0
    %4858 = vmatprep.subr.mxu0 0.0
    %4859 = vmatpush1.xpose.msra.mxu0 0.0
    %4860 = vmatprep.subr.mxu0 0.0
    %4861 = vmatpush1.xpose.msra.mxu0 0.0
    %4862 = vmatprep.subr.mxu0 0.0
    %4863 = vmatpush1.xpose.msra.mxu0 0.0
    %4864 = vmatprep.subr.mxu0 0.0
    %4865 = vmatpush1.xpose.msra.mxu0 0.0
    %4866 = vmatprep.subr.mxu0 0.0
    %4867 = vmatpush1.xpose.msra.mxu0 0.0
    %4868 = vmatprep.subr.mxu0 0.0
    %4869 = vmatpush1.xpose.msra.mxu0 0.0
    %4870 = vmatprep.subr.mxu0 0.0
    %4871 = vmatpush1.xpose.msra.mxu0 0.0
    %4872 = vmatprep.subr.mxu0 0.0
    %4873 = vmatpush1.xpose.msra.mxu0 0.0
    %4874 = vmatprep.subr.mxu0 0.0
    %4875 = vmatpush1.xpose.msra.mxu0 0.0
    %4876 = vmatprep.subr.mxu0 0.0
    %4877 = vmatpush1.xpose.msra.mxu0 0.0
    %4878 = vmatprep.subr.mxu0 0.0
    %4879 = vmatpush1.xpose.msra.mxu0 %v4846
    %4880 = vmatprep.subr.mxu0 0.0
    %4881 = vmatpush2.xpose.msra.mxu0 0.0
    %4882 = vmatprep.subr.mxu0 0.0
    %4883 = vmatpush2.xpose.msra.mxu0 0.0
    %4884 = vmatprep.subr.mxu0 0.0
    %4885 = vmatpush2.xpose.msra.mxu0 0.0
    %4886 = vmatprep.subr.mxu0 0.0
    %4887 = vmatpush2.xpose.msra.mxu0 0.0
    %4888 = vmatprep.subr.mxu0 0.0
    %4889 = vmatpush2.xpose.msra.mxu0 0.0
    %4890 = vmatprep.subr.mxu0 0.0
    %4891 = vmatpush2.xpose.msra.mxu0 0.0
    %4892 = vmatprep.subr.mxu0 0.0
    %4893 = vmatpush2.xpose.msra.mxu0 0.0
    %4894 = vmatprep.subr.mxu0 0.0
    %4895 = vmatpush2.xpose.msra.mxu0 0.0
    %4896 = vmatprep.subr.mxu0 0.0
    %4897 = vmatpush2.xpose.msra.mxu0 0.0
    %4898 = vmatprep.subr.mxu0 0.0
    %4899 = vmatpush2.xpose.msra.mxu0 0.0
    %4900 = vmatprep.subr.mxu0 0.0
    %4901 = vmatpush2.xpose.msra.mxu0 0.0
    %4902 = vmatprep.subr.mxu0 0.0
    %4903 = vmatpush2.xpose.msra.mxu0 0.0
    %4904 = vmatprep.subr.mxu0 0.0
    %4905 = vmatpush2.xpose.msra.mxu0 0.0
    %4906 = vmatprep.subr.mxu0 0.0
    %4907 = vmatpush2.xpose.msra.mxu0 0.0
    %4908 = vmatprep.subr.mxu0 0.0
    %4909 = vmatpush2.xpose.msra.mxu0 0.0
    %4910 = vmatprep.subr.mxu0 0.0
    %4911 = vmatpush2.xpose.msra.mxu0 0.0
    %4912 = vmatprep.mubr.f32.mxu0 0.0
    %4913 = vmatmul.mubr.f32.gmra.mxu0 %v4843
    %v4914 = vpop.f32.mrf.mxu0
    %v4915 = vadd.f32 0.0, %v4914
    %v4916 = vpop.f32.mrf.mxu0
    %4917 = vdwg.mxu0
    %v4918 = vmul.f32 %v4915, 0.35355338
    %v4919 = vsel %vm1397, %v4918, -inf
    %4920 = vmax.xlane.f32.xlu0 %v4919
    %v4921 = vpop.xlane.xlu0 %4920
    %v4922 = vsub.f32 %v4918, %v4921
    %v4923 = vmul.f32 %v4922, 1.442695
    %v4924 = vpow.pop %v4923
    %v4925 = vsel %vm1397, %v4924, 0.0
    %4926 = vadd.xlane.f32.xlu0 %v4925
    %v4927 = vpop.xlane.xlu0 %4926
    %v4928 = vrcp.pop %v4927
    %v4929 = vmul.f32 %v4924, %v4928
    %v4931 = vsel %vm1397, %v4929, 0
    %4933 = vmatprep.subr.mxu0 0.0
    %4934 = vmatpush1.msra.mxu0 0.0
    %4935 = vmatprep.subr.mxu0 0.0
    %4936 = vmatpush1.msra.mxu0 0.0
    %4937 = vmatprep.subr.mxu0 0.0
    %4938 = vmatpush1.msra.mxu0 0.0
    %4939 = vmatprep.subr.mxu0 0.0
    %4940 = vmatpush1.msra.mxu0 0.0
    %4941 = vmatprep.subr.mxu0 0.0
    %4942 = vmatpush1.msra.mxu0 0.0
    %4943 = vmatprep.subr.mxu0 0.0
    %4944 = vmatpush1.msra.mxu0 0.0
    %4945 = vmatprep.subr.mxu0 0.0
    %4946 = vmatpush1.msra.mxu0 0.0
    %4947 = vmatprep.subr.mxu0 0.0
    %4948 = vmatpush1.msra.mxu0 0.0
    %4949 = vmatprep.subr.mxu0 0.0
    %4950 = vmatpush1.msra.mxu0 0.0
    %4951 = vmatprep.subr.mxu0 0.0
    %4952 = vmatpush1.msra.mxu0 0.0
    %4953 = vmatprep.subr.mxu0 0.0
    %4954 = vmatpush1.msra.mxu0 0.0
    %4955 = vmatprep.subr.mxu0 0.0
    %4956 = vmatpush1.msra.mxu0 0.0
    %4957 = vmatprep.subr.mxu0 0.0
    %4958 = vmatpush1.msra.mxu0 0.0
    %4959 = vmatprep.subr.mxu0 0.0
    %4960 = vmatpush1.msra.mxu0 0.0
    %4961 = vmatprep.subr.mxu0 0.0
    %4962 = vmatpush1.msra.mxu0 0.0
    %4963 = vmatprep.subr.mxu0 0.0
    %4964 = vmatpush1.msra.mxu0 %v4139
    %4965 = vmatprep.subr.mxu0 0.0
    %4966 = vmatpush2.msra.mxu0 0.0
    %4967 = vmatprep.subr.mxu0 0.0
    %4968 = vmatpush2.msra.mxu0 0.0
    %4969 = vmatprep.subr.mxu0 0.0
    %4970 = vmatpush2.msra.mxu0 0.0
    %4971 = vmatprep.subr.mxu0 0.0
    %4972 = vmatpush2.msra.mxu0 0.0
    %4973 = vmatprep.subr.mxu0 0.0
    %4974 = vmatpush2.msra.mxu0 0.0
    %4975 = vmatprep.subr.mxu0 0.0
    %4976 = vmatpush2.msra.mxu0 0.0
    %4977 = vmatprep.subr.mxu0 0.0
    %4978 = vmatpush2.msra.mxu0 0.0
    %4979 = vmatprep.subr.mxu0 0.0
    %4980 = vmatpush2.msra.mxu0 0.0
    %4981 = vmatprep.subr.mxu0 0.0
    %4982 = vmatpush2.msra.mxu0 0.0
    %4983 = vmatprep.subr.mxu0 0.0
    %4984 = vmatpush2.msra.mxu0 0.0
    %4985 = vmatprep.subr.mxu0 0.0
    %4986 = vmatpush2.msra.mxu0 0.0
    %4987 = vmatprep.subr.mxu0 0.0
    %4988 = vmatpush2.msra.mxu0 0.0
    %4989 = vmatprep.subr.mxu0 0.0
    %4990 = vmatpush2.msra.mxu0 0.0
    %4991 = vmatprep.subr.mxu0 0.0
    %4992 = vmatpush2.msra.mxu0 0.0
    %4993 = vmatprep.subr.mxu0 0.0
    %4994 = vmatpush2.msra.mxu0 0.0
    %4995 = vmatprep.subr.mxu0 0.0
    %4996 = vmatpush2.msra.mxu0 0.0
    %4997 = vmatprep.mubr.f32.mxu0 0.0
    %4998 = vmatmul.mubr.f32.gmra.mxu0 %v4931
    %v4999 = vpop.f32.mrf.mxu0
    %v5000 = vadd.f32 0.0, %v4999
    %v5001 = vpop.f32.mrf.mxu0
    %5002 = vdwg.mxu0
    %v5004 = vsel %vm1397, %v5000, 0
    %5006 = vmatprep.subr.mxu0 0.0
    %5007 = vmatpush1.msra.mxu0 0.0
    %5008 = vmatprep.subr.mxu0 0.0
    %5009 = vmatpush1.msra.mxu0 0.0
    %5010 = vmatprep.subr.mxu0 0.0
    %5011 = vmatpush1.msra.mxu0 0.0
    %5012 = vmatprep.subr.mxu0 0.0
    %5013 = vmatpush1.msra.mxu0 0.0
    %5014 = vmatprep.subr.mxu0 0.0
    %5015 = vmatpush1.msra.mxu0 0.0
    %5016 = vmatprep.subr.mxu0 0.0
    %5017 = vmatpush1.msra.mxu0 0.0
    %5018 = vmatprep.subr.mxu0 0.0
    %5019 = vmatpush1.msra.mxu0 0.0
    %5020 = vmatprep.subr.mxu0 0.0
    %5021 = vmatpush1.msra.mxu0 0.0
    %5022 = vmatprep.subr.mxu0 0.0
    %5023 = vmatpush1.msra.mxu0 0.0
    %5024 = vmatprep.subr.mxu0 0.0
    %5025 = vmatpush1.msra.mxu0 0.0
    %5026 = vmatprep.subr.mxu0 0.0
    %5027 = vmatpush1.msra.mxu0 0.0
    %5028 = vmatprep.subr.mxu0 0.0
    %5029 = vmatpush1.msra.mxu0 0.0
    %5030 = vmatprep.subr.mxu0 0.0
    %5031 = vmatpush1.msra.mxu0 0.0
    %5032 = vmatprep.subr.mxu0 0.0
    %5033 = vmatpush1.msra.mxu0 0.0
    %5034 = vmatprep.subr.mxu0 0.0
    %5035 = vmatpush1.msra.mxu0 0.0
    %5036 = vmatprep.subr.mxu0 0.0
    %5037 = vmatpush1.msra.mxu0 %v4148
    %5038 = vmatprep.subr.mxu0 0.0
    %5039 = vmatpush2.msra.mxu0 0.0
    %5040 = vmatprep.subr.mxu0 0.0
    %5041 = vmatpush2.msra.mxu0 0.0
    %5042 = vmatprep.subr.mxu0 0.0
    %5043 = vmatpush2.msra.mxu0 0.0
    %5044 = vmatprep.subr.mxu0 0.0
    %5045 = vmatpush2.msra.mxu0 0.0
    %5046 = vmatprep.subr.mxu0 0.0
    %5047 = vmatpush2.msra.mxu0 0.0
    %5048 = vmatprep.subr.mxu0 0.0
    %5049 = vmatpush2.msra.mxu0 0.0
    %5050 = vmatprep.subr.mxu0 0.0
    %5051 = vmatpush2.msra.mxu0 0.0
    %5052 = vmatprep.subr.mxu0 0.0
    %5053 = vmatpush2.msra.mxu0 0.0
    %5054 = vmatprep.subr.mxu0 0.0
    %5055 = vmatpush2.msra.mxu0 0.0
    %5056 = vmatprep.subr.mxu0 0.0
    %5057 = vmatpush2.msra.mxu0 0.0
    %5058 = vmatprep.subr.mxu0 0.0
    %5059 = vmatpush2.msra.mxu0 0.0
    %5060 = vmatprep.subr.mxu0 0.0
    %5061 = vmatpush2.msra.mxu0 0.0
    %5062 = vmatprep.subr.mxu0 0.0
    %5063 = vmatpush2.msra.mxu0 0.0
    %5064 = vmatprep.subr.mxu0 0.0
    %5065 = vmatpush2.msra.mxu0 0.0
    %5066 = vmatprep.subr.mxu0 0.0
    %5067 = vmatpush2.msra.mxu0 0.0
    %5068 = vmatprep.subr.mxu0 0.0
    %5069 = vmatpush2.msra.mxu0 0.0
    %5070 = vmatprep.mubr.f32.mxu0 0.0
    %5071 = vmatmul.mubr.f32.gmra.mxu0 %v5004
    %v5072 = vpop.f32.mrf.mxu0
    %v5073 = vadd.f32 0.0, %v5072
    %v5074 = vpop.f32.mrf.mxu0
    %5075 = vdwg.mxu0
    %v5077 = vsel %vm1397, %v4229, 0
    %v5080 = vsel %vm1397, %v4317, 0
    %5082 = vmatprep.subr.mxu0 0.0
    %5083 = vmatpush1.xpose.msra.mxu0 0.0
    %5084 = vmatprep.subr.mxu0 0.0
    %5085 = vmatpush1.xpose.msra.mxu0 0.0
    %5086 = vmatprep.subr.mxu0 0.0
    %5087 = vmatpush1.xpose.msra.mxu0 0.0
    %5088 = vmatprep.subr.mxu0 0.0
    %5089 = vmatpush1.xpose.msra.mxu0 0.0
    %5090 = vmatprep.subr.mxu0 0.0
    %5091 = vmatpush1.xpose.msra.mxu0 0.0
    %5092 = vmatprep.subr.mxu0 0.0
    %5093 = vmatpush1.xpose.msra.mxu0 0.0
    %5094 = vmatprep.subr.mxu0 0.0
    %5095 = vmatpush1.xpose.msra.mxu0 0.0
    %5096 = vmatprep.subr.mxu0 0.0
    %5097 = vmatpush1.xpose.msra.mxu0 0.0
    %5098 = vmatprep.subr.mxu0 0.0
    %5099 = vmatpush1.xpose.msra.mxu0 0.0
    %5100 = vmatprep.subr.mxu0 0.0
    %5101 = vmatpush1.xpose.msra.mxu0 0.0
    %5102 = vmatprep.subr.mxu0 0.0
    %5103 = vmatpush1.xpose.msra.mxu0 0.0
    %5104 = vmatprep.subr.mxu0 0.0
    %5105 = vmatpush1.xpose.msra.mxu0 0.0
    %5106 = vmatprep.subr.mxu0 0.0
    %5107 = vmatpush1.xpose.msra.mxu0 0.0
    %5108 = vmatprep.subr.mxu0 0.0
    %5109 = vmatpush1.xpose.msra.mxu0 0.0
    %5110 = vmatprep.subr.mxu0 0.0
    %5111 = vmatpush1.xpose.msra.mxu0 0.0
    %5112 = vmatprep.subr.mxu0 0.0
    %5113 = vmatpush1.xpose.msra.mxu0 %v5080
    %5114 = vmatprep.subr.mxu0 0.0
    %5115 = vmatpush2.xpose.msra.mxu0 0.0
    %5116 = vmatprep.subr.mxu0 0.0
    %5117 = vmatpush2.xpose.msra.mxu0 0.0
    %5118 = vmatprep.subr.mxu0 0.0
    %5119 = vmatpush2.xpose.msra.mxu0 0.0
    %5120 = vmatprep.subr.mxu0 0.0
    %5121 = vmatpush2.xpose.msra.mxu0 0.0
    %5122 = vmatprep.subr.mxu0 0.0
    %5123 = vmatpush2.xpose.msra.mxu0 0.0
    %5124 = vmatprep.subr.mxu0 0.0
    %5125 = vmatpush2.xpose.msra.mxu0 0.0
    %5126 = vmatprep.subr.mxu0 0.0
    %5127 = vmatpush2.xpose.msra.mxu0 0.0
    %5128 = vmatprep.subr.mxu0 0.0
    %5129 = vmatpush2.xpose.msra.mxu0 0.0
    %5130 = vmatprep.subr.mxu0 0.0
    %5131 = vmatpush2.xpose.msra.mxu0 0.0
    %5132 = vmatprep.subr.mxu0 0.0
    %5133 = vmatpush2.xpose.msra.mxu0 0.0
    %5134 = vmatprep.subr.mxu0 0.0
    %5135 = vmatpush2.xpose.msra.mxu0 0.0
    %5136 = vmatprep.subr.mxu0 0.0
    %5137 = vmatpush2.xpose.msra.mxu0 0.0
    %5138 = vmatprep.subr.mxu0 0.0
    %5139 = vmatpush2.xpose.msra.mxu0 0.0
    %5140 = vmatprep.subr.mxu0 0.0
    %5141 = vmatpush2.xpose.msra.mxu0 0.0
    %5142 = vmatprep.subr.mxu0 0.0
    %5143 = vmatpush2.xpose.msra.mxu0 0.0
    %5144 = vmatprep.subr.mxu0 0.0
    %5145 = vmatpush2.xpose.msra.mxu0 0.0
    %5146 = vmatprep.mubr.f32.mxu0 0.0
    %5147 = vmatmul.mubr.f32.gmra.mxu0 %v5077
    %v5148 = vpop.f32.mrf.mxu0
    %v5149 = vadd.f32 0.0, %v5148
    %v5150 = vpop.f32.mrf.mxu0
    %5151 = vdwg.mxu0
    %v5152 = vmul.f32 %v5149, 0.35355338
    %v5153 = vsel %vm1397, %v5152, -inf
    %5154 = vmax.xlane.f32.xlu0 %v5153
    %v5155 = vpop.xlane.xlu0 %5154
    %v5156 = vsub.f32 %v5152, %v5155
    %v5157 = vmul.f32 %v5156, 1.442695
    %v5158 = vpow.pop %v5157
    %v5159 = vsel %vm1397, %v5158, 0.0
    %5160 = vadd.xlane.f32.xlu0 %v5159
    %v5161 = vpop.xlane.xlu0 %5160
    %v5162 = vrcp.pop %v5161
    %v5163 = vmul.f32 %v5158, %v5162
    %v5165 = vsel %vm1397, %v5163, 0
    %5167 = vmatprep.subr.mxu0 0.0
    %5168 = vmatpush1.msra.mxu0 0.0
    %5169 = vmatprep.subr.mxu0 0.0
    %5170 = vmatpush1.msra.mxu0 0.0
    %5171 = vmatprep.subr.mxu0 0.0
    %5172 = vmatpush1.msra.mxu0 0.0
    %5173 = vmatprep.subr.mxu0 0.0
    %5174 = vmatpush1.msra.mxu0 0.0
    %5175 = vmatprep.subr.mxu0 0.0
    %5176 = vmatpush1.msra.mxu0 0.0
    %5177 = vmatprep.subr.mxu0 0.0
    %5178 = vmatpush1.msra.mxu0 0.0
    %5179 = vmatprep.subr.mxu0 0.0
    %5180 = vmatpush1.msra.mxu0 0.0
    %5181 = vmatprep.subr.mxu0 0.0
    %5182 = vmatpush1.msra.mxu0 0.0
    %5183 = vmatprep.subr.mxu0 0.0
    %5184 = vmatpush1.msra.mxu0 0.0
    %5185 = vmatprep.subr.mxu0 0.0
    %5186 = vmatpush1.msra.mxu0 0.0
    %5187 = vmatprep.subr.mxu0 0.0
    %5188 = vmatpush1.msra.mxu0 0.0
    %5189 = vmatprep.subr.mxu0 0.0
    %5190 = vmatpush1.msra.mxu0 0.0
    %5191 = vmatprep.subr.mxu0 0.0
    %5192 = vmatpush1.msra.mxu0 0.0
    %5193 = vmatprep.subr.mxu0 0.0
    %5194 = vmatpush1.msra.mxu0 0.0
    %5195 = vmatprep.subr.mxu0 0.0
    %5196 = vmatpush1.msra.mxu0 0.0
    %5197 = vmatprep.subr.mxu0 0.0
    %5198 = vmatpush1.msra.mxu0 %v4405
    %5199 = vmatprep.subr.mxu0 0.0
    %5200 = vmatpush2.msra.mxu0 0.0
    %5201 = vmatprep.subr.mxu0 0.0
    %5202 = vmatpush2.msra.mxu0 0.0
    %5203 = vmatprep.subr.mxu0 0.0
    %5204 = vmatpush2.msra.mxu0 0.0
    %5205 = vmatprep.subr.mxu0 0.0
    %5206 = vmatpush2.msra.mxu0 0.0
    %5207 = vmatprep.subr.mxu0 0.0
    %5208 = vmatpush2.msra.mxu0 0.0
    %5209 = vmatprep.subr.mxu0 0.0
    %5210 = vmatpush2.msra.mxu0 0.0
    %5211 = vmatprep.subr.mxu0 0.0
    %5212 = vmatpush2.msra.mxu0 0.0
    %5213 = vmatprep.subr.mxu0 0.0
    %5214 = vmatpush2.msra.mxu0 0.0
    %5215 = vmatprep.subr.mxu0 0.0
    %5216 = vmatpush2.msra.mxu0 0.0
    %5217 = vmatprep.subr.mxu0 0.0
    %5218 = vmatpush2.msra.mxu0 0.0
    %5219 = vmatprep.subr.mxu0 0.0
    %5220 = vmatpush2.msra.mxu0 0.0
    %5221 = vmatprep.subr.mxu0 0.0
    %5222 = vmatpush2.msra.mxu0 0.0
    %5223 = vmatprep.subr.mxu0 0.0
    %5224 = vmatpush2.msra.mxu0 0.0
    %5225 = vmatprep.subr.mxu0 0.0
    %5226 = vmatpush2.msra.mxu0 0.0
    %5227 = vmatprep.subr.mxu0 0.0
    %5228 = vmatpush2.msra.mxu0 0.0
    %5229 = vmatprep.subr.mxu0 0.0
    %5230 = vmatpush2.msra.mxu0 0.0
    %5231 = vmatprep.mubr.f32.mxu0 0.0
    %5232 = vmatmul.mubr.f32.gmra.mxu0 %v5165
    %v5233 = vpop.f32.mrf.mxu0
    %v5234 = vadd.f32 0.0, %v5233
    %v5235 = vpop.f32.mrf.mxu0
    %5236 = vdwg.mxu0
    %v5238 = vsel %vm1397, %v4495, 0
    %v5241 = vsel %vm1397, %v4583, 0
    %5243 = vmatprep.subr.mxu0 0.0
    %5244 = vmatpush1.xpose.msra.mxu0 0.0
    %5245 = vmatprep.subr.mxu0 0.0
    %5246 = vmatpush1.xpose.msra.mxu0 0.0
    %5247 = vmatprep.subr.mxu0 0.0
    %5248 = vmatpush1.xpose.msra.mxu0 0.0
    %5249 = vmatprep.subr.mxu0 0.0
    %5250 = vmatpush1.xpose.msra.mxu0 0.0
    %5251 = vmatprep.subr.mxu0 0.0
    %5252 = vmatpush1.xpose.msra.mxu0 0.0
    %5253 = vmatprep.subr.mxu0 0.0
    %5254 = vmatpush1.xpose.msra.mxu0 0.0
    %5255 = vmatprep.subr.mxu0 0.0
    %5256 = vmatpush1.xpose.msra.mxu0 0.0
    %5257 = vmatprep.subr.mxu0 0.0
    %5258 = vmatpush1.xpose.msra.mxu0 0.0
    %5259 = vmatprep.subr.mxu0 0.0
    %5260 = vmatpush1.xpose.msra.mxu0 0.0
    %5261 = vmatprep.subr.mxu0 0.0
    %5262 = vmatpush1.xpose.msra.mxu0 0.0
    %5263 = vmatprep.subr.mxu0 0.0
    %5264 = vmatpush1.xpose.msra.mxu0 0.0
    %5265 = vmatprep.subr.mxu0 0.0
    %5266 = vmatpush1.xpose.msra.mxu0 0.0
    %5267 = vmatprep.subr.mxu0 0.0
    %5268 = vmatpush1.xpose.msra.mxu0 0.0
    %5269 = vmatprep.subr.mxu0 0.0
    %5270 = vmatpush1.xpose.msra.mxu0 0.0
    %5271 = vmatprep.subr.mxu0 0.0
    %5272 = vmatpush1.xpose.msra.mxu0 0.0
    %5273 = vmatprep.subr.mxu0 0.0
    %5274 = vmatpush1.xpose.msra.mxu0 %v5241
    %5275 = vmatprep.subr.mxu0 0.0
    %5276 = vmatpush2.xpose.msra.mxu0 0.0
    %5277 = vmatprep.subr.mxu0 0.0
    %5278 = vmatpush2.xpose.msra.mxu0 0.0
    %5279 = vmatprep.subr.mxu0 0.0
    %5280 = vmatpush2.xpose.msra.mxu0 0.0
    %5281 = vmatprep.subr.mxu0 0.0
    %5282 = vmatpush2.xpose.msra.mxu0 0.0
    %5283 = vmatprep.subr.mxu0 0.0
    %5284 = vmatpush2.xpose.msra.mxu0 0.0
    %5285 = vmatprep.subr.mxu0 0.0
    %5286 = vmatpush2.xpose.msra.mxu0 0.0
    %5287 = vmatprep.subr.mxu0 0.0
    %5288 = vmatpush2.xpose.msra.mxu0 0.0
    %5289 = vmatprep.subr.mxu0 0.0
    %5290 = vmatpush2.xpose.msra.mxu0 0.0
    %5291 = vmatprep.subr.mxu0 0.0
    %5292 = vmatpush2.xpose.msra.mxu0 0.0
    %5293 = vmatprep.subr.mxu0 0.0
    %5294 = vmatpush2.xpose.msra.mxu0 0.0
    %5295 = vmatprep.subr.mxu0 0.0
    %5296 = vmatpush2.xpose.msra.mxu0 0.0
    %5297 = vmatprep.subr.mxu0 0.0
    %5298 = vmatpush2.xpose.msra.mxu0 0.0
    %5299 = vmatprep.subr.mxu0 0.0
    %5300 = vmatpush2.xpose.msra.mxu0 0.0
    %5301 = vmatprep.subr.mxu0 0.0
    %5302 = vmatpush2.xpose.msra.mxu0 0.0
    %5303 = vmatprep.subr.mxu0 0.0
    %5304 = vmatpush2.xpose.msra.mxu0 0.0
    %5305 = vmatprep.subr.mxu0 0.0
    %5306 = vmatpush2.xpose.msra.mxu0 0.0
    %5307 = vmatprep.mubr.f32.mxu0 0.0
    %5308 = vmatmul.mubr.f32.gmra.mxu0 %v5238
    %v5309 = vpop.f32.mrf.mxu0
    %v5310 = vadd.f32 0.0, %v5309
    %v5311 = vpop.f32.mrf.mxu0
    %5312 = vdwg.mxu0
    %v5313 = vmul.f32 %v5310, 0.35355338
    %v5314 = vsel %vm1397, %v5313, -inf
    %5315 = vmax.xlane.f32.xlu0 %v5314
    %v5316 = vpop.xlane.xlu0 %5315
    %v5317 = vsub.f32 %v5313, %v5316
    %v5318 = vmul.f32 %v5317, 1.442695
    %v5319 = vpow.pop %v5318
    %v5320 = vsel %vm1397, %v5319, 0.0
    %5321 = vadd.xlane.f32.xlu0 %v5320
    %v5322 = vpop.xlane.xlu0 %5321
    %v5323 = vrcp.pop %v5322
    %v5324 = vmul.f32 %v5319, %v5323
    %v5326 = vsel %vm1397, %v5324, 0
    %5328 = vmatprep.subr.mxu0 0.0
    %5329 = vmatpush1.msra.mxu0 0.0
    %5330 = vmatprep.subr.mxu0 0.0
    %5331 = vmatpush1.msra.mxu0 0.0
    %5332 = vmatprep.subr.mxu0 0.0
    %5333 = vmatpush1.msra.mxu0 0.0
    %5334 = vmatprep.subr.mxu0 0.0
    %5335 = vmatpush1.msra.mxu0 0.0
    %5336 = vmatprep.subr.mxu0 0.0
    %5337 = vmatpush1.msra.mxu0 0.0
    %5338 = vmatprep.subr.mxu0 0.0
    %5339 = vmatpush1.msra.mxu0 0.0
    %5340 = vmatprep.subr.mxu0 0.0
    %5341 = vmatpush1.msra.mxu0 0.0
    %5342 = vmatprep.subr.mxu0 0.0
    %5343 = vmatpush1.msra.mxu0 0.0
    %5344 = vmatprep.subr.mxu0 0.0
    %5345 = vmatpush1.msra.mxu0 0.0
    %5346 = vmatprep.subr.mxu0 0.0
    %5347 = vmatpush1.msra.mxu0 0.0
    %5348 = vmatprep.subr.mxu0 0.0
    %5349 = vmatpush1.msra.mxu0 0.0
    %5350 = vmatprep.subr.mxu0 0.0
    %5351 = vmatpush1.msra.mxu0 0.0
    %5352 = vmatprep.subr.mxu0 0.0
    %5353 = vmatpush1.msra.mxu0 0.0
    %5354 = vmatprep.subr.mxu0 0.0
    %5355 = vmatpush1.msra.mxu0 0.0
    %5356 = vmatprep.subr.mxu0 0.0
    %5357 = vmatpush1.msra.mxu0 0.0
    %5358 = vmatprep.subr.mxu0 0.0
    %5359 = vmatpush1.msra.mxu0 %v4671
    %5360 = vmatprep.subr.mxu0 0.0
    %5361 = vmatpush2.msra.mxu0 0.0
    %5362 = vmatprep.subr.mxu0 0.0
    %5363 = vmatpush2.msra.mxu0 0.0
    %5364 = vmatprep.subr.mxu0 0.0
    %5365 = vmatpush2.msra.mxu0 0.0
    %5366 = vmatprep.subr.mxu0 0.0
    %5367 = vmatpush2.msra.mxu0 0.0
    %5368 = vmatprep.subr.mxu0 0.0
    %5369 = vmatpush2.msra.mxu0 0.0
    %5370 = vmatprep.subr.mxu0 0.0
    %5371 = vmatpush2.msra.mxu0 0.0
    %5372 = vmatprep.subr.mxu0 0.0
    %5373 = vmatpush2.msra.mxu0 0.0
    %5374 = vmatprep.subr.mxu0 0.0
    %5375 = vmatpush2.msra.mxu0 0.0
    %5376 = vmatprep.subr.mxu0 0.0
    %5377 = vmatpush2.msra.mxu0 0.0
    %5378 = vmatprep.subr.mxu0 0.0
    %5379 = vmatpush2.msra.mxu0 0.0
    %5380 = vmatprep.subr.mxu0 0.0
    %5381 = vmatpush2.msra.mxu0 0.0
    %5382 = vmatprep.subr.mxu0 0.0
    %5383 = vmatpush2.msra.mxu0 0.0
    %5384 = vmatprep.subr.mxu0 0.0
    %5385 = vmatpush2.msra.mxu0 0.0
    %5386 = vmatprep.subr.mxu0 0.0
    %5387 = vmatpush2.msra.mxu0 0.0
    %5388 = vmatprep.subr.mxu0 0.0
    %5389 = vmatpush2.msra.mxu0 0.0
    %5390 = vmatprep.subr.mxu0 0.0
    %5391 = vmatpush2.msra.mxu0 0.0
    %5392 = vmatprep.mubr.f32.mxu0 0.0
    %5393 = vmatmul.mubr.f32.gmra.mxu0 %v5326
    %v5394 = vpop.f32.mrf.mxu0
    %v5395 = vadd.f32 0.0, %v5394
    %v5396 = vpop.f32.mrf.mxu0
    %5397 = vdwg.mxu0
    %v5399 = vsel %vm1397, %v5395, 0
    %5401 = vmatprep.subr.mxu0 0.0
    %5402 = vmatpush1.msra.mxu0 0.0
    %5403 = vmatprep.subr.mxu0 0.0
    %5404 = vmatpush1.msra.mxu0 0.0
    %5405 = vmatprep.subr.mxu0 0.0
    %5406 = vmatpush1.msra.mxu0 0.0
    %5407 = vmatprep.subr.mxu0 0.0
    %5408 = vmatpush1.msra.mxu0 0.0
    %5409 = vmatprep.subr.mxu0 0.0
    %5410 = vmatpush1.msra.mxu0 0.0
    %5411 = vmatprep.subr.mxu0 0.0
    %5412 = vmatpush1.msra.mxu0 0.0
    %5413 = vmatprep.subr.mxu0 0.0
    %5414 = vmatpush1.msra.mxu0 0.0
    %5415 = vmatprep.subr.mxu0 0.0
    %5416 = vmatpush1.msra.mxu0 0.0
    %5417 = vmatprep.subr.mxu0 0.0
    %5418 = vmatpush1.msra.mxu0 0.0
    %5419 = vmatprep.subr.mxu0 0.0
    %5420 = vmatpush1.msra.mxu0 0.0
    %5421 = vmatprep.subr.mxu0 0.0
    %5422 = vmatpush1.msra.mxu0 0.0
    %5423 = vmatprep.subr.mxu0 0.0
    %5424 = vmatpush1.msra.mxu0 0.0
    %5425 = vmatprep.subr.mxu0 0.0
    %5426 = vmatpush1.msra.mxu0 0.0
    %5427 = vmatprep.subr.mxu0 0.0
    %5428 = vmatpush1.msra.mxu0 0.0
    %5429 = vmatprep.subr.mxu0 0.0
    %5430 = vmatpush1.msra.mxu0 0.0
    %5431 = vmatprep.subr.mxu0 0.0
    %5432 = vmatpush1.msra.mxu0 %v4680
    %5433 = vmatprep.subr.mxu0 0.0
    %5434 = vmatpush2.msra.mxu0 0.0
    %5435 = vmatprep.subr.mxu0 0.0
    %5436 = vmatpush2.msra.mxu0 0.0
    %5437 = vmatprep.subr.mxu0 0.0
    %5438 = vmatpush2.msra.mxu0 0.0
    %5439 = vmatprep.subr.mxu0 0.0
    %5440 = vmatpush2.msra.mxu0 0.0
    %5441 = vmatprep.subr.mxu0 0.0
    %5442 = vmatpush2.msra.mxu0 0.0
    %5443 = vmatprep.subr.mxu0 0.0
    %5444 = vmatpush2.msra.mxu0 0.0
    %5445 = vmatprep.subr.mxu0 0.0
    %5446 = vmatpush2.msra.mxu0 0.0
    %5447 = vmatprep.subr.mxu0 0.0
    %5448 = vmatpush2.msra.mxu0 0.0
    %5449 = vmatprep.subr.mxu0 0.0
    %5450 = vmatpush2.msra.mxu0 0.0
    %5451 = vmatprep.subr.mxu0 0.0
    %5452 = vmatpush2.msra.mxu0 0.0
    %5453 = vmatprep.subr.mxu0 0.0
    %5454 = vmatpush2.msra.mxu0 0.0
    %5455 = vmatprep.subr.mxu0 0.0
    %5456 = vmatpush2.msra.mxu0 0.0
    %5457 = vmatprep.subr.mxu0 0.0
    %5458 = vmatpush2.msra.mxu0 0.0
    %5459 = vmatprep.subr.mxu0 0.0
    %5460 = vmatpush2.msra.mxu0 0.0
    %5461 = vmatprep.subr.mxu0 0.0
    %5462 = vmatpush2.msra.mxu0 0.0
    %5463 = vmatprep.subr.mxu0 0.0
    %5464 = vmatpush2.msra.mxu0 0.0
    %5465 = vmatprep.mubr.f32.mxu0 0.0
    %5466 = vmatmul.mubr.f32.gmra.mxu0 %v5399
    %v5467 = vpop.f32.mrf.mxu0
    %v5468 = vadd.f32 0.0, %v5467
    %v5469 = vpop.f32.mrf.mxu0
    %5470 = vdwg.mxu0
    %v5472 = vsel %vm1397, %v4839, 0
    %5474 = vmatprep.subr.mxu0 0.0
    %5475 = vmatpush1.msra.mxu0 0.0
    %5476 = vmatprep.subr.mxu0 0.0
    %5477 = vmatpush1.msra.mxu0 0.0
    %5478 = vmatprep.subr.mxu0 0.0
    %5479 = vmatpush1.msra.mxu0 0.0
    %5480 = vmatprep.subr.mxu0 0.0
    %5481 = vmatpush1.msra.mxu0 0.0
    %5482 = vmatprep.subr.mxu0 0.0
    %5483 = vmatpush1.msra.mxu0 0.0
    %5484 = vmatprep.subr.mxu0 0.0
    %5485 = vmatpush1.msra.mxu0 0.0
    %5486 = vmatprep.subr.mxu0 0.0
    %5487 = vmatpush1.msra.mxu0 0.0
    %5488 = vmatprep.subr.mxu0 0.0
    %5489 = vmatpush1.msra.mxu0 0.0
    %5490 = vmatprep.subr.mxu0 0.0
    %5491 = vmatpush1.msra.mxu0 0.0
    %5492 = vmatprep.subr.mxu0 0.0
    %5493 = vmatpush1.msra.mxu0 0.0
    %5494 = vmatprep.subr.mxu0 0.0
    %5495 = vmatpush1.msra.mxu0 0.0
    %5496 = vmatprep.subr.mxu0 0.0
    %5497 = vmatpush1.msra.mxu0 0.0
    %5498 = vmatprep.subr.mxu0 0.0
    %5499 = vmatpush1.msra.mxu0 0.0
    %5500 = vmatprep.subr.mxu0 0.0
    %5501 = vmatpush1.msra.mxu0 0.0
    %5502 = vmatprep.subr.mxu0 0.0
    %5503 = vmatpush1.msra.mxu0 0.0
    %5504 = vmatprep.subr.mxu0 0.0
    %5505 = vmatpush1.msra.mxu0 %v3882
    %5506 = vmatprep.subr.mxu0 0.0
    %5507 = vmatpush2.msra.mxu0 0.0
    %5508 = vmatprep.subr.mxu0 0.0
    %5509 = vmatpush2.msra.mxu0 0.0
    %5510 = vmatprep.subr.mxu0 0.0
    %5511 = vmatpush2.msra.mxu0 0.0
    %5512 = vmatprep.subr.mxu0 0.0
    %5513 = vmatpush2.msra.mxu0 0.0
    %5514 = vmatprep.subr.mxu0 0.0
    %5515 = vmatpush2.msra.mxu0 0.0
    %5516 = vmatprep.subr.mxu0 0.0
    %5517 = vmatpush2.msra.mxu0 0.0
    %5518 = vmatprep.subr.mxu0 0.0
    %5519 = vmatpush2.msra.mxu0 0.0
    %5520 = vmatprep.subr.mxu0 0.0
    %5521 = vmatpush2.msra.mxu0 0.0
    %5522 = vmatprep.subr.mxu0 0.0
    %5523 = vmatpush2.msra.mxu0 0.0
    %5524 = vmatprep.subr.mxu0 0.0
    %5525 = vmatpush2.msra.mxu0 0.0
    %5526 = vmatprep.subr.mxu0 0.0
    %5527 = vmatpush2.msra.mxu0 0.0
    %5528 = vmatprep.subr.mxu0 0.0
    %5529 = vmatpush2.msra.mxu0 0.0
    %5530 = vmatprep.subr.mxu0 0.0
    %5531 = vmatpush2.msra.mxu0 0.0
    %5532 = vmatprep.subr.mxu0 0.0
    %5533 = vmatpush2.msra.mxu0 0.0
    %5534 = vmatprep.subr.mxu0 0.0
    %5535 = vmatpush2.msra.mxu0 0.0
    %5536 = vmatprep.subr.mxu0 0.0
    %5537 = vmatpush2.msra.mxu0 0.0
    %5538 = vmatprep.mubr.f32.mxu0 0.0
    %5539 = vmatmul.mubr.f32.gmra.mxu0 %v5472
    %v5540 = vpop.f32.mrf.mxu0
    %v5541 = vadd.f32 %v5073, %v5540
    %v5542 = vpop.f32.mrf.mxu0
    %5543 = vdwg.mxu0
    %v5545 = vsel %vm1397, %v5234, 0
    %5547 = vmatprep.subr.mxu0 0.0
    %5548 = vmatpush1.msra.mxu0 0.0
    %5549 = vmatprep.subr.mxu0 0.0
    %5550 = vmatpush1.msra.mxu0 0.0
    %5551 = vmatprep.subr.mxu0 0.0
    %5552 = vmatpush1.msra.mxu0 0.0
    %5553 = vmatprep.subr.mxu0 0.0
    %5554 = vmatpush1.msra.mxu0 0.0
    %5555 = vmatprep.subr.mxu0 0.0
    %5556 = vmatpush1.msra.mxu0 0.0
    %5557 = vmatprep.subr.mxu0 0.0
    %5558 = vmatpush1.msra.mxu0 0.0
    %5559 = vmatprep.subr.mxu0 0.0
    %5560 = vmatpush1.msra.mxu0 0.0
    %5561 = vmatprep.subr.mxu0 0.0
    %5562 = vmatpush1.msra.mxu0 0.0
    %5563 = vmatprep.subr.mxu0 0.0
    %5564 = vmatpush1.msra.mxu0 0.0
    %5565 = vmatprep.subr.mxu0 0.0
    %5566 = vmatpush1.msra.mxu0 0.0
    %5567 = vmatprep.subr.mxu0 0.0
    %5568 = vmatpush1.msra.mxu0 0.0
    %5569 = vmatprep.subr.mxu0 0.0
    %5570 = vmatpush1.msra.mxu0 0.0
    %5571 = vmatprep.subr.mxu0 0.0
    %5572 = vmatpush1.msra.mxu0 0.0
    %5573 = vmatprep.subr.mxu0 0.0
    %5574 = vmatpush1.msra.mxu0 0.0
    %5575 = vmatprep.subr.mxu0 0.0
    %5576 = vmatpush1.msra.mxu0 0.0
    %5577 = vmatprep.subr.mxu0 0.0
    %5578 = vmatpush1.msra.mxu0 %v4414
    %5579 = vmatprep.subr.mxu0 0.0
    %5580 = vmatpush2.msra.mxu0 0.0
    %5581 = vmatprep.subr.mxu0 0.0
    %5582 = vmatpush2.msra.mxu0 0.0
    %5583 = vmatprep.subr.mxu0 0.0
    %5584 = vmatpush2.msra.mxu0 0.0
    %5585 = vmatprep.subr.mxu0 0.0
    %5586 = vmatpush2.msra.mxu0 0.0
    %5587 = vmatprep.subr.mxu0 0.0
    %5588 = vmatpush2.msra.mxu0 0.0
    %5589 = vmatprep.subr.mxu0 0.0
    %5590 = vmatpush2.msra.mxu0 0.0
    %5591 = vmatprep.subr.mxu0 0.0
    %5592 = vmatpush2.msra.mxu0 0.0
    %5593 = vmatprep.subr.mxu0 0.0
    %5594 = vmatpush2.msra.mxu0 0.0
    %5595 = vmatprep.subr.mxu0 0.0
    %5596 = vmatpush2.msra.mxu0 0.0
    %5597 = vmatprep.subr.mxu0 0.0
    %5598 = vmatpush2.msra.mxu0 0.0
    %5599 = vmatprep.subr.mxu0 0.0
    %5600 = vmatpush2.msra.mxu0 0.0
    %5601 = vmatprep.subr.mxu0 0.0
    %5602 = vmatpush2.msra.mxu0 0.0
    %5603 = vmatprep.subr.mxu0 0.0
    %5604 = vmatpush2.msra.mxu0 0.0
    %5605 = vmatprep.subr.mxu0 0.0
    %5606 = vmatpush2.msra.mxu0 0.0
    %5607 = vmatprep.subr.mxu0 0.0
    %5608 = vmatpush2.msra.mxu0 0.0
    %5609 = vmatprep.subr.mxu0 0.0
    %5610 = vmatpush2.msra.mxu0 0.0
    %5611 = vmatprep.mubr.f32.mxu0 0.0
    %5612 = vmatmul.mubr.f32.gmra.mxu0 %v5545
    %v5613 = vpop.f32.mrf.mxu0
    %v5614 = vadd.f32 %v5468, %v5613
    %v5615 = vpop.f32.mrf.mxu0
    %5616 = vdwg.mxu0
    %v5617 = vadd.f32 %v5541, %v5614
    %v5619 = vsel %vm1397, %v3707, 0
    %v5622 = vsel %vm1397, %v3793, 0
    %5624 = vmatprep.subr.mxu0 0.0
    %5625 = vmatpush1.xpose.msra.mxu0 0.0
    %5626 = vmatprep.subr.mxu0 0.0
    %5627 = vmatpush1.xpose.msra.mxu0 0.0
    %5628 = vmatprep.subr.mxu0 0.0
    %5629 = vmatpush1.xpose.msra.mxu0 0.0
    %5630 = vmatprep.subr.mxu0 0.0
    %5631 = vmatpush1.xpose.msra.mxu0 0.0
    %5632 = vmatprep.subr.mxu0 0.0
    %5633 = vmatpush1.xpose.msra.mxu0 0.0
    %5634 = vmatprep.subr.mxu0 0.0
    %5635 = vmatpush1.xpose.msra.mxu0 0.0
    %5636 = vmatprep.subr.mxu0 0.0
    %5637 = vmatpush1.xpose.msra.mxu0 0.0
    %5638 = vmatprep.subr.mxu0 0.0
    %5639 = vmatpush1.xpose.msra.mxu0 0.0
    %5640 = vmatprep.subr.mxu0 0.0
    %5641 = vmatpush1.xpose.msra.mxu0 0.0
    %5642 = vmatprep.subr.mxu0 0.0
    %5643 = vmatpush1.xpose.msra.mxu0 0.0
    %5644 = vmatprep.subr.mxu0 0.0
    %5645 = vmatpush1.xpose.msra.mxu0 0.0
    %5646 = vmatprep.subr.mxu0 0.0
    %5647 = vmatpush1.xpose.msra.mxu0 0.0
    %5648 = vmatprep.subr.mxu0 0.0
    %5649 = vmatpush1.xpose.msra.mxu0 0.0
    %5650 = vmatprep.subr.mxu0 0.0
    %5651 = vmatpush1.xpose.msra.mxu0 0.0
    %5652 = vmatprep.subr.mxu0 0.0
    %5653 = vmatpush1.xpose.msra.mxu0 0.0
    %5654 = vmatprep.subr.mxu0 0.0
    %5655 = vmatpush1.xpose.msra.mxu0 %v5622
    %5656 = vmatprep.subr.mxu0 0.0
    %5657 = vmatpush2.xpose.msra.mxu0 0.0
    %5658 = vmatprep.subr.mxu0 0.0
    %5659 = vmatpush2.xpose.msra.mxu0 0.0
    %5660 = vmatprep.subr.mxu0 0.0
    %5661 = vmatpush2.xpose.msra.mxu0 0.0
    %5662 = vmatprep.subr.mxu0 0.0
    %5663 = vmatpush2.xpose.msra.mxu0 0.0
    %5664 = vmatprep.subr.mxu0 0.0
    %5665 = vmatpush2.xpose.msra.mxu0 0.0
    %5666 = vmatprep.subr.mxu0 0.0
    %5667 = vmatpush2.xpose.msra.mxu0 0.0
    %5668 = vmatprep.subr.mxu0 0.0
    %5669 = vmatpush2.xpose.msra.mxu0 0.0
    %5670 = vmatprep.subr.mxu0 0.0
    %5671 = vmatpush2.xpose.msra.mxu0 0.0
    %5672 = vmatprep.subr.mxu0 0.0
    %5673 = vmatpush2.xpose.msra.mxu0 0.0
    %5674 = vmatprep.subr.mxu0 0.0
    %5675 = vmatpush2.xpose.msra.mxu0 0.0
    %5676 = vmatprep.subr.mxu0 0.0
    %5677 = vmatpush2.xpose.msra.mxu0 0.0
    %5678 = vmatprep.subr.mxu0 0.0
    %5679 = vmatpush2.xpose.msra.mxu0 0.0
    %5680 = vmatprep.subr.mxu0 0.0
    %5681 = vmatpush2.xpose.msra.mxu0 0.0
    %5682 = vmatprep.subr.mxu0 0.0
    %5683 = vmatpush2.xpose.msra.mxu0 0.0
    %5684 = vmatprep.subr.mxu0 0.0
    %5685 = vmatpush2.xpose.msra.mxu0 0.0
    %5686 = vmatprep.subr.mxu0 0.0
    %5687 = vmatpush2.xpose.msra.mxu0 0.0
    %5688 = vmatprep.mubr.f32.mxu0 0.0
    %5689 = vmatmul.mubr.f32.gmra.mxu0 %v5619
    %v5690 = vpop.f32.mrf.mxu0
    %v5691 = vadd.f32 0.0, %v5690
    %v5692 = vpop.f32.mrf.mxu0
    %5693 = vdwg.mxu0
    %v5694 = vmul.f32 %v5691, 0.35355338
    %v5695 = vsel %vm1397, %v5694, -inf
    %5696 = vmax.xlane.f32.xlu0 %v5695
    %v5697 = vpop.xlane.xlu0 %5696
    %v5698 = vsub.f32 %v5694, %v5697
    %v5699 = vmul.f32 %v5698, 1.442695
    %v5700 = vpow.pop %v5699
    %v5701 = vsel %vm1397, %v5700, 0.0
    %5702 = vadd.xlane.f32.xlu0 %v5701
    %v5703 = vpop.xlane.xlu0 %5702
    %v5704 = vrcp.pop %v5703
    %v5705 = vmul.f32 %v5700, %v5704
    %v5707 = vsel %vm1397, %v5705, 0
    %5709 = vmatprep.subr.mxu0 0.0
    %5710 = vmatpush1.msra.mxu0 0.0
    %5711 = vmatprep.subr.mxu0 0.0
    %5712 = vmatpush1.msra.mxu0 0.0
    %5713 = vmatprep.subr.mxu0 0.0
    %5714 = vmatpush1.msra.mxu0 0.0
    %5715 = vmatprep.subr.mxu0 0.0
    %5716 = vmatpush1.msra.mxu0 0.0
    %5717 = vmatprep.subr.mxu0 0.0
    %5718 = vmatpush1.msra.mxu0 0.0
    %5719 = vmatprep.subr.mxu0 0.0
    %5720 = vmatpush1.msra.mxu0 0.0
    %5721 = vmatprep.subr.mxu0 0.0
    %5722 = vmatpush1.msra.mxu0 0.0
    %5723 = vmatprep.subr.mxu0 0.0
    %5724 = vmatpush1.msra.mxu0 0.0
    %5725 = vmatprep.subr.mxu0 0.0
    %5726 = vmatpush1.msra.mxu0 0.0
    %5727 = vmatprep.subr.mxu0 0.0
    %5728 = vmatpush1.msra.mxu0 0.0
    %5729 = vmatprep.subr.mxu0 0.0
    %5730 = vmatpush1.msra.mxu0 0.0
    %5731 = vmatprep.subr.mxu0 0.0
    %5732 = vmatpush1.msra.mxu0 0.0
    %5733 = vmatprep.subr.mxu0 0.0
    %5734 = vmatpush1.msra.mxu0 0.0
    %5735 = vmatprep.subr.mxu0 0.0
    %5736 = vmatpush1.msra.mxu0 0.0
    %5737 = vmatprep.subr.mxu0 0.0
    %5738 = vmatpush1.msra.mxu0 0.0
    %5739 = vmatprep.subr.mxu0 0.0
    %5740 = vmatpush1.msra.mxu0 %v3879
    %5741 = vmatprep.subr.mxu0 0.0
    %5742 = vmatpush2.msra.mxu0 0.0
    %5743 = vmatprep.subr.mxu0 0.0
    %5744 = vmatpush2.msra.mxu0 0.0
    %5745 = vmatprep.subr.mxu0 0.0
    %5746 = vmatpush2.msra.mxu0 0.0
    %5747 = vmatprep.subr.mxu0 0.0
    %5748 = vmatpush2.msra.mxu0 0.0
    %5749 = vmatprep.subr.mxu0 0.0
    %5750 = vmatpush2.msra.mxu0 0.0
    %5751 = vmatprep.subr.mxu0 0.0
    %5752 = vmatpush2.msra.mxu0 0.0
    %5753 = vmatprep.subr.mxu0 0.0
    %5754 = vmatpush2.msra.mxu0 0.0
    %5755 = vmatprep.subr.mxu0 0.0
    %5756 = vmatpush2.msra.mxu0 0.0
    %5757 = vmatprep.subr.mxu0 0.0
    %5758 = vmatpush2.msra.mxu0 0.0
    %5759 = vmatprep.subr.mxu0 0.0
    %5760 = vmatpush2.msra.mxu0 0.0
    %5761 = vmatprep.subr.mxu0 0.0
    %5762 = vmatpush2.msra.mxu0 0.0
    %5763 = vmatprep.subr.mxu0 0.0
    %5764 = vmatpush2.msra.mxu0 0.0
    %5765 = vmatprep.subr.mxu0 0.0
    %5766 = vmatpush2.msra.mxu0 0.0
    %5767 = vmatprep.subr.mxu0 0.0
    %5768 = vmatpush2.msra.mxu0 0.0
    %5769 = vmatprep.subr.mxu0 0.0
    %5770 = vmatpush2.msra.mxu0 0.0
    %5771 = vmatprep.subr.mxu0 0.0
    %5772 = vmatpush2.msra.mxu0 0.0
    %5773 = vmatprep.mubr.f32.mxu0 0.0
    %5774 = vmatmul.mubr.f32.gmra.mxu0 %v5707
    %v5775 = vpop.f32.mrf.mxu0
    %v5776 = vadd.f32 0.0, %v5775
    %v5777 = vpop.f32.mrf.mxu0
    %5778 = vdwg.mxu0
    %v5780 = vsel %vm1397, %v3968, 0
    %v5783 = vsel %vm1397, %v4056, 0
    %5785 = vmatprep.subr.mxu0 0.0
    %5786 = vmatpush1.xpose.msra.mxu0 0.0
    %5787 = vmatprep.subr.mxu0 0.0
    %5788 = vmatpush1.xpose.msra.mxu0 0.0
    %5789 = vmatprep.subr.mxu0 0.0
    %5790 = vmatpush1.xpose.msra.mxu0 0.0
    %5791 = vmatprep.subr.mxu0 0.0
    %5792 = vmatpush1.xpose.msra.mxu0 0.0
    %5793 = vmatprep.subr.mxu0 0.0
    %5794 = vmatpush1.xpose.msra.mxu0 0.0
    %5795 = vmatprep.subr.mxu0 0.0
    %5796 = vmatpush1.xpose.msra.mxu0 0.0
    %5797 = vmatprep.subr.mxu0 0.0
    %5798 = vmatpush1.xpose.msra.mxu0 0.0
    %5799 = vmatprep.subr.mxu0 0.0
    %5800 = vmatpush1.xpose.msra.mxu0 0.0
    %5801 = vmatprep.subr.mxu0 0.0
    %5802 = vmatpush1.xpose.msra.mxu0 0.0
    %5803 = vmatprep.subr.mxu0 0.0
    %5804 = vmatpush1.xpose.msra.mxu0 0.0
    %5805 = vmatprep.subr.mxu0 0.0
    %5806 = vmatpush1.xpose.msra.mxu0 0.0
    %5807 = vmatprep.subr.mxu0 0.0
    %5808 = vmatpush1.xpose.msra.mxu0 0.0
    %5809 = vmatprep.subr.mxu0 0.0
    %5810 = vmatpush1.xpose.msra.mxu0 0.0
    %5811 = vmatprep.subr.mxu0 0.0
    %5812 = vmatpush1.xpose.msra.mxu0 0.0
    %5813 = vmatprep.subr.mxu0 0.0
    %5814 = vmatpush1.xpose.msra.mxu0 0.0
    %5815 = vmatprep.subr.mxu0 0.0
    %5816 = vmatpush1.xpose.msra.mxu0 %v5783
    %5817 = vmatprep.subr.mxu0 0.0
    %5818 = vmatpush2.xpose.msra.mxu0 0.0
    %5819 = vmatprep.subr.mxu0 0.0
    %5820 = vmatpush2.xpose.msra.mxu0 0.0
    %5821 = vmatprep.subr.mxu0 0.0
    %5822 = vmatpush2.xpose.msra.mxu0 0.0
    %5823 = vmatprep.subr.mxu0 0.0
    %5824 = vmatpush2.xpose.msra.mxu0 0.0
    %5825 = vmatprep.subr.mxu0 0.0
    %5826 = vmatpush2.xpose.msra.mxu0 0.0
    %5827 = vmatprep.subr.mxu0 0.0
    %5828 = vmatpush2.xpose.msra.mxu0 0.0
    %5829 = vmatprep.subr.mxu0 0.0
    %5830 = vmatpush2.xpose.msra.mxu0 0.0
    %5831 = vmatprep.subr.mxu0 0.0
    %5832 = vmatpush2.xpose.msra.mxu0 0.0
    %5833 = vmatprep.subr.mxu0 0.0
    %5834 = vmatpush2.xpose.msra.mxu0 0.0
    %5835 = vmatprep.subr.mxu0 0.0
    %5836 = vmatpush2.xpose.msra.mxu0 0.0
    %5837 = vmatprep.subr.mxu0 0.0
    %5838 = vmatpush2.xpose.msra.mxu0 0.0
    %5839 = vmatprep.subr.mxu0 0.0
    %5840 = vmatpush2.xpose.msra.mxu0 0.0
    %5841 = vmatprep.subr.mxu0 0.0
    %5842 = vmatpush2.xpose.msra.mxu0 0.0
    %5843 = vmatprep.subr.mxu0 0.0
    %5844 = vmatpush2.xpose.msra.mxu0 0.0
    %5845 = vmatprep.subr.mxu0 0.0
    %5846 = vmatpush2.xpose.msra.mxu0 0.0
    %5847 = vmatprep.subr.mxu0 0.0
    %5848 = vmatpush2.xpose.msra.mxu0 0.0
    %5849 = vmatprep.mubr.f32.mxu0 0.0
    %5850 = vmatmul.mubr.f32.gmra.mxu0 %v5780
    %v5851 = vpop.f32.mrf.mxu0
    %v5852 = vadd.f32 0.0, %v5851
    %v5853 = vpop.f32.mrf.mxu0
    %5854 = vdwg.mxu0
    %v5855 = vmul.f32 %v5852, 0.35355338
    %v5856 = vsel %vm1397, %v5855, -inf
    %5857 = vmax.xlane.f32.xlu0 %v5856
    %v5858 = vpop.xlane.xlu0 %5857
    %v5859 = vsub.f32 %v5855, %v5858
    %v5860 = vmul.f32 %v5859, 1.442695
    %v5861 = vpow.pop %v5860
    %v5862 = vsel %vm1397, %v5861, 0.0
    %5863 = vadd.xlane.f32.xlu0 %v5862
    %v5864 = vpop.xlane.xlu0 %5863
    %v5865 = vrcp.pop %v5864
    %v5866 = vmul.f32 %v5861, %v5865
    %v5868 = vsel %vm1397, %v5866, 0
    %5870 = vmatprep.subr.mxu0 0.0
    %5871 = vmatpush1.msra.mxu0 0.0
    %5872 = vmatprep.subr.mxu0 0.0
    %5873 = vmatpush1.msra.mxu0 0.0
    %5874 = vmatprep.subr.mxu0 0.0
    %5875 = vmatpush1.msra.mxu0 0.0
    %5876 = vmatprep.subr.mxu0 0.0
    %5877 = vmatpush1.msra.mxu0 0.0
    %5878 = vmatprep.subr.mxu0 0.0
    %5879 = vmatpush1.msra.mxu0 0.0
    %5880 = vmatprep.subr.mxu0 0.0
    %5881 = vmatpush1.msra.mxu0 0.0
    %5882 = vmatprep.subr.mxu0 0.0
    %5883 = vmatpush1.msra.mxu0 0.0
    %5884 = vmatprep.subr.mxu0 0.0
    %5885 = vmatpush1.msra.mxu0 0.0
    %5886 = vmatprep.subr.mxu0 0.0
    %5887 = vmatpush1.msra.mxu0 0.0
    %5888 = vmatprep.subr.mxu0 0.0
    %5889 = vmatpush1.msra.mxu0 0.0
    %5890 = vmatprep.subr.mxu0 0.0
    %5891 = vmatpush1.msra.mxu0 0.0
    %5892 = vmatprep.subr.mxu0 0.0
    %5893 = vmatpush1.msra.mxu0 0.0
    %5894 = vmatprep.subr.mxu0 0.0
    %5895 = vmatpush1.msra.mxu0 0.0
    %5896 = vmatprep.subr.mxu0 0.0
    %5897 = vmatpush1.msra.mxu0 0.0
    %5898 = vmatprep.subr.mxu0 0.0
    %5899 = vmatpush1.msra.mxu0 0.0
    %5900 = vmatprep.subr.mxu0 0.0
    %5901 = vmatpush1.msra.mxu0 %v4144
    %5902 = vmatprep.subr.mxu0 0.0
    %5903 = vmatpush2.msra.mxu0 0.0
    %5904 = vmatprep.subr.mxu0 0.0
    %5905 = vmatpush2.msra.mxu0 0.0
    %5906 = vmatprep.subr.mxu0 0.0
    %5907 = vmatpush2.msra.mxu0 0.0
    %5908 = vmatprep.subr.mxu0 0.0
    %5909 = vmatpush2.msra.mxu0 0.0
    %5910 = vmatprep.subr.mxu0 0.0
    %5911 = vmatpush2.msra.mxu0 0.0
    %5912 = vmatprep.subr.mxu0 0.0
    %5913 = vmatpush2.msra.mxu0 0.0
    %5914 = vmatprep.subr.mxu0 0.0
    %5915 = vmatpush2.msra.mxu0 0.0
    %5916 = vmatprep.subr.mxu0 0.0
    %5917 = vmatpush2.msra.mxu0 0.0
    %5918 = vmatprep.subr.mxu0 0.0
    %5919 = vmatpush2.msra.mxu0 0.0
    %5920 = vmatprep.subr.mxu0 0.0
    %5921 = vmatpush2.msra.mxu0 0.0
    %5922 = vmatprep.subr.mxu0 0.0
    %5923 = vmatpush2.msra.mxu0 0.0
    %5924 = vmatprep.subr.mxu0 0.0
    %5925 = vmatpush2.msra.mxu0 0.0
    %5926 = vmatprep.subr.mxu0 0.0
    %5927 = vmatpush2.msra.mxu0 0.0
    %5928 = vmatprep.subr.mxu0 0.0
    %5929 = vmatpush2.msra.mxu0 0.0
    %5930 = vmatprep.subr.mxu0 0.0
    %5931 = vmatpush2.msra.mxu0 0.0
    %5932 = vmatprep.subr.mxu0 0.0
    %5933 = vmatpush2.msra.mxu0 0.0
    %5934 = vmatprep.mubr.f32.mxu0 0.0
    %5935 = vmatmul.mubr.f32.gmra.mxu0 %v5868
    %v5936 = vpop.f32.mrf.mxu0
    %v5937 = vadd.f32 0.0, %v5936
    %v5938 = vpop.f32.mrf.mxu0
    %5939 = vdwg.mxu0
    %v5941 = vsel %vm1397, %v5937, 0
    %5943 = vmatprep.subr.mxu0 0.0
    %5944 = vmatpush1.msra.mxu0 0.0
    %5945 = vmatprep.subr.mxu0 0.0
    %5946 = vmatpush1.msra.mxu0 0.0
    %5947 = vmatprep.subr.mxu0 0.0
    %5948 = vmatpush1.msra.mxu0 0.0
    %5949 = vmatprep.subr.mxu0 0.0
    %5950 = vmatpush1.msra.mxu0 0.0
    %5951 = vmatprep.subr.mxu0 0.0
    %5952 = vmatpush1.msra.mxu0 0.0
    %5953 = vmatprep.subr.mxu0 0.0
    %5954 = vmatpush1.msra.mxu0 0.0
    %5955 = vmatprep.subr.mxu0 0.0
    %5956 = vmatpush1.msra.mxu0 0.0
    %5957 = vmatprep.subr.mxu0 0.0
    %5958 = vmatpush1.msra.mxu0 0.0
    %5959 = vmatprep.subr.mxu0 0.0
    %5960 = vmatpush1.msra.mxu0 0.0
    %5961 = vmatprep.subr.mxu0 0.0
    %5962 = vmatpush1.msra.mxu0 0.0
    %5963 = vmatprep.subr.mxu0 0.0
    %5964 = vmatpush1.msra.mxu0 0.0
    %5965 = vmatprep.subr.mxu0 0.0
    %5966 = vmatpush1.msra.mxu0 0.0
    %5967 = vmatprep.subr.mxu0 0.0
    %5968 = vmatpush1.msra.mxu0 0.0
    %5969 = vmatprep.subr.mxu0 0.0
    %5970 = vmatpush1.msra.mxu0 0.0
    %5971 = vmatprep.subr.mxu0 0.0
    %5972 = vmatpush1.msra.mxu0 0.0
    %5973 = vmatprep.subr.mxu0 0.0
    %5974 = vmatpush1.msra.mxu0 %v4148
    %5975 = vmatprep.subr.mxu0 0.0
    %5976 = vmatpush2.msra.mxu0 0.0
    %5977 = vmatprep.subr.mxu0 0.0
    %5978 = vmatpush2.msra.mxu0 0.0
    %5979 = vmatprep.subr.mxu0 0.0
    %5980 = vmatpush2.msra.mxu0 0.0
    %5981 = vmatprep.subr.mxu0 0.0
    %5982 = vmatpush2.msra.mxu0 0.0
    %5983 = vmatprep.subr.mxu0 0.0
    %5984 = vmatpush2.msra.mxu0 0.0
    %5985 = vmatprep.subr.mxu0 0.0
    %5986 = vmatpush2.msra.mxu0 0.0
    %5987 = vmatprep.subr.mxu0 0.0
    %5988 = vmatpush2.msra.mxu0 0.0
    %5989 = vmatprep.subr.mxu0 0.0
    %5990 = vmatpush2.msra.mxu0 0.0
    %5991 = vmatprep.subr.mxu0 0.0
    %5992 = vmatpush2.msra.mxu0 0.0
    %5993 = vmatprep.subr.mxu0 0.0
    %5994 = vmatpush2.msra.mxu0 0.0
    %5995 = vmatprep.subr.mxu0 0.0
    %5996 = vmatpush2.msra.mxu0 0.0
    %5997 = vmatprep.subr.mxu0 0.0
    %5998 = vmatpush2.msra.mxu0 0.0
    %5999 = vmatprep.subr.mxu0 0.0
    %6000 = vmatpush2.msra.mxu0 0.0
    %6001 = vmatprep.subr.mxu0 0.0
    %6002 = vmatpush2.msra.mxu0 0.0
    %6003 = vmatprep.subr.mxu0 0.0
    %6004 = vmatpush2.msra.mxu0 0.0
    %6005 = vmatprep.subr.mxu0 0.0
    %6006 = vmatpush2.msra.mxu0 0.0
    %6007 = vmatprep.mubr.f32.mxu0 0.0
    %6008 = vmatmul.mubr.f32.gmra.mxu0 %v5941
    %v6009 = vpop.f32.mrf.mxu0
    %v6010 = vadd.f32 0.0, %v6009
    %v6011 = vpop.f32.mrf.mxu0
    %6012 = vdwg.mxu0
    %v6014 = vsel %vm1397, %v4234, 0
    %v6017 = vsel %vm1397, %v4322, 0
    %6019 = vmatprep.subr.mxu0 0.0
    %6020 = vmatpush1.xpose.msra.mxu0 0.0
    %6021 = vmatprep.subr.mxu0 0.0
    %6022 = vmatpush1.xpose.msra.mxu0 0.0
    %6023 = vmatprep.subr.mxu0 0.0
    %6024 = vmatpush1.xpose.msra.mxu0 0.0
    %6025 = vmatprep.subr.mxu0 0.0
    %6026 = vmatpush1.xpose.msra.mxu0 0.0
    %6027 = vmatprep.subr.mxu0 0.0
    %6028 = vmatpush1.xpose.msra.mxu0 0.0
    %6029 = vmatprep.subr.mxu0 0.0
    %6030 = vmatpush1.xpose.msra.mxu0 0.0
    %6031 = vmatprep.subr.mxu0 0.0
    %6032 = vmatpush1.xpose.msra.mxu0 0.0
    %6033 = vmatprep.subr.mxu0 0.0
    %6034 = vmatpush1.xpose.msra.mxu0 0.0
    %6035 = vmatprep.subr.mxu0 0.0
    %6036 = vmatpush1.xpose.msra.mxu0 0.0
    %6037 = vmatprep.subr.mxu0 0.0
    %6038 = vmatpush1.xpose.msra.mxu0 0.0
    %6039 = vmatprep.subr.mxu0 0.0
    %6040 = vmatpush1.xpose.msra.mxu0 0.0
    %6041 = vmatprep.subr.mxu0 0.0
    %6042 = vmatpush1.xpose.msra.mxu0 0.0
    %6043 = vmatprep.subr.mxu0 0.0
    %6044 = vmatpush1.xpose.msra.mxu0 0.0
    %6045 = vmatprep.subr.mxu0 0.0
    %6046 = vmatpush1.xpose.msra.mxu0 0.0
    %6047 = vmatprep.subr.mxu0 0.0
    %6048 = vmatpush1.xpose.msra.mxu0 0.0
    %6049 = vmatprep.subr.mxu0 0.0
    %6050 = vmatpush1.xpose.msra.mxu0 %v6017
    %6051 = vmatprep.subr.mxu0 0.0
    %6052 = vmatpush2.xpose.msra.mxu0 0.0
    %6053 = vmatprep.subr.mxu0 0.0
    %6054 = vmatpush2.xpose.msra.mxu0 0.0
    %6055 = vmatprep.subr.mxu0 0.0
    %6056 = vmatpush2.xpose.msra.mxu0 0.0
    %6057 = vmatprep.subr.mxu0 0.0
    %6058 = vmatpush2.xpose.msra.mxu0 0.0
    %6059 = vmatprep.subr.mxu0 0.0
    %6060 = vmatpush2.xpose.msra.mxu0 0.0
    %6061 = vmatprep.subr.mxu0 0.0
    %6062 = vmatpush2.xpose.msra.mxu0 0.0
    %6063 = vmatprep.subr.mxu0 0.0
    %6064 = vmatpush2.xpose.msra.mxu0 0.0
    %6065 = vmatprep.subr.mxu0 0.0
    %6066 = vmatpush2.xpose.msra.mxu0 0.0
    %6067 = vmatprep.subr.mxu0 0.0
    %6068 = vmatpush2.xpose.msra.mxu0 0.0
    %6069 = vmatprep.subr.mxu0 0.0
    %6070 = vmatpush2.xpose.msra.mxu0 0.0
    %6071 = vmatprep.subr.mxu0 0.0
    %6072 = vmatpush2.xpose.msra.mxu0 0.0
    %6073 = vmatprep.subr.mxu0 0.0
    %6074 = vmatpush2.xpose.msra.mxu0 0.0
    %6075 = vmatprep.subr.mxu0 0.0
    %6076 = vmatpush2.xpose.msra.mxu0 0.0
    %6077 = vmatprep.subr.mxu0 0.0
    %6078 = vmatpush2.xpose.msra.mxu0 0.0
    %6079 = vmatprep.subr.mxu0 0.0
    %6080 = vmatpush2.xpose.msra.mxu0 0.0
    %6081 = vmatprep.subr.mxu0 0.0
    %6082 = vmatpush2.xpose.msra.mxu0 0.0
    %6083 = vmatprep.mubr.f32.mxu0 0.0
    %6084 = vmatmul.mubr.f32.gmra.mxu0 %v6014
    %v6085 = vpop.f32.mrf.mxu0
    %v6086 = vadd.f32 0.0, %v6085
    %v6087 = vpop.f32.mrf.mxu0
    %6088 = vdwg.mxu0
    %v6089 = vmul.f32 %v6086, 0.35355338
    %v6090 = vsel %vm1397, %v6089, -inf
    %6091 = vmax.xlane.f32.xlu0 %v6090
    %v6092 = vpop.xlane.xlu0 %6091
    %v6093 = vsub.f32 %v6089, %v6092
    %v6094 = vmul.f32 %v6093, 1.442695
    %v6095 = vpow.pop %v6094
    %v6096 = vsel %vm1397, %v6095, 0.0
    %6097 = vadd.xlane.f32.xlu0 %v6096
    %v6098 = vpop.xlane.xlu0 %6097
    %v6099 = vrcp.pop %v6098
    %v6100 = vmul.f32 %v6095, %v6099
    %v6102 = vsel %vm1397, %v6100, 0
    %6104 = vmatprep.subr.mxu0 0.0
    %6105 = vmatpush1.msra.mxu0 0.0
    %6106 = vmatprep.subr.mxu0 0.0
    %6107 = vmatpush1.msra.mxu0 0.0
    %6108 = vmatprep.subr.mxu0 0.0
    %6109 = vmatpush1.msra.mxu0 0.0
    %6110 = vmatprep.subr.mxu0 0.0
    %6111 = vmatpush1.msra.mxu0 0.0
    %6112 = vmatprep.subr.mxu0 0.0
    %6113 = vmatpush1.msra.mxu0 0.0
    %6114 = vmatprep.subr.mxu0 0.0
    %6115 = vmatpush1.msra.mxu0 0.0
    %6116 = vmatprep.subr.mxu0 0.0
    %6117 = vmatpush1.msra.mxu0 0.0
    %6118 = vmatprep.subr.mxu0 0.0
    %6119 = vmatpush1.msra.mxu0 0.0
    %6120 = vmatprep.subr.mxu0 0.0
    %6121 = vmatpush1.msra.mxu0 0.0
    %6122 = vmatprep.subr.mxu0 0.0
    %6123 = vmatpush1.msra.mxu0 0.0
    %6124 = vmatprep.subr.mxu0 0.0
    %6125 = vmatpush1.msra.mxu0 0.0
    %6126 = vmatprep.subr.mxu0 0.0
    %6127 = vmatpush1.msra.mxu0 0.0
    %6128 = vmatprep.subr.mxu0 0.0
    %6129 = vmatpush1.msra.mxu0 0.0
    %6130 = vmatprep.subr.mxu0 0.0
    %6131 = vmatpush1.msra.mxu0 0.0
    %6132 = vmatprep.subr.mxu0 0.0
    %6133 = vmatpush1.msra.mxu0 0.0
    %6134 = vmatprep.subr.mxu0 0.0
    %6135 = vmatpush1.msra.mxu0 %v4410
    %6136 = vmatprep.subr.mxu0 0.0
    %6137 = vmatpush2.msra.mxu0 0.0
    %6138 = vmatprep.subr.mxu0 0.0
    %6139 = vmatpush2.msra.mxu0 0.0
    %6140 = vmatprep.subr.mxu0 0.0
    %6141 = vmatpush2.msra.mxu0 0.0
    %6142 = vmatprep.subr.mxu0 0.0
    %6143 = vmatpush2.msra.mxu0 0.0
    %6144 = vmatprep.subr.mxu0 0.0
    %6145 = vmatpush2.msra.mxu0 0.0
    %6146 = vmatprep.subr.mxu0 0.0
    %6147 = vmatpush2.msra.mxu0 0.0
    %6148 = vmatprep.subr.mxu0 0.0
    %6149 = vmatpush2.msra.mxu0 0.0
    %6150 = vmatprep.subr.mxu0 0.0
    %6151 = vmatpush2.msra.mxu0 0.0
    %6152 = vmatprep.subr.mxu0 0.0
    %6153 = vmatpush2.msra.mxu0 0.0
    %6154 = vmatprep.subr.mxu0 0.0
    %6155 = vmatpush2.msra.mxu0 0.0
    %6156 = vmatprep.subr.mxu0 0.0
    %6157 = vmatpush2.msra.mxu0 0.0
    %6158 = vmatprep.subr.mxu0 0.0
    %6159 = vmatpush2.msra.mxu0 0.0
    %6160 = vmatprep.subr.mxu0 0.0
    %6161 = vmatpush2.msra.mxu0 0.0
    %6162 = vmatprep.subr.mxu0 0.0
    %6163 = vmatpush2.msra.mxu0 0.0
    %6164 = vmatprep.subr.mxu0 0.0
    %6165 = vmatpush2.msra.mxu0 0.0
    %6166 = vmatprep.subr.mxu0 0.0
    %6167 = vmatpush2.msra.mxu0 0.0
    %6168 = vmatprep.mubr.f32.mxu0 0.0
    %6169 = vmatmul.mubr.f32.gmra.mxu0 %v6102
    %v6170 = vpop.f32.mrf.mxu0
    %v6171 = vadd.f32 0.0, %v6170
    %v6172 = vpop.f32.mrf.mxu0
    %6173 = vdwg.mxu0
    %v6175 = vsel %vm1397, %v4500, 0
    %v6178 = vsel %vm1397, %v4588, 0
    %6180 = vmatprep.subr.mxu0 0.0
    %6181 = vmatpush1.xpose.msra.mxu0 0.0
    %6182 = vmatprep.subr.mxu0 0.0
    %6183 = vmatpush1.xpose.msra.mxu0 0.0
    %6184 = vmatprep.subr.mxu0 0.0
    %6185 = vmatpush1.xpose.msra.mxu0 0.0
    %6186 = vmatprep.subr.mxu0 0.0
    %6187 = vmatpush1.xpose.msra.mxu0 0.0
    %6188 = vmatprep.subr.mxu0 0.0
    %6189 = vmatpush1.xpose.msra.mxu0 0.0
    %6190 = vmatprep.subr.mxu0 0.0
    %6191 = vmatpush1.xpose.msra.mxu0 0.0
    %6192 = vmatprep.subr.mxu0 0.0
    %6193 = vmatpush1.xpose.msra.mxu0 0.0
    %6194 = vmatprep.subr.mxu0 0.0
    %6195 = vmatpush1.xpose.msra.mxu0 0.0
    %6196 = vmatprep.subr.mxu0 0.0
    %6197 = vmatpush1.xpose.msra.mxu0 0.0
    %6198 = vmatprep.subr.mxu0 0.0
    %6199 = vmatpush1.xpose.msra.mxu0 0.0
    %6200 = vmatprep.subr.mxu0 0.0
    %6201 = vmatpush1.xpose.msra.mxu0 0.0
    %6202 = vmatprep.subr.mxu0 0.0
    %6203 = vmatpush1.xpose.msra.mxu0 0.0
    %6204 = vmatprep.subr.mxu0 0.0
    %6205 = vmatpush1.xpose.msra.mxu0 0.0
    %6206 = vmatprep.subr.mxu0 0.0
    %6207 = vmatpush1.xpose.msra.mxu0 0.0
    %6208 = vmatprep.subr.mxu0 0.0
    %6209 = vmatpush1.xpose.msra.mxu0 0.0
    %6210 = vmatprep.subr.mxu0 0.0
    %6211 = vmatpush1.xpose.msra.mxu0 %v6178
    %6212 = vmatprep.subr.mxu0 0.0
    %6213 = vmatpush2.xpose.msra.mxu0 0.0
    %6214 = vmatprep.subr.mxu0 0.0
    %6215 = vmatpush2.xpose.msra.mxu0 0.0
    %6216 = vmatprep.subr.mxu0 0.0
    %6217 = vmatpush2.xpose.msra.mxu0 0.0
    %6218 = vmatprep.subr.mxu0 0.0
    %6219 = vmatpush2.xpose.msra.mxu0 0.0
    %6220 = vmatprep.subr.mxu0 0.0
    %6221 = vmatpush2.xpose.msra.mxu0 0.0
    %6222 = vmatprep.subr.mxu0 0.0
    %6223 = vmatpush2.xpose.msra.mxu0 0.0
    %6224 = vmatprep.subr.mxu0 0.0
    %6225 = vmatpush2.xpose.msra.mxu0 0.0
    %6226 = vmatprep.subr.mxu0 0.0
    %6227 = vmatpush2.xpose.msra.mxu0 0.0
    %6228 = vmatprep.subr.mxu0 0.0
    %6229 = vmatpush2.xpose.msra.mxu0 0.0
    %6230 = vmatprep.subr.mxu0 0.0
    %6231 = vmatpush2.xpose.msra.mxu0 0.0
    %6232 = vmatprep.subr.mxu0 0.0
    %6233 = vmatpush2.xpose.msra.mxu0 0.0
    %6234 = vmatprep.subr.mxu0 0.0
    %6235 = vmatpush2.xpose.msra.mxu0 0.0
    %6236 = vmatprep.subr.mxu0 0.0
    %6237 = vmatpush2.xpose.msra.mxu0 0.0
    %6238 = vmatprep.subr.mxu0 0.0
    %6239 = vmatpush2.xpose.msra.mxu0 0.0
    %6240 = vmatprep.subr.mxu0 0.0
    %6241 = vmatpush2.xpose.msra.mxu0 0.0
    %6242 = vmatprep.subr.mxu0 0.0
    %6243 = vmatpush2.xpose.msra.mxu0 0.0
    %6244 = vmatprep.mubr.f32.mxu0 0.0
    %6245 = vmatmul.mubr.f32.gmra.mxu0 %v6175
    %v6246 = vpop.f32.mrf.mxu0
    %v6247 = vadd.f32 0.0, %v6246
    %v6248 = vpop.f32.mrf.mxu0
    %6249 = vdwg.mxu0
    %v6250 = vmul.f32 %v6247, 0.35355338
    %v6251 = vsel %vm1397, %v6250, -inf
    %6252 = vmax.xlane.f32.xlu0 %v6251
    %v6253 = vpop.xlane.xlu0 %6252
    %v6254 = vsub.f32 %v6250, %v6253
    %v6255 = vmul.f32 %v6254, 1.442695
    %v6256 = vpow.pop %v6255
    %v6257 = vsel %vm1397, %v6256, 0.0
    %6258 = vadd.xlane.f32.xlu0 %v6257
    %v6259 = vpop.xlane.xlu0 %6258
    %v6260 = vrcp.pop %v6259
    %v6261 = vmul.f32 %v6256, %v6260
    %v6263 = vsel %vm1397, %v6261, 0
    %6265 = vmatprep.subr.mxu0 0.0
    %6266 = vmatpush1.msra.mxu0 0.0
    %6267 = vmatprep.subr.mxu0 0.0
    %6268 = vmatpush1.msra.mxu0 0.0
    %6269 = vmatprep.subr.mxu0 0.0
    %6270 = vmatpush1.msra.mxu0 0.0
    %6271 = vmatprep.subr.mxu0 0.0
    %6272 = vmatpush1.msra.mxu0 0.0
    %6273 = vmatprep.subr.mxu0 0.0
    %6274 = vmatpush1.msra.mxu0 0.0
    %6275 = vmatprep.subr.mxu0 0.0
    %6276 = vmatpush1.msra.mxu0 0.0
    %6277 = vmatprep.subr.mxu0 0.0
    %6278 = vmatpush1.msra.mxu0 0.0
    %6279 = vmatprep.subr.mxu0 0.0
    %6280 = vmatpush1.msra.mxu0 0.0
    %6281 = vmatprep.subr.mxu0 0.0
    %6282 = vmatpush1.msra.mxu0 0.0
    %6283 = vmatprep.subr.mxu0 0.0
    %6284 = vmatpush1.msra.mxu0 0.0
    %6285 = vmatprep.subr.mxu0 0.0
    %6286 = vmatpush1.msra.mxu0 0.0
    %6287 = vmatprep.subr.mxu0 0.0
    %6288 = vmatpush1.msra.mxu0 0.0
    %6289 = vmatprep.subr.mxu0 0.0
    %6290 = vmatpush1.msra.mxu0 0.0
    %6291 = vmatprep.subr.mxu0 0.0
    %6292 = vmatpush1.msra.mxu0 0.0
    %6293 = vmatprep.subr.mxu0 0.0
    %6294 = vmatpush1.msra.mxu0 0.0
    %6295 = vmatprep.subr.mxu0 0.0
    %6296 = vmatpush1.msra.mxu0 %v4676
    %6297 = vmatprep.subr.mxu0 0.0
    %6298 = vmatpush2.msra.mxu0 0.0
    %6299 = vmatprep.subr.mxu0 0.0
    %6300 = vmatpush2.msra.mxu0 0.0
    %6301 = vmatprep.subr.mxu0 0.0
    %6302 = vmatpush2.msra.mxu0 0.0
    %6303 = vmatprep.subr.mxu0 0.0
    %6304 = vmatpush2.msra.mxu0 0.0
    %6305 = vmatprep.subr.mxu0 0.0
    %6306 = vmatpush2.msra.mxu0 0.0
    %6307 = vmatprep.subr.mxu0 0.0
    %6308 = vmatpush2.msra.mxu0 0.0
    %6309 = vmatprep.subr.mxu0 0.0
    %6310 = vmatpush2.msra.mxu0 0.0
    %6311 = vmatprep.subr.mxu0 0.0
    %6312 = vmatpush2.msra.mxu0 0.0
    %6313 = vmatprep.subr.mxu0 0.0
    %6314 = vmatpush2.msra.mxu0 0.0
    %6315 = vmatprep.subr.mxu0 0.0
    %6316 = vmatpush2.msra.mxu0 0.0
    %6317 = vmatprep.subr.mxu0 0.0
    %6318 = vmatpush2.msra.mxu0 0.0
    %6319 = vmatprep.subr.mxu0 0.0
    %6320 = vmatpush2.msra.mxu0 0.0
    %6321 = vmatprep.subr.mxu0 0.0
    %6322 = vmatpush2.msra.mxu0 0.0
    %6323 = vmatprep.subr.mxu0 0.0
    %6324 = vmatpush2.msra.mxu0 0.0
    %6325 = vmatprep.subr.mxu0 0.0
    %6326 = vmatpush2.msra.mxu0 0.0
    %6327 = vmatprep.subr.mxu0 0.0
    %6328 = vmatpush2.msra.mxu0 0.0
    %6329 = vmatprep.mubr.f32.mxu0 0.0
    %6330 = vmatmul.mubr.f32.gmra.mxu0 %v6263
    %v6331 = vpop.f32.mrf.mxu0
    %v6332 = vadd.f32 0.0, %v6331
    %v6333 = vpop.f32.mrf.mxu0
    %6334 = vdwg.mxu0
    %v6336 = vsel %vm1397, %v6332, 0
    %6338 = vmatprep.subr.mxu0 0.0
    %6339 = vmatpush1.msra.mxu0 0.0
    %6340 = vmatprep.subr.mxu0 0.0
    %6341 = vmatpush1.msra.mxu0 0.0
    %6342 = vmatprep.subr.mxu0 0.0
    %6343 = vmatpush1.msra.mxu0 0.0
    %6344 = vmatprep.subr.mxu0 0.0
    %6345 = vmatpush1.msra.mxu0 0.0
    %6346 = vmatprep.subr.mxu0 0.0
    %6347 = vmatpush1.msra.mxu0 0.0
    %6348 = vmatprep.subr.mxu0 0.0
    %6349 = vmatpush1.msra.mxu0 0.0
    %6350 = vmatprep.subr.mxu0 0.0
    %6351 = vmatpush1.msra.mxu0 0.0
    %6352 = vmatprep.subr.mxu0 0.0
    %6353 = vmatpush1.msra.mxu0 0.0
    %6354 = vmatprep.subr.mxu0 0.0
    %6355 = vmatpush1.msra.mxu0 0.0
    %6356 = vmatprep.subr.mxu0 0.0
    %6357 = vmatpush1.msra.mxu0 0.0
    %6358 = vmatprep.subr.mxu0 0.0
    %6359 = vmatpush1.msra.mxu0 0.0
    %6360 = vmatprep.subr.mxu0 0.0
    %6361 = vmatpush1.msra.mxu0 0.0
    %6362 = vmatprep.subr.mxu0 0.0
    %6363 = vmatpush1.msra.mxu0 0.0
    %6364 = vmatprep.subr.mxu0 0.0
    %6365 = vmatpush1.msra.mxu0 0.0
    %6366 = vmatprep.subr.mxu0 0.0
    %6367 = vmatpush1.msra.mxu0 0.0
    %6368 = vmatprep.subr.mxu0 0.0
    %6369 = vmatpush1.msra.mxu0 %v4680
    %6370 = vmatprep.subr.mxu0 0.0
    %6371 = vmatpush2.msra.mxu0 0.0
    %6372 = vmatprep.subr.mxu0 0.0
    %6373 = vmatpush2.msra.mxu0 0.0
    %6374 = vmatprep.subr.mxu0 0.0
    %6375 = vmatpush2.msra.mxu0 0.0
    %6376 = vmatprep.subr.mxu0 0.0
    %6377 = vmatpush2.msra.mxu0 0.0
    %6378 = vmatprep.subr.mxu0 0.0
    %6379 = vmatpush2.msra.mxu0 0.0
    %6380 = vmatprep.subr.mxu0 0.0
    %6381 = vmatpush2.msra.mxu0 0.0
    %6382 = vmatprep.subr.mxu0 0.0
    %6383 = vmatpush2.msra.mxu0 0.0
    %6384 = vmatprep.subr.mxu0 0.0
    %6385 = vmatpush2.msra.mxu0 0.0
    %6386 = vmatprep.subr.mxu0 0.0
    %6387 = vmatpush2.msra.mxu0 0.0
    %6388 = vmatprep.subr.mxu0 0.0
    %6389 = vmatpush2.msra.mxu0 0.0
    %6390 = vmatprep.subr.mxu0 0.0
    %6391 = vmatpush2.msra.mxu0 0.0
    %6392 = vmatprep.subr.mxu0 0.0
    %6393 = vmatpush2.msra.mxu0 0.0
    %6394 = vmatprep.subr.mxu0 0.0
    %6395 = vmatpush2.msra.mxu0 0.0
    %6396 = vmatprep.subr.mxu0 0.0
    %6397 = vmatpush2.msra.mxu0 0.0
    %6398 = vmatprep.subr.mxu0 0.0
    %6399 = vmatpush2.msra.mxu0 0.0
    %6400 = vmatprep.subr.mxu0 0.0
    %6401 = vmatpush2.msra.mxu0 0.0
    %6402 = vmatprep.mubr.f32.mxu0 0.0
    %6403 = vmatmul.mubr.f32.gmra.mxu0 %v6336
    %v6404 = vpop.f32.mrf.mxu0
    %v6405 = vadd.f32 0.0, %v6404
    %v6406 = vpop.f32.mrf.mxu0
    %6407 = vdwg.mxu0
    %v6409 = vsel %vm1397, %v5776, 0
    %6411 = vmatprep.subr.mxu0 0.0
    %6412 = vmatpush1.msra.mxu0 0.0
    %6413 = vmatprep.subr.mxu0 0.0
    %6414 = vmatpush1.msra.mxu0 0.0
    %6415 = vmatprep.subr.mxu0 0.0
    %6416 = vmatpush1.msra.mxu0 0.0
    %6417 = vmatprep.subr.mxu0 0.0
    %6418 = vmatpush1.msra.mxu0 0.0
    %6419 = vmatprep.subr.mxu0 0.0
    %6420 = vmatpush1.msra.mxu0 0.0
    %6421 = vmatprep.subr.mxu0 0.0
    %6422 = vmatpush1.msra.mxu0 0.0
    %6423 = vmatprep.subr.mxu0 0.0
    %6424 = vmatpush1.msra.mxu0 0.0
    %6425 = vmatprep.subr.mxu0 0.0
    %6426 = vmatpush1.msra.mxu0 0.0
    %6427 = vmatprep.subr.mxu0 0.0
    %6428 = vmatpush1.msra.mxu0 0.0
    %6429 = vmatprep.subr.mxu0 0.0
    %6430 = vmatpush1.msra.mxu0 0.0
    %6431 = vmatprep.subr.mxu0 0.0
    %6432 = vmatpush1.msra.mxu0 0.0
    %6433 = vmatprep.subr.mxu0 0.0
    %6434 = vmatpush1.msra.mxu0 0.0
    %6435 = vmatprep.subr.mxu0 0.0
    %6436 = vmatpush1.msra.mxu0 0.0
    %6437 = vmatprep.subr.mxu0 0.0
    %6438 = vmatpush1.msra.mxu0 0.0
    %6439 = vmatprep.subr.mxu0 0.0
    %6440 = vmatpush1.msra.mxu0 0.0
    %6441 = vmatprep.subr.mxu0 0.0
    %6442 = vmatpush1.msra.mxu0 %v3882
    %6443 = vmatprep.subr.mxu0 0.0
    %6444 = vmatpush2.msra.mxu0 0.0
    %6445 = vmatprep.subr.mxu0 0.0
    %6446 = vmatpush2.msra.mxu0 0.0
    %6447 = vmatprep.subr.mxu0 0.0
    %6448 = vmatpush2.msra.mxu0 0.0
    %6449 = vmatprep.subr.mxu0 0.0
    %6450 = vmatpush2.msra.mxu0 0.0
    %6451 = vmatprep.subr.mxu0 0.0
    %6452 = vmatpush2.msra.mxu0 0.0
    %6453 = vmatprep.subr.mxu0 0.0
    %6454 = vmatpush2.msra.mxu0 0.0
    %6455 = vmatprep.subr.mxu0 0.0
    %6456 = vmatpush2.msra.mxu0 0.0
    %6457 = vmatprep.subr.mxu0 0.0
    %6458 = vmatpush2.msra.mxu0 0.0
    %6459 = vmatprep.subr.mxu0 0.0
    %6460 = vmatpush2.msra.mxu0 0.0
    %6461 = vmatprep.subr.mxu0 0.0
    %6462 = vmatpush2.msra.mxu0 0.0
    %6463 = vmatprep.subr.mxu0 0.0
    %6464 = vmatpush2.msra.mxu0 0.0
    %6465 = vmatprep.subr.mxu0 0.0
    %6466 = vmatpush2.msra.mxu0 0.0
    %6467 = vmatprep.subr.mxu0 0.0
    %6468 = vmatpush2.msra.mxu0 0.0
    %6469 = vmatprep.subr.mxu0 0.0
    %6470 = vmatpush2.msra.mxu0 0.0
    %6471 = vmatprep.subr.mxu0 0.0
    %6472 = vmatpush2.msra.mxu0 0.0
    %6473 = vmatprep.subr.mxu0 0.0
    %6474 = vmatpush2.msra.mxu0 0.0
    %6475 = vmatprep.mubr.f32.mxu0 0.0
    %6476 = vmatmul.mubr.f32.gmra.mxu0 %v6409
    %v6477 = vpop.f32.mrf.mxu0
    %v6478 = vadd.f32 %v6010, %v6477
    %v6479 = vpop.f32.mrf.mxu0
    %6480 = vdwg.mxu0
    %v6482 = vsel %vm1397, %v6171, 0
    %6484 = vmatprep.subr.mxu0 0.0
    %6485 = vmatpush1.msra.mxu0 0.0
    %6486 = vmatprep.subr.mxu0 0.0
    %6487 = vmatpush1.msra.mxu0 0.0
    %6488 = vmatprep.subr.mxu0 0.0
    %6489 = vmatpush1.msra.mxu0 0.0
    %6490 = vmatprep.subr.mxu0 0.0
    %6491 = vmatpush1.msra.mxu0 0.0
    %6492 = vmatprep.subr.mxu0 0.0
    %6493 = vmatpush1.msra.mxu0 0.0
    %6494 = vmatprep.subr.mxu0 0.0
    %6495 = vmatpush1.msra.mxu0 0.0
    %6496 = vmatprep.subr.mxu0 0.0
    %6497 = vmatpush1.msra.mxu0 0.0
    %6498 = vmatprep.subr.mxu0 0.0
    %6499 = vmatpush1.msra.mxu0 0.0
    %6500 = vmatprep.subr.mxu0 0.0
    %6501 = vmatpush1.msra.mxu0 0.0
    %6502 = vmatprep.subr.mxu0 0.0
    %6503 = vmatpush1.msra.mxu0 0.0
    %6504 = vmatprep.subr.mxu0 0.0
    %6505 = vmatpush1.msra.mxu0 0.0
    %6506 = vmatprep.subr.mxu0 0.0
    %6507 = vmatpush1.msra.mxu0 0.0
    %6508 = vmatprep.subr.mxu0 0.0
    %6509 = vmatpush1.msra.mxu0 0.0
    %6510 = vmatprep.subr.mxu0 0.0
    %6511 = vmatpush1.msra.mxu0 0.0
    %6512 = vmatprep.subr.mxu0 0.0
    %6513 = vmatpush1.msra.mxu0 0.0
    %6514 = vmatprep.subr.mxu0 0.0
    %6515 = vmatpush1.msra.mxu0 %v4414
    %6516 = vmatprep.subr.mxu0 0.0
    %6517 = vmatpush2.msra.mxu0 0.0
    %6518 = vmatprep.subr.mxu0 0.0
    %6519 = vmatpush2.msra.mxu0 0.0
    %6520 = vmatprep.subr.mxu0 0.0
    %6521 = vmatpush2.msra.mxu0 0.0
    %6522 = vmatprep.subr.mxu0 0.0
    %6523 = vmatpush2.msra.mxu0 0.0
    %6524 = vmatprep.subr.mxu0 0.0
    %6525 = vmatpush2.msra.mxu0 0.0
    %6526 = vmatprep.subr.mxu0 0.0
    %6527 = vmatpush2.msra.mxu0 0.0
    %6528 = vmatprep.subr.mxu0 0.0
    %6529 = vmatpush2.msra.mxu0 0.0
    %6530 = vmatprep.subr.mxu0 0.0
    %6531 = vmatpush2.msra.mxu0 0.0
    %6532 = vmatprep.subr.mxu0 0.0
    %6533 = vmatpush2.msra.mxu0 0.0
    %6534 = vmatprep.subr.mxu0 0.0
    %6535 = vmatpush2.msra.mxu0 0.0
    %6536 = vmatprep.subr.mxu0 0.0
    %6537 = vmatpush2.msra.mxu0 0.0
    %6538 = vmatprep.subr.mxu0 0.0
    %6539 = vmatpush2.msra.mxu0 0.0
    %6540 = vmatprep.subr.mxu0 0.0
    %6541 = vmatpush2.msra.mxu0 0.0
    %6542 = vmatprep.subr.mxu0 0.0
    %6543 = vmatpush2.msra.mxu0 0.0
    %6544 = vmatprep.subr.mxu0 0.0
    %6545 = vmatpush2.msra.mxu0 0.0
    %6546 = vmatprep.subr.mxu0 0.0
    %6547 = vmatpush2.msra.mxu0 0.0
    %6548 = vmatprep.mubr.f32.mxu0 0.0
    %6549 = vmatmul.mubr.f32.gmra.mxu0 %v6482
    %v6550 = vpop.f32.mrf.mxu0
    %v6551 = vadd.f32 %v6405, %v6550
    %v6552 = vpop.f32.mrf.mxu0
    %6553 = vdwg.mxu0
    %v6554 = vadd.f32 %v6478, %v6551
    %v6555 = vadd.f32 %v3572, %v5617
    %v6556 = vadd.f32 %v3573, %v6554
    %v6557 = vld [vmem:[%s79] sm:$0x1]
    %v6559 = vlaneseq
    %v6560 = vshrl.u32 %v6559, 7
    %v6561 = vsub.s32 0, %v6560
    %v6562 = vrot.slane %v6557, %v6561
    %v6564 = vadd.f32 %v6555, %v6562
    %v6565 = vadd.f32 %v6556, %v6562
    %v6566 = vld [vmem:[%s77] sm:$0x1]
    %v6567 = vld [vmem:[%s75] sm:$0x1]
    %v6568 = vsel %vm290, %v6564, 0.0
    %6569 = vadd.xlane.f32.xlu0 %v6568
    %v6570 = vpop.xlane.xlu0 %6569
    %v6571 = vsel %vm290, %v6565, 0.0
    %6572 = vadd.xlane.f32.xlu0 %v6571
    %v6573 = vpop.xlane.xlu0 %6572
    %v6574 = vmul.f32 %v6570, %v297
    %v6575 = vmul.f32 %v6573, %v297
    %v6576 = vsub.f32 %v6564, %v6574
    %v6577 = vsub.f32 %v6565, %v6575
    %v6578 = vmul.f32 %v6576, %v6576
    %v6579 = vmul.f32 %v6577, %v6577
    %v6580 = vsel %vm290, %v6578, 0.0
    %6581 = vadd.xlane.f32.xlu0 %v6580
    %v6582 = vpop.xlane.xlu0 %6581
    %v6583 = vsel %vm290, %v6579, 0.0
    %6584 = vadd.xlane.f32.xlu0 %v6583
    %v6585 = vpop.xlane.xlu0 %6584
    %v6586 = vmul.f32 %v6582, %v297
    %v6587 = vmul.f32 %v6585, %v297
    %v6588 = vadd.f32 %v6586, 1e-05
    %v6589 = vadd.f32 %v6587, 1e-05
    %v6590 = vrsqrt.pop %v6588
    %v6591 = vrsqrt.pop %v6589
    %v6592 = vmul.f32 %v6576, %v6590
    %v6593 = vmul.f32 %v6577, %v6591
    %v6595 = vlaneseq
    %v6596 = vshrl.u32 %v6595, 7
    %v6597 = vsub.s32 0, %v6596
    %v6598 = vrot.slane %v6566, %v6597
    %v6600 = vmul.f32 %v6592, %v6598
    %v6601 = vmul.f32 %v6593, %v6598
    %v6603 = vlaneseq
    %v6604 = vshrl.u32 %v6603, 7
    %v6605 = vsub.s32 0, %v6604
    %v6606 = vrot.slane %v6567, %v6605
    %v6608 = vadd.f32 %v6600, %v6606
    %v6609 = vadd.f32 %v6601, %v6606
    %v6610 = vld [vmem:[%s61] sm:$0xff]
    %v6611 = vld [vmem:[%s61 + $0x8] sm:$0xff]
    %v6612 = vld [vmem:[%s61 + $0x10] sm:$0xff]
    %v6613 = vld [vmem:[%s61 + $0x18] sm:$0xff]
    %v6614 = vld [vmem:[%s59] sm:$0x1]
    %v6616 = vlaneseq
    %v6617 = vshrl.u32 %v6616, 7
    %v6618 = vsub.s32 0, %v6617
    %v6619 = vrot.slane %v6614, %v6618
    %v6622 = vsel %vm290, %v6608, 0
    %v6625 = vsel %vm290, %v6609, 0
    %6627 = vmatprep.subr.mxu0 0.0
    %6628 = vmatpush1.msra.mxu0 0.0
    %6629 = vmatprep.subr.mxu0 0.0
    %6630 = vmatpush1.msra.mxu0 0.0
    %6631 = vmatprep.subr.mxu0 0.0
    %6632 = vmatpush1.msra.mxu0 0.0
    %6633 = vmatprep.subr.mxu0 0.0
    %6634 = vmatpush1.msra.mxu0 0.0
    %6635 = vmatprep.subr.mxu0 0.0
    %6636 = vmatpush1.msra.mxu0 0.0
    %6637 = vmatprep.subr.mxu0 0.0
    %6638 = vmatpush1.msra.mxu0 0.0
    %6639 = vmatprep.subr.mxu0 0.0
    %6640 = vmatpush1.msra.mxu0 0.0
    %6641 = vmatprep.subr.mxu0 0.0
    %6642 = vmatpush1.msra.mxu0 0.0
    %6643 = vmatprep.subr.mxu0 0.0
    %6644 = vmatpush1.msra.mxu0 0.0
    %6645 = vmatprep.subr.mxu0 0.0
    %6646 = vmatpush1.msra.mxu0 0.0
    %6647 = vmatprep.subr.mxu0 0.0
    %6648 = vmatpush1.msra.mxu0 0.0
    %6649 = vmatprep.subr.mxu0 0.0
    %6650 = vmatpush1.msra.mxu0 0.0
    %6651 = vmatprep.subr.mxu0 0.0
    %6652 = vmatpush1.msra.mxu0 %v6613
    %6653 = vmatprep.subr.mxu0 0.0
    %6654 = vmatpush1.msra.mxu0 %v6612
    %6655 = vmatprep.subr.mxu0 0.0
    %6656 = vmatpush1.msra.mxu0 %v6611
    %6657 = vmatprep.subr.mxu0 0.0
    %6658 = vmatpush1.msra.mxu0 %v6610
    %6659 = vmatprep.subr.mxu0 0.0
    %6660 = vmatpush2.msra.mxu0 0.0
    %6661 = vmatprep.subr.mxu0 0.0
    %6662 = vmatpush2.msra.mxu0 0.0
    %6663 = vmatprep.subr.mxu0 0.0
    %6664 = vmatpush2.msra.mxu0 0.0
    %6665 = vmatprep.subr.mxu0 0.0
    %6666 = vmatpush2.msra.mxu0 0.0
    %6667 = vmatprep.subr.mxu0 0.0
    %6668 = vmatpush2.msra.mxu0 0.0
    %6669 = vmatprep.subr.mxu0 0.0
    %6670 = vmatpush2.msra.mxu0 0.0
    %6671 = vmatprep.subr.mxu0 0.0
    %6672 = vmatpush2.msra.mxu0 0.0
    %6673 = vmatprep.subr.mxu0 0.0
    %6674 = vmatpush2.msra.mxu0 0.0
    %6675 = vmatprep.subr.mxu0 0.0
    %6676 = vmatpush2.msra.mxu0 0.0
    %6677 = vmatprep.subr.mxu0 0.0
    %6678 = vmatpush2.msra.mxu0 0.0
    %6679 = vmatprep.subr.mxu0 0.0
    %6680 = vmatpush2.msra.mxu0 0.0
    %6681 = vmatprep.subr.mxu0 0.0
    %6682 = vmatpush2.msra.mxu0 0.0
    %6683 = vmatprep.subr.mxu0 0.0
    %6684 = vmatpush2.msra.mxu0 0.0
    %6685 = vmatprep.subr.mxu0 0.0
    %6686 = vmatpush2.msra.mxu0 0.0
    %6687 = vmatprep.subr.mxu0 0.0
    %6688 = vmatpush2.msra.mxu0 0.0
    %6689 = vmatprep.subr.mxu0 0.0
    %6690 = vmatpush2.msra.mxu0 0.0
    %6691 = vmatprep.mubr.f32.mxu0 0.0
    %6692 = vmatmul.mubr.f32.gmra.mxu0 %v6622
    %v6693 = vpop.f32.mrf.mxu0
    %v6694 = vadd.f32 %v6619, %v6693
    %v6695 = vpop.f32.mrf.mxu0
    %6696 = vmatprep.mubr.f32.mxu0 0.0
    %6697 = vmatmul.mubr.f32.gmra.mxu0 %v6625
    %v6698 = vpop.f32.mrf.mxu0
    %v6699 = vadd.f32 %v6619, %v6698
    %v6700 = vpop.f32.mrf.mxu0
    %6701 = vdwg.mxu0
    %v6702 = vmul.f32 %v6694, 0.70710677
    %v6703 = vmul.f32 %v6699, 0.70710677
    %v6704 = vand.u32 2147483647, %v6702
    %v6705 = vand.u32 2147483647, %v6703
    %v6706 = vmul.f32 %v6704, 0.3275911
    %v6707 = vmul.f32 %v6705, 0.3275911
    %v6708 = vadd.f32 %v6706, 1.0
    %v6709 = vadd.f32 %v6707, 1.0
    %v6710 = vrcp.pop %v6708
    %v6711 = vmul.f32 1.0, %v6710
    %v6712 = vrcp.pop %v6709
    %v6713 = vmul.f32 1.0, %v6712
    %v6714 = vmul.f32 %v6711, 1.0614054
    %v6715 = vmul.f32 %v6713, 1.0614054
    %v6716 = vadd.f32 %v6714, -1.4531521
    %v6717 = vadd.f32 %v6715, -1.4531521
    %v6718 = vmul.f32 %v6716, %v6711
    %v6719 = vmul.f32 %v6717, %v6713
    %v6720 = vadd.f32 %v6718, 1.4214138
    %v6721 = vadd.f32 %v6719, 1.4214138
    %v6722 = vmul.f32 %v6720, %v6711
    %v6723 = vmul.f32 %v6721, %v6713
    %v6724 = vadd.f32 %v6722, -0.28449672
    %v6725 = vadd.f32 %v6723, -0.28449672
    %v6726 = vmul.f32 %v6724, %v6711
    %v6727 = vmul.f32 %v6725, %v6713
    %v6728 = vadd.f32 %v6726, 0.2548296
    %v6729 = vadd.f32 %v6727, 0.2548296
    %v6730 = vmul.f32 %v6728, %v6711
    %v6731 = vmul.f32 %v6729, %v6713
    %v6732 = vsub.f32 0.0, %v6704
    %v6733 = vsub.f32 0.0, %v6705
    %v6734 = vmul.f32 %v6732, %v6704
    %v6735 = vmul.f32 %v6733, %v6705
    %v6736 = vmul.f32 %v6734, 1.442695
    %v6737 = vpow.pop %v6736
    %v6738 = vmul.f32 %v6735, 1.442695
    %v6739 = vpow.pop %v6738
    %v6740 = vmul.f32 %v6730, %v6737
    %v6741 = vmul.f32 %v6731, %v6739
    %v6742 = vsub.f32 1.0, %v6740
    %v6743 = vsub.f32 1.0, %v6741
    %vm6744 = vcmp.ge.f32.partialorder %v6702, 0.0
    %vm6745 = vcmp.ge.f32.partialorder %v6703, 0.0
    %v6746 = vsub.f32 0.0, %v6742
    %v6747 = vsub.f32 0.0, %v6743
    %v6748 = vsel %vm6744, %v6742, %v6746
    %v6749 = vsel %vm6745, %v6743, %v6747
    %v6750 = vmul.f32 %v6694, 0.5
    %v6751 = vmul.f32 %v6699, 0.5
    %v6752 = vadd.f32 %v6748, 1.0
    %v6753 = vadd.f32 %v6749, 1.0
    %v6754 = vmul.f32 %v6750, %v6752
    %v6755 = vmul.f32 %v6751, %v6753
    %v6756 = vld [vmem:[%s65] sm:$0xff]
    %v6757 = vld [vmem:[%s65 + $0x8] sm:$0xff]
    %v6758 = vld [vmem:[%s65 + $0x10] sm:$0xff]
    %v6759 = vld [vmem:[%s65 + $0x18] sm:$0xff]
    %v6760 = vld [vmem:[%s65 + $0x20] sm:$0xff]
    %v6761 = vld [vmem:[%s65 + $0x28] sm:$0xff]
    %v6762 = vld [vmem:[%s65 + $0x30] sm:$0xff]
    %v6763 = vld [vmem:[%s65 + $0x38] sm:$0xff]
    %v6765 = vsel %vm3481, %v6754, 0
    %v6768 = vsel %vm3481, %v6755, 0
    %6770 = vmatprep.subr.mxu0 0.0
    %6771 = vmatpush1.msra.mxu0 0.0
    %6772 = vmatprep.subr.mxu0 0.0
    %6773 = vmatpush1.msra.mxu0 0.0
    %6774 = vmatprep.subr.mxu0 0.0
    %6775 = vmatpush1.msra.mxu0 0.0
    %6776 = vmatprep.subr.mxu0 0.0
    %6777 = vmatpush1.msra.mxu0 0.0
    %6778 = vmatprep.subr.mxu0 0.0
    %6779 = vmatpush1.msra.mxu0 0.0
    %6780 = vmatprep.subr.mxu0 0.0
    %6781 = vmatpush1.msra.mxu0 0.0
    %6782 = vmatprep.subr.mxu0 0.0
    %6783 = vmatpush1.msra.mxu0 0.0
    %6784 = vmatprep.subr.mxu0 0.0
    %6785 = vmatpush1.msra.mxu0 0.0
    %6786 = vmatprep.subr.mxu0 0.0
    %6787 = vmatpush1.msra.mxu0 %v6763
    %6788 = vmatprep.subr.mxu0 0.0
    %6789 = vmatpush1.msra.mxu0 %v6762
    %6790 = vmatprep.subr.mxu0 0.0
    %6791 = vmatpush1.msra.mxu0 %v6761
    %6792 = vmatprep.subr.mxu0 0.0
    %6793 = vmatpush1.msra.mxu0 %v6760
    %6794 = vmatprep.subr.mxu0 0.0
    %6795 = vmatpush1.msra.mxu0 %v6759
    %6796 = vmatprep.subr.mxu0 0.0
    %6797 = vmatpush1.msra.mxu0 %v6758
    %6798 = vmatprep.subr.mxu0 0.0
    %6799 = vmatpush1.msra.mxu0 %v6757
    %6800 = vmatprep.subr.mxu0 0.0
    %6801 = vmatpush1.msra.mxu0 %v6756
    %6802 = vmatprep.subr.mxu0 0.0
    %6803 = vmatpush2.msra.mxu0 0.0
    %6804 = vmatprep.subr.mxu0 0.0
    %6805 = vmatpush2.msra.mxu0 0.0
    %6806 = vmatprep.subr.mxu0 0.0
    %6807 = vmatpush2.msra.mxu0 0.0
    %6808 = vmatprep.subr.mxu0 0.0
    %6809 = vmatpush2.msra.mxu0 0.0
    %6810 = vmatprep.subr.mxu0 0.0
    %6811 = vmatpush2.msra.mxu0 0.0
    %6812 = vmatprep.subr.mxu0 0.0
    %6813 = vmatpush2.msra.mxu0 0.0
    %6814 = vmatprep.subr.mxu0 0.0
    %6815 = vmatpush2.msra.mxu0 0.0
    %6816 = vmatprep.subr.mxu0 0.0
    %6817 = vmatpush2.msra.mxu0 0.0
    %6818 = vmatprep.subr.mxu0 0.0
    %6819 = vmatpush2.msra.mxu0 0.0
    %6820 = vmatprep.subr.mxu0 0.0
    %6821 = vmatpush2.msra.mxu0 0.0
    %6822 = vmatprep.subr.mxu0 0.0
    %6823 = vmatpush2.msra.mxu0 0.0
    %6824 = vmatprep.subr.mxu0 0.0
    %6825 = vmatpush2.msra.mxu0 0.0
    %6826 = vmatprep.subr.mxu0 0.0
    %6827 = vmatpush2.msra.mxu0 0.0
    %6828 = vmatprep.subr.mxu0 0.0
    %6829 = vmatpush2.msra.mxu0 0.0
    %6830 = vmatprep.subr.mxu0 0.0
    %6831 = vmatpush2.msra.mxu0 0.0
    %6832 = vmatprep.subr.mxu0 0.0
    %6833 = vmatpush2.msra.mxu0 0.0
    %6834 = vmatprep.mubr.f32.mxu0 0.0
    %6835 = vmatmul.mubr.f32.gmra.mxu0 %v6765
    %v6836 = vpop.f32.mrf.mxu0
    %v6837 = vadd.f32 0.0, %v6836
    %v6838 = vpop.f32.mrf.mxu0
    %6839 = vmatprep.mubr.f32.mxu0 0.0
    %6840 = vmatmul.mubr.f32.gmra.mxu0 %v6768
    %v6841 = vpop.f32.mrf.mxu0
    %v6842 = vadd.f32 0.0, %v6841
    %v6843 = vpop.f32.mrf.mxu0
    %6844 = vdwg.mxu0
    %v6845 = vadd.f32 %v6564, %v6837
    %v6846 = vadd.f32 %v6565, %v6842
    %v6847 = vld [vmem:[%s63] sm:$0x1]
    %v6849 = vlaneseq
    %v6850 = vshrl.u32 %v6849, 7
    %v6851 = vsub.s32 0, %v6850
    %v6852 = vrot.slane %v6847, %v6851
    %v6854 = vadd.f32 %v6845, %v6852
    %v6855 = vadd.f32 %v6846, %v6852
    %v6856 = vld [vmem:[%s9] sm:$0xff]
    %v6857 = vld [vmem:[%s9 + $0x8] sm:$0xff]
    %v6858 = vld [vmem:[%s9 + $0x10] sm:$0xff]
    %v6859 = vld [vmem:[%s9 + $0x18] sm:$0xff]
    %s6860 = scalar_lea.vmem %s9, 32
    %v6861 = vld [vmem:[%s6860] sm:$0xff]
    %v6862 = vld [vmem:[%s6860 + $0x8] sm:$0xff]
    %v6863 = vld [vmem:[%s6860 + $0x10] sm:$0xff]
    %v6864 = vld [vmem:[%s6860 + $0x18] sm:$0xff]
    %v6866 = vrot.slane %v6854, 1
    %v6867 = vsel %vm290, %v6866, 0
    %6869 = vmatprep.subr.mxu0 0.0
    %6870 = vmatpush1.msra.mxu0 0.0
    %6871 = vmatprep.subr.mxu0 0.0
    %6872 = vmatpush1.msra.mxu0 0.0
    %6873 = vmatprep.subr.mxu0 0.0
    %6874 = vmatpush1.msra.mxu0 0.0
    %6875 = vmatprep.subr.mxu0 0.0
    %6876 = vmatpush1.msra.mxu0 0.0
    %6877 = vmatprep.subr.mxu0 0.0
    %6878 = vmatpush1.msra.mxu0 0.0
    %6879 = vmatprep.subr.mxu0 0.0
    %6880 = vmatpush1.msra.mxu0 0.0
    %6881 = vmatprep.subr.mxu0 0.0
    %6882 = vmatpush1.msra.mxu0 0.0
    %6883 = vmatprep.subr.mxu0 0.0
    %6884 = vmatpush1.msra.mxu0 0.0
    %6885 = vmatprep.subr.mxu0 0.0
    %6886 = vmatpush1.msra.mxu0 0.0
    %6887 = vmatprep.subr.mxu0 0.0
    %6888 = vmatpush1.msra.mxu0 0.0
    %6889 = vmatprep.subr.mxu0 0.0
    %6890 = vmatpush1.msra.mxu0 0.0
    %6891 = vmatprep.subr.mxu0 0.0
    %6892 = vmatpush1.msra.mxu0 0.0
    %6893 = vmatprep.subr.mxu0 0.0
    %6894 = vmatpush1.msra.mxu0 %v6864
    %6895 = vmatprep.subr.mxu0 0.0
    %6896 = vmatpush1.msra.mxu0 %v6863
    %6897 = vmatprep.subr.mxu0 0.0
    %6898 = vmatpush1.msra.mxu0 %v6862
    %6899 = vmatprep.subr.mxu0 0.0
    %6900 = vmatpush1.msra.mxu0 %v6861
    %6901 = vmatprep.subr.mxu0 0.0
    %6902 = vmatpush2.msra.mxu0 0.0
    %6903 = vmatprep.subr.mxu0 0.0
    %6904 = vmatpush2.msra.mxu0 0.0
    %6905 = vmatprep.subr.mxu0 0.0
    %6906 = vmatpush2.msra.mxu0 0.0
    %6907 = vmatprep.subr.mxu0 0.0
    %6908 = vmatpush2.msra.mxu0 0.0
    %6909 = vmatprep.subr.mxu0 0.0
    %6910 = vmatpush2.msra.mxu0 0.0
    %6911 = vmatprep.subr.mxu0 0.0
    %6912 = vmatpush2.msra.mxu0 0.0
    %6913 = vmatprep.subr.mxu0 0.0
    %6914 = vmatpush2.msra.mxu0 0.0
    %6915 = vmatprep.subr.mxu0 0.0
    %6916 = vmatpush2.msra.mxu0 0.0
    %6917 = vmatprep.subr.mxu0 0.0
    %6918 = vmatpush2.msra.mxu0 0.0
    %6919 = vmatprep.subr.mxu0 0.0
    %6920 = vmatpush2.msra.mxu0 0.0
    %6921 = vmatprep.subr.mxu0 0.0
    %6922 = vmatpush2.msra.mxu0 0.0
    %6923 = vmatprep.subr.mxu0 0.0
    %6924 = vmatpush2.msra.mxu0 0.0
    %6925 = vmatprep.subr.mxu0 0.0
    %6926 = vmatpush2.msra.mxu0 0.0
    %6927 = vmatprep.subr.mxu0 0.0
    %6928 = vmatpush2.msra.mxu0 0.0
    %6929 = vmatprep.subr.mxu0 0.0
    %6930 = vmatpush2.msra.mxu0 0.0
    %6931 = vmatprep.subr.mxu0 0.0
    %6932 = vmatpush2.msra.mxu0 0.0
    %6933 = vmatprep.mubr.f32.mxu0 0.0
    %6934 = vmatmul.mubr.f32.gmra.mxu0 %v6867
    %v6935 = vpop.f32.mrf.mxu0
    %v6936 = vadd.f32 0.0, %v6935
    %v6937 = vpop.f32.mrf.mxu0
    %6938 = vdwg.mxu0
    %s6939 = scalar_lea.vmem %s9, 64
    %v6940 = vld [vmem:[%s6939] sm:$0xff]
    %v6941 = vld [vmem:[%s6939 + $0x8] sm:$0xff]
    %v6942 = vld [vmem:[%s6939 + $0x10] sm:$0xff]
    %v6943 = vld [vmem:[%s6939 + $0x18] sm:$0xff]
    %s6944 = scalar_lea.vmem %s9, 96
    %v6945 = vld [vmem:[%s6944] sm:$0xff]
    %v6946 = vld [vmem:[%s6944 + $0x8] sm:$0xff]
    %v6947 = vld [vmem:[%s6944 + $0x10] sm:$0xff]
    %v6948 = vld [vmem:[%s6944 + $0x18] sm:$0xff]
    %v6949 = vrot.slane %v6854, 3
    %v6950 = vsel %vm290, %v6949, 0
    %6952 = vmatprep.subr.mxu0 0.0
    %6953 = vmatpush1.msra.mxu0 0.0
    %6954 = vmatprep.subr.mxu0 0.0
    %6955 = vmatpush1.msra.mxu0 0.0
    %6956 = vmatprep.subr.mxu0 0.0
    %6957 = vmatpush1.msra.mxu0 0.0
    %6958 = vmatprep.subr.mxu0 0.0
    %6959 = vmatpush1.msra.mxu0 0.0
    %6960 = vmatprep.subr.mxu0 0.0
    %6961 = vmatpush1.msra.mxu0 0.0
    %6962 = vmatprep.subr.mxu0 0.0
    %6963 = vmatpush1.msra.mxu0 0.0
    %6964 = vmatprep.subr.mxu0 0.0
    %6965 = vmatpush1.msra.mxu0 0.0
    %6966 = vmatprep.subr.mxu0 0.0
    %6967 = vmatpush1.msra.mxu0 0.0
    %6968 = vmatprep.subr.mxu0 0.0
    %6969 = vmatpush1.msra.mxu0 0.0
    %6970 = vmatprep.subr.mxu0 0.0
    %6971 = vmatpush1.msra.mxu0 0.0
    %6972 = vmatprep.subr.mxu0 0.0
    %6973 = vmatpush1.msra.mxu0 0.0
    %6974 = vmatprep.subr.mxu0 0.0
    %6975 = vmatpush1.msra.mxu0 0.0
    %6976 = vmatprep.subr.mxu0 0.0
    %6977 = vmatpush1.msra.mxu0 %v6948
    %6978 = vmatprep.subr.mxu0 0.0
    %6979 = vmatpush1.msra.mxu0 %v6947
    %6980 = vmatprep.subr.mxu0 0.0
    %6981 = vmatpush1.msra.mxu0 %v6946
    %6982 = vmatprep.subr.mxu0 0.0
    %6983 = vmatpush1.msra.mxu0 %v6945
    %6984 = vmatprep.subr.mxu0 0.0
    %6985 = vmatpush2.msra.mxu0 0.0
    %6986 = vmatprep.subr.mxu0 0.0
    %6987 = vmatpush2.msra.mxu0 0.0
    %6988 = vmatprep.subr.mxu0 0.0
    %6989 = vmatpush2.msra.mxu0 0.0
    %6990 = vmatprep.subr.mxu0 0.0
    %6991 = vmatpush2.msra.mxu0 0.0
    %6992 = vmatprep.subr.mxu0 0.0
    %6993 = vmatpush2.msra.mxu0 0.0
    %6994 = vmatprep.subr.mxu0 0.0
    %6995 = vmatpush2.msra.mxu0 0.0
    %6996 = vmatprep.subr.mxu0 0.0
    %6997 = vmatpush2.msra.mxu0 0.0
    %6998 = vmatprep.subr.mxu0 0.0
    %6999 = vmatpush2.msra.mxu0 0.0
    %7000 = vmatprep.subr.mxu0 0.0
    %7001 = vmatpush2.msra.mxu0 0.0
    %7002 = vmatprep.subr.mxu0 0.0
    %7003 = vmatpush2.msra.mxu0 0.0
    %7004 = vmatprep.subr.mxu0 0.0
    %7005 = vmatpush2.msra.mxu0 0.0
    %7006 = vmatprep.subr.mxu0 0.0
    %7007 = vmatpush2.msra.mxu0 0.0
    %7008 = vmatprep.subr.mxu0 0.0
    %7009 = vmatpush2.msra.mxu0 0.0
    %7010 = vmatprep.subr.mxu0 0.0
    %7011 = vmatpush2.msra.mxu0 0.0
    %7012 = vmatprep.subr.mxu0 0.0
    %7013 = vmatpush2.msra.mxu0 0.0
    %7014 = vmatprep.subr.mxu0 0.0
    %7015 = vmatpush2.msra.mxu0 0.0
    %7016 = vmatprep.mubr.f32.mxu0 0.0
    %7017 = vmatmul.mubr.f32.gmra.mxu0 %v6950
    %v7018 = vpop.f32.mrf.mxu0
    %v7019 = vadd.f32 0.0, %v7018
    %v7020 = vpop.f32.mrf.mxu0
    %7021 = vdwg.mxu0
    %s7022 = scalar_lea.vmem %s9, 128
    %v7023 = vld [vmem:[%s7022] sm:$0xff]
    %v7024 = vld [vmem:[%s7022 + $0x8] sm:$0xff]
    %v7025 = vld [vmem:[%s7022 + $0x10] sm:$0xff]
    %v7026 = vld [vmem:[%s7022 + $0x18] sm:$0xff]
    %s7027 = scalar_lea.vmem %s9, 160
    %v7028 = vld [vmem:[%s7027] sm:$0xff]
    %v7029 = vld [vmem:[%s7027 + $0x8] sm:$0xff]
    %v7030 = vld [vmem:[%s7027 + $0x10] sm:$0xff]
    %v7031 = vld [vmem:[%s7027 + $0x18] sm:$0xff]
    %v7032 = vrot.slane %v6854, 5
    %v7033 = vsel %vm290, %v7032, 0
    %7035 = vmatprep.subr.mxu0 0.0
    %7036 = vmatpush1.msra.mxu0 0.0
    %7037 = vmatprep.subr.mxu0 0.0
    %7038 = vmatpush1.msra.mxu0 0.0
    %7039 = vmatprep.subr.mxu0 0.0
    %7040 = vmatpush1.msra.mxu0 0.0
    %7041 = vmatprep.subr.mxu0 0.0
    %7042 = vmatpush1.msra.mxu0 0.0
    %7043 = vmatprep.subr.mxu0 0.0
    %7044 = vmatpush1.msra.mxu0 0.0
    %7045 = vmatprep.subr.mxu0 0.0
    %7046 = vmatpush1.msra.mxu0 0.0
    %7047 = vmatprep.subr.mxu0 0.0
    %7048 = vmatpush1.msra.mxu0 0.0
    %7049 = vmatprep.subr.mxu0 0.0
    %7050 = vmatpush1.msra.mxu0 0.0
    %7051 = vmatprep.subr.mxu0 0.0
    %7052 = vmatpush1.msra.mxu0 0.0
    %7053 = vmatprep.subr.mxu0 0.0
    %7054 = vmatpush1.msra.mxu0 0.0
    %7055 = vmatprep.subr.mxu0 0.0
    %7056 = vmatpush1.msra.mxu0 0.0
    %7057 = vmatprep.subr.mxu0 0.0
    %7058 = vmatpush1.msra.mxu0 0.0
    %7059 = vmatprep.subr.mxu0 0.0
    %7060 = vmatpush1.msra.mxu0 %v7031
    %7061 = vmatprep.subr.mxu0 0.0
    %7062 = vmatpush1.msra.mxu0 %v7030
    %7063 = vmatprep.subr.mxu0 0.0
    %7064 = vmatpush1.msra.mxu0 %v7029
    %7065 = vmatprep.subr.mxu0 0.0
    %7066 = vmatpush1.msra.mxu0 %v7028
    %7067 = vmatprep.subr.mxu0 0.0
    %7068 = vmatpush2.msra.mxu0 0.0
    %7069 = vmatprep.subr.mxu0 0.0
    %7070 = vmatpush2.msra.mxu0 0.0
    %7071 = vmatprep.subr.mxu0 0.0
    %7072 = vmatpush2.msra.mxu0 0.0
    %7073 = vmatprep.subr.mxu0 0.0
    %7074 = vmatpush2.msra.mxu0 0.0
    %7075 = vmatprep.subr.mxu0 0.0
    %7076 = vmatpush2.msra.mxu0 0.0
    %7077 = vmatprep.subr.mxu0 0.0
    %7078 = vmatpush2.msra.mxu0 0.0
    %7079 = vmatprep.subr.mxu0 0.0
    %7080 = vmatpush2.msra.mxu0 0.0
    %7081 = vmatprep.subr.mxu0 0.0
    %7082 = vmatpush2.msra.mxu0 0.0
    %7083 = vmatprep.subr.mxu0 0.0
    %7084 = vmatpush2.msra.mxu0 0.0
    %7085 = vmatprep.subr.mxu0 0.0
    %7086 = vmatpush2.msra.mxu0 0.0
    %7087 = vmatprep.subr.mxu0 0.0
    %7088 = vmatpush2.msra.mxu0 0.0
    %7089 = vmatprep.subr.mxu0 0.0
    %7090 = vmatpush2.msra.mxu0 0.0
    %7091 = vmatprep.subr.mxu0 0.0
    %7092 = vmatpush2.msra.mxu0 0.0
    %7093 = vmatprep.subr.mxu0 0.0
    %7094 = vmatpush2.msra.mxu0 0.0
    %7095 = vmatprep.subr.mxu0 0.0
    %7096 = vmatpush2.msra.mxu0 0.0
    %7097 = vmatprep.subr.mxu0 0.0
    %7098 = vmatpush2.msra.mxu0 0.0
    %7099 = vmatprep.mubr.f32.mxu0 0.0
    %7100 = vmatmul.mubr.f32.gmra.mxu0 %v7033
    %v7101 = vpop.f32.mrf.mxu0
    %v7102 = vadd.f32 0.0, %v7101
    %v7103 = vpop.f32.mrf.mxu0
    %7104 = vdwg.mxu0
    %s7105 = scalar_lea.vmem %s9, 192
    %v7106 = vld [vmem:[%s7105] sm:$0xff]
    %v7107 = vld [vmem:[%s7105 + $0x8] sm:$0xff]
    %v7108 = vld [vmem:[%s7105 + $0x10] sm:$0xff]
    %v7109 = vld [vmem:[%s7105 + $0x18] sm:$0xff]
    %s7110 = scalar_lea.vmem %s9, 224
    %v7111 = vld [vmem:[%s7110] sm:$0xff]
    %v7112 = vld [vmem:[%s7110 + $0x8] sm:$0xff]
    %v7113 = vld [vmem:[%s7110 + $0x10] sm:$0xff]
    %v7114 = vld [vmem:[%s7110 + $0x18] sm:$0xff]
    %v7115 = vrot.slane %v6854, 7
    %v7116 = vsel %vm290, %v7115, 0
    %7118 = vmatprep.subr.mxu0 0.0
    %7119 = vmatpush1.msra.mxu0 0.0
    %7120 = vmatprep.subr.mxu0 0.0
    %7121 = vmatpush1.msra.mxu0 0.0
    %7122 = vmatprep.subr.mxu0 0.0
    %7123 = vmatpush1.msra.mxu0 0.0
    %7124 = vmatprep.subr.mxu0 0.0
    %7125 = vmatpush1.msra.mxu0 0.0
    %7126 = vmatprep.subr.mxu0 0.0
    %7127 = vmatpush1.msra.mxu0 0.0
    %7128 = vmatprep.subr.mxu0 0.0
    %7129 = vmatpush1.msra.mxu0 0.0
    %7130 = vmatprep.subr.mxu0 0.0
    %7131 = vmatpush1.msra.mxu0 0.0
    %7132 = vmatprep.subr.mxu0 0.0
    %7133 = vmatpush1.msra.mxu0 0.0
    %7134 = vmatprep.subr.mxu0 0.0
    %7135 = vmatpush1.msra.mxu0 0.0
    %7136 = vmatprep.subr.mxu0 0.0
    %7137 = vmatpush1.msra.mxu0 0.0
    %7138 = vmatprep.subr.mxu0 0.0
    %7139 = vmatpush1.msra.mxu0 0.0
    %7140 = vmatprep.subr.mxu0 0.0
    %7141 = vmatpush1.msra.mxu0 0.0
    %7142 = vmatprep.subr.mxu0 0.0
    %7143 = vmatpush1.msra.mxu0 %v7114
    %7144 = vmatprep.subr.mxu0 0.0
    %7145 = vmatpush1.msra.mxu0 %v7113
    %7146 = vmatprep.subr.mxu0 0.0
    %7147 = vmatpush1.msra.mxu0 %v7112
    %7148 = vmatprep.subr.mxu0 0.0
    %7149 = vmatpush1.msra.mxu0 %v7111
    %7150 = vmatprep.subr.mxu0 0.0
    %7151 = vmatpush2.msra.mxu0 0.0
    %7152 = vmatprep.subr.mxu0 0.0
    %7153 = vmatpush2.msra.mxu0 0.0
    %7154 = vmatprep.subr.mxu0 0.0
    %7155 = vmatpush2.msra.mxu0 0.0
    %7156 = vmatprep.subr.mxu0 0.0
    %7157 = vmatpush2.msra.mxu0 0.0
    %7158 = vmatprep.subr.mxu0 0.0
    %7159 = vmatpush2.msra.mxu0 0.0
    %7160 = vmatprep.subr.mxu0 0.0
    %7161 = vmatpush2.msra.mxu0 0.0
    %7162 = vmatprep.subr.mxu0 0.0
    %7163 = vmatpush2.msra.mxu0 0.0
    %7164 = vmatprep.subr.mxu0 0.0
    %7165 = vmatpush2.msra.mxu0 0.0
    %7166 = vmatprep.subr.mxu0 0.0
    %7167 = vmatpush2.msra.mxu0 0.0
    %7168 = vmatprep.subr.mxu0 0.0
    %7169 = vmatpush2.msra.mxu0 0.0
    %7170 = vmatprep.subr.mxu0 0.0
    %7171 = vmatpush2.msra.mxu0 0.0
    %7172 = vmatprep.subr.mxu0 0.0
    %7173 = vmatpush2.msra.mxu0 0.0
    %7174 = vmatprep.subr.mxu0 0.0
    %7175 = vmatpush2.msra.mxu0 0.0
    %7176 = vmatprep.subr.mxu0 0.0
    %7177 = vmatpush2.msra.mxu0 0.0
    %7178 = vmatprep.subr.mxu0 0.0
    %7179 = vmatpush2.msra.mxu0 0.0
    %7180 = vmatprep.subr.mxu0 0.0
    %7181 = vmatpush2.msra.mxu0 0.0
    %7182 = vmatprep.mubr.f32.mxu0 0.0
    %7183 = vmatmul.mubr.f32.gmra.mxu0 %v7116
    %v7184 = vpop.f32.mrf.mxu0
    %v7185 = vadd.f32 0.0, %v7184
    %v7186 = vpop.f32.mrf.mxu0
    %7187 = vdwg.mxu0
    %v7188 = vsel %vm290, %v6854, 0
    %7190 = vmatprep.subr.mxu0 0.0
    %7191 = vmatpush1.msra.mxu0 0.0
    %7192 = vmatprep.subr.mxu0 0.0
    %7193 = vmatpush1.msra.mxu0 0.0
    %7194 = vmatprep.subr.mxu0 0.0
    %7195 = vmatpush1.msra.mxu0 0.0
    %7196 = vmatprep.subr.mxu0 0.0
    %7197 = vmatpush1.msra.mxu0 0.0
    %7198 = vmatprep.subr.mxu0 0.0
    %7199 = vmatpush1.msra.mxu0 0.0
    %7200 = vmatprep.subr.mxu0 0.0
    %7201 = vmatpush1.msra.mxu0 0.0
    %7202 = vmatprep.subr.mxu0 0.0
    %7203 = vmatpush1.msra.mxu0 0.0
    %7204 = vmatprep.subr.mxu0 0.0
    %7205 = vmatpush1.msra.mxu0 0.0
    %7206 = vmatprep.subr.mxu0 0.0
    %7207 = vmatpush1.msra.mxu0 0.0
    %7208 = vmatprep.subr.mxu0 0.0
    %7209 = vmatpush1.msra.mxu0 0.0
    %7210 = vmatprep.subr.mxu0 0.0
    %7211 = vmatpush1.msra.mxu0 0.0
    %7212 = vmatprep.subr.mxu0 0.0
    %7213 = vmatpush1.msra.mxu0 0.0
    %7214 = vmatprep.subr.mxu0 0.0
    %7215 = vmatpush1.msra.mxu0 %v6859
    %7216 = vmatprep.subr.mxu0 0.0
    %7217 = vmatpush1.msra.mxu0 %v6858
    %7218 = vmatprep.subr.mxu0 0.0
    %7219 = vmatpush1.msra.mxu0 %v6857
    %7220 = vmatprep.subr.mxu0 0.0
    %7221 = vmatpush1.msra.mxu0 %v6856
    %7222 = vmatprep.subr.mxu0 0.0
    %7223 = vmatpush2.msra.mxu0 0.0
    %7224 = vmatprep.subr.mxu0 0.0
    %7225 = vmatpush2.msra.mxu0 0.0
    %7226 = vmatprep.subr.mxu0 0.0
    %7227 = vmatpush2.msra.mxu0 0.0
    %7228 = vmatprep.subr.mxu0 0.0
    %7229 = vmatpush2.msra.mxu0 0.0
    %7230 = vmatprep.subr.mxu0 0.0
    %7231 = vmatpush2.msra.mxu0 0.0
    %7232 = vmatprep.subr.mxu0 0.0
    %7233 = vmatpush2.msra.mxu0 0.0
    %7234 = vmatprep.subr.mxu0 0.0
    %7235 = vmatpush2.msra.mxu0 0.0
    %7236 = vmatprep.subr.mxu0 0.0
    %7237 = vmatpush2.msra.mxu0 0.0
    %7238 = vmatprep.subr.mxu0 0.0
    %7239 = vmatpush2.msra.mxu0 0.0
    %7240 = vmatprep.subr.mxu0 0.0
    %7241 = vmatpush2.msra.mxu0 0.0
    %7242 = vmatprep.subr.mxu0 0.0
    %7243 = vmatpush2.msra.mxu0 0.0
    %7244 = vmatprep.subr.mxu0 0.0
    %7245 = vmatpush2.msra.mxu0 0.0
    %7246 = vmatprep.subr.mxu0 0.0
    %7247 = vmatpush2.msra.mxu0 0.0
    %7248 = vmatprep.subr.mxu0 0.0
    %7249 = vmatpush2.msra.mxu0 0.0
    %7250 = vmatprep.subr.mxu0 0.0
    %7251 = vmatpush2.msra.mxu0 0.0
    %7252 = vmatprep.subr.mxu0 0.0
    %7253 = vmatpush2.msra.mxu0 0.0
    %7254 = vmatprep.mubr.f32.mxu0 0.0
    %7255 = vmatmul.mubr.f32.gmra.mxu0 %v7188
    %v7256 = vpop.f32.mrf.mxu0
    %v7257 = vadd.f32 %v6936, %v7256
    %v7258 = vpop.f32.mrf.mxu0
    %7259 = vdwg.mxu0
    %v7260 = vrot.slane %v6854, 2
    %v7261 = vsel %vm290, %v7260, 0
    %7263 = vmatprep.subr.mxu0 0.0
    %7264 = vmatpush1.msra.mxu0 0.0
    %7265 = vmatprep.subr.mxu0 0.0
    %7266 = vmatpush1.msra.mxu0 0.0
    %7267 = vmatprep.subr.mxu0 0.0
    %7268 = vmatpush1.msra.mxu0 0.0
    %7269 = vmatprep.subr.mxu0 0.0
    %7270 = vmatpush1.msra.mxu0 0.0
    %7271 = vmatprep.subr.mxu0 0.0
    %7272 = vmatpush1.msra.mxu0 0.0
    %7273 = vmatprep.subr.mxu0 0.0
    %7274 = vmatpush1.msra.mxu0 0.0
    %7275 = vmatprep.subr.mxu0 0.0
    %7276 = vmatpush1.msra.mxu0 0.0
    %7277 = vmatprep.subr.mxu0 0.0
    %7278 = vmatpush1.msra.mxu0 0.0
    %7279 = vmatprep.subr.mxu0 0.0
    %7280 = vmatpush1.msra.mxu0 0.0
    %7281 = vmatprep.subr.mxu0 0.0
    %7282 = vmatpush1.msra.mxu0 0.0
    %7283 = vmatprep.subr.mxu0 0.0
    %7284 = vmatpush1.msra.mxu0 0.0
    %7285 = vmatprep.subr.mxu0 0.0
    %7286 = vmatpush1.msra.mxu0 0.0
    %7287 = vmatprep.subr.mxu0 0.0
    %7288 = vmatpush1.msra.mxu0 %v6943
    %7289 = vmatprep.subr.mxu0 0.0
    %7290 = vmatpush1.msra.mxu0 %v6942
    %7291 = vmatprep.subr.mxu0 0.0
    %7292 = vmatpush1.msra.mxu0 %v6941
    %7293 = vmatprep.subr.mxu0 0.0
    %7294 = vmatpush1.msra.mxu0 %v6940
    %7295 = vmatprep.subr.mxu0 0.0
    %7296 = vmatpush2.msra.mxu0 0.0
    %7297 = vmatprep.subr.mxu0 0.0
    %7298 = vmatpush2.msra.mxu0 0.0
    %7299 = vmatprep.subr.mxu0 0.0
    %7300 = vmatpush2.msra.mxu0 0.0
    %7301 = vmatprep.subr.mxu0 0.0
    %7302 = vmatpush2.msra.mxu0 0.0
    %7303 = vmatprep.subr.mxu0 0.0
    %7304 = vmatpush2.msra.mxu0 0.0
    %7305 = vmatprep.subr.mxu0 0.0
    %7306 = vmatpush2.msra.mxu0 0.0
    %7307 = vmatprep.subr.mxu0 0.0
    %7308 = vmatpush2.msra.mxu0 0.0
    %7309 = vmatprep.subr.mxu0 0.0
    %7310 = vmatpush2.msra.mxu0 0.0
    %7311 = vmatprep.subr.mxu0 0.0
    %7312 = vmatpush2.msra.mxu0 0.0
    %7313 = vmatprep.subr.mxu0 0.0
    %7314 = vmatpush2.msra.mxu0 0.0
    %7315 = vmatprep.subr.mxu0 0.0
    %7316 = vmatpush2.msra.mxu0 0.0
    %7317 = vmatprep.subr.mxu0 0.0
    %7318 = vmatpush2.msra.mxu0 0.0
    %7319 = vmatprep.subr.mxu0 0.0
    %7320 = vmatpush2.msra.mxu0 0.0
    %7321 = vmatprep.subr.mxu0 0.0
    %7322 = vmatpush2.msra.mxu0 0.0
    %7323 = vmatprep.subr.mxu0 0.0
    %7324 = vmatpush2.msra.mxu0 0.0
    %7325 = vmatprep.subr.mxu0 0.0
    %7326 = vmatpush2.msra.mxu0 0.0
    %7327 = vmatprep.mubr.f32.mxu0 0.0
    %7328 = vmatmul.mubr.f32.gmra.mxu0 %v7261
    %v7329 = vpop.f32.mrf.mxu0
    %v7330 = vadd.f32 %v7019, %v7329
    %v7331 = vpop.f32.mrf.mxu0
    %7332 = vdwg.mxu0
    %v7333 = vrot.slane %v6854, 4
    %v7334 = vsel %vm290, %v7333, 0
    %7336 = vmatprep.subr.mxu0 0.0
    %7337 = vmatpush1.msra.mxu0 0.0
    %7338 = vmatprep.subr.mxu0 0.0
    %7339 = vmatpush1.msra.mxu0 0.0
    %7340 = vmatprep.subr.mxu0 0.0
    %7341 = vmatpush1.msra.mxu0 0.0
    %7342 = vmatprep.subr.mxu0 0.0
    %7343 = vmatpush1.msra.mxu0 0.0
    %7344 = vmatprep.subr.mxu0 0.0
    %7345 = vmatpush1.msra.mxu0 0.0
    %7346 = vmatprep.subr.mxu0 0.0
    %7347 = vmatpush1.msra.mxu0 0.0
    %7348 = vmatprep.subr.mxu0 0.0
    %7349 = vmatpush1.msra.mxu0 0.0
    %7350 = vmatprep.subr.mxu0 0.0
    %7351 = vmatpush1.msra.mxu0 0.0
    %7352 = vmatprep.subr.mxu0 0.0
    %7353 = vmatpush1.msra.mxu0 0.0
    %7354 = vmatprep.subr.mxu0 0.0
    %7355 = vmatpush1.msra.mxu0 0.0
    %7356 = vmatprep.subr.mxu0 0.0
    %7357 = vmatpush1.msra.mxu0 0.0
    %7358 = vmatprep.subr.mxu0 0.0
    %7359 = vmatpush1.msra.mxu0 0.0
    %7360 = vmatprep.subr.mxu0 0.0
    %7361 = vmatpush1.msra.mxu0 %v7026
    %7362 = vmatprep.subr.mxu0 0.0
    %7363 = vmatpush1.msra.mxu0 %v7025
    %7364 = vmatprep.subr.mxu0 0.0
    %7365 = vmatpush1.msra.mxu0 %v7024
    %7366 = vmatprep.subr.mxu0 0.0
    %7367 = vmatpush1.msra.mxu0 %v7023
    %7368 = vmatprep.subr.mxu0 0.0
    %7369 = vmatpush2.msra.mxu0 0.0
    %7370 = vmatprep.subr.mxu0 0.0
    %7371 = vmatpush2.msra.mxu0 0.0
    %7372 = vmatprep.subr.mxu0 0.0
    %7373 = vmatpush2.msra.mxu0 0.0
    %7374 = vmatprep.subr.mxu0 0.0
    %7375 = vmatpush2.msra.mxu0 0.0
    %7376 = vmatprep.subr.mxu0 0.0
    %7377 = vmatpush2.msra.mxu0 0.0
    %7378 = vmatprep.subr.mxu0 0.0
    %7379 = vmatpush2.msra.mxu0 0.0
    %7380 = vmatprep.subr.mxu0 0.0
    %7381 = vmatpush2.msra.mxu0 0.0
    %7382 = vmatprep.subr.mxu0 0.0
    %7383 = vmatpush2.msra.mxu0 0.0
    %7384 = vmatprep.subr.mxu0 0.0
    %7385 = vmatpush2.msra.mxu0 0.0
    %7386 = vmatprep.subr.mxu0 0.0
    %7387 = vmatpush2.msra.mxu0 0.0
    %7388 = vmatprep.subr.mxu0 0.0
    %7389 = vmatpush2.msra.mxu0 0.0
    %7390 = vmatprep.subr.mxu0 0.0
    %7391 = vmatpush2.msra.mxu0 0.0
    %7392 = vmatprep.subr.mxu0 0.0
    %7393 = vmatpush2.msra.mxu0 0.0
    %7394 = vmatprep.subr.mxu0 0.0
    %7395 = vmatpush2.msra.mxu0 0.0
    %7396 = vmatprep.subr.mxu0 0.0
    %7397 = vmatpush2.msra.mxu0 0.0
    %7398 = vmatprep.subr.mxu0 0.0
    %7399 = vmatpush2.msra.mxu0 0.0
    %7400 = vmatprep.mubr.f32.mxu0 0.0
    %7401 = vmatmul.mubr.f32.gmra.mxu0 %v7334
    %v7402 = vpop.f32.mrf.mxu0
    %v7403 = vadd.f32 %v7102, %v7402
    %v7404 = vpop.f32.mrf.mxu0
    %7405 = vdwg.mxu0
    %v7406 = vrot.slane %v6854, 6
    %v7407 = vsel %vm290, %v7406, 0
    %7409 = vmatprep.subr.mxu0 0.0
    %7410 = vmatpush1.msra.mxu0 0.0
    %7411 = vmatprep.subr.mxu0 0.0
    %7412 = vmatpush1.msra.mxu0 0.0
    %7413 = vmatprep.subr.mxu0 0.0
    %7414 = vmatpush1.msra.mxu0 0.0
    %7415 = vmatprep.subr.mxu0 0.0
    %7416 = vmatpush1.msra.mxu0 0.0
    %7417 = vmatprep.subr.mxu0 0.0
    %7418 = vmatpush1.msra.mxu0 0.0
    %7419 = vmatprep.subr.mxu0 0.0
    %7420 = vmatpush1.msra.mxu0 0.0
    %7421 = vmatprep.subr.mxu0 0.0
    %7422 = vmatpush1.msra.mxu0 0.0
    %7423 = vmatprep.subr.mxu0 0.0
    %7424 = vmatpush1.msra.mxu0 0.0
    %7425 = vmatprep.subr.mxu0 0.0
    %7426 = vmatpush1.msra.mxu0 0.0
    %7427 = vmatprep.subr.mxu0 0.0
    %7428 = vmatpush1.msra.mxu0 0.0
    %7429 = vmatprep.subr.mxu0 0.0
    %7430 = vmatpush1.msra.mxu0 0.0
    %7431 = vmatprep.subr.mxu0 0.0
    %7432 = vmatpush1.msra.mxu0 0.0
    %7433 = vmatprep.subr.mxu0 0.0
    %7434 = vmatpush1.msra.mxu0 %v7109
    %7435 = vmatprep.subr.mxu0 0.0
    %7436 = vmatpush1.msra.mxu0 %v7108
    %7437 = vmatprep.subr.mxu0 0.0
    %7438 = vmatpush1.msra.mxu0 %v7107
    %7439 = vmatprep.subr.mxu0 0.0
    %7440 = vmatpush1.msra.mxu0 %v7106
    %7441 = vmatprep.subr.mxu0 0.0
    %7442 = vmatpush2.msra.mxu0 0.0
    %7443 = vmatprep.subr.mxu0 0.0
    %7444 = vmatpush2.msra.mxu0 0.0
    %7445 = vmatprep.subr.mxu0 0.0
    %7446 = vmatpush2.msra.mxu0 0.0
    %7447 = vmatprep.subr.mxu0 0.0
    %7448 = vmatpush2.msra.mxu0 0.0
    %7449 = vmatprep.subr.mxu0 0.0
    %7450 = vmatpush2.msra.mxu0 0.0
    %7451 = vmatprep.subr.mxu0 0.0
    %7452 = vmatpush2.msra.mxu0 0.0
    %7453 = vmatprep.subr.mxu0 0.0
    %7454 = vmatpush2.msra.mxu0 0.0
    %7455 = vmatprep.subr.mxu0 0.0
    %7456 = vmatpush2.msra.mxu0 0.0
    %7457 = vmatprep.subr.mxu0 0.0
    %7458 = vmatpush2.msra.mxu0 0.0
    %7459 = vmatprep.subr.mxu0 0.0
    %7460 = vmatpush2.msra.mxu0 0.0
    %7461 = vmatprep.subr.mxu0 0.0
    %7462 = vmatpush2.msra.mxu0 0.0
    %7463 = vmatprep.subr.mxu0 0.0
    %7464 = vmatpush2.msra.mxu0 0.0
    %7465 = vmatprep.subr.mxu0 0.0
    %7466 = vmatpush2.msra.mxu0 0.0
    %7467 = vmatprep.subr.mxu0 0.0
    %7468 = vmatpush2.msra.mxu0 0.0
    %7469 = vmatprep.subr.mxu0 0.0
    %7470 = vmatpush2.msra.mxu0 0.0
    %7471 = vmatprep.subr.mxu0 0.0
    %7472 = vmatpush2.msra.mxu0 0.0
    %7473 = vmatprep.mubr.f32.mxu0 0.0
    %7474 = vmatmul.mubr.f32.gmra.mxu0 %v7407
    %v7475 = vpop.f32.mrf.mxu0
    %v7476 = vadd.f32 %v7185, %v7475
    %v7477 = vpop.f32.mrf.mxu0
    %7478 = vdwg.mxu0
    %v7479 = vadd.f32 %v7257, %v7330
    %v7480 = vadd.f32 %v7403, %v7476
    %v7481 = vadd.f32 %v7479, %v7480
    %v7483 = vrot.slane %v6855, 1
    %v7484 = vsel %vm290, %v7483, 0
    %7486 = vmatprep.subr.mxu0 0.0
    %7487 = vmatpush1.msra.mxu0 0.0
    %7488 = vmatprep.subr.mxu0 0.0
    %7489 = vmatpush1.msra.mxu0 0.0
    %7490 = vmatprep.subr.mxu0 0.0
    %7491 = vmatpush1.msra.mxu0 0.0
    %7492 = vmatprep.subr.mxu0 0.0
    %7493 = vmatpush1.msra.mxu0 0.0
    %7494 = vmatprep.subr.mxu0 0.0
    %7495 = vmatpush1.msra.mxu0 0.0
    %7496 = vmatprep.subr.mxu0 0.0
    %7497 = vmatpush1.msra.mxu0 0.0
    %7498 = vmatprep.subr.mxu0 0.0
    %7499 = vmatpush1.msra.mxu0 0.0
    %7500 = vmatprep.subr.mxu0 0.0
    %7501 = vmatpush1.msra.mxu0 0.0
    %7502 = vmatprep.subr.mxu0 0.0
    %7503 = vmatpush1.msra.mxu0 0.0
    %7504 = vmatprep.subr.mxu0 0.0
    %7505 = vmatpush1.msra.mxu0 0.0
    %7506 = vmatprep.subr.mxu0 0.0
    %7507 = vmatpush1.msra.mxu0 0.0
    %7508 = vmatprep.subr.mxu0 0.0
    %7509 = vmatpush1.msra.mxu0 0.0
    %7510 = vmatprep.subr.mxu0 0.0
    %7511 = vmatpush1.msra.mxu0 %v6864
    %7512 = vmatprep.subr.mxu0 0.0
    %7513 = vmatpush1.msra.mxu0 %v6863
    %7514 = vmatprep.subr.mxu0 0.0
    %7515 = vmatpush1.msra.mxu0 %v6862
    %7516 = vmatprep.subr.mxu0 0.0
    %7517 = vmatpush1.msra.mxu0 %v6861
    %7518 = vmatprep.subr.mxu0 0.0
    %7519 = vmatpush2.msra.mxu0 0.0
    %7520 = vmatprep.subr.mxu0 0.0
    %7521 = vmatpush2.msra.mxu0 0.0
    %7522 = vmatprep.subr.mxu0 0.0
    %7523 = vmatpush2.msra.mxu0 0.0
    %7524 = vmatprep.subr.mxu0 0.0
    %7525 = vmatpush2.msra.mxu0 0.0
    %7526 = vmatprep.subr.mxu0 0.0
    %7527 = vmatpush2.msra.mxu0 0.0
    %7528 = vmatprep.subr.mxu0 0.0
    %7529 = vmatpush2.msra.mxu0 0.0
    %7530 = vmatprep.subr.mxu0 0.0
    %7531 = vmatpush2.msra.mxu0 0.0
    %7532 = vmatprep.subr.mxu0 0.0
    %7533 = vmatpush2.msra.mxu0 0.0
    %7534 = vmatprep.subr.mxu0 0.0
    %7535 = vmatpush2.msra.mxu0 0.0
    %7536 = vmatprep.subr.mxu0 0.0
    %7537 = vmatpush2.msra.mxu0 0.0
    %7538 = vmatprep.subr.mxu0 0.0
    %7539 = vmatpush2.msra.mxu0 0.0
    %7540 = vmatprep.subr.mxu0 0.0
    %7541 = vmatpush2.msra.mxu0 0.0
    %7542 = vmatprep.subr.mxu0 0.0
    %7543 = vmatpush2.msra.mxu0 0.0
    %7544 = vmatprep.subr.mxu0 0.0
    %7545 = vmatpush2.msra.mxu0 0.0
    %7546 = vmatprep.subr.mxu0 0.0
    %7547 = vmatpush2.msra.mxu0 0.0
    %7548 = vmatprep.subr.mxu0 0.0
    %7549 = vmatpush2.msra.mxu0 0.0
    %7550 = vmatprep.mubr.f32.mxu0 0.0
    %7551 = vmatmul.mubr.f32.gmra.mxu0 %v7484
    %v7552 = vpop.f32.mrf.mxu0
    %v7553 = vadd.f32 0.0, %v7552
    %v7554 = vpop.f32.mrf.mxu0
    %7555 = vdwg.mxu0
    %v7556 = vrot.slane %v6855, 3
    %v7557 = vsel %vm290, %v7556, 0
    %7559 = vmatprep.subr.mxu0 0.0
    %7560 = vmatpush1.msra.mxu0 0.0
    %7561 = vmatprep.subr.mxu0 0.0
    %7562 = vmatpush1.msra.mxu0 0.0
    %7563 = vmatprep.subr.mxu0 0.0
    %7564 = vmatpush1.msra.mxu0 0.0
    %7565 = vmatprep.subr.mxu0 0.0
    %7566 = vmatpush1.msra.mxu0 0.0
    %7567 = vmatprep.subr.mxu0 0.0
    %7568 = vmatpush1.msra.mxu0 0.0
    %7569 = vmatprep.subr.mxu0 0.0
    %7570 = vmatpush1.msra.mxu0 0.0
    %7571 = vmatprep.subr.mxu0 0.0
    %7572 = vmatpush1.msra.mxu0 0.0
    %7573 = vmatprep.subr.mxu0 0.0
    %7574 = vmatpush1.msra.mxu0 0.0
    %7575 = vmatprep.subr.mxu0 0.0
    %7576 = vmatpush1.msra.mxu0 0.0
    %7577 = vmatprep.subr.mxu0 0.0
    %7578 = vmatpush1.msra.mxu0 0.0
    %7579 = vmatprep.subr.mxu0 0.0
    %7580 = vmatpush1.msra.mxu0 0.0
    %7581 = vmatprep.subr.mxu0 0.0
    %7582 = vmatpush1.msra.mxu0 0.0
    %7583 = vmatprep.subr.mxu0 0.0
    %7584 = vmatpush1.msra.mxu0 %v6948
    %7585 = vmatprep.subr.mxu0 0.0
    %7586 = vmatpush1.msra.mxu0 %v6947
    %7587 = vmatprep.subr.mxu0 0.0
    %7588 = vmatpush1.msra.mxu0 %v6946
    %7589 = vmatprep.subr.mxu0 0.0
    %7590 = vmatpush1.msra.mxu0 %v6945
    %7591 = vmatprep.subr.mxu0 0.0
    %7592 = vmatpush2.msra.mxu0 0.0
    %7593 = vmatprep.subr.mxu0 0.0
    %7594 = vmatpush2.msra.mxu0 0.0
    %7595 = vmatprep.subr.mxu0 0.0
    %7596 = vmatpush2.msra.mxu0 0.0
    %7597 = vmatprep.subr.mxu0 0.0
    %7598 = vmatpush2.msra.mxu0 0.0
    %7599 = vmatprep.subr.mxu0 0.0
    %7600 = vmatpush2.msra.mxu0 0.0
    %7601 = vmatprep.subr.mxu0 0.0
    %7602 = vmatpush2.msra.mxu0 0.0
    %7603 = vmatprep.subr.mxu0 0.0
    %7604 = vmatpush2.msra.mxu0 0.0
    %7605 = vmatprep.subr.mxu0 0.0
    %7606 = vmatpush2.msra.mxu0 0.0
    %7607 = vmatprep.subr.mxu0 0.0
    %7608 = vmatpush2.msra.mxu0 0.0
    %7609 = vmatprep.subr.mxu0 0.0
    %7610 = vmatpush2.msra.mxu0 0.0
    %7611 = vmatprep.subr.mxu0 0.0
    %7612 = vmatpush2.msra.mxu0 0.0
    %7613 = vmatprep.subr.mxu0 0.0
    %7614 = vmatpush2.msra.mxu0 0.0
    %7615 = vmatprep.subr.mxu0 0.0
    %7616 = vmatpush2.msra.mxu0 0.0
    %7617 = vmatprep.subr.mxu0 0.0
    %7618 = vmatpush2.msra.mxu0 0.0
    %7619 = vmatprep.subr.mxu0 0.0
    %7620 = vmatpush2.msra.mxu0 0.0
    %7621 = vmatprep.subr.mxu0 0.0
    %7622 = vmatpush2.msra.mxu0 0.0
    %7623 = vmatprep.mubr.f32.mxu0 0.0
    %7624 = vmatmul.mubr.f32.gmra.mxu0 %v7557
    %v7625 = vpop.f32.mrf.mxu0
    %v7626 = vadd.f32 0.0, %v7625
    %v7627 = vpop.f32.mrf.mxu0
    %7628 = vdwg.mxu0
    %v7629 = vrot.slane %v6855, 5
    %v7630 = vsel %vm290, %v7629, 0
    %7632 = vmatprep.subr.mxu0 0.0
    %7633 = vmatpush1.msra.mxu0 0.0
    %7634 = vmatprep.subr.mxu0 0.0
    %7635 = vmatpush1.msra.mxu0 0.0
    %7636 = vmatprep.subr.mxu0 0.0
    %7637 = vmatpush1.msra.mxu0 0.0
    %7638 = vmatprep.subr.mxu0 0.0
    %7639 = vmatpush1.msra.mxu0 0.0
    %7640 = vmatprep.subr.mxu0 0.0
    %7641 = vmatpush1.msra.mxu0 0.0
    %7642 = vmatprep.subr.mxu0 0.0
    %7643 = vmatpush1.msra.mxu0 0.0
    %7644 = vmatprep.subr.mxu0 0.0
    %7645 = vmatpush1.msra.mxu0 0.0
    %7646 = vmatprep.subr.mxu0 0.0
    %7647 = vmatpush1.msra.mxu0 0.0
    %7648 = vmatprep.subr.mxu0 0.0
    %7649 = vmatpush1.msra.mxu0 0.0
    %7650 = vmatprep.subr.mxu0 0.0
    %7651 = vmatpush1.msra.mxu0 0.0
    %7652 = vmatprep.subr.mxu0 0.0
    %7653 = vmatpush1.msra.mxu0 0.0
    %7654 = vmatprep.subr.mxu0 0.0
    %7655 = vmatpush1.msra.mxu0 0.0
    %7656 = vmatprep.subr.mxu0 0.0
    %7657 = vmatpush1.msra.mxu0 %v7031
    %7658 = vmatprep.subr.mxu0 0.0
    %7659 = vmatpush1.msra.mxu0 %v7030
    %7660 = vmatprep.subr.mxu0 0.0
    %7661 = vmatpush1.msra.mxu0 %v7029
    %7662 = vmatprep.subr.mxu0 0.0
    %7663 = vmatpush1.msra.mxu0 %v7028
    %7664 = vmatprep.subr.mxu0 0.0
    %7665 = vmatpush2.msra.mxu0 0.0
    %7666 = vmatprep.subr.mxu0 0.0
    %7667 = vmatpush2.msra.mxu0 0.0
    %7668 = vmatprep.subr.mxu0 0.0
    %7669 = vmatpush2.msra.mxu0 0.0
    %7670 = vmatprep.subr.mxu0 0.0
    %7671 = vmatpush2.msra.mxu0 0.0
    %7672 = vmatprep.subr.mxu0 0.0
    %7673 = vmatpush2.msra.mxu0 0.0
    %7674 = vmatprep.subr.mxu0 0.0
    %7675 = vmatpush2.msra.mxu0 0.0
    %7676 = vmatprep.subr.mxu0 0.0
    %7677 = vmatpush2.msra.mxu0 0.0
    %7678 = vmatprep.subr.mxu0 0.0
    %7679 = vmatpush2.msra.mxu0 0.0
    %7680 = vmatprep.subr.mxu0 0.0
    %7681 = vmatpush2.msra.mxu0 0.0
    %7682 = vmatprep.subr.mxu0 0.0
    %7683 = vmatpush2.msra.mxu0 0.0
    %7684 = vmatprep.subr.mxu0 0.0
    %7685 = vmatpush2.msra.mxu0 0.0
    %7686 = vmatprep.subr.mxu0 0.0
    %7687 = vmatpush2.msra.mxu0 0.0
    %7688 = vmatprep.subr.mxu0 0.0
    %7689 = vmatpush2.msra.mxu0 0.0
    %7690 = vmatprep.subr.mxu0 0.0
    %7691 = vmatpush2.msra.mxu0 0.0
    %7692 = vmatprep.subr.mxu0 0.0
    %7693 = vmatpush2.msra.mxu0 0.0
    %7694 = vmatprep.subr.mxu0 0.0
    %7695 = vmatpush2.msra.mxu0 0.0
    %7696 = vmatprep.mubr.f32.mxu0 0.0
    %7697 = vmatmul.mubr.f32.gmra.mxu0 %v7630
    %v7698 = vpop.f32.mrf.mxu0
    %v7699 = vadd.f32 0.0, %v7698
    %v7700 = vpop.f32.mrf.mxu0
    %7701 = vdwg.mxu0
    %v7702 = vrot.slane %v6855, 7
    %v7703 = vsel %vm290, %v7702, 0
    %7705 = vmatprep.subr.mxu0 0.0
    %7706 = vmatpush1.msra.mxu0 0.0
    %7707 = vmatprep.subr.mxu0 0.0
    %7708 = vmatpush1.msra.mxu0 0.0
    %7709 = vmatprep.subr.mxu0 0.0
    %7710 = vmatpush1.msra.mxu0 0.0
    %7711 = vmatprep.subr.mxu0 0.0
    %7712 = vmatpush1.msra.mxu0 0.0
    %7713 = vmatprep.subr.mxu0 0.0
    %7714 = vmatpush1.msra.mxu0 0.0
    %7715 = vmatprep.subr.mxu0 0.0
    %7716 = vmatpush1.msra.mxu0 0.0
    %7717 = vmatprep.subr.mxu0 0.0
    %7718 = vmatpush1.msra.mxu0 0.0
    %7719 = vmatprep.subr.mxu0 0.0
    %7720 = vmatpush1.msra.mxu0 0.0
    %7721 = vmatprep.subr.mxu0 0.0
    %7722 = vmatpush1.msra.mxu0 0.0
    %7723 = vmatprep.subr.mxu0 0.0
    %7724 = vmatpush1.msra.mxu0 0.0
    %7725 = vmatprep.subr.mxu0 0.0
    %7726 = vmatpush1.msra.mxu0 0.0
    %7727 = vmatprep.subr.mxu0 0.0
    %7728 = vmatpush1.msra.mxu0 0.0
    %7729 = vmatprep.subr.mxu0 0.0
    %7730 = vmatpush1.msra.mxu0 %v7114
    %7731 = vmatprep.subr.mxu0 0.0
    %7732 = vmatpush1.msra.mxu0 %v7113
    %7733 = vmatprep.subr.mxu0 0.0
    %7734 = vmatpush1.msra.mxu0 %v7112
    %7735 = vmatprep.subr.mxu0 0.0
    %7736 = vmatpush1.msra.mxu0 %v7111
    %7737 = vmatprep.subr.mxu0 0.0
    %7738 = vmatpush2.msra.mxu0 0.0
    %7739 = vmatprep.subr.mxu0 0.0
    %7740 = vmatpush2.msra.mxu0 0.0
    %7741 = vmatprep.subr.mxu0 0.0
    %7742 = vmatpush2.msra.mxu0 0.0
    %7743 = vmatprep.subr.mxu0 0.0
    %7744 = vmatpush2.msra.mxu0 0.0
    %7745 = vmatprep.subr.mxu0 0.0
    %7746 = vmatpush2.msra.mxu0 0.0
    %7747 = vmatprep.subr.mxu0 0.0
    %7748 = vmatpush2.msra.mxu0 0.0
    %7749 = vmatprep.subr.mxu0 0.0
    %7750 = vmatpush2.msra.mxu0 0.0
    %7751 = vmatprep.subr.mxu0 0.0
    %7752 = vmatpush2.msra.mxu0 0.0
    %7753 = vmatprep.subr.mxu0 0.0
    %7754 = vmatpush2.msra.mxu0 0.0
    %7755 = vmatprep.subr.mxu0 0.0
    %7756 = vmatpush2.msra.mxu0 0.0
    %7757 = vmatprep.subr.mxu0 0.0
    %7758 = vmatpush2.msra.mxu0 0.0
    %7759 = vmatprep.subr.mxu0 0.0
    %7760 = vmatpush2.msra.mxu0 0.0
    %7761 = vmatprep.subr.mxu0 0.0
    %7762 = vmatpush2.msra.mxu0 0.0
    %7763 = vmatprep.subr.mxu0 0.0
    %7764 = vmatpush2.msra.mxu0 0.0
    %7765 = vmatprep.subr.mxu0 0.0
    %7766 = vmatpush2.msra.mxu0 0.0
    %7767 = vmatprep.subr.mxu0 0.0
    %7768 = vmatpush2.msra.mxu0 0.0
    %7769 = vmatprep.mubr.f32.mxu0 0.0
    %7770 = vmatmul.mubr.f32.gmra.mxu0 %v7703
    %v7771 = vpop.f32.mrf.mxu0
    %v7772 = vadd.f32 0.0, %v7771
    %v7773 = vpop.f32.mrf.mxu0
    %7774 = vdwg.mxu0
    %v7775 = vsel %vm290, %v6855, 0
    %7777 = vmatprep.subr.mxu0 0.0
    %7778 = vmatpush1.msra.mxu0 0.0
    %7779 = vmatprep.subr.mxu0 0.0
    %7780 = vmatpush1.msra.mxu0 0.0
    %7781 = vmatprep.subr.mxu0 0.0
    %7782 = vmatpush1.msra.mxu0 0.0
    %7783 = vmatprep.subr.mxu0 0.0
    %7784 = vmatpush1.msra.mxu0 0.0
    %7785 = vmatprep.subr.mxu0 0.0
    %7786 = vmatpush1.msra.mxu0 0.0
    %7787 = vmatprep.subr.mxu0 0.0
    %7788 = vmatpush1.msra.mxu0 0.0
    %7789 = vmatprep.subr.mxu0 0.0
    %7790 = vmatpush1.msra.mxu0 0.0
    %7791 = vmatprep.subr.mxu0 0.0
    %7792 = vmatpush1.msra.mxu0 0.0
    %7793 = vmatprep.subr.mxu0 0.0
    %7794 = vmatpush1.msra.mxu0 0.0
    %7795 = vmatprep.subr.mxu0 0.0
    %7796 = vmatpush1.msra.mxu0 0.0
    %7797 = vmatprep.subr.mxu0 0.0
    %7798 = vmatpush1.msra.mxu0 0.0
    %7799 = vmatprep.subr.mxu0 0.0
    %7800 = vmatpush1.msra.mxu0 0.0
    %7801 = vmatprep.subr.mxu0 0.0
    %7802 = vmatpush1.msra.mxu0 %v6859
    %7803 = vmatprep.subr.mxu0 0.0
    %7804 = vmatpush1.msra.mxu0 %v6858
    %7805 = vmatprep.subr.mxu0 0.0
    %7806 = vmatpush1.msra.mxu0 %v6857
    %7807 = vmatprep.subr.mxu0 0.0
    %7808 = vmatpush1.msra.mxu0 %v6856
    %7809 = vmatprep.subr.mxu0 0.0
    %7810 = vmatpush2.msra.mxu0 0.0
    %7811 = vmatprep.subr.mxu0 0.0
    %7812 = vmatpush2.msra.mxu0 0.0
    %7813 = vmatprep.subr.mxu0 0.0
    %7814 = vmatpush2.msra.mxu0 0.0
    %7815 = vmatprep.subr.mxu0 0.0
    %7816 = vmatpush2.msra.mxu0 0.0
    %7817 = vmatprep.subr.mxu0 0.0
    %7818 = vmatpush2.msra.mxu0 0.0
    %7819 = vmatprep.subr.mxu0 0.0
    %7820 = vmatpush2.msra.mxu0 0.0
    %7821 = vmatprep.subr.mxu0 0.0
    %7822 = vmatpush2.msra.mxu0 0.0
    %7823 = vmatprep.subr.mxu0 0.0
    %7824 = vmatpush2.msra.mxu0 0.0
    %7825 = vmatprep.subr.mxu0 0.0
    %7826 = vmatpush2.msra.mxu0 0.0
    %7827 = vmatprep.subr.mxu0 0.0
    %7828 = vmatpush2.msra.mxu0 0.0
    %7829 = vmatprep.subr.mxu0 0.0
    %7830 = vmatpush2.msra.mxu0 0.0
    %7831 = vmatprep.subr.mxu0 0.0
    %7832 = vmatpush2.msra.mxu0 0.0
    %7833 = vmatprep.subr.mxu0 0.0
    %7834 = vmatpush2.msra.mxu0 0.0
    %7835 = vmatprep.subr.mxu0 0.0
    %7836 = vmatpush2.msra.mxu0 0.0
    %7837 = vmatprep.subr.mxu0 0.0
    %7838 = vmatpush2.msra.mxu0 0.0
    %7839 = vmatprep.subr.mxu0 0.0
    %7840 = vmatpush2.msra.mxu0 0.0
    %7841 = vmatprep.mubr.f32.mxu0 0.0
    %7842 = vmatmul.mubr.f32.gmra.mxu0 %v7775
    %v7843 = vpop.f32.mrf.mxu0
    %v7844 = vadd.f32 %v7553, %v7843
    %v7845 = vpop.f32.mrf.mxu0
    %7846 = vdwg.mxu0
    %v7847 = vrot.slane %v6855, 2
    %v7848 = vsel %vm290, %v7847, 0
    %7850 = vmatprep.subr.mxu0 0.0
    %7851 = vmatpush1.msra.mxu0 0.0
    %7852 = vmatprep.subr.mxu0 0.0
    %7853 = vmatpush1.msra.mxu0 0.0
    %7854 = vmatprep.subr.mxu0 0.0
    %7855 = vmatpush1.msra.mxu0 0.0
    %7856 = vmatprep.subr.mxu0 0.0
    %7857 = vmatpush1.msra.mxu0 0.0
    %7858 = vmatprep.subr.mxu0 0.0
    %7859 = vmatpush1.msra.mxu0 0.0
    %7860 = vmatprep.subr.mxu0 0.0
    %7861 = vmatpush1.msra.mxu0 0.0
    %7862 = vmatprep.subr.mxu0 0.0
    %7863 = vmatpush1.msra.mxu0 0.0
    %7864 = vmatprep.subr.mxu0 0.0
    %7865 = vmatpush1.msra.mxu0 0.0
    %7866 = vmatprep.subr.mxu0 0.0
    %7867 = vmatpush1.msra.mxu0 0.0
    %7868 = vmatprep.subr.mxu0 0.0
    %7869 = vmatpush1.msra.mxu0 0.0
    %7870 = vmatprep.subr.mxu0 0.0
    %7871 = vmatpush1.msra.mxu0 0.0
    %7872 = vmatprep.subr.mxu0 0.0
    %7873 = vmatpush1.msra.mxu0 0.0
    %7874 = vmatprep.subr.mxu0 0.0
    %7875 = vmatpush1.msra.mxu0 %v6943
    %7876 = vmatprep.subr.mxu0 0.0
    %7877 = vmatpush1.msra.mxu0 %v6942
    %7878 = vmatprep.subr.mxu0 0.0
    %7879 = vmatpush1.msra.mxu0 %v6941
    %7880 = vmatprep.subr.mxu0 0.0
    %7881 = vmatpush1.msra.mxu0 %v6940
    %7882 = vmatprep.subr.mxu0 0.0
    %7883 = vmatpush2.msra.mxu0 0.0
    %7884 = vmatprep.subr.mxu0 0.0
    %7885 = vmatpush2.msra.mxu0 0.0
    %7886 = vmatprep.subr.mxu0 0.0
    %7887 = vmatpush2.msra.mxu0 0.0
    %7888 = vmatprep.subr.mxu0 0.0
    %7889 = vmatpush2.msra.mxu0 0.0
    %7890 = vmatprep.subr.mxu0 0.0
    %7891 = vmatpush2.msra.mxu0 0.0
    %7892 = vmatprep.subr.mxu0 0.0
    %7893 = vmatpush2.msra.mxu0 0.0
    %7894 = vmatprep.subr.mxu0 0.0
    %7895 = vmatpush2.msra.mxu0 0.0
    %7896 = vmatprep.subr.mxu0 0.0
    %7897 = vmatpush2.msra.mxu0 0.0
    %7898 = vmatprep.subr.mxu0 0.0
    %7899 = vmatpush2.msra.mxu0 0.0
    %7900 = vmatprep.subr.mxu0 0.0
    %7901 = vmatpush2.msra.mxu0 0.0
    %7902 = vmatprep.subr.mxu0 0.0
    %7903 = vmatpush2.msra.mxu0 0.0
    %7904 = vmatprep.subr.mxu0 0.0
    %7905 = vmatpush2.msra.mxu0 0.0
    %7906 = vmatprep.subr.mxu0 0.0
    %7907 = vmatpush2.msra.mxu0 0.0
    %7908 = vmatprep.subr.mxu0 0.0
    %7909 = vmatpush2.msra.mxu0 0.0
    %7910 = vmatprep.subr.mxu0 0.0
    %7911 = vmatpush2.msra.mxu0 0.0
    %7912 = vmatprep.subr.mxu0 0.0
    %7913 = vmatpush2.msra.mxu0 0.0
    %7914 = vmatprep.mubr.f32.mxu0 0.0
    %7915 = vmatmul.mubr.f32.gmra.mxu0 %v7848
    %v7916 = vpop.f32.mrf.mxu0
    %v7917 = vadd.f32 %v7626, %v7916
    %v7918 = vpop.f32.mrf.mxu0
    %7919 = vdwg.mxu0
    %v7920 = vrot.slane %v6855, 4
    %v7921 = vsel %vm290, %v7920, 0
    %7923 = vmatprep.subr.mxu0 0.0
    %7924 = vmatpush1.msra.mxu0 0.0
    %7925 = vmatprep.subr.mxu0 0.0
    %7926 = vmatpush1.msra.mxu0 0.0
    %7927 = vmatprep.subr.mxu0 0.0
    %7928 = vmatpush1.msra.mxu0 0.0
    %7929 = vmatprep.subr.mxu0 0.0
    %7930 = vmatpush1.msra.mxu0 0.0
    %7931 = vmatprep.subr.mxu0 0.0
    %7932 = vmatpush1.msra.mxu0 0.0
    %7933 = vmatprep.subr.mxu0 0.0
    %7934 = vmatpush1.msra.mxu0 0.0
    %7935 = vmatprep.subr.mxu0 0.0
    %7936 = vmatpush1.msra.mxu0 0.0
    %7937 = vmatprep.subr.mxu0 0.0
    %7938 = vmatpush1.msra.mxu0 0.0
    %7939 = vmatprep.subr.mxu0 0.0
    %7940 = vmatpush1.msra.mxu0 0.0
    %7941 = vmatprep.subr.mxu0 0.0
    %7942 = vmatpush1.msra.mxu0 0.0
    %7943 = vmatprep.subr.mxu0 0.0
    %7944 = vmatpush1.msra.mxu0 0.0
    %7945 = vmatprep.subr.mxu0 0.0
    %7946 = vmatpush1.msra.mxu0 0.0
    %7947 = vmatprep.subr.mxu0 0.0
    %7948 = vmatpush1.msra.mxu0 %v7026
    %7949 = vmatprep.subr.mxu0 0.0
    %7950 = vmatpush1.msra.mxu0 %v7025
    %7951 = vmatprep.subr.mxu0 0.0
    %7952 = vmatpush1.msra.mxu0 %v7024
    %7953 = vmatprep.subr.mxu0 0.0
    %7954 = vmatpush1.msra.mxu0 %v7023
    %7955 = vmatprep.subr.mxu0 0.0
    %7956 = vmatpush2.msra.mxu0 0.0
    %7957 = vmatprep.subr.mxu0 0.0
    %7958 = vmatpush2.msra.mxu0 0.0
    %7959 = vmatprep.subr.mxu0 0.0
    %7960 = vmatpush2.msra.mxu0 0.0
    %7961 = vmatprep.subr.mxu0 0.0
    %7962 = vmatpush2.msra.mxu0 0.0
    %7963 = vmatprep.subr.mxu0 0.0
    %7964 = vmatpush2.msra.mxu0 0.0
    %7965 = vmatprep.subr.mxu0 0.0
    %7966 = vmatpush2.msra.mxu0 0.0
    %7967 = vmatprep.subr.mxu0 0.0
    %7968 = vmatpush2.msra.mxu0 0.0
    %7969 = vmatprep.subr.mxu0 0.0
    %7970 = vmatpush2.msra.mxu0 0.0
    %7971 = vmatprep.subr.mxu0 0.0
    %7972 = vmatpush2.msra.mxu0 0.0
    %7973 = vmatprep.subr.mxu0 0.0
    %7974 = vmatpush2.msra.mxu0 0.0
    %7975 = vmatprep.subr.mxu0 0.0
    %7976 = vmatpush2.msra.mxu0 0.0
    %7977 = vmatprep.subr.mxu0 0.0
    %7978 = vmatpush2.msra.mxu0 0.0
    %7979 = vmatprep.subr.mxu0 0.0
    %7980 = vmatpush2.msra.mxu0 0.0
    %7981 = vmatprep.subr.mxu0 0.0
    %7982 = vmatpush2.msra.mxu0 0.0
    %7983 = vmatprep.subr.mxu0 0.0
    %7984 = vmatpush2.msra.mxu0 0.0
    %7985 = vmatprep.subr.mxu0 0.0
    %7986 = vmatpush2.msra.mxu0 0.0
    %7987 = vmatprep.mubr.f32.mxu0 0.0
    %7988 = vmatmul.mubr.f32.gmra.mxu0 %v7921
    %v7989 = vpop.f32.mrf.mxu0
    %v7990 = vadd.f32 %v7699, %v7989
    %v7991 = vpop.f32.mrf.mxu0
    %7992 = vdwg.mxu0
    %v7993 = vrot.slane %v6855, 6
    %v7994 = vsel %vm290, %v7993, 0
    %7996 = vmatprep.subr.mxu0 0.0
    %7997 = vmatpush1.msra.mxu0 0.0
    %7998 = vmatprep.subr.mxu0 0.0
    %7999 = vmatpush1.msra.mxu0 0.0
    %8000 = vmatprep.subr.mxu0 0.0
    %8001 = vmatpush1.msra.mxu0 0.0
    %8002 = vmatprep.subr.mxu0 0.0
    %8003 = vmatpush1.msra.mxu0 0.0
    %8004 = vmatprep.subr.mxu0 0.0
    %8005 = vmatpush1.msra.mxu0 0.0
    %8006 = vmatprep.subr.mxu0 0.0
    %8007 = vmatpush1.msra.mxu0 0.0
    %8008 = vmatprep.subr.mxu0 0.0
    %8009 = vmatpush1.msra.mxu0 0.0
    %8010 = vmatprep.subr.mxu0 0.0
    %8011 = vmatpush1.msra.mxu0 0.0
    %8012 = vmatprep.subr.mxu0 0.0
    %8013 = vmatpush1.msra.mxu0 0.0
    %8014 = vmatprep.subr.mxu0 0.0
    %8015 = vmatpush1.msra.mxu0 0.0
    %8016 = vmatprep.subr.mxu0 0.0
    %8017 = vmatpush1.msra.mxu0 0.0
    %8018 = vmatprep.subr.mxu0 0.0
    %8019 = vmatpush1.msra.mxu0 0.0
    %8020 = vmatprep.subr.mxu0 0.0
    %8021 = vmatpush1.msra.mxu0 %v7109
    %8022 = vmatprep.subr.mxu0 0.0
    %8023 = vmatpush1.msra.mxu0 %v7108
    %8024 = vmatprep.subr.mxu0 0.0
    %8025 = vmatpush1.msra.mxu0 %v7107
    %8026 = vmatprep.subr.mxu0 0.0
    %8027 = vmatpush1.msra.mxu0 %v7106
    %8028 = vmatprep.subr.mxu0 0.0
    %8029 = vmatpush2.msra.mxu0 0.0
    %8030 = vmatprep.subr.mxu0 0.0
    %8031 = vmatpush2.msra.mxu0 0.0
    %8032 = vmatprep.subr.mxu0 0.0
    %8033 = vmatpush2.msra.mxu0 0.0
    %8034 = vmatprep.subr.mxu0 0.0
    %8035 = vmatpush2.msra.mxu0 0.0
    %8036 = vmatprep.subr.mxu0 0.0
    %8037 = vmatpush2.msra.mxu0 0.0
    %8038 = vmatprep.subr.mxu0 0.0
    %8039 = vmatpush2.msra.mxu0 0.0
    %8040 = vmatprep.subr.mxu0 0.0
    %8041 = vmatpush2.msra.mxu0 0.0
    %8042 = vmatprep.subr.mxu0 0.0
    %8043 = vmatpush2.msra.mxu0 0.0
    %8044 = vmatprep.subr.mxu0 0.0
    %8045 = vmatpush2.msra.mxu0 0.0
    %8046 = vmatprep.subr.mxu0 0.0
    %8047 = vmatpush2.msra.mxu0 0.0
    %8048 = vmatprep.subr.mxu0 0.0
    %8049 = vmatpush2.msra.mxu0 0.0
    %8050 = vmatprep.subr.mxu0 0.0
    %8051 = vmatpush2.msra.mxu0 0.0
    %8052 = vmatprep.subr.mxu0 0.0
    %8053 = vmatpush2.msra.mxu0 0.0
    %8054 = vmatprep.subr.mxu0 0.0
    %8055 = vmatpush2.msra.mxu0 0.0
    %8056 = vmatprep.subr.mxu0 0.0
    %8057 = vmatpush2.msra.mxu0 0.0
    %8058 = vmatprep.subr.mxu0 0.0
    %8059 = vmatpush2.msra.mxu0 0.0
    %8060 = vmatprep.mubr.f32.mxu0 0.0
    %8061 = vmatmul.mubr.f32.gmra.mxu0 %v7994
    %v8062 = vpop.f32.mrf.mxu0
    %v8063 = vadd.f32 %v7772, %v8062
    %v8064 = vpop.f32.mrf.mxu0
    %8065 = vdwg.mxu0
    %v8066 = vadd.f32 %v7844, %v7917
    %v8067 = vadd.f32 %v7990, %v8063
    %v8068 = vadd.f32 %v8066, %v8067
    %v8070 = vrot.slane %v8068, 7
    %vm8072 = vcmask 1040384
    %v8073 = vsel %vm8072, %v7481, %v8070
    %v8074 = vld [vmem:[%s7] sm:$0x1]
    %v8076 = vlaneseq
    %v8077 = vshrl.u32 %v8076, 7
    %v8078 = vsub.s32 0, %v8077
    %v8079 = vrot.slane %v8074, %v8078
    %v8081 = vadd.f32 %v8073, %v8079
    %v8082 = vmax.f32 %v8081, 0.0
    %v8083 = vld [vmem:[%s13] sm:$0xff]
    %v8084 = vld [vmem:[%s13 + $0x8] sm:$0xff]
    %v8085 = vld [vmem:[%s13 + $0x10] sm:$0xff]
    %v8086 = vld [vmem:[%s13 + $0x18] sm:$0xff]
    %v8087 = vld [vmem:[%s13 + $0x20] sm:$0xff]
    %v8088 = vld [vmem:[%s13 + $0x28] sm:$0xff]
    %v8089 = vld [vmem:[%s13 + $0x30] sm:$0xff]
    %v8090 = vld [vmem:[%s13 + $0x38] sm:$0xff]
    %v8091 = vld [vmem:[%s11] sm:$0x1]
    %v8093 = vlaneseq
    %v8094 = vshrl.u32 %v8093, 7
    %v8095 = vsub.s32 0, %v8094
    %v8096 = vrot.slane %v8091, %v8095
    %v8099 = vsel %vm3481, %v8082, 0
    %8101 = vmatprep.subr.mxu0 0.0
    %8102 = vmatpush1.msra.mxu0 0.0
    %8103 = vmatprep.subr.mxu0 0.0
    %8104 = vmatpush1.msra.mxu0 0.0
    %8105 = vmatprep.subr.mxu0 0.0
    %8106 = vmatpush1.msra.mxu0 0.0
    %8107 = vmatprep.subr.mxu0 0.0
    %8108 = vmatpush1.msra.mxu0 0.0
    %8109 = vmatprep.subr.mxu0 0.0
    %8110 = vmatpush1.msra.mxu0 0.0
    %8111 = vmatprep.subr.mxu0 0.0
    %8112 = vmatpush1.msra.mxu0 0.0
    %8113 = vmatprep.subr.mxu0 0.0
    %8114 = vmatpush1.msra.mxu0 0.0
    %8115 = vmatprep.subr.mxu0 0.0
    %8116 = vmatpush1.msra.mxu0 0.0
    %8117 = vmatprep.subr.mxu0 0.0
    %8118 = vmatpush1.msra.mxu0 %v8090
    %8119 = vmatprep.subr.mxu0 0.0
    %8120 = vmatpush1.msra.mxu0 %v8089
    %8121 = vmatprep.subr.mxu0 0.0
    %8122 = vmatpush1.msra.mxu0 %v8088
    %8123 = vmatprep.subr.mxu0 0.0
    %8124 = vmatpush1.msra.mxu0 %v8087
    %8125 = vmatprep.subr.mxu0 0.0
    %8126 = vmatpush1.msra.mxu0 %v8086
    %8127 = vmatprep.subr.mxu0 0.0
    %8128 = vmatpush1.msra.mxu0 %v8085
    %8129 = vmatprep.subr.mxu0 0.0
    %8130 = vmatpush1.msra.mxu0 %v8084
    %8131 = vmatprep.subr.mxu0 0.0
    %8132 = vmatpush1.msra.mxu0 %v8083
    %8133 = vmatprep.subr.mxu0 0.0
    %8134 = vmatpush2.msra.mxu0 0.0
    %8135 = vmatprep.subr.mxu0 0.0
    %8136 = vmatpush2.msra.mxu0 0.0
    %8137 = vmatprep.subr.mxu0 0.0
    %8138 = vmatpush2.msra.mxu0 0.0
    %8139 = vmatprep.subr.mxu0 0.0
    %8140 = vmatpush2.msra.mxu0 0.0
    %8141 = vmatprep.subr.mxu0 0.0
    %8142 = vmatpush2.msra.mxu0 0.0
    %8143 = vmatprep.subr.mxu0 0.0
    %8144 = vmatpush2.msra.mxu0 0.0
    %8145 = vmatprep.subr.mxu0 0.0
    %8146 = vmatpush2.msra.mxu0 0.0
    %8147 = vmatprep.subr.mxu0 0.0
    %8148 = vmatpush2.msra.mxu0 0.0
    %8149 = vmatprep.subr.mxu0 0.0
    %8150 = vmatpush2.msra.mxu0 0.0
    %8151 = vmatprep.subr.mxu0 0.0
    %8152 = vmatpush2.msra.mxu0 0.0
    %8153 = vmatprep.subr.mxu0 0.0
    %8154 = vmatpush2.msra.mxu0 0.0
    %8155 = vmatprep.subr.mxu0 0.0
    %8156 = vmatpush2.msra.mxu0 0.0
    %8157 = vmatprep.subr.mxu0 0.0
    %8158 = vmatpush2.msra.mxu0 0.0
    %8159 = vmatprep.subr.mxu0 0.0
    %8160 = vmatpush2.msra.mxu0 0.0
    %8161 = vmatprep.subr.mxu0 0.0
    %8162 = vmatpush2.msra.mxu0 0.0
    %8163 = vmatprep.subr.mxu0 0.0
    %8164 = vmatpush2.msra.mxu0 0.0
    %8165 = vmatprep.mubr.f32.mxu0 0.0
    %8166 = vmatmul.mubr.f32.gmra.mxu0 %v8099
    %v8167 = vpop.f32.mrf.mxu0
    %v8168 = vadd.f32 %v8096, %v8167
    %v8169 = vpop.f32.mrf.mxu0
    %8170 = vdwg.mxu0
    %v8171 = vmax.f32 %v8168, 0.0
    %v8172 = vld [vmem:[%s17] sm:$0xff]
    %v8173 = vld [vmem:[%s17 + $0x8] sm:$0xff]
    %v8174 = vld [vmem:[%s17 + $0x10] sm:$0xff]
    %v8175 = vld [vmem:[%s17 + $0x18] sm:$0xff]
    %v8176 = vld [vmem:[%s17 + $0x20] sm:$0xff]
    %v8177 = vld [vmem:[%s17 + $0x28] sm:$0xff]
    %v8178 = vld [vmem:[%s17 + $0x30] sm:$0xff]
    %v8179 = vld [vmem:[%s17 + $0x38] sm:$0xff]
    %v8180 = vld [vmem:[%s15] sm:$0x1]
    %v8182 = vlaneseq
    %v8183 = vshrl.u32 %v8182, 7
    %v8184 = vsub.s32 0, %v8183
    %v8185 = vrot.slane %v8180, %v8184
    %v8188 = vsel %vm3481, %v8171, 0
    %8190 = vmatprep.subr.mxu0 0.0
    %8191 = vmatpush1.msra.mxu0 0.0
    %8192 = vmatprep.subr.mxu0 0.0
    %8193 = vmatpush1.msra.mxu0 0.0
    %8194 = vmatprep.subr.mxu0 0.0
    %8195 = vmatpush1.msra.mxu0 0.0
    %8196 = vmatprep.subr.mxu0 0.0
    %8197 = vmatpush1.msra.mxu0 0.0
    %8198 = vmatprep.subr.mxu0 0.0
    %8199 = vmatpush1.msra.mxu0 0.0
    %8200 = vmatprep.subr.mxu0 0.0
    %8201 = vmatpush1.msra.mxu0 0.0
    %8202 = vmatprep.subr.mxu0 0.0
    %8203 = vmatpush1.msra.mxu0 0.0
    %8204 = vmatprep.subr.mxu0 0.0
    %8205 = vmatpush1.msra.mxu0 0.0
    %8206 = vmatprep.subr.mxu0 0.0
    %8207 = vmatpush1.msra.mxu0 %v8179
    %8208 = vmatprep.subr.mxu0 0.0
    %8209 = vmatpush1.msra.mxu0 %v8178
    %8210 = vmatprep.subr.mxu0 0.0
    %8211 = vmatpush1.msra.mxu0 %v8177
    %8212 = vmatprep.subr.mxu0 0.0
    %8213 = vmatpush1.msra.mxu0 %v8176
    %8214 = vmatprep.subr.mxu0 0.0
    %8215 = vmatpush1.msra.mxu0 %v8175
    %8216 = vmatprep.subr.mxu0 0.0
    %8217 = vmatpush1.msra.mxu0 %v8174
    %8218 = vmatprep.subr.mxu0 0.0
    %8219 = vmatpush1.msra.mxu0 %v8173
    %8220 = vmatprep.subr.mxu0 0.0
    %8221 = vmatpush1.msra.mxu0 %v8172
    %8222 = vmatprep.subr.mxu0 0.0
    %8223 = vmatpush2.msra.mxu0 0.0
    %8224 = vmatprep.subr.mxu0 0.0
    %8225 = vmatpush2.msra.mxu0 0.0
    %8226 = vmatprep.subr.mxu0 0.0
    %8227 = vmatpush2.msra.mxu0 0.0
    %8228 = vmatprep.subr.mxu0 0.0
    %8229 = vmatpush2.msra.mxu0 0.0
    %8230 = vmatprep.subr.mxu0 0.0
    %8231 = vmatpush2.msra.mxu0 0.0
    %8232 = vmatprep.subr.mxu0 0.0
    %8233 = vmatpush2.msra.mxu0 0.0
    %8234 = vmatprep.subr.mxu0 0.0
    %8235 = vmatpush2.msra.mxu0 0.0
    %8236 = vmatprep.subr.mxu0 0.0
    %8237 = vmatpush2.msra.mxu0 0.0
    %8238 = vmatprep.subr.mxu0 0.0
    %8239 = vmatpush2.msra.mxu0 0.0
    %8240 = vmatprep.subr.mxu0 0.0
    %8241 = vmatpush2.msra.mxu0 0.0
    %8242 = vmatprep.subr.mxu0 0.0
    %8243 = vmatpush2.msra.mxu0 0.0
    %8244 = vmatprep.subr.mxu0 0.0
    %8245 = vmatpush2.msra.mxu0 0.0
    %8246 = vmatprep.subr.mxu0 0.0
    %8247 = vmatpush2.msra.mxu0 0.0
    %8248 = vmatprep.subr.mxu0 0.0
    %8249 = vmatpush2.msra.mxu0 0.0
    %8250 = vmatprep.subr.mxu0 0.0
    %8251 = vmatpush2.msra.mxu0 0.0
    %8252 = vmatprep.subr.mxu0 0.0
    %8253 = vmatpush2.msra.mxu0 0.0
    %8254 = vmatprep.mubr.f32.mxu0 0.0
    %8255 = vmatmul.mubr.f32.gmra.mxu0 %v8188
    %v8256 = vpop.f32.mrf.mxu0
    %v8257 = vadd.f32 %v8185, %v8256
    %v8258 = vpop.f32.mrf.mxu0
    %8259 = vdwg.mxu0
    %v8260 = vmax.f32 %v8257, 0.0
    %v8261 = vld [vmem:[%s21] sm:$0xff]
    %v8262 = vld [vmem:[%s21 + $0x8] sm:$0xff]
    %v8263 = vld [vmem:[%s21 + $0x10] sm:$0xff]
    %v8264 = vld [vmem:[%s21 + $0x18] sm:$0xff]
    %v8265 = vld [vmem:[%s19] sm:$0x1]
    %v8267 = vlaneseq
    %v8268 = vshrl.u32 %v8267, 7
    %v8269 = vsub.s32 0, %v8268
    %v8270 = vrot.slane %v8265, %v8269
    %v8273 = vsel %vm290, %v8260, 0
    %8275 = vmatprep.subr.mxu0 0.0
    %8276 = vmatpush1.msra.mxu0 0.0
    %8277 = vmatprep.subr.mxu0 0.0
    %8278 = vmatpush1.msra.mxu0 0.0
    %8279 = vmatprep.subr.mxu0 0.0
    %8280 = vmatpush1.msra.mxu0 0.0
    %8281 = vmatprep.subr.mxu0 0.0
    %8282 = vmatpush1.msra.mxu0 0.0
    %8283 = vmatprep.subr.mxu0 0.0
    %8284 = vmatpush1.msra.mxu0 0.0
    %8285 = vmatprep.subr.mxu0 0.0
    %8286 = vmatpush1.msra.mxu0 0.0
    %8287 = vmatprep.subr.mxu0 0.0
    %8288 = vmatpush1.msra.mxu0 0.0
    %8289 = vmatprep.subr.mxu0 0.0
    %8290 = vmatpush1.msra.mxu0 0.0
    %8291 = vmatprep.subr.mxu0 0.0
    %8292 = vmatpush1.msra.mxu0 0.0
    %8293 = vmatprep.subr.mxu0 0.0
    %8294 = vmatpush1.msra.mxu0 0.0
    %8295 = vmatprep.subr.mxu0 0.0
    %8296 = vmatpush1.msra.mxu0 0.0
    %8297 = vmatprep.subr.mxu0 0.0
    %8298 = vmatpush1.msra.mxu0 0.0
    %8299 = vmatprep.subr.mxu0 0.0
    %8300 = vmatpush1.msra.mxu0 %v8264
    %8301 = vmatprep.subr.mxu0 0.0
    %8302 = vmatpush1.msra.mxu0 %v8263
    %8303 = vmatprep.subr.mxu0 0.0
    %8304 = vmatpush1.msra.mxu0 %v8262
    %8305 = vmatprep.subr.mxu0 0.0
    %8306 = vmatpush1.msra.mxu0 %v8261
    %8307 = vmatprep.subr.mxu0 0.0
    %8308 = vmatpush2.msra.mxu0 0.0
    %8309 = vmatprep.subr.mxu0 0.0
    %8310 = vmatpush2.msra.mxu0 0.0
    %8311 = vmatprep.subr.mxu0 0.0
    %8312 = vmatpush2.msra.mxu0 0.0
    %8313 = vmatprep.subr.mxu0 0.0
    %8314 = vmatpush2.msra.mxu0 0.0
    %8315 = vmatprep.subr.mxu0 0.0
    %8316 = vmatpush2.msra.mxu0 0.0
    %8317 = vmatprep.subr.mxu0 0.0
    %8318 = vmatpush2.msra.mxu0 0.0
    %8319 = vmatprep.subr.mxu0 0.0
    %8320 = vmatpush2.msra.mxu0 0.0
    %8321 = vmatprep.subr.mxu0 0.0
    %8322 = vmatpush2.msra.mxu0 0.0
    %8323 = vmatprep.subr.mxu0 0.0
    %8324 = vmatpush2.msra.mxu0 0.0
    %8325 = vmatprep.subr.mxu0 0.0
    %8326 = vmatpush2.msra.mxu0 0.0
    %8327 = vmatprep.subr.mxu0 0.0
    %8328 = vmatpush2.msra.mxu0 0.0
    %8329 = vmatprep.subr.mxu0 0.0
    %8330 = vmatpush2.msra.mxu0 0.0
    %8331 = vmatprep.subr.mxu0 0.0
    %8332 = vmatpush2.msra.mxu0 0.0
    %8333 = vmatprep.subr.mxu0 0.0
    %8334 = vmatpush2.msra.mxu0 0.0
    %8335 = vmatprep.subr.mxu0 0.0
    %8336 = vmatpush2.msra.mxu0 0.0
    %8337 = vmatprep.subr.mxu0 0.0
    %8338 = vmatpush2.msra.mxu0 0.0
    %8339 = vmatprep.mubr.f32.mxu0 0.0
    %8340 = vmatmul.mubr.f32.gmra.mxu0 %v8273
    %v8341 = vpop.f32.mrf.mxu0
    %v8342 = vadd.f32 %v8270, %v8341
    %v8343 = vpop.f32.mrf.mxu0
    %8344 = vdwg.mxu0
    %v8345 = vmax.f32 %v8342, 0.0
    %v8346 = vld [vmem:[%s25] sm:$0xff]
    %v8347 = vld [vmem:[%s25 + $0x8] sm:$0xff]
    %v8348 = vld [vmem:[%s23] sm:$0x1]
    %v8350 = vlaneseq
    %v8351 = vshrl.u32 %v8350, 7
    %v8352 = vsub.s32 0, %v8351
    %v8353 = vrot.slane %v8348, %v8352
    %vm8355 = vcmask 130048
    %v8357 = vsel %vm8355, %v8345, 0
    %8359 = vmatprep.subr.mxu0 0.0
    %8360 = vmatpush1.msra.mxu0 0.0
    %8361 = vmatprep.subr.mxu0 0.0
    %8362 = vmatpush1.msra.mxu0 0.0
    %8363 = vmatprep.subr.mxu0 0.0
    %8364 = vmatpush1.msra.mxu0 0.0
    %8365 = vmatprep.subr.mxu0 0.0
    %8366 = vmatpush1.msra.mxu0 0.0
    %8367 = vmatprep.subr.mxu0 0.0
    %8368 = vmatpush1.msra.mxu0 0.0
    %8369 = vmatprep.subr.mxu0 0.0
    %8370 = vmatpush1.msra.mxu0 0.0
    %8371 = vmatprep.subr.mxu0 0.0
    %8372 = vmatpush1.msra.mxu0 0.0
    %8373 = vmatprep.subr.mxu0 0.0
    %8374 = vmatpush1.msra.mxu0 0.0
    %8375 = vmatprep.subr.mxu0 0.0
    %8376 = vmatpush1.msra.mxu0 0.0
    %8377 = vmatprep.subr.mxu0 0.0
    %8378 = vmatpush1.msra.mxu0 0.0
    %8379 = vmatprep.subr.mxu0 0.0
    %8380 = vmatpush1.msra.mxu0 0.0
    %8381 = vmatprep.subr.mxu0 0.0
    %8382 = vmatpush1.msra.mxu0 0.0
    %8383 = vmatprep.subr.mxu0 0.0
    %8384 = vmatpush1.msra.mxu0 0.0
    %8385 = vmatprep.subr.mxu0 0.0
    %8386 = vmatpush1.msra.mxu0 0.0
    %8387 = vmatprep.subr.mxu0 0.0
    %8388 = vmatpush1.msra.mxu0 %v8347
    %8389 = vmatprep.subr.mxu0 0.0
    %8390 = vmatpush1.msra.mxu0 %v8346
    %8391 = vmatprep.subr.mxu0 0.0
    %8392 = vmatpush2.msra.mxu0 0.0
    %8393 = vmatprep.subr.mxu0 0.0
    %8394 = vmatpush2.msra.mxu0 0.0
    %8395 = vmatprep.subr.mxu0 0.0
    %8396 = vmatpush2.msra.mxu0 0.0
    %8397 = vmatprep.subr.mxu0 0.0
    %8398 = vmatpush2.msra.mxu0 0.0
    %8399 = vmatprep.subr.mxu0 0.0
    %8400 = vmatpush2.msra.mxu0 0.0
    %8401 = vmatprep.subr.mxu0 0.0
    %8402 = vmatpush2.msra.mxu0 0.0
    %8403 = vmatprep.subr.mxu0 0.0
    %8404 = vmatpush2.msra.mxu0 0.0
    %8405 = vmatprep.subr.mxu0 0.0
    %8406 = vmatpush2.msra.mxu0 0.0
    %8407 = vmatprep.subr.mxu0 0.0
    %8408 = vmatpush2.msra.mxu0 0.0
    %8409 = vmatprep.subr.mxu0 0.0
    %8410 = vmatpush2.msra.mxu0 0.0
    %8411 = vmatprep.subr.mxu0 0.0
    %8412 = vmatpush2.msra.mxu0 0.0
    %8413 = vmatprep.subr.mxu0 0.0
    %8414 = vmatpush2.msra.mxu0 0.0
    %8415 = vmatprep.subr.mxu0 0.0
    %8416 = vmatpush2.msra.mxu0 0.0
    %8417 = vmatprep.subr.mxu0 0.0
    %8418 = vmatpush2.msra.mxu0 0.0
    %8419 = vmatprep.subr.mxu0 0.0
    %8420 = vmatpush2.msra.mxu0 0.0
    %8421 = vmatprep.subr.mxu0 0.0
    %8422 = vmatpush2.msra.mxu0 0.0
    %8423 = vmatprep.mubr.f32.mxu0 0.0
    %8424 = vmatmul.mubr.f32.gmra.mxu0 %v8357
    %v8425 = vpop.f32.mrf.mxu0
    %v8426 = vadd.f32 %v8353, %v8425
    %v8427 = vpop.f32.mrf.mxu0
    %8428 = vdwg.mxu0
    %vm8429 = vcmask 25600
    %8430 = vst.msk [vmem:[#allocation2] sm:$0x3] %vm8429, %v8426
    // Predicated region
    $region182: #{dqn_forward.1} parent=1 // pred_check
      _
    $region183: #{dqn_forward.1} parent=1 // pred_check_branch
      %8432 = sbr.rel (0) target = $region185
    $region184: #{dqn_forward.1} parent=1 // pred_region
      %s8434 = ssub.s32 32, 32
      %8435 = vsyncadd [#allocation3], %s8434
      %s8437 = sshll.u32 [#allocation2], 4
      %s8438 = int_to_ptr.vmem [resolvable:$true] %s8437
      %8440 = dma.vmem_to_hbm [thread:$0]  %s8438, 32, %s91, [#allocation3]
    $region185: #{dqn_forward.1} parent=1 // pred_fallthru
      _
    // Predicated region
    $region186: #{dqn_forward.1} parent=1 // pred_check
      _
    $region187: #{dqn_forward.1} parent=1 // pred_check_branch
      %8442 = sbr.rel (0) target = $region189
    $region188: #{dqn_forward.1} parent=1 // pred_region
      %8443 = dma.done [#allocation3], 32
    $region189: #{dqn_forward.1} parent=1 // pred_fallthru
      _
    %8444 = vsyncpa [#allocation3], 1

</llo_original>
